<compile_context>
chip_gen: v7x
topology: tpu7x:2x2x1
jax: 0.10.0
libtpu: 0.0.40
codegen_flags: <defaults>
</compile_context>

<pallas_src>
import jax
import jax.numpy as jnp
import numpy as np
from jax.experimental import pallas as pl
from jax.experimental.pallas import tpu as pltpu


# ---------------------------------------------------------------------------
# In-kernel helpers (operate on jnp values already resident in VMEM/vregs).
# ---------------------------------------------------------------------------
def _shift_prev(x, axis):
    n = x.shape[axis]
    first = jax.lax.slice_in_dim(x, 0, 1, axis=axis)
    body = jax.lax.slice_in_dim(x, 0, n - 1, axis=axis)
    return jnp.concatenate([first, body], axis=axis)


def _shift_next(x, axis):
    n = x.shape[axis]
    body = jax.lax.slice_in_dim(x, 1, n, axis=axis)
    last = jax.lax.slice_in_dim(x, n - 1, n, axis=axis)
    return jnp.concatenate([body, last], axis=axis)


def _upsample_axis_bilinear(x, scale, axis):
    """PyTorch nn.Upsample(mode='bilinear', align_corners=False) along one axis
    (integer scale factor): edge-replicated shifts + weighted adds (VPU work),
    then a static interleave."""
    if scale == 1:
        return x
    xp = _shift_prev(x, axis)
    xn = _shift_next(x, axis)
    phases = []
    for r in range(scale):
        f = (r + 0.5) / scale - 0.5            # source offset of output phase r
        if f >= 0:
            phases.append((1.0 - f) * x + f * xn)
        else:
            phases.append((1.0 + f) * x + (-f) * xp)
    y = jnp.stack(phases, axis=axis + 1)       # (..., n, scale, ...)
    new_shape = x.shape[:axis] + (x.shape[axis] * scale,) + x.shape[axis + 1:]
    return y.reshape(new_shape)


def _upsample_bilinear_2d(x_hwc, scale):
    x = _upsample_axis_bilinear(x_hwc, scale, axis=0)
    x = _upsample_axis_bilinear(x, scale, axis=1)
    return x


def _conv2d_same(x_hwc, w_hwio, b):
    """Conv2d(stride=1, padding='same', zero pad) + bias as ONE im2col MXU matmul."""
    H, W, Cin = x_hwc.shape
    kh, kw, _, Cout = w_hwio.shape
    ph0, ph1 = (kh - 1) // 2, (kh - 1) - (kh - 1) // 2   # PyTorch 'same' split
    pw0, pw1 = (kw - 1) // 2, (kw - 1) - (kw - 1) // 2

    xp = x_hwc
    if ph0 or ph1:
        rows = []
        if ph0:
            rows.append(jnp.zeros((ph0, W, Cin), xp.dtype))
        rows.append(xp)
        if ph1:
            rows.append(jnp.zeros((ph1, W, Cin), xp.dtype))
        xp = jnp.concatenate(rows, axis=0)
    if pw0 or pw1:
        Hp = H + ph0 + ph1
        cols_ = []
        if pw0:
            cols_.append(jnp.zeros((Hp, pw0, Cin), xp.dtype))
        cols_.append(xp)
        if pw1:
            cols_.append(jnp.zeros((Hp, pw1, Cin), xp.dtype))
        xp = jnp.concatenate(cols_, axis=1)

    # im2col -> single (H*W, kh*kw*Cin) @ (kh*kw*Cin, Cout) matmul.
    taps = []
    for ki in range(kh):
        for kj in range(kw):
            taps.append(jax.lax.slice(xp, (ki, kj, 0), (ki + H, kj + W, Cin)))
    cols = jnp.concatenate(taps, axis=-1).reshape(H * W, kh * kw * Cin)
    wmat = w_hwio.reshape(kh * kw * Cin, Cout)
    acc = jax.lax.dot_general(cols, wmat, (((1,), (0,)), ((), ())),
                              preferred_element_type=jnp.float32,
                              precision=jax.lax.Precision.HIGHEST)
    return acc.reshape(H, W, Cout) + b[None, None, :]


def _make_decoder_kernel(num_layers, num_skips, upsample_per_layer, neg_slope):
    """Builds the fused per-sample decoder kernel (all config is static)."""
    def kernel(*refs):
        x_ref = refs[0]
        skip_refs = refs[1:1 + num_skips]
        wb_refs = refs[1 + num_skips:1 + num_skips + 2 * num_layers]
        o_ref = refs[-1]

        x = x_ref[0].astype(jnp.float32)                       # (h, w, C)
        si = 0
        for i in range(num_layers):
            s = int(upsample_per_layer[i]) if upsample_per_layer[i] else 0
            if s:
                x = _upsample_bilinear_2d(x, s)                # bilinear upsample x s
                skip = skip_refs[si][0].astype(jnp.float32)
                si += 1
                x = jnp.concatenate([x, skip], axis=-1)        # cat([x, x_cat.pop()], C)
            w = wb_refs[2 * i][...].astype(jnp.float32)
            bias = wb_refs[2 * i + 1][0].astype(jnp.float32)
            x = _conv2d_same(x, w, bias)
            x = jnp.where(x >= 0, x, neg_slope * x)            # LeakyReLU(0.01)
        H, W, C = x.shape
        o_ref[0] = x.reshape(H, W * C).astype(o_ref.dtype)     # lane-dense store
    return kernel


# ---------------------------------------------------------------------------
# Wrapper: PyTorch-style NCHW in / NCHW out, single fused pallas_call.
# ---------------------------------------------------------------------------
def cnn_decoder_forward(x_nchw, x_cat_nchw, params, upsample_per_layer,
                        neg_slope=0.01):
    num_layers = len(params)
    assert len(upsample_per_layer) == num_layers

    # NCHW -> NHWC once at the boundary (C maps to the TPU lane dim).
    x = jnp.transpose(x_nchw, (0, 2, 3, 1))
    # Skip maps in consumption order (forward pops x_cat from the end).
    skips_all = [jnp.transpose(t, (0, 2, 3, 1)) for t in reversed(list(x_cat_nchw))]
    num_skips = sum(1 for s in upsample_per_layer if s)
    skips = skips_all[:num_skips]

    N = x.shape[0]
    # Static output-shape propagation.
    Hc, Wc, Cout = x.shape[1], x.shape[2], x.shape[3]
    for i, (wgt, _) in enumerate(params):
        if upsample_per_layer[i]:
            s = int(upsample_per_layer[i])
            Hc *= s
            Wc *= s
        Cout = wgt.shape[-1]

    in_arrays = [x]
    in_specs = [pl.BlockSpec((1,) + x.shape[1:], lambda n: (n, 0, 0, 0))]
    for sk in skips:
        in_arrays.append(sk)
        in_specs.append(pl.BlockSpec((1,) + sk.shape[1:], lambda n: (n, 0, 0, 0)))
    for wgt, bias in params:
        b2 = bias.reshape(1, -1)
        in_arrays += [wgt, b2]
        in_specs += [pl.BlockSpec(wgt.shape, lambda n: (0, 0, 0, 0)),
                     pl.BlockSpec(b2.shape, lambda n: (0, 0))]

    kernel = _make_decoder_kernel(num_layers, num_skips,
                                  tuple(upsample_per_layer), neg_slope)
    out = pl.pallas_call(
        kernel,
        out_shape=jax.ShapeDtypeStruct((N, Hc, Wc * Cout), x.dtype),
        grid=(N,),
        in_specs=in_specs,
        out_specs=pl.BlockSpec((1, Hc, Wc * Cout), lambda n: (n, 0, 0)),
        compiler_params=pltpu.CompilerParams(dimension_semantics=("parallel",)),
    )(*in_arrays)

    # lane-dense (N, H, W*C) -> (N, C, H, W)
    return jnp.transpose(out.reshape(N, Hc, Wc, Cout), (0, 3, 1, 2))


# ---------------------------------------------------------------------------
# Parameter init mirroring the PyTorch module construction.
# ---------------------------------------------------------------------------
def init_decoder_params(key, input_shape, out_channels_per_layer,
                        kernel_sizes_per_layer, upsample_per_layer):
    c0, _, _ = input_shape
    in_features = c0 * 2                       # first conv sees cat([up(x), skip])
    num_layers = len(out_channels_per_layer)
    params = []
    for i in range(num_layers):
        if i + 1 < num_layers and upsample_per_layer[i + 1]:
            out_ch = out_channels_per_layer[i] // 2
        else:
            out_ch = out_channels_per_layer[i]
        k = kernel_sizes_per_layer[i]
        key, kw_, kb_ = jax.random.split(key, 3)
        fan_in = in_features * k * k
        bound = 1.0 / float(np.sqrt(fan_in))
        w = jax.random.uniform(kw_, (k, k, in_features, out_ch), jnp.float32,
                               -bound, bound)                  # HWIO layout
        b = jax.random.uniform(kb_, (out_ch,), jnp.float32, -bound, bound)
        params.append((w, b))
        in_features = out_channels_per_layer[i]
    return params


# ---------------------------------------------------------------------------
# Independent pure-JAX reference for a sanity check.
# ---------------------------------------------------------------------------
def _upsample_matrix(n_in, scale):
    n_out = n_in * scale
    U = np.zeros((n_out, n_in), np.float32)
    for i in range(n_out):
        src = max((i + 0.5) / scale - 0.5, 0.0)
        i0 = min(int(np.floor(src)), n_in - 1)
        i1 = min(i0 + 1, n_in - 1)
        lam = src - i0
        U[i, i0] += 1.0 - lam
        U[i, i1] += lam
    return jnp.asarray(U)


def reference_decoder_forward(x_nchw, x_cat, params, upsample_per_layer,
                              neg_slope=0.01):
    x = x_nchw
    cat = list(x_cat)
    for i, (w, b) in enumerate(params):
        if upsample_per_layer[i]:
            s = int(upsample_per_layer[i])
            _, _, H, W = x.shape
            Uh = _upsample_matrix(H, s)
            Uw = _upsample_matrix(W, s)
            x = jnp.einsum('ph,nchw->ncpw', Uh, x,
                           precision=jax.lax.Precision.HIGHEST)
            x = jnp.einsum('qw,ncpw->ncpq', Uw, x,
                           precision=jax.lax.Precision.HIGHEST)
            x = jnp.concatenate([x, cat.pop()], axis=1)
        kh, kw = w.shape[0], w.shape[1]
        pads = [((kh - 1) // 2, (kh - 1) - (kh - 1) // 2),
                ((kw - 1) // 2, (kw - 1) - (kw - 1) // 2)]
        x = jax.lax.conv_general_dilated(
            x, w, window_strides=(1, 1), padding=pads,
            dimension_numbers=('NCHW', 'HWIO', 'NCHW'),
            precision=jax.lax.Precision.HIGHEST)
        x = x + b[None, :, None, None]
        x = jnp.where(x >= 0, x, neg_slope * x)
    return x


if __name__ == "__main__":
    key = jax.random.PRNGKey(0)
    k_x, k_s0, k_s1, k_p = jax.random.split(key, 4)

    # Decoder config matching a small U-Net bottleneck: input (C=16, 4, 4),
    # two (upsample x2 -> conv 3x3 -> LeakyReLU) layers -> output (8, 16, 16).
    input_shape = (16, 4, 4)                  # (C, H, W)
    out_channels_per_layer = [16, 8]
    kernel_sizes_per_layer = [3, 3]
    upsample_per_layer = [2, 2]
    N = 2

    params = init_decoder_params(k_p, input_shape, out_channels_per_layer,
                                 kernel_sizes_per_layer, upsample_per_layer)

    x = jax.random.normal(k_x, (N, *input_shape), jnp.float32)        # (2,16,4,4)
    # Encoder skip maps; forward pops from the end: first the (16,8,8) map,
    # then the (8,16,16) map.
    x_cat = [jax.random.normal(k_s0, (N, 8, 16, 16), jnp.float32),
             jax.random.normal(k_s1, (N, 16, 8, 8), jnp.float32)]

    out = cnn_decoder_forward(x, x_cat, params, upsample_per_layer)
    out = jax.block_until_ready(out)
    assert out.shape == (N, 8, 16, 16), out.shape

    ref = jax.block_until_ready(
        reference_decoder_forward(x, x_cat, params, upsample_per_layer))
    # Loose tolerance only to accommodate MXU / matmul-precision differences.
    np.testing.assert_allclose(np.asarray(out), np.asarray(ref),
                               rtol=2e-2, atol=2e-2)

    print("KERNEL_OK")
</pallas_src>

<mosaic_0001>
module attributes {stable_mosaic.version = 11 : i64} {
  func.func @kernel(%arg0: i32, %arg1: memref<1x4x4x16xf32, #tpu.memory_space<vmem>>, %arg2: memref<1x8x8x16xf32, #tpu.memory_space<vmem>>, %arg3: memref<1x16x16x8xf32, #tpu.memory_space<vmem>>, %arg4: memref<3x3x32x8xf32, #tpu.memory_space<vmem>>, %arg5: memref<1x8xf32, #tpu.memory_space<vmem>>, %arg6: memref<3x3x16x8xf32, #tpu.memory_space<vmem>>, %arg7: memref<1x8xf32, #tpu.memory_space<vmem>>, %arg8: memref<1x16x128xf32, #tpu.memory_space<vmem>>) attributes {dimension_semantics = [#tpu.dimension_semantics<parallel>], iteration_bounds = array<i64: 2>, scalar_prefetch = 0 : i64, scratch_operands = 0 : i64, tpu.core_type = #tpu.core_type<tc>, window_params = [{transform_indices = @transform_0, window_bounds = array<i64: 1, 4, 4, 16>}, {transform_indices = @transform_1, window_bounds = array<i64: 1, 8, 8, 16>}, {transform_indices = @transform_2, window_bounds = array<i64: 1, 16, 16, 8>}, {pipeline_mode = #tpu.pipeline_mode<synchronous>, transform_indices = @transform_3, window_bounds = array<i64: 3, 3, 32, 8>}, {pipeline_mode = #tpu.pipeline_mode<synchronous>, transform_indices = @transform_4, window_bounds = array<i64: 1, 8>}, {pipeline_mode = #tpu.pipeline_mode<synchronous>, transform_indices = @transform_5, window_bounds = array<i64: 3, 3, 16, 8>}, {pipeline_mode = #tpu.pipeline_mode<synchronous>, transform_indices = @transform_6, window_bounds = array<i64: 1, 8>}, {transform_indices = @transform_7, window_bounds = array<i64: 1, 16, 128>}]} {
    %c0 = arith.constant 0 : index
    %c0_0 = arith.constant 0 : index
    %c0_1 = arith.constant 0 : index
    %c0_2 = arith.constant 0 : index
    %0 = vector.load %arg1[%c0, %c0_0, %c0_1, %c0_2] : memref<1x4x4x16xf32, #tpu.memory_space<vmem>>, vector<1x4x4x16xf32>
    %1 = vector.shape_cast %0 : vector<1x4x4x16xf32> to vector<4x4x16xf32>
    %2 = vector.extract_strided_slice %1 {offsets = [0, 0, 0], sizes = [1, 4, 16], strides = [1, 1, 1]} : vector<4x4x16xf32> to vector<1x4x16xf32>
    %3 = vector.extract_strided_slice %1 {offsets = [0, 0, 0], sizes = [3, 4, 16], strides = [1, 1, 1]} : vector<4x4x16xf32> to vector<3x4x16xf32>
    %4 = tpu.concatenate %2, %3 in 0 : vector<1x4x16xf32>, vector<3x4x16xf32> -> vector<4x4x16xf32>
    %5 = vector.extract_strided_slice %1 {offsets = [1, 0, 0], sizes = [3, 4, 16], strides = [1, 1, 1]} : vector<4x4x16xf32> to vector<3x4x16xf32>
    %6 = vector.extract_strided_slice %1 {offsets = [3, 0, 0], sizes = [1, 4, 16], strides = [1, 1, 1]} : vector<4x4x16xf32> to vector<1x4x16xf32>
    %7 = tpu.concatenate %5, %6 in 0 : vector<3x4x16xf32>, vector<1x4x16xf32> -> vector<4x4x16xf32>
    %cst = arith.constant 7.500000e-01 : f32
    %8 = vector.broadcast %cst : f32 to vector<4x4x16xf32>
    %9 = arith.mulf %8, %1 : vector<4x4x16xf32>
    %cst_3 = arith.constant 2.500000e-01 : f32
    %10 = vector.broadcast %cst_3 : f32 to vector<4x4x16xf32>
    %11 = arith.mulf %10, %4 : vector<4x4x16xf32>
    %12 = arith.addf %9, %11 : vector<4x4x16xf32>
    %cst_4 = arith.constant 7.500000e-01 : f32
    %13 = vector.broadcast %cst_4 : f32 to vector<4x4x16xf32>
    %14 = arith.mulf %13, %1 : vector<4x4x16xf32>
    %cst_5 = arith.constant 2.500000e-01 : f32
    %15 = vector.broadcast %cst_5 : f32 to vector<4x4x16xf32>
    %16 = arith.mulf %15, %7 : vector<4x4x16xf32>
    %17 = arith.addf %14, %16 : vector<4x4x16xf32>
    %18 = vector.shape_cast %12 : vector<4x4x16xf32> to vector<4x1x4x16xf32>
    %19 = vector.shape_cast %17 : vector<4x4x16xf32> to vector<4x1x4x16xf32>
    %20 = tpu.concatenate %18, %19 in 1 : vector<4x1x4x16xf32>, vector<4x1x4x16xf32> -> vector<4x2x4x16xf32>
    %21 = vector.shape_cast %20 : vector<4x2x4x16xf32> to vector<8x4x16xf32>
    %22 = vector.extract_strided_slice %21 {offsets = [0, 0, 0], sizes = [8, 1, 16], strides = [1, 1, 1]} : vector<8x4x16xf32> to vector<8x1x16xf32>
    %23 = vector.extract_strided_slice %21 {offsets = [0, 0, 0], sizes = [8, 3, 16], strides = [1, 1, 1]} : vector<8x4x16xf32> to vector<8x3x16xf32>
    %24 = tpu.concatenate %22, %23 in 1 : vector<8x1x16xf32>, vector<8x3x16xf32> -> vector<8x4x16xf32>
    %25 = vector.extract_strided_slice %21 {offsets = [0, 1, 0], sizes = [8, 3, 16], strides = [1, 1, 1]} : vector<8x4x16xf32> to vector<8x3x16xf32>
    %26 = vector.extract_strided_slice %21 {offsets = [0, 3, 0], sizes = [8, 1, 16], strides = [1, 1, 1]} : vector<8x4x16xf32> to vector<8x1x16xf32>
    %27 = tpu.concatenate %25, %26 in 1 : vector<8x3x16xf32>, vector<8x1x16xf32> -> vector<8x4x16xf32>
    %cst_6 = arith.constant 7.500000e-01 : f32
    %28 = vector.broadcast %cst_6 : f32 to vector<8x4x16xf32>
    %29 = arith.mulf %28, %21 : vector<8x4x16xf32>
    %cst_7 = arith.constant 2.500000e-01 : f32
    %30 = vector.broadcast %cst_7 : f32 to vector<8x4x16xf32>
    %31 = arith.mulf %30, %24 : vector<8x4x16xf32>
    %32 = arith.addf %29, %31 : vector<8x4x16xf32>
    %cst_8 = arith.constant 7.500000e-01 : f32
    %33 = vector.broadcast %cst_8 : f32 to vector<8x4x16xf32>
    %34 = arith.mulf %33, %21 : vector<8x4x16xf32>
    %cst_9 = arith.constant 2.500000e-01 : f32
    %35 = vector.broadcast %cst_9 : f32 to vector<8x4x16xf32>
    %36 = arith.mulf %35, %27 : vector<8x4x16xf32>
    %37 = arith.addf %34, %36 : vector<8x4x16xf32>
    %38 = vector.shape_cast %32 : vector<8x4x16xf32> to vector<8x4x1x16xf32>
    %39 = vector.shape_cast %37 : vector<8x4x16xf32> to vector<8x4x1x16xf32>
    %40 = tpu.concatenate %38, %39 in 2 : vector<8x4x1x16xf32>, vector<8x4x1x16xf32> -> vector<8x4x2x16xf32>
    %41 = vector.shape_cast %40 : vector<8x4x2x16xf32> to vector<8x8x16xf32>
    %c0_10 = arith.constant 0 : index
    %c0_11 = arith.constant 0 : index
    %c0_12 = arith.constant 0 : index
    %c0_13 = arith.constant 0 : index
    %42 = vector.load %arg2[%c0_10, %c0_11, %c0_12, %c0_13] : memref<1x8x8x16xf32, #tpu.memory_space<vmem>>, vector<1x8x8x16xf32>
    %43 = vector.shape_cast %42 : vector<1x8x8x16xf32> to vector<8x8x16xf32>
    %44 = tpu.concatenate %41, %43 in 2 : vector<8x8x16xf32>, vector<8x8x16xf32> -> vector<8x8x32xf32>
    %c0_14 = arith.constant 0 : index
    %c0_15 = arith.constant 0 : index
    %c0_16 = arith.constant 0 : index
    %c0_17 = arith.constant 0 : index
    %45 = vector.load %arg4[%c0_14, %c0_15, %c0_16, %c0_17] : memref<3x3x32x8xf32, #tpu.memory_space<vmem>>, vector<3x3x32x8xf32>
    %c0_18 = arith.constant 0 : index
    %c0_19 = arith.constant 0 : index
    %46 = vector.load %arg5[%c0_18, %c0_19] : memref<1x8xf32, #tpu.memory_space<vmem>>, vector<1x8xf32>
    %47 = vector.shape_cast %46 : vector<1x8xf32> to vector<8xf32>
    %cst_20 = arith.constant 0.000000e+00 : f32
    %48 = vector.broadcast %cst_20 : f32 to vector<1x8x32xf32>
    %cst_21 = arith.constant 0.000000e+00 : f32
    %49 = vector.broadcast %cst_21 : f32 to vector<1x8x32xf32>
    %50 = tpu.concatenate %48, %44, %49 in 0 : vector<1x8x32xf32>, vector<8x8x32xf32>, vector<1x8x32xf32> -> vector<10x8x32xf32>
    %cst_22 = arith.constant 0.000000e+00 : f32
    %51 = vector.broadcast %cst_22 : f32 to vector<10x1x32xf32>
    %cst_23 = arith.constant 0.000000e+00 : f32
    %52 = vector.broadcast %cst_23 : f32 to vector<10x1x32xf32>
    %53 = tpu.concatenate %51, %50, %52 in 1 : vector<10x1x32xf32>, vector<10x8x32xf32>, vector<10x1x32xf32> -> vector<10x10x32xf32>
    %54 = vector.extract_strided_slice %53 {offsets = [0, 0, 0], sizes = [8, 8, 32], strides = [1, 1, 1]} : vector<10x10x32xf32> to vector<8x8x32xf32>
    %55 = vector.extract_strided_slice %53 {offsets = [0, 1, 0], sizes = [8, 8, 32], strides = [1, 1, 1]} : vector<10x10x32xf32> to vector<8x8x32xf32>
    %56 = vector.extract_strided_slice %53 {offsets = [0, 2, 0], sizes = [8, 8, 32], strides = [1, 1, 1]} : vector<10x10x32xf32> to vector<8x8x32xf32>
    %57 = vector.extract_strided_slice %53 {offsets = [1, 0, 0], sizes = [8, 8, 32], strides = [1, 1, 1]} : vector<10x10x32xf32> to vector<8x8x32xf32>
    %58 = vector.extract_strided_slice %53 {offsets = [1, 1, 0], sizes = [8, 8, 32], strides = [1, 1, 1]} : vector<10x10x32xf32> to vector<8x8x32xf32>
    %59 = vector.extract_strided_slice %53 {offsets = [1, 2, 0], sizes = [8, 8, 32], strides = [1, 1, 1]} : vector<10x10x32xf32> to vector<8x8x32xf32>
    %60 = vector.extract_strided_slice %53 {offsets = [2, 0, 0], sizes = [8, 8, 32], strides = [1, 1, 1]} : vector<10x10x32xf32> to vector<8x8x32xf32>
    %61 = vector.extract_strided_slice %53 {offsets = [2, 1, 0], sizes = [8, 8, 32], strides = [1, 1, 1]} : vector<10x10x32xf32> to vector<8x8x32xf32>
    %62 = vector.extract_strided_slice %53 {offsets = [2, 2, 0], sizes = [8, 8, 32], strides = [1, 1, 1]} : vector<10x10x32xf32> to vector<8x8x32xf32>
    %63 = tpu.concatenate %54, %55, %56, %57, %58, %59, %60, %61, %62 in 2 : vector<8x8x32xf32>, vector<8x8x32xf32>, vector<8x8x32xf32>, vector<8x8x32xf32>, vector<8x8x32xf32>, vector<8x8x32xf32>, vector<8x8x32xf32>, vector<8x8x32xf32>, vector<8x8x32xf32> -> vector<8x8x288xf32>
    %64 = vector.shape_cast %63 : vector<8x8x288xf32> to vector<64x288xf32>
    %65 = vector.shape_cast %45 : vector<3x3x32x8xf32> to vector<288x8xf32>
    %cst_24 = arith.constant dense<0.000000e+00> : vector<64x8xf32>
    %66 = tpu.matmul %64, %65, %cst_24 {dimension_numbers = #tpu.dot_dimension_numbers<[1], [0], [0], [1], [0, 0, 1, 1], [], []>, precision = #tpu.contract_precision<fp32>} : vector<64x288xf32>, vector<288x8xf32>, vector<64x8xf32> -> vector<64x8xf32>
    %67 = vector.shape_cast %66 : vector<64x8xf32> to vector<8x8x8xf32>
    %68 = vector.shape_cast %47 : vector<8xf32> to vector<1x1x8xf32>
    %69 = vector.broadcast %68 : vector<1x1x8xf32> to vector<8x8x8xf32>
    %70 = arith.addf %67, %69 : vector<8x8x8xf32>
    %cst_25 = arith.constant 0.000000e+00 : f32
    %71 = vector.broadcast %cst_25 : f32 to vector<8x8x8xf32>
    %72 = arith.cmpf oge, %70, %71 : vector<8x8x8xf32>
    %cst_26 = arith.constant 0.00999999977 : f32
    %73 = vector.broadcast %cst_26 : f32 to vector<8x8x8xf32>
    %74 = arith.mulf %73, %70 : vector<8x8x8xf32>
    %75 = arith.select %72, %70, %74 : vector<8x8x8xi1>, vector<8x8x8xf32>
    %76 = vector.extract_strided_slice %75 {offsets = [0, 0, 0], sizes = [1, 8, 8], strides = [1, 1, 1]} : vector<8x8x8xf32> to vector<1x8x8xf32>
    %77 = vector.extract_strided_slice %75 {offsets = [0, 0, 0], sizes = [7, 8, 8], strides = [1, 1, 1]} : vector<8x8x8xf32> to vector<7x8x8xf32>
    %78 = tpu.concatenate %76, %77 in 0 : vector<1x8x8xf32>, vector<7x8x8xf32> -> vector<8x8x8xf32>
    %79 = vector.extract_strided_slice %75 {offsets = [1, 0, 0], sizes = [7, 8, 8], strides = [1, 1, 1]} : vector<8x8x8xf32> to vector<7x8x8xf32>
    %80 = vector.extract_strided_slice %75 {offsets = [7, 0, 0], sizes = [1, 8, 8], strides = [1, 1, 1]} : vector<8x8x8xf32> to vector<1x8x8xf32>
    %81 = tpu.concatenate %79, %80 in 0 : vector<7x8x8xf32>, vector<1x8x8xf32> -> vector<8x8x8xf32>
    %cst_27 = arith.constant 7.500000e-01 : f32
    %82 = vector.broadcast %cst_27 : f32 to vector<8x8x8xf32>
    %83 = arith.mulf %82, %75 : vector<8x8x8xf32>
    %cst_28 = arith.constant 2.500000e-01 : f32
    %84 = vector.broadcast %cst_28 : f32 to vector<8x8x8xf32>
    %85 = arith.mulf %84, %78 : vector<8x8x8xf32>
    %86 = arith.addf %83, %85 : vector<8x8x8xf32>
    %cst_29 = arith.constant 7.500000e-01 : f32
    %87 = vector.broadcast %cst_29 : f32 to vector<8x8x8xf32>
    %88 = arith.mulf %87, %75 : vector<8x8x8xf32>
    %cst_30 = arith.constant 2.500000e-01 : f32
    %89 = vector.broadcast %cst_30 : f32 to vector<8x8x8xf32>
    %90 = arith.mulf %89, %81 : vector<8x8x8xf32>
    %91 = arith.addf %88, %90 : vector<8x8x8xf32>
    %92 = vector.shape_cast %86 : vector<8x8x8xf32> to vector<8x1x8x8xf32>
    %93 = vector.shape_cast %91 : vector<8x8x8xf32> to vector<8x1x8x8xf32>
    %94 = tpu.concatenate %92, %93 in 1 : vector<8x1x8x8xf32>, vector<8x1x8x8xf32> -> vector<8x2x8x8xf32>
    %95 = vector.shape_cast %94 : vector<8x2x8x8xf32> to vector<16x8x8xf32>
    %96 = vector.extract_strided_slice %95 {offsets = [0, 0, 0], sizes = [16, 1, 8], strides = [1, 1, 1]} : vector<16x8x8xf32> to vector<16x1x8xf32>
    %97 = vector.extract_strided_slice %95 {offsets = [0, 0, 0], sizes = [16, 7, 8], strides = [1, 1, 1]} : vector<16x8x8xf32> to vector<16x7x8xf32>
    %98 = tpu.concatenate %96, %97 in 1 : vector<16x1x8xf32>, vector<16x7x8xf32> -> vector<16x8x8xf32>
    %99 = vector.extract_strided_slice %95 {offsets = [0, 1, 0], sizes = [16, 7, 8], strides = [1, 1, 1]} : vector<16x8x8xf32> to vector<16x7x8xf32>
    %100 = vector.extract_strided_slice %95 {offsets = [0, 7, 0], sizes = [16, 1, 8], strides = [1, 1, 1]} : vector<16x8x8xf32> to vector<16x1x8xf32>
    %101 = tpu.concatenate %99, %100 in 1 : vector<16x7x8xf32>, vector<16x1x8xf32> -> vector<16x8x8xf32>
    %cst_31 = arith.constant 7.500000e-01 : f32
    %102 = vector.broadcast %cst_31 : f32 to vector<16x8x8xf32>
    %103 = arith.mulf %102, %95 : vector<16x8x8xf32>
    %cst_32 = arith.constant 2.500000e-01 : f32
    %104 = vector.broadcast %cst_32 : f32 to vector<16x8x8xf32>
    %105 = arith.mulf %104, %98 : vector<16x8x8xf32>
    %106 = arith.addf %103, %105 : vector<16x8x8xf32>
    %cst_33 = arith.constant 7.500000e-01 : f32
    %107 = vector.broadcast %cst_33 : f32 to vector<16x8x8xf32>
    %108 = arith.mulf %107, %95 : vector<16x8x8xf32>
    %cst_34 = arith.constant 2.500000e-01 : f32
    %109 = vector.broadcast %cst_34 : f32 to vector<16x8x8xf32>
    %110 = arith.mulf %109, %101 : vector<16x8x8xf32>
    %111 = arith.addf %108, %110 : vector<16x8x8xf32>
    %112 = vector.shape_cast %106 : vector<16x8x8xf32> to vector<16x8x1x8xf32>
    %113 = vector.shape_cast %111 : vector<16x8x8xf32> to vector<16x8x1x8xf32>
    %114 = tpu.concatenate %112, %113 in 2 : vector<16x8x1x8xf32>, vector<16x8x1x8xf32> -> vector<16x8x2x8xf32>
    %115 = vector.shape_cast %114 : vector<16x8x2x8xf32> to vector<16x16x8xf32>
    %c0_35 = arith.constant 0 : index
    %c0_36 = arith.constant 0 : index
    %c0_37 = arith.constant 0 : index
    %c0_38 = arith.constant 0 : index
    %116 = vector.load %arg3[%c0_35, %c0_36, %c0_37, %c0_38] : memref<1x16x16x8xf32, #tpu.memory_space<vmem>>, vector<1x16x16x8xf32>
    %117 = vector.shape_cast %116 : vector<1x16x16x8xf32> to vector<16x16x8xf32>
    %118 = tpu.concatenate %115, %117 in 2 : vector<16x16x8xf32>, vector<16x16x8xf32> -> vector<16x16x16xf32>
    %c0_39 = arith.constant 0 : index
    %c0_40 = arith.constant 0 : index
    %c0_41 = arith.constant 0 : index
    %c0_42 = arith.constant 0 : index
    %119 = vector.load %arg6[%c0_39, %c0_40, %c0_41, %c0_42] : memref<3x3x16x8xf32, #tpu.memory_space<vmem>>, vector<3x3x16x8xf32>
    %c0_43 = arith.constant 0 : index
    %c0_44 = arith.constant 0 : index
    %120 = vector.load %arg7[%c0_43, %c0_44] : memref<1x8xf32, #tpu.memory_space<vmem>>, vector<1x8xf32>
    %121 = vector.shape_cast %120 : vector<1x8xf32> to vector<8xf32>
    %cst_45 = arith.constant 0.000000e+00 : f32
    %122 = vector.broadcast %cst_45 : f32 to vector<1x16x16xf32>
    %cst_46 = arith.constant 0.000000e+00 : f32
    %123 = vector.broadcast %cst_46 : f32 to vector<1x16x16xf32>
    %124 = tpu.concatenate %122, %118, %123 in 0 : vector<1x16x16xf32>, vector<16x16x16xf32>, vector<1x16x16xf32> -> vector<18x16x16xf32>
    %cst_47 = arith.constant 0.000000e+00 : f32
    %125 = vector.broadcast %cst_47 : f32 to vector<18x1x16xf32>
    %cst_48 = arith.constant 0.000000e+00 : f32
    %126 = vector.broadcast %cst_48 : f32 to vector<18x1x16xf32>
    %127 = tpu.concatenate %125, %124, %126 in 1 : vector<18x1x16xf32>, vector<18x16x16xf32>, vector<18x1x16xf32> -> vector<18x18x16xf32>
    %128 = vector.extract_strided_slice %127 {offsets = [0, 0, 0], sizes = [16, 16, 16], strides = [1, 1, 1]} : vector<18x18x16xf32> to vector<16x16x16xf32>
    %129 = vector.extract_strided_slice %127 {offsets = [0, 1, 0], sizes = [16, 16, 16], strides = [1, 1, 1]} : vector<18x18x16xf32> to vector<16x16x16xf32>
    %130 = vector.extract_strided_slice %127 {offsets = [0, 2, 0], sizes = [16, 16, 16], strides = [1, 1, 1]} : vector<18x18x16xf32> to vector<16x16x16xf32>
    %131 = vector.extract_strided_slice %127 {offsets = [1, 0, 0], sizes = [16, 16, 16], strides = [1, 1, 1]} : vector<18x18x16xf32> to vector<16x16x16xf32>
    %132 = vector.extract_strided_slice %127 {offsets = [1, 1, 0], sizes = [16, 16, 16], strides = [1, 1, 1]} : vector<18x18x16xf32> to vector<16x16x16xf32>
    %133 = vector.extract_strided_slice %127 {offsets = [1, 2, 0], sizes = [16, 16, 16], strides = [1, 1, 1]} : vector<18x18x16xf32> to vector<16x16x16xf32>
    %134 = vector.extract_strided_slice %127 {offsets = [2, 0, 0], sizes = [16, 16, 16], strides = [1, 1, 1]} : vector<18x18x16xf32> to vector<16x16x16xf32>
    %135 = vector.extract_strided_slice %127 {offsets = [2, 1, 0], sizes = [16, 16, 16], strides = [1, 1, 1]} : vector<18x18x16xf32> to vector<16x16x16xf32>
    %136 = vector.extract_strided_slice %127 {offsets = [2, 2, 0], sizes = [16, 16, 16], strides = [1, 1, 1]} : vector<18x18x16xf32> to vector<16x16x16xf32>
    %137 = tpu.concatenate %128, %129, %130, %131, %132, %133, %134, %135, %136 in 2 : vector<16x16x16xf32>, vector<16x16x16xf32>, vector<16x16x16xf32>, vector<16x16x16xf32>, vector<16x16x16xf32>, vector<16x16x16xf32>, vector<16x16x16xf32>, vector<16x16x16xf32>, vector<16x16x16xf32> -> vector<16x16x144xf32>
    %138 = vector.shape_cast %137 : vector<16x16x144xf32> to vector<256x144xf32>
    %139 = vector.shape_cast %119 : vector<3x3x16x8xf32> to vector<144x8xf32>
    %cst_49 = arith.constant dense<0.000000e+00> : vector<256x8xf32>
    %140 = tpu.matmul %138, %139, %cst_49 {dimension_numbers = #tpu.dot_dimension_numbers<[1], [0], [0], [1], [0, 0, 1, 1], [], []>, precision = #tpu.contract_precision<fp32>} : vector<256x144xf32>, vector<144x8xf32>, vector<256x8xf32> -> vector<256x8xf32>
    %141 = vector.shape_cast %140 : vector<256x8xf32> to vector<16x16x8xf32>
    %142 = vector.shape_cast %121 : vector<8xf32> to vector<1x1x8xf32>
    %143 = vector.broadcast %142 : vector<1x1x8xf32> to vector<16x16x8xf32>
    %144 = arith.addf %141, %143 : vector<16x16x8xf32>
    %cst_50 = arith.constant 0.000000e+00 : f32
    %145 = vector.broadcast %cst_50 : f32 to vector<16x16x8xf32>
    %146 = arith.cmpf oge, %144, %145 : vector<16x16x8xf32>
    %cst_51 = arith.constant 0.00999999977 : f32
    %147 = vector.broadcast %cst_51 : f32 to vector<16x16x8xf32>
    %148 = arith.mulf %147, %144 : vector<16x16x8xf32>
    %149 = arith.select %146, %144, %148 : vector<16x16x8xi1>, vector<16x16x8xf32>
    %150 = vector.shape_cast %149 : vector<16x16x8xf32> to vector<16x128xf32>
    %c0_52 = arith.constant 0 : index
    %c0_53 = arith.constant 0 : index
    %c0_54 = arith.constant 0 : index
    %151 = vector.load %arg8[%c0_52, %c0_53, %c0_54] : memref<1x16x128xf32, #tpu.memory_space<vmem>>, vector<1x16x128xf32>
    %152 = vector.shape_cast %151 : vector<1x16x128xf32> to vector<16x128xf32>
    %153 = vector.shape_cast %150 : vector<16x128xf32> to vector<1x16x128xf32>
    tpu.vector_store %arg8[%c0_52, %c0_53, %c0_54], %153 {strides = array<i32>} : memref<1x16x128xf32, #tpu.memory_space<vmem>>, vector<1x16x128xf32>,
    return
  }
  func.func @transform_0(%arg0: i32) -> (i32, i32, i32, i32) {
    %c0_i32 = arith.constant 0 : i32
    %c0_i32_0 = arith.constant 0 : i32
    %c0_i32_1 = arith.constant 0 : i32
    %c0_i32_2 = arith.constant 0 : i32
    return %arg0, %c0_i32, %c0_i32_0, %c0_i32_1 : i32, i32, i32, i32
  }
  func.func @transform_1(%arg0: i32) -> (i32, i32, i32, i32) {
    %c0_i32 = arith.constant 0 : i32
    %c0_i32_0 = arith.constant 0 : i32
    %c0_i32_1 = arith.constant 0 : i32
    %c0_i32_2 = arith.constant 0 : i32
    return %arg0, %c0_i32, %c0_i32_0, %c0_i32_1 : i32, i32, i32, i32
  }
  func.func @transform_2(%arg0: i32) -> (i32, i32, i32, i32) {
    %c0_i32 = arith.constant 0 : i32
    %c0_i32_0 = arith.constant 0 : i32
    %c0_i32_1 = arith.constant 0 : i32
    %c0_i32_2 = arith.constant 0 : i32
    return %arg0, %c0_i32, %c0_i32_0, %c0_i32_1 : i32, i32, i32, i32
  }
  func.func @transform_3(%arg0: i32) -> (i32, i32, i32, i32) {
    %c0_i32 = arith.constant 0 : i32
    %c0_i32_0 = arith.constant 0 : i32
    %c0_i32_1 = arith.constant 0 : i32
    %c0_i32_2 = arith.constant 0 : i32
    %c0_i32_3 = arith.constant 0 : i32
    return %c0_i32, %c0_i32_0, %c0_i32_1, %c0_i32_2 : i32, i32, i32, i32
  }
  func.func @transform_4(%arg0: i32) -> (i32, i32) {
    %c0_i32 = arith.constant 0 : i32
    %c0_i32_0 = arith.constant 0 : i32
    %c0_i32_1 = arith.constant 0 : i32
    return %c0_i32, %c0_i32_0 : i32, i32
  }
  func.func @transform_5(%arg0: i32) -> (i32, i32, i32, i32) {
    %c0_i32 = arith.constant 0 : i32
    %c0_i32_0 = arith.constant 0 : i32
    %c0_i32_1 = arith.constant 0 : i32
    %c0_i32_2 = arith.constant 0 : i32
    %c0_i32_3 = arith.constant 0 : i32
    return %c0_i32, %c0_i32_0, %c0_i32_1, %c0_i32_2 : i32, i32, i32, i32
  }
  func.func @transform_6(%arg0: i32) -> (i32, i32) {
    %c0_i32 = arith.constant 0 : i32
    %c0_i32_0 = arith.constant 0 : i32
    %c0_i32_1 = arith.constant 0 : i32
    return %c0_i32, %c0_i32_0 : i32, i32
  }
  func.func @transform_7(%arg0: i32) -> (i32, i32, i32) {
    %c0_i32 = arith.constant 0 : i32
    %c0_i32_0 = arith.constant 0 : i32
    %c0_i32_1 = arith.constant 0 : i32
    return %arg0, %c0_i32, %c0_i32_0 : i32, i32, i32
  }
}

</mosaic_0001>

<llo_original>
// kernel: tpu_custom_call.1
$region0: #{tpu_custom_call.1}
  #allocation0 [shape = 'u32[]', space=smem, size = 0x4, offset = 0x4, fixed_abs, tag = 'smem constant byte address 0x4 - core index']
  #allocation1 [shape = 'u32[144,128]{1,0:T(1,128)}', space=vmem, size = 0x12000, scoped, tag = 'internal scratch']
  %s0 = inlined_call_operand.vmem [shape: f32[2,4,4,16], index: 0, kind: input, shape index: {}]
  %s1 = inlined_call_operand.vmem [shape: f32[2,8,8,16], index: 1, kind: input, shape index: {}]
  %s2 = inlined_call_operand.vmem [shape: f32[2,16,16,8], index: 2, kind: input, shape index: {}]
  %s3 = inlined_call_operand.vmem [shape: f32[3,3,32,8], index: 3, kind: input, shape index: {}]
  %s4 = inlined_call_operand.vmem [shape: f32[1,8], index: 4, kind: input, shape index: {}]
  %s5 = inlined_call_operand.vmem [shape: f32[3,3,16,8], index: 5, kind: input, shape index: {}]
  %s6 = inlined_call_operand.vmem [shape: f32[1,8], index: 6, kind: input, shape index: {}]
  %s7 = inlined_call_operand.hbm [shape: f32[2,16,128], index: 7, kind: output, shape index: {}]
  %s8 = sld [smem:[#allocation0]]
  $region61: #{tpu_custom_call.1} parent=0
    _
  %s10 = ssub.s32 1, %s8
  %s11 = scalar_select 0, %s10, %s8
  $region1: #{tpu_custom_call.1} parent=0
    #allocation2 [shape = 'u8[16384]{0}', space=vmem, size = 0x4000, scoped, tag = 'output window, operand 0']
    #allocation3 [shape = 's32[2]{0}', space=sflag, size = 0x8, scoped, tag = 'scoped memory for tpu_custom_call.1']
    %12 = vsyncpa [#allocation3], 0
    %s13 = scalar_lea.sflag [#allocation3], 1
    %14 = vsyncpa %s13, 0
    loop: start=0, step=1, limit=4
    $region2: #{tpu_custom_call.1} parent=1 // loop_pre_header
      _
    $region3: #{tpu_custom_call.1} parent=1 // loop_header
      %s16 = sphi 0, %s20
      %p17 = scmp.ge.s32.totalorder %s16, 4
      %s26 = sphi 0, %s28
      %s29 = sphi 0, %s26
      %s30 = sphi 0, %s29
      %s46 = sphi 0, %s30
      %s52 = sphi 0, %s54
      %s55 = sphi 0, %s52
      %s56 = sphi 0, %s55
      %s72 = sphi 0, %s56
      %s78 = sphi 0, %s80
      %s81 = sphi 0, %s78
      %s82 = sphi 0, %s81
      %s98 = sphi 0, %s82
      %s102 = sphi 0, %s102
      %s104 = sphi 0, %s102
      %s105 = sphi 0, %s104
      %s119 = sphi 0, %s105
      %s123 = sphi 0, %s123
      %s125 = sphi 0, %s123
      %s126 = sphi 0, %s125
      %s140 = sphi 0, %s126
      %s144 = sphi 0, %s144
      %s146 = sphi 0, %s144
      %s147 = sphi 0, %s146
      %s161 = sphi 0, %s147
      %s165 = sphi 0, %s165
      %s167 = sphi 0, %s165
      %s168 = sphi 0, %s167
      %s182 = sphi 0, %s168
      %s188 = sphi 0, %s190
      %s191 = sphi 0, %s188
      %s192 = sphi 0, %s191
      %s208 = sphi 0, %s192
    $region4: #{tpu_custom_call.1} parent=1 // loop_header_branch
      %19 = sbr.rel (%p17) target = $region8
    $region5: #{tpu_custom_call.1} parent=1 // loop_body
      %s21 = ssub.s32 %s16, 1
      %s22 = ssub.s32 %s16, 2
      %s23 = sadd.s32 %s16, 1
      %s24 = ssub.s32 %s16, %s23
      %p25 = scmp.eq.s32.totalorder %s24, 0
      %s27 = sadd.s32 %s26, 1
      %s28 = scalar_select %p25, %s26, %s27
      %p31 = pneg %p25
      %p32 = scmp.eq.s32.totalorder %s16, 1
      %p33 = por %p31, %p32
      %p34 = scmp.ne.s32.totalorder %s26, %s29
      %p35 = scmp.eq.s32.totalorder %s16, 0
      %p36 = por %p34, %p35
      %p37 = scmp.ne.s32.totalorder %s26, %s29
      %p38 = scmp.eq.s32.totalorder %s21, 1
      %p39 = por %p37, %p38
      %p40 = scmp.ne.s32.totalorder %s29, %s30
      %p41 = scmp.eq.s32.totalorder %s21, 0
      %p42 = por %p40, %p41
      %p43 = scmp.ne.s32.totalorder %s29, %s30
      %p44 = scmp.eq.s32.totalorder %s22, 1
      %p45 = por %p43, %p44
      %p47 = scmp.ne.s32.totalorder %s30, %s46
      %p48 = scmp.eq.s32.totalorder %s22, 0
      %p49 = por %p47, %p48
      %s50 = ssub.s32 %s16, %s23
      %p51 = scmp.eq.s32.totalorder %s50, 0
      %s53 = sadd.s32 %s52, 1
      %s54 = scalar_select %p51, %s52, %s53
      %p57 = pneg %p51
      %p58 = scmp.eq.s32.totalorder %s16, 1
      %p59 = por %p57, %p58
      %p60 = scmp.ne.s32.totalorder %s52, %s55
      %p61 = scmp.eq.s32.totalorder %s16, 0
      %p62 = por %p60, %p61
      %p63 = scmp.ne.s32.totalorder %s52, %s55
      %p64 = scmp.eq.s32.totalorder %s21, 1
      %p65 = por %p63, %p64
      %p66 = scmp.ne.s32.totalorder %s55, %s56
      %p67 = scmp.eq.s32.totalorder %s21, 0
      %p68 = por %p66, %p67
      %p69 = scmp.ne.s32.totalorder %s55, %s56
      %p70 = scmp.eq.s32.totalorder %s22, 1
      %p71 = por %p69, %p70
      %p73 = scmp.ne.s32.totalorder %s56, %s72
      %p74 = scmp.eq.s32.totalorder %s22, 0
      %p75 = por %p73, %p74
      %s76 = ssub.s32 %s16, %s23
      %p77 = scmp.eq.s32.totalorder %s76, 0
      %s79 = sadd.s32 %s78, 1
      %s80 = scalar_select %p77, %s78, %s79
      %p83 = pneg %p77
      %p84 = scmp.eq.s32.totalorder %s16, 1
      %p85 = por %p83, %p84
      %p86 = scmp.ne.s32.totalorder %s78, %s81
      %p87 = scmp.eq.s32.totalorder %s16, 0
      %p88 = por %p86, %p87
      %p89 = scmp.ne.s32.totalorder %s78, %s81
      %p90 = scmp.eq.s32.totalorder %s21, 1
      %p91 = por %p89, %p90
      %p92 = scmp.ne.s32.totalorder %s81, %s82
      %p93 = scmp.eq.s32.totalorder %s21, 0
      %p94 = por %p92, %p93
      %p95 = scmp.ne.s32.totalorder %s81, %s82
      %p96 = scmp.eq.s32.totalorder %s22, 1
      %p97 = por %p95, %p96
      %p99 = scmp.ne.s32.totalorder %s82, %s98
      %p100 = scmp.eq.s32.totalorder %s22, 0
      %p101 = por %p99, %p100
      %s103 = sadd.s32 %s102, 1
      %p106 = scmp.eq.s32.totalorder %s16, 1
      %p107 = scmp.ne.s32.totalorder %s102, %s104
      %p108 = scmp.eq.s32.totalorder %s16, 0
      %p109 = por %p107, %p108
      %p110 = scmp.ne.s32.totalorder %s102, %s104
      %p111 = scmp.eq.s32.totalorder %s21, 1
      %p112 = por %p110, %p111
      %p113 = scmp.ne.s32.totalorder %s104, %s105
      %p114 = scmp.eq.s32.totalorder %s21, 0
      %p115 = por %p113, %p114
      %p116 = scmp.ne.s32.totalorder %s104, %s105
      %p117 = scmp.eq.s32.totalorder %s22, 1
      %p118 = por %p116, %p117
      %p120 = scmp.ne.s32.totalorder %s105, %s119
      %p121 = scmp.eq.s32.totalorder %s22, 0
      %p122 = por %p120, %p121
      %s124 = sadd.s32 %s123, 1
      %p127 = scmp.eq.s32.totalorder %s16, 1
      %p128 = scmp.ne.s32.totalorder %s123, %s125
      %p129 = scmp.eq.s32.totalorder %s16, 0
      %p130 = por %p128, %p129
      %p131 = scmp.ne.s32.totalorder %s123, %s125
      %p132 = scmp.eq.s32.totalorder %s21, 1
      %p133 = por %p131, %p132
      %p134 = scmp.ne.s32.totalorder %s125, %s126
      %p135 = scmp.eq.s32.totalorder %s21, 0
      %p136 = por %p134, %p135
      %p137 = scmp.ne.s32.totalorder %s125, %s126
      %p138 = scmp.eq.s32.totalorder %s22, 1
      %p139 = por %p137, %p138
      %p141 = scmp.ne.s32.totalorder %s126, %s140
      %p142 = scmp.eq.s32.totalorder %s22, 0
      %p143 = por %p141, %p142
      %s145 = sadd.s32 %s144, 1
      %p148 = scmp.eq.s32.totalorder %s16, 1
      %p149 = scmp.ne.s32.totalorder %s144, %s146
      %p150 = scmp.eq.s32.totalorder %s16, 0
      %p151 = por %p149, %p150
      %p152 = scmp.ne.s32.totalorder %s144, %s146
      %p153 = scmp.eq.s32.totalorder %s21, 1
      %p154 = por %p152, %p153
      %p155 = scmp.ne.s32.totalorder %s146, %s147
      %p156 = scmp.eq.s32.totalorder %s21, 0
      %p157 = por %p155, %p156
      %p158 = scmp.ne.s32.totalorder %s146, %s147
      %p159 = scmp.eq.s32.totalorder %s22, 1
      %p160 = por %p158, %p159
      %p162 = scmp.ne.s32.totalorder %s147, %s161
      %p163 = scmp.eq.s32.totalorder %s22, 0
      %p164 = por %p162, %p163
      %s166 = sadd.s32 %s165, 1
      %p169 = scmp.eq.s32.totalorder %s16, 1
      %p170 = scmp.ne.s32.totalorder %s165, %s167
      %p171 = scmp.eq.s32.totalorder %s16, 0
      %p172 = por %p170, %p171
      %p173 = scmp.ne.s32.totalorder %s165, %s167
      %p174 = scmp.eq.s32.totalorder %s21, 1
      %p175 = por %p173, %p174
      %p176 = scmp.ne.s32.totalorder %s167, %s168
      %p177 = scmp.eq.s32.totalorder %s21, 0
      %p178 = por %p176, %p177
      %p179 = scmp.ne.s32.totalorder %s167, %s168
      %p180 = scmp.eq.s32.totalorder %s22, 1
      %p181 = por %p179, %p180
      %p183 = scmp.ne.s32.totalorder %s168, %s182
      %p184 = scmp.eq.s32.totalorder %s22, 0
      %p185 = por %p183, %p184
      %s186 = ssub.s32 %s16, %s23
      %p187 = scmp.eq.s32.totalorder %s186, 0
      %s189 = sadd.s32 %s188, 1
      %s190 = scalar_select %p187, %s188, %s189
      %p193 = pneg %p187
      %p194 = scmp.eq.s32.totalorder %s16, 1
      %p195 = por %p193, %p194
      %p196 = scmp.ne.s32.totalorder %s188, %s191
      %p197 = scmp.eq.s32.totalorder %s16, 0
      %p198 = por %p196, %p197
      %p199 = scmp.ne.s32.totalorder %s188, %s191
      %p200 = scmp.eq.s32.totalorder %s21, 1
      %p201 = por %p199, %p200
      %p202 = scmp.ne.s32.totalorder %s191, %s192
      %p203 = scmp.eq.s32.totalorder %s21, 0
      %p204 = por %p202, %p203
      %p205 = scmp.ne.s32.totalorder %s191, %s192
      %p206 = scmp.eq.s32.totalorder %s22, 1
      %p207 = por %p205, %p206
      %p209 = scmp.ne.s32.totalorder %s192, %s208
      %p210 = scmp.eq.s32.totalorder %s22, 0
      %p211 = por %p209, %p210
      %p212 = scmp.le.s32.totalorder 1, %s16
      %p213 = scmp.lt.s32.totalorder %s16, 3
      %p214 = pnand %p212, %p213
      %p215 = pneg %p214
      // Predicated region
      $region9: #{tpu_custom_call.1} parent=5 // pred_check
        _
      $region10: #{tpu_custom_call.1} parent=5 // pred_check_branch
        %217 = sbr.rel (%p214) target = $region12
      $region11: #{tpu_custom_call.1} parent=5 // pred_region
        %s218 = ssub.s32 %s16, 1
        // Predicated region
        $region13: #{tpu_custom_call.1} parent=11 // pred_check
          %p219 = pneg %p115
        $region14: #{tpu_custom_call.1} parent=11 // pred_check_branch
          %221 = sbr.rel (%p219) target = $region16
        $region15: #{tpu_custom_call.1} parent=11 // pred_region
          _
        $region16: #{tpu_custom_call.1} parent=11 // pred_fallthru
          _
        // Predicated region
        $region17: #{tpu_custom_call.1} parent=11 // pred_check
          %p222 = pneg %p136
        $region18: #{tpu_custom_call.1} parent=11 // pred_check_branch
          %224 = sbr.rel (%p222) target = $region20
        $region19: #{tpu_custom_call.1} parent=11 // pred_region
          _
        $region20: #{tpu_custom_call.1} parent=11 // pred_fallthru
          _
        // Predicated region
        $region21: #{tpu_custom_call.1} parent=11 // pred_check
          %p225 = pneg %p157
        $region22: #{tpu_custom_call.1} parent=11 // pred_check_branch
          %227 = sbr.rel (%p225) target = $region24
        $region23: #{tpu_custom_call.1} parent=11 // pred_region
          _
        $region24: #{tpu_custom_call.1} parent=11 // pred_fallthru
          _
        // Predicated region
        $region25: #{tpu_custom_call.1} parent=11 // pred_check
          %p228 = pneg %p178
        $region26: #{tpu_custom_call.1} parent=11 // pred_check_branch
          %230 = sbr.rel (%p228) target = $region28
        $region27: #{tpu_custom_call.1} parent=11 // pred_region
          _
        $region28: #{tpu_custom_call.1} parent=11 // pred_fallthru
          _
      $region12: #{tpu_custom_call.1} parent=5 // pred_fallthru
        _
      %p231 = scmp.lt.s32.totalorder %s16, 2
      // Predicated region
      $region29: #{tpu_custom_call.1} parent=5 // pred_check
        %p232 = pneg %p231
      $region30: #{tpu_custom_call.1} parent=5 // pred_check_branch
        %234 = sbr.rel (%p232) target = $region32
      $region31: #{tpu_custom_call.1} parent=5 // pred_region
        // Predicated region
        $region33: #{tpu_custom_call.1} parent=31 // pred_check
          %p235 = pneg %p36
        $region34: #{tpu_custom_call.1} parent=31 // pred_check_branch
          %237 = sbr.rel (%p235) target = $region36
        $region35: #{tpu_custom_call.1} parent=31 // pred_region
          %p238 = scmp.lt.s32.totalorder %s16, 1
          %s239 = scalar_select %p238, %s16, 1
          %s240 = smul.addr %s239, 4
          %s241 = smul.addr %s240, 4
          %s242 = scalar_lea.vmem %s0, %s241
        $region36: #{tpu_custom_call.1} parent=31 // pred_fallthru
          _
        // Predicated region
        $region37: #{tpu_custom_call.1} parent=31 // pred_check
          %p243 = pneg %p62
        $region38: #{tpu_custom_call.1} parent=31 // pred_check_branch
          %245 = sbr.rel (%p243) target = $region40
        $region39: #{tpu_custom_call.1} parent=31 // pred_region
          %p246 = scmp.lt.s32.totalorder %s16, 1
          %s247 = scalar_select %p246, %s16, 1
          %s248 = smul.addr %s247, 8
          %s249 = smul.addr %s248, 8
          %s250 = scalar_lea.vmem %s1, %s249
        $region40: #{tpu_custom_call.1} parent=31 // pred_fallthru
          _
        // Predicated region
        $region41: #{tpu_custom_call.1} parent=31 // pred_check
          %p251 = pneg %p88
        $region42: #{tpu_custom_call.1} parent=31 // pred_check_branch
          %253 = sbr.rel (%p251) target = $region44
        $region43: #{tpu_custom_call.1} parent=31 // pred_region
          %p254 = scmp.lt.s32.totalorder %s16, 1
          %s255 = scalar_select %p254, %s16, 1
          %s256 = smul.addr %s255, 32
          %s257 = smul.addr %s256, 8
          %s258 = scalar_lea.vmem %s2, %s257
        $region44: #{tpu_custom_call.1} parent=31 // pred_fallthru
          _
      $region32: #{tpu_custom_call.1} parent=5 // pred_fallthru
        _
      %p259 = scmp.le.s32.totalorder 1, %s16
      %p260 = scmp.lt.s32.totalorder %s16, 3
      %p261 = pnand %p259, %p260
      %p262 = pneg %p261
      // Predicated region
      $region45: #{tpu_custom_call.1} parent=5 // pred_check
        _
      $region46: #{tpu_custom_call.1} parent=5 // pred_check_branch
        %264 = sbr.rel (%p261) target = $region48
      $region47: #{tpu_custom_call.1} parent=5 // pred_region
        %s265 = ssub.s32 %s16, 1
        %p266 = scmp.lt.s32.totalorder %s21, 1
        %s267 = scalar_select %p266, %s21, 1
        %s268 = smul.addr %s267, 4
        %s269 = smul.addr %s268, 4
        %s270 = scalar_lea.vmem %s0, %s269
        %p271 = pneg %p42
        %p272 = pneg %p39
        %p273 = scmp.lt.s32.totalorder %s21, 1
        %s274 = scalar_select %p273, %s21, 1
        %s275 = smul.addr %s274, 8
        %s276 = smul.addr %s275, 8
        %s277 = scalar_lea.vmem %s1, %s276
        %p278 = pneg %p68
        %p279 = pneg %p65
        %p280 = scmp.lt.s32.totalorder %s21, 1
        %s281 = scalar_select %p280, %s21, 1
        %s282 = smul.addr %s281, 32
        %s283 = smul.addr %s282, 8
        %s284 = scalar_lea.vmem %s2, %s283
        %p285 = pneg %p94
        %p286 = pneg %p91
        %p287 = pneg %p115
        %p288 = pneg %p112
        %p289 = pneg %p136
        %p290 = pneg %p133
        %p291 = pneg %p157
        %p292 = pneg %p154
        %p293 = pneg %p178
        %p294 = pneg %p175
        %p295 = pneg %p204
        %p296 = pneg %p201
        %s297 = sand.u32 %s191, 1
        %s298 = scalar_lea.sflag [#allocation3], %s297
        %s299 = sand.u32 %s191, 1
        %s300 = smul.addr %s299, 16
        %s301 = scalar_lea.vmem [#allocation2], %s300
        %p302 = scmp.lt.s32.totalorder %s21, 1
        %s303 = scalar_select %p302, %s21, 1
        %s304 = smul.addr %s303, 4
        %s305 = smul.addr %s304, 4
        %s306 = scalar_lea.vmem %s0, %s305
        %p307 = scmp.lt.s32.totalorder %s21, 1
        %s308 = scalar_select %p307, %s21, 1
        %s309 = smul.addr %s308, 8
        %s310 = smul.addr %s309, 8
        %s311 = scalar_lea.vmem %s1, %s310
        %p312 = scmp.lt.s32.totalorder %s21, 1
        %s313 = scalar_select %p312, %s21, 1
        %s314 = smul.addr %s313, 32
        %s315 = smul.addr %s314, 8
        %s316 = scalar_lea.vmem %s2, %s315
        %v317 = vld [vmem:[%s306] sm:$0xf]
        %v318 = vld [vmem:[%s306 + $0x4] sm:$0xf]
        %v319 = vld [vmem:[%s306 + $0x8] sm:$0xf]
        %v320 = vld [vmem:[%s306 + $0xc] sm:$0xf]
        %v321 = vmul.f32 %v317, 0.75
        %v322 = vmul.f32 %v318, 0.75
        %v323 = vmul.f32 %v319, 0.75
        %v324 = vmul.f32 %v320, 0.75
        %v325 = vmul.f32 %v317, 0.25
        %v326 = vmul.f32 %v318, 0.25
        %v327 = vmul.f32 %v319, 0.25
        %v328 = vadd.f32 %v321, %v325
        %v329 = vadd.f32 %v322, %v325
        %v330 = vadd.f32 %v323, %v326
        %v331 = vadd.f32 %v324, %v327
        %v332 = vmul.f32 %v320, 0.25
        %v333 = vadd.f32 %v321, %v326
        %v334 = vadd.f32 %v322, %v327
        %v335 = vadd.f32 %v323, %v332
        %v336 = vadd.f32 %v324, %v332
        %v345 = vrot.slane %v328, 7
        %v346 = vrot.slane %v333, 7
        %v347 = vrot.slane %v329, 7
        %v348 = vrot.slane %v334, 7
        %v349 = vrot.slane %v330, 7
        %v350 = vrot.slane %v335, 7
        %v351 = vrot.slane %v331, 7
        %v352 = vrot.slane %v336, 7
        %vm361 = vcmask 1040384
        %v362 = vsel %vm361, %v328, %v345
        %v363 = vsel %vm361, %v333, %v346
        %v364 = vsel %vm361, %v329, %v347
        %v365 = vsel %vm361, %v334, %v348
        %v366 = vsel %vm361, %v330, %v349
        %v367 = vsel %vm361, %v335, %v350
        %v368 = vsel %vm361, %v331, %v351
        %v369 = vsel %vm361, %v336, %v352
        %v370 = vrot.slane %v328, 1
        %v371 = vrot.slane %v333, 1
        %v372 = vrot.slane %v329, 1
        %v373 = vrot.slane %v334, 1
        %v374 = vrot.slane %v330, 1
        %v375 = vrot.slane %v335, 1
        %v376 = vrot.slane %v331, 1
        %v377 = vrot.slane %v336, 1
        %vm386 = vcmask 1042432
        %v387 = vsel %vm386, %v370, %v328
        %v388 = vsel %vm386, %v371, %v333
        %v389 = vsel %vm386, %v372, %v329
        %v390 = vsel %vm386, %v373, %v334
        %v391 = vsel %vm386, %v374, %v330
        %v392 = vsel %vm386, %v375, %v335
        %v393 = vsel %vm386, %v376, %v331
        %v394 = vsel %vm386, %v377, %v336
        %v395 = vmul.f32 %v328, 0.75
        %v396 = vmul.f32 %v333, 0.75
        %v397 = vmul.f32 %v329, 0.75
        %v398 = vmul.f32 %v334, 0.75
        %v399 = vmul.f32 %v330, 0.75
        %v400 = vmul.f32 %v335, 0.75
        %v401 = vmul.f32 %v331, 0.75
        %v402 = vmul.f32 %v336, 0.75
        %v403 = vmul.f32 %v362, 0.25
        %v404 = vmul.f32 %v363, 0.25
        %v405 = vmul.f32 %v364, 0.25
        %v406 = vmul.f32 %v365, 0.25
        %v407 = vmul.f32 %v366, 0.25
        %v408 = vmul.f32 %v367, 0.25
        %v409 = vmul.f32 %v368, 0.25
        %v410 = vmul.f32 %v369, 0.25
        %v411 = vadd.f32 %v395, %v403
        %v412 = vadd.f32 %v396, %v404
        %v413 = vadd.f32 %v397, %v405
        %v414 = vadd.f32 %v398, %v406
        %v415 = vadd.f32 %v399, %v407
        %v416 = vadd.f32 %v400, %v408
        %v417 = vadd.f32 %v401, %v409
        %v418 = vadd.f32 %v402, %v410
        %v419 = vmul.f32 %v387, 0.25
        %v420 = vmul.f32 %v388, 0.25
        %v421 = vmul.f32 %v389, 0.25
        %v422 = vmul.f32 %v390, 0.25
        %v423 = vmul.f32 %v391, 0.25
        %v424 = vmul.f32 %v392, 0.25
        %v425 = vmul.f32 %v393, 0.25
        %v426 = vmul.f32 %v394, 0.25
        %v427 = vadd.f32 %v395, %v419
        %v428 = vadd.f32 %v396, %v420
        %v429 = vadd.f32 %v397, %v421
        %v430 = vadd.f32 %v398, %v422
        %v431 = vadd.f32 %v399, %v423
        %v432 = vadd.f32 %v400, %v424
        %v433 = vadd.f32 %v401, %v425
        %v434 = vadd.f32 %v402, %v426
        %v444 = vunpack.c.l.s4 1966171168
        %v445 = vunpack.c.0.s8 %v444
        %v446 = vlaneseq
        %v447 = vshrl.u32 %v446, 7
        %v448 = vsub.s32 %v445, %v447
        %v449 = vrot.slane %v411, %v448
        %v450 = vcombine.high %v449, %v449
        %v452 = vunpack.c.l.s4 1966171168
        %v453 = vunpack.c.0.s8 %v452
        %v454 = vlaneseq
        %v455 = vshrl.u32 %v454, 7
        %v456 = vsub.s32 %v453, %v455
        %v457 = vrot.slane %v449, %v456
        %v459 = vunpack.c.l.s4 1966171168
        %v460 = vunpack.c.0.s8 %v459
        %v461 = vlaneseq
        %v462 = vshrl.u32 %v461, 7
        %v463 = vsub.s32 %v460, %v462
        %v464 = vrot.slane %v450, %v463
        %v465 = vcombine.high %v457, %v457
        %v466 = vcombine.high %v464, %v464
        %v468 = vunpack.c.l.s4 1966171168
        %v469 = vunpack.c.0.s8 %v468
        %v470 = vlaneseq
        %v471 = vshrl.u32 %v470, 7
        %v472 = vsub.s32 %v469, %v471
        %v473 = vrot.slane %v412, %v472
        %v474 = vcombine.high %v473, %v473
        %v476 = vunpack.c.l.s4 1966171168
        %v477 = vunpack.c.0.s8 %v476
        %v478 = vlaneseq
        %v479 = vshrl.u32 %v478, 7
        %v480 = vsub.s32 %v477, %v479
        %v481 = vrot.slane %v473, %v480
        %v483 = vunpack.c.l.s4 1966171168
        %v484 = vunpack.c.0.s8 %v483
        %v485 = vlaneseq
        %v486 = vshrl.u32 %v485, 7
        %v487 = vsub.s32 %v484, %v486
        %v488 = vrot.slane %v474, %v487
        %v489 = vcombine.high %v481, %v481
        %v490 = vcombine.high %v488, %v488
        %v492 = vunpack.c.l.s4 1966171168
        %v493 = vunpack.c.0.s8 %v492
        %v494 = vlaneseq
        %v495 = vshrl.u32 %v494, 7
        %v496 = vsub.s32 %v493, %v495
        %v497 = vrot.slane %v413, %v496
        %v498 = vcombine.high %v497, %v497
        %v500 = vunpack.c.l.s4 1966171168
        %v501 = vunpack.c.0.s8 %v500
        %v502 = vlaneseq
        %v503 = vshrl.u32 %v502, 7
        %v504 = vsub.s32 %v501, %v503
        %v505 = vrot.slane %v497, %v504
        %v507 = vunpack.c.l.s4 1966171168
        %v508 = vunpack.c.0.s8 %v507
        %v509 = vlaneseq
        %v510 = vshrl.u32 %v509, 7
        %v511 = vsub.s32 %v508, %v510
        %v512 = vrot.slane %v498, %v511
        %v513 = vcombine.high %v505, %v505
        %v514 = vcombine.high %v512, %v512
        %v516 = vunpack.c.l.s4 1966171168
        %v517 = vunpack.c.0.s8 %v516
        %v518 = vlaneseq
        %v519 = vshrl.u32 %v518, 7
        %v520 = vsub.s32 %v517, %v519
        %v521 = vrot.slane %v414, %v520
        %v522 = vcombine.high %v521, %v521
        %v524 = vunpack.c.l.s4 1966171168
        %v525 = vunpack.c.0.s8 %v524
        %v526 = vlaneseq
        %v527 = vshrl.u32 %v526, 7
        %v528 = vsub.s32 %v525, %v527
        %v529 = vrot.slane %v521, %v528
        %v531 = vunpack.c.l.s4 1966171168
        %v532 = vunpack.c.0.s8 %v531
        %v533 = vlaneseq
        %v534 = vshrl.u32 %v533, 7
        %v535 = vsub.s32 %v532, %v534
        %v536 = vrot.slane %v522, %v535
        %v537 = vcombine.high %v529, %v529
        %v538 = vcombine.high %v536, %v536
        %v540 = vunpack.c.l.s4 1966171168
        %v541 = vunpack.c.0.s8 %v540
        %v542 = vlaneseq
        %v543 = vshrl.u32 %v542, 7
        %v544 = vsub.s32 %v541, %v543
        %v545 = vrot.slane %v415, %v544
        %v546 = vcombine.high %v545, %v545
        %v548 = vunpack.c.l.s4 1966171168
        %v549 = vunpack.c.0.s8 %v548
        %v550 = vlaneseq
        %v551 = vshrl.u32 %v550, 7
        %v552 = vsub.s32 %v549, %v551
        %v553 = vrot.slane %v545, %v552
        %v555 = vunpack.c.l.s4 1966171168
        %v556 = vunpack.c.0.s8 %v555
        %v557 = vlaneseq
        %v558 = vshrl.u32 %v557, 7
        %v559 = vsub.s32 %v556, %v558
        %v560 = vrot.slane %v546, %v559
        %v561 = vcombine.high %v553, %v553
        %v562 = vcombine.high %v560, %v560
        %v564 = vunpack.c.l.s4 1966171168
        %v565 = vunpack.c.0.s8 %v564
        %v566 = vlaneseq
        %v567 = vshrl.u32 %v566, 7
        %v568 = vsub.s32 %v565, %v567
        %v569 = vrot.slane %v416, %v568
        %v570 = vcombine.high %v569, %v569
        %v572 = vunpack.c.l.s4 1966171168
        %v573 = vunpack.c.0.s8 %v572
        %v574 = vlaneseq
        %v575 = vshrl.u32 %v574, 7
        %v576 = vsub.s32 %v573, %v575
        %v577 = vrot.slane %v569, %v576
        %v579 = vunpack.c.l.s4 1966171168
        %v580 = vunpack.c.0.s8 %v579
        %v581 = vlaneseq
        %v582 = vshrl.u32 %v581, 7
        %v583 = vsub.s32 %v580, %v582
        %v584 = vrot.slane %v570, %v583
        %v585 = vcombine.high %v577, %v577
        %v586 = vcombine.high %v584, %v584
        %v588 = vunpack.c.l.s4 1966171168
        %v589 = vunpack.c.0.s8 %v588
        %v590 = vlaneseq
        %v591 = vshrl.u32 %v590, 7
        %v592 = vsub.s32 %v589, %v591
        %v593 = vrot.slane %v417, %v592
        %v594 = vcombine.high %v593, %v593
        %v596 = vunpack.c.l.s4 1966171168
        %v597 = vunpack.c.0.s8 %v596
        %v598 = vlaneseq
        %v599 = vshrl.u32 %v598, 7
        %v600 = vsub.s32 %v597, %v599
        %v601 = vrot.slane %v593, %v600
        %v603 = vunpack.c.l.s4 1966171168
        %v604 = vunpack.c.0.s8 %v603
        %v605 = vlaneseq
        %v606 = vshrl.u32 %v605, 7
        %v607 = vsub.s32 %v604, %v606
        %v608 = vrot.slane %v594, %v607
        %v609 = vcombine.high %v601, %v601
        %v610 = vcombine.high %v608, %v608
        %v612 = vunpack.c.l.s4 1966171168
        %v613 = vunpack.c.0.s8 %v612
        %v614 = vlaneseq
        %v615 = vshrl.u32 %v614, 7
        %v616 = vsub.s32 %v613, %v615
        %v617 = vrot.slane %v418, %v616
        %v618 = vcombine.high %v617, %v617
        %v620 = vunpack.c.l.s4 1966171168
        %v621 = vunpack.c.0.s8 %v620
        %v622 = vlaneseq
        %v623 = vshrl.u32 %v622, 7
        %v624 = vsub.s32 %v621, %v623
        %v625 = vrot.slane %v617, %v624
        %v627 = vunpack.c.l.s4 1966171168
        %v628 = vunpack.c.0.s8 %v627
        %v629 = vlaneseq
        %v630 = vshrl.u32 %v629, 7
        %v631 = vsub.s32 %v628, %v630
        %v632 = vrot.slane %v618, %v631
        %v633 = vcombine.high %v625, %v625
        %v634 = vcombine.high %v632, %v632
        %v676 = vunpack.c.l.s4 1966171168
        %v677 = vunpack.c.0.s8 %v676
        %v678 = vlaneseq
        %v679 = vshrl.u32 %v678, 7
        %v680 = vsub.s32 %v677, %v679
        %v681 = vrot.slane %v427, %v680
        %v682 = vcombine.high %v681, %v681
        %v684 = vunpack.c.l.s4 1966171168
        %v685 = vunpack.c.0.s8 %v684
        %v686 = vlaneseq
        %v687 = vshrl.u32 %v686, 7
        %v688 = vsub.s32 %v685, %v687
        %v689 = vrot.slane %v681, %v688
        %v691 = vunpack.c.l.s4 1966171168
        %v692 = vunpack.c.0.s8 %v691
        %v693 = vlaneseq
        %v694 = vshrl.u32 %v693, 7
        %v695 = vsub.s32 %v692, %v694
        %v696 = vrot.slane %v682, %v695
        %v697 = vcombine.high %v689, %v689
        %v698 = vcombine.high %v696, %v696
        %v700 = vunpack.c.l.s4 1966171168
        %v701 = vunpack.c.0.s8 %v700
        %v702 = vlaneseq
        %v703 = vshrl.u32 %v702, 7
        %v704 = vsub.s32 %v701, %v703
        %v705 = vrot.slane %v428, %v704
        %v706 = vcombine.high %v705, %v705
        %v708 = vunpack.c.l.s4 1966171168
        %v709 = vunpack.c.0.s8 %v708
        %v710 = vlaneseq
        %v711 = vshrl.u32 %v710, 7
        %v712 = vsub.s32 %v709, %v711
        %v713 = vrot.slane %v705, %v712
        %v715 = vunpack.c.l.s4 1966171168
        %v716 = vunpack.c.0.s8 %v715
        %v717 = vlaneseq
        %v718 = vshrl.u32 %v717, 7
        %v719 = vsub.s32 %v716, %v718
        %v720 = vrot.slane %v706, %v719
        %v721 = vcombine.high %v713, %v713
        %v722 = vcombine.high %v720, %v720
        %v724 = vunpack.c.l.s4 1966171168
        %v725 = vunpack.c.0.s8 %v724
        %v726 = vlaneseq
        %v727 = vshrl.u32 %v726, 7
        %v728 = vsub.s32 %v725, %v727
        %v729 = vrot.slane %v429, %v728
        %v730 = vcombine.high %v729, %v729
        %v732 = vunpack.c.l.s4 1966171168
        %v733 = vunpack.c.0.s8 %v732
        %v734 = vlaneseq
        %v735 = vshrl.u32 %v734, 7
        %v736 = vsub.s32 %v733, %v735
        %v737 = vrot.slane %v729, %v736
        %v739 = vunpack.c.l.s4 1966171168
        %v740 = vunpack.c.0.s8 %v739
        %v741 = vlaneseq
        %v742 = vshrl.u32 %v741, 7
        %v743 = vsub.s32 %v740, %v742
        %v744 = vrot.slane %v730, %v743
        %v745 = vcombine.high %v737, %v737
        %v746 = vcombine.high %v744, %v744
        %v748 = vunpack.c.l.s4 1966171168
        %v749 = vunpack.c.0.s8 %v748
        %v750 = vlaneseq
        %v751 = vshrl.u32 %v750, 7
        %v752 = vsub.s32 %v749, %v751
        %v753 = vrot.slane %v430, %v752
        %v754 = vcombine.high %v753, %v753
        %v756 = vunpack.c.l.s4 1966171168
        %v757 = vunpack.c.0.s8 %v756
        %v758 = vlaneseq
        %v759 = vshrl.u32 %v758, 7
        %v760 = vsub.s32 %v757, %v759
        %v761 = vrot.slane %v753, %v760
        %v763 = vunpack.c.l.s4 1966171168
        %v764 = vunpack.c.0.s8 %v763
        %v765 = vlaneseq
        %v766 = vshrl.u32 %v765, 7
        %v767 = vsub.s32 %v764, %v766
        %v768 = vrot.slane %v754, %v767
        %v769 = vcombine.high %v761, %v761
        %v770 = vcombine.high %v768, %v768
        %v772 = vunpack.c.l.s4 1966171168
        %v773 = vunpack.c.0.s8 %v772
        %v774 = vlaneseq
        %v775 = vshrl.u32 %v774, 7
        %v776 = vsub.s32 %v773, %v775
        %v777 = vrot.slane %v431, %v776
        %v778 = vcombine.high %v777, %v777
        %v780 = vunpack.c.l.s4 1966171168
        %v781 = vunpack.c.0.s8 %v780
        %v782 = vlaneseq
        %v783 = vshrl.u32 %v782, 7
        %v784 = vsub.s32 %v781, %v783
        %v785 = vrot.slane %v777, %v784
        %v787 = vunpack.c.l.s4 1966171168
        %v788 = vunpack.c.0.s8 %v787
        %v789 = vlaneseq
        %v790 = vshrl.u32 %v789, 7
        %v791 = vsub.s32 %v788, %v790
        %v792 = vrot.slane %v778, %v791
        %v793 = vcombine.high %v785, %v785
        %v794 = vcombine.high %v792, %v792
        %v796 = vunpack.c.l.s4 1966171168
        %v797 = vunpack.c.0.s8 %v796
        %v798 = vlaneseq
        %v799 = vshrl.u32 %v798, 7
        %v800 = vsub.s32 %v797, %v799
        %v801 = vrot.slane %v432, %v800
        %v802 = vcombine.high %v801, %v801
        %v804 = vunpack.c.l.s4 1966171168
        %v805 = vunpack.c.0.s8 %v804
        %v806 = vlaneseq
        %v807 = vshrl.u32 %v806, 7
        %v808 = vsub.s32 %v805, %v807
        %v809 = vrot.slane %v801, %v808
        %v811 = vunpack.c.l.s4 1966171168
        %v812 = vunpack.c.0.s8 %v811
        %v813 = vlaneseq
        %v814 = vshrl.u32 %v813, 7
        %v815 = vsub.s32 %v812, %v814
        %v816 = vrot.slane %v802, %v815
        %v817 = vcombine.high %v809, %v809
        %v818 = vcombine.high %v816, %v816
        %v820 = vunpack.c.l.s4 1966171168
        %v821 = vunpack.c.0.s8 %v820
        %v822 = vlaneseq
        %v823 = vshrl.u32 %v822, 7
        %v824 = vsub.s32 %v821, %v823
        %v825 = vrot.slane %v433, %v824
        %v826 = vcombine.high %v825, %v825
        %v828 = vunpack.c.l.s4 1966171168
        %v829 = vunpack.c.0.s8 %v828
        %v830 = vlaneseq
        %v831 = vshrl.u32 %v830, 7
        %v832 = vsub.s32 %v829, %v831
        %v833 = vrot.slane %v825, %v832
        %v835 = vunpack.c.l.s4 1966171168
        %v836 = vunpack.c.0.s8 %v835
        %v837 = vlaneseq
        %v838 = vshrl.u32 %v837, 7
        %v839 = vsub.s32 %v836, %v838
        %v840 = vrot.slane %v826, %v839
        %v841 = vcombine.high %v833, %v833
        %v842 = vcombine.high %v840, %v840
        %v844 = vunpack.c.l.s4 1966171168
        %v845 = vunpack.c.0.s8 %v844
        %v846 = vlaneseq
        %v847 = vshrl.u32 %v846, 7
        %v848 = vsub.s32 %v845, %v847
        %v849 = vrot.slane %v434, %v848
        %v850 = vcombine.high %v849, %v849
        %v852 = vunpack.c.l.s4 1966171168
        %v853 = vunpack.c.0.s8 %v852
        %v854 = vlaneseq
        %v855 = vshrl.u32 %v854, 7
        %v856 = vsub.s32 %v853, %v855
        %v857 = vrot.slane %v849, %v856
        %v859 = vunpack.c.l.s4 1966171168
        %v860 = vunpack.c.0.s8 %v859
        %v861 = vlaneseq
        %v862 = vshrl.u32 %v861, 7
        %v863 = vsub.s32 %v860, %v862
        %v864 = vrot.slane %v850, %v863
        %v865 = vcombine.high %v857, %v857
        %v866 = vcombine.high %v864, %v864
        %v867 = vlaneseq
        %v868 = vshrl.u32 %v867, 7
        %v869 = vsub.s32 0, %v868
        %v870 = vrot.slane %v689, %v869
        %v871 = vlaneseq
        %v872 = vshrl.u32 %v871, 7
        %v873 = vsub.s32 0, %v872
        %v874 = vrot.slane %v696, %v873
        %v875 = vlaneseq
        %v876 = vshrl.u32 %v875, 7
        %v877 = vsub.s32 0, %v876
        %v878 = vrot.slane %v697, %v877
        %v879 = vlaneseq
        %v880 = vshrl.u32 %v879, 7
        %v881 = vsub.s32 0, %v880
        %v882 = vrot.slane %v698, %v881
        %v883 = vlaneseq
        %v884 = vshrl.u32 %v883, 7
        %v885 = vsub.s32 0, %v884
        %v886 = vrot.slane %v713, %v885
        %v887 = vlaneseq
        %v888 = vshrl.u32 %v887, 7
        %v889 = vsub.s32 0, %v888
        %v890 = vrot.slane %v720, %v889
        %v891 = vlaneseq
        %v892 = vshrl.u32 %v891, 7
        %v893 = vsub.s32 0, %v892
        %v894 = vrot.slane %v721, %v893
        %v895 = vlaneseq
        %v896 = vshrl.u32 %v895, 7
        %v897 = vsub.s32 0, %v896
        %v898 = vrot.slane %v722, %v897
        %v899 = vlaneseq
        %v900 = vshrl.u32 %v899, 7
        %v901 = vsub.s32 0, %v900
        %v902 = vrot.slane %v737, %v901
        %v903 = vlaneseq
        %v904 = vshrl.u32 %v903, 7
        %v905 = vsub.s32 0, %v904
        %v906 = vrot.slane %v744, %v905
        %v907 = vlaneseq
        %v908 = vshrl.u32 %v907, 7
        %v909 = vsub.s32 0, %v908
        %v910 = vrot.slane %v745, %v909
        %v911 = vlaneseq
        %v912 = vshrl.u32 %v911, 7
        %v913 = vsub.s32 0, %v912
        %v914 = vrot.slane %v746, %v913
        %v915 = vlaneseq
        %v916 = vshrl.u32 %v915, 7
        %v917 = vsub.s32 0, %v916
        %v918 = vrot.slane %v761, %v917
        %v919 = vlaneseq
        %v920 = vshrl.u32 %v919, 7
        %v921 = vsub.s32 0, %v920
        %v922 = vrot.slane %v768, %v921
        %v923 = vlaneseq
        %v924 = vshrl.u32 %v923, 7
        %v925 = vsub.s32 0, %v924
        %v926 = vrot.slane %v769, %v925
        %v927 = vlaneseq
        %v928 = vshrl.u32 %v927, 7
        %v929 = vsub.s32 0, %v928
        %v930 = vrot.slane %v770, %v929
        %v931 = vlaneseq
        %v932 = vshrl.u32 %v931, 7
        %v933 = vsub.s32 0, %v932
        %v934 = vrot.slane %v785, %v933
        %v935 = vlaneseq
        %v936 = vshrl.u32 %v935, 7
        %v937 = vsub.s32 0, %v936
        %v938 = vrot.slane %v792, %v937
        %v939 = vlaneseq
        %v940 = vshrl.u32 %v939, 7
        %v941 = vsub.s32 0, %v940
        %v942 = vrot.slane %v793, %v941
        %v943 = vlaneseq
        %v944 = vshrl.u32 %v943, 7
        %v945 = vsub.s32 0, %v944
        %v946 = vrot.slane %v794, %v945
        %v947 = vlaneseq
        %v948 = vshrl.u32 %v947, 7
        %v949 = vsub.s32 0, %v948
        %v950 = vrot.slane %v809, %v949
        %v951 = vlaneseq
        %v952 = vshrl.u32 %v951, 7
        %v953 = vsub.s32 0, %v952
        %v954 = vrot.slane %v816, %v953
        %v955 = vlaneseq
        %v956 = vshrl.u32 %v955, 7
        %v957 = vsub.s32 0, %v956
        %v958 = vrot.slane %v817, %v957
        %v959 = vlaneseq
        %v960 = vshrl.u32 %v959, 7
        %v961 = vsub.s32 0, %v960
        %v962 = vrot.slane %v818, %v961
        %v963 = vlaneseq
        %v964 = vshrl.u32 %v963, 7
        %v965 = vsub.s32 0, %v964
        %v966 = vrot.slane %v833, %v965
        %v967 = vlaneseq
        %v968 = vshrl.u32 %v967, 7
        %v969 = vsub.s32 0, %v968
        %v970 = vrot.slane %v840, %v969
        %v971 = vlaneseq
        %v972 = vshrl.u32 %v971, 7
        %v973 = vsub.s32 0, %v972
        %v974 = vrot.slane %v841, %v973
        %v975 = vlaneseq
        %v976 = vshrl.u32 %v975, 7
        %v977 = vsub.s32 0, %v976
        %v978 = vrot.slane %v842, %v977
        %v979 = vlaneseq
        %v980 = vshrl.u32 %v979, 7
        %v981 = vsub.s32 0, %v980
        %v982 = vrot.slane %v857, %v981
        %v983 = vlaneseq
        %v984 = vshrl.u32 %v983, 7
        %v985 = vsub.s32 0, %v984
        %v986 = vrot.slane %v864, %v985
        %v987 = vlaneseq
        %v988 = vshrl.u32 %v987, 7
        %v989 = vsub.s32 0, %v988
        %v990 = vrot.slane %v865, %v989
        %v991 = vlaneseq
        %v992 = vshrl.u32 %v991, 7
        %v993 = vsub.s32 0, %v992
        %v994 = vrot.slane %v866, %v993
        %v1027 = vsel %vm361, %v457, %v870
        %v1028 = vsel %vm361, %v464, %v874
        %v1029 = vsel %vm361, %v465, %v878
        %v1030 = vsel %vm361, %v466, %v882
        %v1031 = vsel %vm361, %v481, %v886
        %v1032 = vsel %vm361, %v488, %v890
        %v1033 = vsel %vm361, %v489, %v894
        %v1034 = vsel %vm361, %v490, %v898
        %v1035 = vsel %vm361, %v505, %v902
        %v1036 = vsel %vm361, %v512, %v906
        %v1037 = vsel %vm361, %v513, %v910
        %v1038 = vsel %vm361, %v514, %v914
        %v1039 = vsel %vm361, %v529, %v918
        %v1040 = vsel %vm361, %v536, %v922
        %v1041 = vsel %vm361, %v537, %v926
        %v1042 = vsel %vm361, %v538, %v930
        %v1043 = vsel %vm361, %v553, %v934
        %v1044 = vsel %vm361, %v560, %v938
        %v1045 = vsel %vm361, %v561, %v942
        %v1046 = vsel %vm361, %v562, %v946
        %v1047 = vsel %vm361, %v577, %v950
        %v1048 = vsel %vm361, %v584, %v954
        %v1049 = vsel %vm361, %v585, %v958
        %v1050 = vsel %vm361, %v586, %v962
        %v1051 = vsel %vm361, %v601, %v966
        %v1052 = vsel %vm361, %v608, %v970
        %v1053 = vsel %vm361, %v609, %v974
        %v1054 = vsel %vm361, %v610, %v978
        %v1055 = vsel %vm361, %v625, %v982
        %v1056 = vsel %vm361, %v632, %v986
        %v1057 = vsel %vm361, %v633, %v990
        %v1058 = vsel %vm361, %v634, %v994
        %v1059 = vld [vmem:[%s311] sm:$0xff]
        %v1060 = vld [vmem:[%s311 + $0x8] sm:$0xff]
        %v1061 = vld [vmem:[%s311 + $0x10] sm:$0xff]
        %v1062 = vld [vmem:[%s311 + $0x18] sm:$0xff]
        %v1063 = vld [vmem:[%s311 + $0x20] sm:$0xff]
        %v1064 = vld [vmem:[%s311 + $0x28] sm:$0xff]
        %v1065 = vld [vmem:[%s311 + $0x30] sm:$0xff]
        %v1066 = vld [vmem:[%s311 + $0x38] sm:$0xff]
        %v1099 = vcombine.low %v1027, %v1028
        %v1100 = vcombine.low %v1029, %v1030
        %v1102 = vunpack.c.l.s4 1983009808
        %v1103 = vunpack.c.0.s8 %v1102
        %v1104 = vlaneseq
        %v1105 = vshrl.u32 %v1104, 7
        %v1106 = vsub.s32 %v1103, %v1105
        %v1107 = vrot.slane %v1099, %v1106
        %v1109 = vunpack.c.l.s4 1983009808
        %v1110 = vunpack.c.0.s8 %v1109
        %v1111 = vlaneseq
        %v1112 = vshrl.u32 %v1111, 7
        %v1113 = vsub.s32 %v1110, %v1112
        %v1114 = vrot.slane %v1100, %v1113
        %v1115 = vcombine.low %v1107, %v1114
        %v1116 = vcombine.low %v1031, %v1032
        %v1117 = vcombine.low %v1033, %v1034
        %v1119 = vunpack.c.l.s4 1983009808
        %v1120 = vunpack.c.0.s8 %v1119
        %v1121 = vlaneseq
        %v1122 = vshrl.u32 %v1121, 7
        %v1123 = vsub.s32 %v1120, %v1122
        %v1124 = vrot.slane %v1116, %v1123
        %v1126 = vunpack.c.l.s4 1983009808
        %v1127 = vunpack.c.0.s8 %v1126
        %v1128 = vlaneseq
        %v1129 = vshrl.u32 %v1128, 7
        %v1130 = vsub.s32 %v1127, %v1129
        %v1131 = vrot.slane %v1117, %v1130
        %v1132 = vcombine.low %v1124, %v1131
        %v1133 = vcombine.low %v1035, %v1036
        %v1134 = vcombine.low %v1037, %v1038
        %v1136 = vunpack.c.l.s4 1983009808
        %v1137 = vunpack.c.0.s8 %v1136
        %v1138 = vlaneseq
        %v1139 = vshrl.u32 %v1138, 7
        %v1140 = vsub.s32 %v1137, %v1139
        %v1141 = vrot.slane %v1133, %v1140
        %v1143 = vunpack.c.l.s4 1983009808
        %v1144 = vunpack.c.0.s8 %v1143
        %v1145 = vlaneseq
        %v1146 = vshrl.u32 %v1145, 7
        %v1147 = vsub.s32 %v1144, %v1146
        %v1148 = vrot.slane %v1134, %v1147
        %v1149 = vcombine.low %v1141, %v1148
        %v1150 = vcombine.low %v1039, %v1040
        %v1151 = vcombine.low %v1041, %v1042
        %v1153 = vunpack.c.l.s4 1983009808
        %v1154 = vunpack.c.0.s8 %v1153
        %v1155 = vlaneseq
        %v1156 = vshrl.u32 %v1155, 7
        %v1157 = vsub.s32 %v1154, %v1156
        %v1158 = vrot.slane %v1150, %v1157
        %v1160 = vunpack.c.l.s4 1983009808
        %v1161 = vunpack.c.0.s8 %v1160
        %v1162 = vlaneseq
        %v1163 = vshrl.u32 %v1162, 7
        %v1164 = vsub.s32 %v1161, %v1163
        %v1165 = vrot.slane %v1151, %v1164
        %v1166 = vcombine.low %v1158, %v1165
        %v1167 = vcombine.low %v1043, %v1044
        %v1168 = vcombine.low %v1045, %v1046
        %v1170 = vunpack.c.l.s4 1983009808
        %v1171 = vunpack.c.0.s8 %v1170
        %v1172 = vlaneseq
        %v1173 = vshrl.u32 %v1172, 7
        %v1174 = vsub.s32 %v1171, %v1173
        %v1175 = vrot.slane %v1167, %v1174
        %v1177 = vunpack.c.l.s4 1983009808
        %v1178 = vunpack.c.0.s8 %v1177
        %v1179 = vlaneseq
        %v1180 = vshrl.u32 %v1179, 7
        %v1181 = vsub.s32 %v1178, %v1180
        %v1182 = vrot.slane %v1168, %v1181
        %v1183 = vcombine.low %v1175, %v1182
        %v1184 = vcombine.low %v1047, %v1048
        %v1185 = vcombine.low %v1049, %v1050
        %v1187 = vunpack.c.l.s4 1983009808
        %v1188 = vunpack.c.0.s8 %v1187
        %v1189 = vlaneseq
        %v1190 = vshrl.u32 %v1189, 7
        %v1191 = vsub.s32 %v1188, %v1190
        %v1192 = vrot.slane %v1184, %v1191
        %v1194 = vunpack.c.l.s4 1983009808
        %v1195 = vunpack.c.0.s8 %v1194
        %v1196 = vlaneseq
        %v1197 = vshrl.u32 %v1196, 7
        %v1198 = vsub.s32 %v1195, %v1197
        %v1199 = vrot.slane %v1185, %v1198
        %v1200 = vcombine.low %v1192, %v1199
        %v1201 = vcombine.low %v1051, %v1052
        %v1202 = vcombine.low %v1053, %v1054
        %v1204 = vunpack.c.l.s4 1983009808
        %v1205 = vunpack.c.0.s8 %v1204
        %v1206 = vlaneseq
        %v1207 = vshrl.u32 %v1206, 7
        %v1208 = vsub.s32 %v1205, %v1207
        %v1209 = vrot.slane %v1201, %v1208
        %v1211 = vunpack.c.l.s4 1983009808
        %v1212 = vunpack.c.0.s8 %v1211
        %v1213 = vlaneseq
        %v1214 = vshrl.u32 %v1213, 7
        %v1215 = vsub.s32 %v1212, %v1214
        %v1216 = vrot.slane %v1202, %v1215
        %v1217 = vcombine.low %v1209, %v1216
        %v1218 = vcombine.low %v1055, %v1056
        %v1219 = vcombine.low %v1057, %v1058
        %v1221 = vunpack.c.l.s4 1983009808
        %v1222 = vunpack.c.0.s8 %v1221
        %v1223 = vlaneseq
        %v1224 = vshrl.u32 %v1223, 7
        %v1225 = vsub.s32 %v1222, %v1224
        %v1226 = vrot.slane %v1218, %v1225
        %v1228 = vunpack.c.l.s4 1983009808
        %v1229 = vunpack.c.0.s8 %v1228
        %v1230 = vlaneseq
        %v1231 = vshrl.u32 %v1230, 7
        %v1232 = vsub.s32 %v1229, %v1231
        %v1233 = vrot.slane %v1219, %v1232
        %v1234 = vcombine.low %v1226, %v1233
        %1251 = vrot.lane.b32.xlu0 %v1059, 16
        %v1252 = vpop.permute.xlu0 %1251
        %1253 = vrot.lane.b32.xlu0 %v1060, 16
        %v1254 = vpop.permute.xlu0 %1253
        %1255 = vrot.lane.b32.xlu0 %v1061, 16
        %v1256 = vpop.permute.xlu0 %1255
        %1257 = vrot.lane.b32.xlu0 %v1062, 16
        %v1258 = vpop.permute.xlu0 %1257
        %1259 = vrot.lane.b32.xlu0 %v1063, 16
        %v1260 = vpop.permute.xlu0 %1259
        %1261 = vrot.lane.b32.xlu0 %v1064, 16
        %v1262 = vpop.permute.xlu0 %1261
        %1263 = vrot.lane.b32.xlu0 %v1065, 16
        %v1264 = vpop.permute.xlu0 %1263
        %1265 = vrot.lane.b32.xlu0 %v1066, 16
        %v1266 = vpop.permute.xlu0 %1265
        %vm1275 = vcmask 130048
        %v1276 = vsel %vm1275, %v1115, %v1252
        %v1277 = vsel %vm1275, %v1132, %v1254
        %v1278 = vsel %vm1275, %v1149, %v1256
        %v1279 = vsel %vm1275, %v1166, %v1258
        %v1280 = vsel %vm1275, %v1183, %v1260
        %v1281 = vsel %vm1275, %v1200, %v1262
        %v1282 = vsel %vm1275, %v1217, %v1264
        %v1283 = vsel %vm1275, %v1234, %v1266
        %v1284 = vld [vmem:[%s3] sm:$0xff]
        %v1285 = vld [vmem:[%s3 + $0x8] sm:$0xff]
        %v1286 = vld [vmem:[%s3 + $0x10] sm:$0xff]
        %v1287 = vld [vmem:[%s3 + $0x18] sm:$0xff]
        %v1288 = vld [vmem:[%s3 + $0x20] sm:$0xff]
        %v1289 = vld [vmem:[%s3 + $0x28] sm:$0xff]
        %v1290 = vld [vmem:[%s3 + $0x30] sm:$0xff]
        %v1291 = vld [vmem:[%s3 + $0x38] sm:$0xff]
        %v1292 = vld [vmem:[%s3 + $0x40] sm:$0xff]
        %v1293 = vld [vmem:[%s3 + $0x48] sm:$0xff]
        %v1294 = vld [vmem:[%s3 + $0x50] sm:$0xff]
        %v1295 = vld [vmem:[%s3 + $0x58] sm:$0xff]
        %v1296 = vld [vmem:[%s3 + $0x60] sm:$0xff]
        %v1297 = vld [vmem:[%s3 + $0x68] sm:$0xff]
        %v1298 = vld [vmem:[%s3 + $0x70] sm:$0xff]
        %v1299 = vld [vmem:[%s3 + $0x78] sm:$0xff]
        %v1300 = vld [vmem:[%s3 + $0x80] sm:$0xff]
        %v1301 = vld [vmem:[%s3 + $0x88] sm:$0xff]
        %v1302 = vld [vmem:[%s3 + $0x90] sm:$0xff]
        %v1303 = vld [vmem:[%s3 + $0x98] sm:$0xff]
        %v1304 = vld [vmem:[%s3 + $0xa0] sm:$0xff]
        %v1305 = vld [vmem:[%s3 + $0xa8] sm:$0xff]
        %v1306 = vld [vmem:[%s3 + $0xb0] sm:$0xff]
        %v1307 = vld [vmem:[%s3 + $0xb8] sm:$0xff]
        %v1308 = vld [vmem:[%s3 + $0xc0] sm:$0xff]
        %v1309 = vld [vmem:[%s3 + $0xc8] sm:$0xff]
        %v1310 = vld [vmem:[%s3 + $0xd0] sm:$0xff]
        %v1311 = vld [vmem:[%s3 + $0xd8] sm:$0xff]
        %v1312 = vld [vmem:[%s3 + $0xe0] sm:$0xff]
        %v1313 = vld [vmem:[%s3 + $0xe8] sm:$0xff]
        %v1314 = vld [vmem:[%s3 + $0xf0] sm:$0xff]
        %v1315 = vld [vmem:[%s3 + $0xf8] sm:$0xff]
        %v1316 = vld [vmem:[%s3 + $0x100] sm:$0xff]
        %v1317 = vld [vmem:[%s3 + $0x108] sm:$0xff]
        %v1318 = vld [vmem:[%s3 + $0x110] sm:$0xff]
        %v1319 = vld [vmem:[%s3 + $0x118] sm:$0xff]
        %v1320 = vld [vmem:[%s4] sm:$0x1]
        %v1330 = vrot.slane 0.0, 7
        %v1331 = vrot.slane %v1276, 7
        %v1332 = vrot.slane %v1277, 7
        %v1333 = vrot.slane %v1278, 7
        %v1334 = vrot.slane %v1279, 7
        %v1335 = vrot.slane %v1280, 7
        %v1336 = vrot.slane %v1281, 7
        %v1337 = vrot.slane %v1282, 7
        %v1338 = vrot.slane %v1283, 7
        %v1348 = vsel %vm361, 0.0, %v1330
        %v1349 = vsel %vm361, 0.0, %v1331
        %v1350 = vsel %vm361, 0.0, %v1332
        %v1351 = vsel %vm361, 0.0, %v1333
        %v1352 = vsel %vm361, 0.0, %v1334
        %v1353 = vsel %vm361, 0.0, %v1335
        %v1354 = vsel %vm361, 0.0, %v1336
        %v1355 = vsel %vm361, 0.0, %v1337
        %v1356 = vsel %vm361, 0.0, %v1338
        %v1357 = vsel %vm361, %v1330, 0.0
        %v1358 = vsel %vm361, %v1331, 0.0
        %v1359 = vsel %vm361, %v1332, 0.0
        %v1360 = vsel %vm361, %v1333, 0.0
        %v1361 = vsel %vm361, %v1334, 0.0
        %v1362 = vsel %vm361, %v1335, 0.0
        %v1363 = vsel %vm361, %v1336, 0.0
        %v1364 = vsel %vm361, %v1337, 0.0
        %v1365 = vsel %vm361, %v1338, 0.0
        %vm1382 = vcmask 1046528
        %v1383 = vrot.slane %v1348, 1
        %v1384 = vrot.slane %v1357, 1
        %v1385 = vsel %vm1382, %v1383, %v1384
        %v1386 = vrot.slane %v1349, 1
        %v1387 = vrot.slane %v1358, 1
        %v1388 = vsel %vm1382, %v1386, %v1387
        %v1389 = vrot.slane %v1350, 1
        %v1390 = vrot.slane %v1359, 1
        %v1391 = vsel %vm1382, %v1389, %v1390
        %v1392 = vrot.slane %v1351, 1
        %v1393 = vrot.slane %v1360, 1
        %v1394 = vsel %vm1382, %v1392, %v1393
        %v1395 = vrot.slane %v1352, 1
        %v1396 = vrot.slane %v1361, 1
        %v1397 = vsel %vm1382, %v1395, %v1396
        %v1398 = vrot.slane %v1353, 1
        %v1399 = vrot.slane %v1362, 1
        %v1400 = vsel %vm1382, %v1398, %v1399
        %v1401 = vrot.slane %v1354, 1
        %v1402 = vrot.slane %v1363, 1
        %v1403 = vsel %vm1382, %v1401, %v1402
        %v1404 = vrot.slane %v1355, 1
        %v1405 = vrot.slane %v1364, 1
        %v1406 = vsel %vm1382, %v1404, %v1405
        %1407 = vrot.lane.b32.xlu0 %v1385, 32
        %v1408 = vpop.permute.xlu0 %1407
        %1409 = vrot.lane.b32.xlu0 %v1388, 32
        %v1410 = vpop.permute.xlu0 %1409
        %1411 = vrot.lane.b32.xlu0 %v1391, 32
        %v1412 = vpop.permute.xlu0 %1411
        %1413 = vrot.lane.b32.xlu0 %v1394, 32
        %v1414 = vpop.permute.xlu0 %1413
        %1415 = vrot.lane.b32.xlu0 %v1397, 32
        %v1416 = vpop.permute.xlu0 %1415
        %1417 = vrot.lane.b32.xlu0 %v1400, 32
        %v1418 = vpop.permute.xlu0 %1417
        %1419 = vrot.lane.b32.xlu0 %v1403, 32
        %v1420 = vpop.permute.xlu0 %1419
        %1421 = vrot.lane.b32.xlu0 %v1406, 32
        %v1422 = vpop.permute.xlu0 %1421
        %vm1431 = vcmask 1045504
        %v1432 = vrot.slane %v1348, 2
        %v1433 = vrot.slane %v1357, 2
        %v1434 = vsel %vm1431, %v1432, %v1433
        %v1435 = vrot.slane %v1349, 2
        %v1436 = vrot.slane %v1358, 2
        %v1437 = vsel %vm1431, %v1435, %v1436
        %v1438 = vrot.slane %v1350, 2
        %v1439 = vrot.slane %v1359, 2
        %v1440 = vsel %vm1431, %v1438, %v1439
        %v1441 = vrot.slane %v1351, 2
        %v1442 = vrot.slane %v1360, 2
        %v1443 = vsel %vm1431, %v1441, %v1442
        %v1444 = vrot.slane %v1352, 2
        %v1445 = vrot.slane %v1361, 2
        %v1446 = vsel %vm1431, %v1444, %v1445
        %v1447 = vrot.slane %v1353, 2
        %v1448 = vrot.slane %v1362, 2
        %v1449 = vsel %vm1431, %v1447, %v1448
        %v1450 = vrot.slane %v1354, 2
        %v1451 = vrot.slane %v1363, 2
        %v1452 = vsel %vm1431, %v1450, %v1451
        %v1453 = vrot.slane %v1355, 2
        %v1454 = vrot.slane %v1364, 2
        %v1455 = vsel %vm1431, %v1453, %v1454
        %1456 = vrot.lane.b32.xlu0 %v1434, 64
        %v1457 = vpop.permute.xlu0 %1456
        %1458 = vrot.lane.b32.xlu0 %v1437, 64
        %v1459 = vpop.permute.xlu0 %1458
        %1460 = vrot.lane.b32.xlu0 %v1440, 64
        %v1461 = vpop.permute.xlu0 %1460
        %1462 = vrot.lane.b32.xlu0 %v1443, 64
        %v1463 = vpop.permute.xlu0 %1462
        %1464 = vrot.lane.b32.xlu0 %v1446, 64
        %v1465 = vpop.permute.xlu0 %1464
        %1466 = vrot.lane.b32.xlu0 %v1449, 64
        %v1467 = vpop.permute.xlu0 %1466
        %1468 = vrot.lane.b32.xlu0 %v1452, 64
        %v1469 = vpop.permute.xlu0 %1468
        %1470 = vrot.lane.b32.xlu0 %v1455, 64
        %v1471 = vpop.permute.xlu0 %1470
        %1481 = vrot.lane.b32.xlu0 %v1349, 96
        %v1482 = vpop.permute.xlu0 %1481
        %1483 = vrot.lane.b32.xlu0 %v1350, 96
        %v1484 = vpop.permute.xlu0 %1483
        %1485 = vrot.lane.b32.xlu0 %v1351, 96
        %v1486 = vpop.permute.xlu0 %1485
        %1487 = vrot.lane.b32.xlu0 %v1352, 96
        %v1488 = vpop.permute.xlu0 %1487
        %1489 = vrot.lane.b32.xlu0 %v1353, 96
        %v1490 = vpop.permute.xlu0 %1489
        %1491 = vrot.lane.b32.xlu0 %v1354, 96
        %v1492 = vpop.permute.xlu0 %1491
        %1493 = vrot.lane.b32.xlu0 %v1355, 96
        %v1494 = vpop.permute.xlu0 %1493
        %1495 = vrot.lane.b32.xlu0 %v1356, 96
        %v1496 = vpop.permute.xlu0 %1495
        %v1506 = vrot.slane %v1356, 1
        %v1507 = vrot.slane %v1365, 1
        %v1508 = vsel %vm1382, %v1506, %v1507
        %v1517 = vrot.slane %v1356, 2
        %v1518 = vrot.slane %v1365, 2
        %v1519 = vsel %vm1431, %v1517, %v1518
        %1520 = vrot.lane.b32.xlu0 %v1437, 32
        %v1521 = vpop.permute.xlu0 %1520
        %1522 = vrot.lane.b32.xlu0 %v1440, 32
        %v1523 = vpop.permute.xlu0 %1522
        %1524 = vrot.lane.b32.xlu0 %v1443, 32
        %v1525 = vpop.permute.xlu0 %1524
        %1526 = vrot.lane.b32.xlu0 %v1446, 32
        %v1527 = vpop.permute.xlu0 %1526
        %1528 = vrot.lane.b32.xlu0 %v1449, 32
        %v1529 = vpop.permute.xlu0 %1528
        %1530 = vrot.lane.b32.xlu0 %v1452, 32
        %v1531 = vpop.permute.xlu0 %1530
        %1532 = vrot.lane.b32.xlu0 %v1455, 32
        %v1533 = vpop.permute.xlu0 %1532
        %1534 = vrot.lane.b32.xlu0 %v1519, 32
        %v1535 = vpop.permute.xlu0 %1534
        %1544 = vrot.lane.b32.xlu0 %v1350, 64
        %v1545 = vpop.permute.xlu0 %1544
        %1546 = vrot.lane.b32.xlu0 %v1351, 64
        %v1547 = vpop.permute.xlu0 %1546
        %1548 = vrot.lane.b32.xlu0 %v1352, 64
        %v1549 = vpop.permute.xlu0 %1548
        %1550 = vrot.lane.b32.xlu0 %v1353, 64
        %v1551 = vpop.permute.xlu0 %1550
        %1552 = vrot.lane.b32.xlu0 %v1354, 64
        %v1553 = vpop.permute.xlu0 %1552
        %1554 = vrot.lane.b32.xlu0 %v1355, 64
        %v1555 = vpop.permute.xlu0 %1554
        %1556 = vrot.lane.b32.xlu0 %v1356, 64
        %v1557 = vpop.permute.xlu0 %1556
        %1558 = vrot.lane.b32.xlu0 %v1348, 64
        %v1559 = vpop.permute.xlu0 %1558
        %1568 = vrot.lane.b32.xlu0 %v1391, 96
        %v1569 = vpop.permute.xlu0 %1568
        %1570 = vrot.lane.b32.xlu0 %v1394, 96
        %v1571 = vpop.permute.xlu0 %1570
        %1572 = vrot.lane.b32.xlu0 %v1397, 96
        %v1573 = vpop.permute.xlu0 %1572
        %1574 = vrot.lane.b32.xlu0 %v1400, 96
        %v1575 = vpop.permute.xlu0 %1574
        %1576 = vrot.lane.b32.xlu0 %v1403, 96
        %v1577 = vpop.permute.xlu0 %1576
        %1578 = vrot.lane.b32.xlu0 %v1406, 96
        %v1579 = vpop.permute.xlu0 %1578
        %1580 = vrot.lane.b32.xlu0 %v1508, 96
        %v1581 = vpop.permute.xlu0 %1580
        %1582 = vrot.lane.b32.xlu0 %v1385, 96
        %v1583 = vpop.permute.xlu0 %1582
        %vm1592 = vcmask 261120
        %v1593 = vsel %vm1592, %v1348, %v1408
        %v1594 = vsel %vm1592, %v1349, %v1410
        %v1595 = vsel %vm1592, %v1350, %v1412
        %v1596 = vsel %vm1592, %v1351, %v1414
        %v1597 = vsel %vm1592, %v1352, %v1416
        %v1598 = vsel %vm1592, %v1353, %v1418
        %v1599 = vsel %vm1592, %v1354, %v1420
        %v1600 = vsel %vm1592, %v1355, %v1422
        %vm1601 = vcmask 523264
        %v1602 = vsel %vm1601, %v1593, %v1457
        %v1603 = vsel %vm1601, %v1594, %v1459
        %v1604 = vsel %vm1601, %v1595, %v1461
        %v1605 = vsel %vm1601, %v1596, %v1463
        %v1606 = vsel %vm1601, %v1597, %v1465
        %v1607 = vsel %vm1601, %v1598, %v1467
        %v1608 = vsel %vm1601, %v1599, %v1469
        %v1609 = vsel %vm1601, %v1600, %v1471
        %vm1610 = vcmask 785408
        %v1611 = vsel %vm1610, %v1602, %v1482
        %v1612 = vsel %vm1610, %v1603, %v1484
        %v1613 = vsel %vm1610, %v1604, %v1486
        %v1614 = vsel %vm1610, %v1605, %v1488
        %v1615 = vsel %vm1610, %v1606, %v1490
        %v1616 = vsel %vm1610, %v1607, %v1492
        %v1617 = vsel %vm1610, %v1608, %v1494
        %v1618 = vsel %vm1610, %v1609, %v1496
        %v1619 = vsel %vm1592, %v1388, %v1521
        %v1620 = vsel %vm1592, %v1391, %v1523
        %v1621 = vsel %vm1592, %v1394, %v1525
        %v1622 = vsel %vm1592, %v1397, %v1527
        %v1623 = vsel %vm1592, %v1400, %v1529
        %v1624 = vsel %vm1592, %v1403, %v1531
        %v1625 = vsel %vm1592, %v1406, %v1533
        %v1626 = vsel %vm1592, %v1508, %v1535
        %v1627 = vsel %vm1601, %v1619, %v1545
        %v1628 = vsel %vm1601, %v1620, %v1547
        %v1629 = vsel %vm1601, %v1621, %v1549
        %v1630 = vsel %vm1601, %v1622, %v1551
        %v1631 = vsel %vm1601, %v1623, %v1553
        %v1632 = vsel %vm1601, %v1624, %v1555
        %v1633 = vsel %vm1601, %v1625, %v1557
        %v1634 = vsel %vm1601, %v1626, %v1559
        %v1635 = vsel %vm1610, %v1627, %v1569
        %v1636 = vsel %vm1610, %v1628, %v1571
        %v1637 = vsel %vm1610, %v1629, %v1573
        %v1638 = vsel %vm1610, %v1630, %v1575
        %v1639 = vsel %vm1610, %v1631, %v1577
        %v1640 = vsel %vm1610, %v1632, %v1579
        %v1641 = vsel %vm1610, %v1633, %v1581
        %v1642 = vsel %vm1610, %v1634, %v1583
        %v1643 = vsel %vm1592, %v1440, 0
        %v1645 = vsel %vm1592, %v1443, 0
        %v1647 = vsel %vm1592, %v1446, 0
        %v1649 = vsel %vm1592, %v1449, 0
        %v1651 = vsel %vm1592, %v1452, 0
        %v1653 = vsel %vm1592, %v1455, 0
        %v1655 = vsel %vm1592, %v1519, 0
        %v1657 = vsel %vm1592, %v1434, 0
        %1659 = vmatprep.subr.mxu0 0.0
        %v1660 = vand.u32 %v1284, 4294901760
        %1661 = vmatpush1.msra.mxu0 %v1660
        %1662 = vmatprep.subr.mxu0 0.0
        %v1663 = vand.u32 %v1285, 4294901760
        %1664 = vmatpush1.msra.mxu0 %v1663
        %1665 = vmatprep.subr.mxu0 0.0
        %v1666 = vand.u32 %v1286, 4294901760
        %1667 = vmatpush1.msra.mxu0 %v1666
        %1668 = vmatprep.subr.mxu0 0.0
        %v1669 = vand.u32 %v1287, 4294901760
        %1670 = vmatpush1.msra.mxu0 %v1669
        %1671 = vmatprep.subr.mxu0 0.0
        %v1672 = vand.u32 %v1288, 4294901760
        %1673 = vmatpush1.msra.mxu0 %v1672
        %1674 = vmatprep.subr.mxu0 0.0
        %v1675 = vand.u32 %v1289, 4294901760
        %1676 = vmatpush1.msra.mxu0 %v1675
        %1677 = vmatprep.subr.mxu0 0.0
        %v1678 = vand.u32 %v1290, 4294901760
        %1679 = vmatpush1.msra.mxu0 %v1678
        %1680 = vmatprep.subr.mxu0 0.0
        %v1681 = vand.u32 %v1291, 4294901760
        %1682 = vmatpush1.msra.mxu0 %v1681
        %1683 = vmatprep.subr.mxu0 0.0
        %v1684 = vand.u32 %v1292, 4294901760
        %1685 = vmatpush1.msra.mxu0 %v1684
        %1686 = vmatprep.subr.mxu0 0.0
        %v1687 = vand.u32 %v1293, 4294901760
        %1688 = vmatpush1.msra.mxu0 %v1687
        %1689 = vmatprep.subr.mxu0 0.0
        %v1690 = vand.u32 %v1294, 4294901760
        %1691 = vmatpush1.msra.mxu0 %v1690
        %1692 = vmatprep.subr.mxu0 0.0
        %v1693 = vand.u32 %v1295, 4294901760
        %1694 = vmatpush1.msra.mxu0 %v1693
        %1695 = vmatprep.subr.mxu0 0.0
        %v1696 = vand.u32 %v1296, 4294901760
        %1697 = vmatpush1.msra.mxu0 %v1696
        %1698 = vmatprep.subr.mxu0 0.0
        %v1699 = vand.u32 %v1297, 4294901760
        %1700 = vmatpush1.msra.mxu0 %v1699
        %1701 = vmatprep.subr.mxu0 0.0
        %v1702 = vand.u32 %v1298, 4294901760
        %1703 = vmatpush1.msra.mxu0 %v1702
        %1704 = vmatprep.subr.mxu0 0.0
        %v1705 = vand.u32 %v1299, 4294901760
        %1706 = vmatpush1.msra.mxu0 %v1705
        %1707 = vmatprep.subr.mxu0 0.0
        %v1708 = vand.u32 %v1300, 4294901760
        %1709 = vmatpush1.msra.mxu0 %v1708
        %1710 = vmatprep.subr.mxu0 0.0
        %v1711 = vand.u32 %v1301, 4294901760
        %1712 = vmatpush1.msra.mxu0 %v1711
        %1713 = vmatprep.subr.mxu0 0.0
        %v1714 = vand.u32 %v1302, 4294901760
        %1715 = vmatpush1.msra.mxu0 %v1714
        %1716 = vmatprep.subr.mxu0 0.0
        %v1717 = vand.u32 %v1303, 4294901760
        %1718 = vmatpush1.msra.mxu0 %v1717
        %1719 = vmatprep.subr.mxu0 0.0
        %v1720 = vand.u32 %v1304, 4294901760
        %1721 = vmatpush1.msra.mxu0 %v1720
        %1722 = vmatprep.subr.mxu0 0.0
        %v1723 = vand.u32 %v1305, 4294901760
        %1724 = vmatpush1.msra.mxu0 %v1723
        %1725 = vmatprep.subr.mxu0 0.0
        %v1726 = vand.u32 %v1306, 4294901760
        %1727 = vmatpush1.msra.mxu0 %v1726
        %1728 = vmatprep.subr.mxu0 0.0
        %v1729 = vand.u32 %v1307, 4294901760
        %1730 = vmatpush1.msra.mxu0 %v1729
        %1731 = vmatprep.subr.mxu0 0.0
        %v1732 = vand.u32 %v1308, 4294901760
        %1733 = vmatpush1.msra.mxu0 %v1732
        %1734 = vmatprep.subr.mxu0 0.0
        %v1735 = vand.u32 %v1309, 4294901760
        %1736 = vmatpush1.msra.mxu0 %v1735
        %1737 = vmatprep.subr.mxu0 0.0
        %v1738 = vand.u32 %v1310, 4294901760
        %1739 = vmatpush1.msra.mxu0 %v1738
        %1740 = vmatprep.subr.mxu0 0.0
        %v1741 = vand.u32 %v1311, 4294901760
        %1742 = vmatpush1.msra.mxu0 %v1741
        %1743 = vmatprep.subr.mxu0 0.0
        %v1744 = vand.u32 %v1312, 4294901760
        %1745 = vmatpush1.msra.mxu0 %v1744
        %1746 = vmatprep.subr.mxu0 0.0
        %v1747 = vand.u32 %v1313, 4294901760
        %1748 = vmatpush1.msra.mxu0 %v1747
        %1749 = vmatprep.subr.mxu0 0.0
        %v1750 = vand.u32 %v1314, 4294901760
        %1751 = vmatpush1.msra.mxu0 %v1750
        %1752 = vmatprep.subr.mxu0 0.0
        %v1753 = vand.u32 %v1315, 4294901760
        %1754 = vmatpush1.msra.mxu0 %v1753
        %v1755 = vand.u32 %v1635, 4294901760
        %v1756 = vsub.f32 %v1635, %v1755
        %v1757 = vand.u32 %v1756, 4294901760
        %v1758 = vsub.f32 %v1756, %v1757
        %v1759 = vand.u32 %v1758, 4294901760
        %1760 = vmatprep.mubr.f32.mxu0 %v1759
        %v1761 = vand.u32 %v1611, 4294901760
        %v1762 = vsub.f32 %v1611, %v1761
        %v1763 = vand.u32 %v1762, 4294901760
        %v1764 = vsub.f32 %v1762, %v1763
        %v1765 = vand.u32 %v1764, 4294901760
        %1766 = vmatmul.mubr.f32.gmra.mrb[0].mxu0 %v1765
        %v1767 = vpop.f32.mrb[0].mxu0
        %v1768 = vadd.f32 0.0, %v1767
        %v1769 = vpop.f32.mrb[0].mxu0
        %v1770 = vand.u32 %v1636, 4294901760
        %v1771 = vsub.f32 %v1636, %v1770
        %v1772 = vand.u32 %v1771, 4294901760
        %v1773 = vsub.f32 %v1771, %v1772
        %v1774 = vand.u32 %v1773, 4294901760
        %1775 = vmatprep.mubr.f32.mxu0 %v1774
        %v1776 = vand.u32 %v1612, 4294901760
        %v1777 = vsub.f32 %v1612, %v1776
        %v1778 = vand.u32 %v1777, 4294901760
        %v1779 = vsub.f32 %v1777, %v1778
        %v1780 = vand.u32 %v1779, 4294901760
        %1781 = vmatmul.mubr.f32.gmra.mrb[0].mxu0 %v1780
        %v1782 = vpop.f32.mrb[0].mxu0
        %v1783 = vadd.f32 0.0, %v1782
        %v1784 = vpop.f32.mrb[0].mxu0
        %v1785 = vand.u32 %v1637, 4294901760
        %v1786 = vsub.f32 %v1637, %v1785
        %v1787 = vand.u32 %v1786, 4294901760
        %v1788 = vsub.f32 %v1786, %v1787
        %v1789 = vand.u32 %v1788, 4294901760
        %1790 = vmatprep.mubr.f32.mxu0 %v1789
        %v1791 = vand.u32 %v1613, 4294901760
        %v1792 = vsub.f32 %v1613, %v1791
        %v1793 = vand.u32 %v1792, 4294901760
        %v1794 = vsub.f32 %v1792, %v1793
        %v1795 = vand.u32 %v1794, 4294901760
        %1796 = vmatmul.mubr.f32.gmra.mrb[0].mxu0 %v1795
        %v1797 = vpop.f32.mrb[0].mxu0
        %v1798 = vadd.f32 0.0, %v1797
        %v1799 = vpop.f32.mrb[0].mxu0
        %v1800 = vand.u32 %v1638, 4294901760
        %v1801 = vsub.f32 %v1638, %v1800
        %v1802 = vand.u32 %v1801, 4294901760
        %v1803 = vsub.f32 %v1801, %v1802
        %v1804 = vand.u32 %v1803, 4294901760
        %1805 = vmatprep.mubr.f32.mxu0 %v1804
        %v1806 = vand.u32 %v1614, 4294901760
        %v1807 = vsub.f32 %v1614, %v1806
        %v1808 = vand.u32 %v1807, 4294901760
        %v1809 = vsub.f32 %v1807, %v1808
        %v1810 = vand.u32 %v1809, 4294901760
        %1811 = vmatmul.mubr.f32.gmra.mrb[0].mxu0 %v1810
        %v1812 = vpop.f32.mrb[0].mxu0
        %v1813 = vadd.f32 0.0, %v1812
        %v1814 = vpop.f32.mrb[0].mxu0
        %v1815 = vand.u32 %v1639, 4294901760
        %v1816 = vsub.f32 %v1639, %v1815
        %v1817 = vand.u32 %v1816, 4294901760
        %v1818 = vsub.f32 %v1816, %v1817
        %v1819 = vand.u32 %v1818, 4294901760
        %1820 = vmatprep.mubr.f32.mxu0 %v1819
        %v1821 = vand.u32 %v1615, 4294901760
        %v1822 = vsub.f32 %v1615, %v1821
        %v1823 = vand.u32 %v1822, 4294901760
        %v1824 = vsub.f32 %v1822, %v1823
        %v1825 = vand.u32 %v1824, 4294901760
        %1826 = vmatmul.mubr.f32.gmra.mrb[0].mxu0 %v1825
        %v1827 = vpop.f32.mrb[0].mxu0
        %v1828 = vadd.f32 0.0, %v1827
        %v1829 = vpop.f32.mrb[0].mxu0
        %v1830 = vand.u32 %v1640, 4294901760
        %v1831 = vsub.f32 %v1640, %v1830
        %v1832 = vand.u32 %v1831, 4294901760
        %v1833 = vsub.f32 %v1831, %v1832
        %v1834 = vand.u32 %v1833, 4294901760
        %1835 = vmatprep.mubr.f32.mxu0 %v1834
        %v1836 = vand.u32 %v1616, 4294901760
        %v1837 = vsub.f32 %v1616, %v1836
        %v1838 = vand.u32 %v1837, 4294901760
        %v1839 = vsub.f32 %v1837, %v1838
        %v1840 = vand.u32 %v1839, 4294901760
        %1841 = vmatmul.mubr.f32.gmra.mrb[0].mxu0 %v1840
        %v1842 = vpop.f32.mrb[0].mxu0
        %v1843 = vadd.f32 0.0, %v1842
        %v1844 = vpop.f32.mrb[0].mxu0
        %v1845 = vand.u32 %v1641, 4294901760
        %v1846 = vsub.f32 %v1641, %v1845
        %v1847 = vand.u32 %v1846, 4294901760
        %v1848 = vsub.f32 %v1846, %v1847
        %v1849 = vand.u32 %v1848, 4294901760
        %1850 = vmatprep.mubr.f32.mxu0 %v1849
        %v1851 = vand.u32 %v1617, 4294901760
        %v1852 = vsub.f32 %v1617, %v1851
        %v1853 = vand.u32 %v1852, 4294901760
        %v1854 = vsub.f32 %v1852, %v1853
        %v1855 = vand.u32 %v1854, 4294901760
        %1856 = vmatmul.mubr.f32.gmra.mrb[0].mxu0 %v1855
        %v1857 = vpop.f32.mrb[0].mxu0
        %v1858 = vadd.f32 0.0, %v1857
        %v1859 = vpop.f32.mrb[0].mxu0
        %v1860 = vand.u32 %v1642, 4294901760
        %v1861 = vsub.f32 %v1642, %v1860
        %v1862 = vand.u32 %v1861, 4294901760
        %v1863 = vsub.f32 %v1861, %v1862
        %v1864 = vand.u32 %v1863, 4294901760
        %1865 = vmatprep.mubr.f32.mxu0 %v1864
        %v1866 = vand.u32 %v1618, 4294901760
        %v1867 = vsub.f32 %v1618, %v1866
        %v1868 = vand.u32 %v1867, 4294901760
        %v1869 = vsub.f32 %v1867, %v1868
        %v1870 = vand.u32 %v1869, 4294901760
        %1871 = vmatmul.mubr.f32.gmra.mrb[0].mxu0 %v1870
        %v1872 = vpop.f32.mrb[0].mxu0
        %v1873 = vadd.f32 0.0, %v1872
        %v1874 = vpop.f32.mrb[0].mxu0
        %1875 = vdwg.mxu0
        %1876 = vmatprep.subr.mxu0 0.0
        %v1877 = vand.u32 %v1284, 4294901760
        %v1878 = vsub.f32 %v1284, %v1877
        %v1879 = vand.u32 %v1878, 4294901760
        %v1880 = vsub.f32 %v1878, %v1879
        %v1881 = vand.u32 %v1880, 4294901760
        %1882 = vmatpush1.msra.mxu0 %v1881
        %1883 = vmatprep.subr.mxu0 0.0
        %v1884 = vand.u32 %v1285, 4294901760
        %v1885 = vsub.f32 %v1285, %v1884
        %v1886 = vand.u32 %v1885, 4294901760
        %v1887 = vsub.f32 %v1885, %v1886
        %v1888 = vand.u32 %v1887, 4294901760
        %1889 = vmatpush1.msra.mxu0 %v1888
        %1890 = vmatprep.subr.mxu0 0.0
        %v1891 = vand.u32 %v1286, 4294901760
        %v1892 = vsub.f32 %v1286, %v1891
        %v1893 = vand.u32 %v1892, 4294901760
        %v1894 = vsub.f32 %v1892, %v1893
        %v1895 = vand.u32 %v1894, 4294901760
        %1896 = vmatpush1.msra.mxu0 %v1895
        %1897 = vmatprep.subr.mxu0 0.0
        %v1898 = vand.u32 %v1287, 4294901760
        %v1899 = vsub.f32 %v1287, %v1898
        %v1900 = vand.u32 %v1899, 4294901760
        %v1901 = vsub.f32 %v1899, %v1900
        %v1902 = vand.u32 %v1901, 4294901760
        %1903 = vmatpush1.msra.mxu0 %v1902
        %1904 = vmatprep.subr.mxu0 0.0
        %v1905 = vand.u32 %v1288, 4294901760
        %v1906 = vsub.f32 %v1288, %v1905
        %v1907 = vand.u32 %v1906, 4294901760
        %v1908 = vsub.f32 %v1906, %v1907
        %v1909 = vand.u32 %v1908, 4294901760
        %1910 = vmatpush1.msra.mxu0 %v1909
        %1911 = vmatprep.subr.mxu0 0.0
        %v1912 = vand.u32 %v1289, 4294901760
        %v1913 = vsub.f32 %v1289, %v1912
        %v1914 = vand.u32 %v1913, 4294901760
        %v1915 = vsub.f32 %v1913, %v1914
        %v1916 = vand.u32 %v1915, 4294901760
        %1917 = vmatpush1.msra.mxu0 %v1916
        %1918 = vmatprep.subr.mxu0 0.0
        %v1919 = vand.u32 %v1290, 4294901760
        %v1920 = vsub.f32 %v1290, %v1919
        %v1921 = vand.u32 %v1920, 4294901760
        %v1922 = vsub.f32 %v1920, %v1921
        %v1923 = vand.u32 %v1922, 4294901760
        %1924 = vmatpush1.msra.mxu0 %v1923
        %1925 = vmatprep.subr.mxu0 0.0
        %v1926 = vand.u32 %v1291, 4294901760
        %v1927 = vsub.f32 %v1291, %v1926
        %v1928 = vand.u32 %v1927, 4294901760
        %v1929 = vsub.f32 %v1927, %v1928
        %v1930 = vand.u32 %v1929, 4294901760
        %1931 = vmatpush1.msra.mxu0 %v1930
        %1932 = vmatprep.subr.mxu0 0.0
        %v1933 = vand.u32 %v1292, 4294901760
        %v1934 = vsub.f32 %v1292, %v1933
        %v1935 = vand.u32 %v1934, 4294901760
        %v1936 = vsub.f32 %v1934, %v1935
        %v1937 = vand.u32 %v1936, 4294901760
        %1938 = vmatpush1.msra.mxu0 %v1937
        %1939 = vmatprep.subr.mxu0 0.0
        %v1940 = vand.u32 %v1293, 4294901760
        %v1941 = vsub.f32 %v1293, %v1940
        %v1942 = vand.u32 %v1941, 4294901760
        %v1943 = vsub.f32 %v1941, %v1942
        %v1944 = vand.u32 %v1943, 4294901760
        %1945 = vmatpush1.msra.mxu0 %v1944
        %1946 = vmatprep.subr.mxu0 0.0
        %v1947 = vand.u32 %v1294, 4294901760
        %v1948 = vsub.f32 %v1294, %v1947
        %v1949 = vand.u32 %v1948, 4294901760
        %v1950 = vsub.f32 %v1948, %v1949
        %v1951 = vand.u32 %v1950, 4294901760
        %1952 = vmatpush1.msra.mxu0 %v1951
        %1953 = vmatprep.subr.mxu0 0.0
        %v1954 = vand.u32 %v1295, 4294901760
        %v1955 = vsub.f32 %v1295, %v1954
        %v1956 = vand.u32 %v1955, 4294901760
        %v1957 = vsub.f32 %v1955, %v1956
        %v1958 = vand.u32 %v1957, 4294901760
        %1959 = vmatpush1.msra.mxu0 %v1958
        %1960 = vmatprep.subr.mxu0 0.0
        %v1961 = vand.u32 %v1296, 4294901760
        %v1962 = vsub.f32 %v1296, %v1961
        %v1963 = vand.u32 %v1962, 4294901760
        %v1964 = vsub.f32 %v1962, %v1963
        %v1965 = vand.u32 %v1964, 4294901760
        %1966 = vmatpush1.msra.mxu0 %v1965
        %1967 = vmatprep.subr.mxu0 0.0
        %v1968 = vand.u32 %v1297, 4294901760
        %v1969 = vsub.f32 %v1297, %v1968
        %v1970 = vand.u32 %v1969, 4294901760
        %v1971 = vsub.f32 %v1969, %v1970
        %v1972 = vand.u32 %v1971, 4294901760
        %1973 = vmatpush1.msra.mxu0 %v1972
        %1974 = vmatprep.subr.mxu0 0.0
        %v1975 = vand.u32 %v1298, 4294901760
        %v1976 = vsub.f32 %v1298, %v1975
        %v1977 = vand.u32 %v1976, 4294901760
        %v1978 = vsub.f32 %v1976, %v1977
        %v1979 = vand.u32 %v1978, 4294901760
        %1980 = vmatpush1.msra.mxu0 %v1979
        %1981 = vmatprep.subr.mxu0 0.0
        %v1982 = vand.u32 %v1299, 4294901760
        %v1983 = vsub.f32 %v1299, %v1982
        %v1984 = vand.u32 %v1983, 4294901760
        %v1985 = vsub.f32 %v1983, %v1984
        %v1986 = vand.u32 %v1985, 4294901760
        %1987 = vmatpush1.msra.mxu0 %v1986
        %1988 = vmatprep.subr.mxu0 0.0
        %v1989 = vand.u32 %v1300, 4294901760
        %v1990 = vsub.f32 %v1300, %v1989
        %v1991 = vand.u32 %v1990, 4294901760
        %v1992 = vsub.f32 %v1990, %v1991
        %v1993 = vand.u32 %v1992, 4294901760
        %1994 = vmatpush1.msra.mxu0 %v1993
        %1995 = vmatprep.subr.mxu0 0.0
        %v1996 = vand.u32 %v1301, 4294901760
        %v1997 = vsub.f32 %v1301, %v1996
        %v1998 = vand.u32 %v1997, 4294901760
        %v1999 = vsub.f32 %v1997, %v1998
        %v2000 = vand.u32 %v1999, 4294901760
        %2001 = vmatpush1.msra.mxu0 %v2000
        %2002 = vmatprep.subr.mxu0 0.0
        %v2003 = vand.u32 %v1302, 4294901760
        %v2004 = vsub.f32 %v1302, %v2003
        %v2005 = vand.u32 %v2004, 4294901760
        %v2006 = vsub.f32 %v2004, %v2005
        %v2007 = vand.u32 %v2006, 4294901760
        %2008 = vmatpush1.msra.mxu0 %v2007
        %2009 = vmatprep.subr.mxu0 0.0
        %v2010 = vand.u32 %v1303, 4294901760
        %v2011 = vsub.f32 %v1303, %v2010
        %v2012 = vand.u32 %v2011, 4294901760
        %v2013 = vsub.f32 %v2011, %v2012
        %v2014 = vand.u32 %v2013, 4294901760
        %2015 = vmatpush1.msra.mxu0 %v2014
        %2016 = vmatprep.subr.mxu0 0.0
        %v2017 = vand.u32 %v1304, 4294901760
        %v2018 = vsub.f32 %v1304, %v2017
        %v2019 = vand.u32 %v2018, 4294901760
        %v2020 = vsub.f32 %v2018, %v2019
        %v2021 = vand.u32 %v2020, 4294901760
        %2022 = vmatpush1.msra.mxu0 %v2021
        %2023 = vmatprep.subr.mxu0 0.0
        %v2024 = vand.u32 %v1305, 4294901760
        %v2025 = vsub.f32 %v1305, %v2024
        %v2026 = vand.u32 %v2025, 4294901760
        %v2027 = vsub.f32 %v2025, %v2026
        %v2028 = vand.u32 %v2027, 4294901760
        %2029 = vmatpush1.msra.mxu0 %v2028
        %2030 = vmatprep.subr.mxu0 0.0
        %v2031 = vand.u32 %v1306, 4294901760
        %v2032 = vsub.f32 %v1306, %v2031
        %v2033 = vand.u32 %v2032, 4294901760
        %v2034 = vsub.f32 %v2032, %v2033
        %v2035 = vand.u32 %v2034, 4294901760
        %2036 = vmatpush1.msra.mxu0 %v2035
        %2037 = vmatprep.subr.mxu0 0.0
        %v2038 = vand.u32 %v1307, 4294901760
        %v2039 = vsub.f32 %v1307, %v2038
        %v2040 = vand.u32 %v2039, 4294901760
        %v2041 = vsub.f32 %v2039, %v2040
        %v2042 = vand.u32 %v2041, 4294901760
        %2043 = vmatpush1.msra.mxu0 %v2042
        %2044 = vmatprep.subr.mxu0 0.0
        %v2045 = vand.u32 %v1308, 4294901760
        %v2046 = vsub.f32 %v1308, %v2045
        %v2047 = vand.u32 %v2046, 4294901760
        %v2048 = vsub.f32 %v2046, %v2047
        %v2049 = vand.u32 %v2048, 4294901760
        %2050 = vmatpush1.msra.mxu0 %v2049
        %2051 = vmatprep.subr.mxu0 0.0
        %v2052 = vand.u32 %v1309, 4294901760
        %v2053 = vsub.f32 %v1309, %v2052
        %v2054 = vand.u32 %v2053, 4294901760
        %v2055 = vsub.f32 %v2053, %v2054
        %v2056 = vand.u32 %v2055, 4294901760
        %2057 = vmatpush1.msra.mxu0 %v2056
        %2058 = vmatprep.subr.mxu0 0.0
        %v2059 = vand.u32 %v1310, 4294901760
        %v2060 = vsub.f32 %v1310, %v2059
        %v2061 = vand.u32 %v2060, 4294901760
        %v2062 = vsub.f32 %v2060, %v2061
        %v2063 = vand.u32 %v2062, 4294901760
        %2064 = vmatpush1.msra.mxu0 %v2063
        %2065 = vmatprep.subr.mxu0 0.0
        %v2066 = vand.u32 %v1311, 4294901760
        %v2067 = vsub.f32 %v1311, %v2066
        %v2068 = vand.u32 %v2067, 4294901760
        %v2069 = vsub.f32 %v2067, %v2068
        %v2070 = vand.u32 %v2069, 4294901760
        %2071 = vmatpush1.msra.mxu0 %v2070
        %2072 = vmatprep.subr.mxu0 0.0
        %v2073 = vand.u32 %v1312, 4294901760
        %v2074 = vsub.f32 %v1312, %v2073
        %v2075 = vand.u32 %v2074, 4294901760
        %v2076 = vsub.f32 %v2074, %v2075
        %v2077 = vand.u32 %v2076, 4294901760
        %2078 = vmatpush1.msra.mxu0 %v2077
        %2079 = vmatprep.subr.mxu0 0.0
        %v2080 = vand.u32 %v1313, 4294901760
        %v2081 = vsub.f32 %v1313, %v2080
        %v2082 = vand.u32 %v2081, 4294901760
        %v2083 = vsub.f32 %v2081, %v2082
        %v2084 = vand.u32 %v2083, 4294901760
        %2085 = vmatpush1.msra.mxu0 %v2084
        %2086 = vmatprep.subr.mxu0 0.0
        %v2087 = vand.u32 %v1314, 4294901760
        %v2088 = vsub.f32 %v1314, %v2087
        %v2089 = vand.u32 %v2088, 4294901760
        %v2090 = vsub.f32 %v2088, %v2089
        %v2091 = vand.u32 %v2090, 4294901760
        %2092 = vmatpush1.msra.mxu0 %v2091
        %2093 = vmatprep.subr.mxu0 0.0
        %v2094 = vand.u32 %v1315, 4294901760
        %v2095 = vsub.f32 %v1315, %v2094
        %v2096 = vand.u32 %v2095, 4294901760
        %v2097 = vsub.f32 %v2095, %v2096
        %v2098 = vand.u32 %v2097, 4294901760
        %2099 = vmatpush1.msra.mxu0 %v2098
        %v2100 = vand.u32 %v1635, 4294901760
        %2101 = vmatprep.mubr.f32.mxu0 %v2100
        %v2102 = vand.u32 %v1611, 4294901760
        %2103 = vmatmul.mubr.f32.gmra.mrb[0].mxu0 %v2102
        %v2104 = vpop.f32.mrb[0].mxu0
        %v2105 = vadd.f32 %v1768, %v2104
        %v2106 = vpop.f32.mrb[0].mxu0
        %v2107 = vand.u32 %v1636, 4294901760
        %2108 = vmatprep.mubr.f32.mxu0 %v2107
        %v2109 = vand.u32 %v1612, 4294901760
        %2110 = vmatmul.mubr.f32.gmra.mrb[0].mxu0 %v2109
        %v2111 = vpop.f32.mrb[0].mxu0
        %v2112 = vadd.f32 %v1783, %v2111
        %v2113 = vpop.f32.mrb[0].mxu0
        %v2114 = vand.u32 %v1637, 4294901760
        %2115 = vmatprep.mubr.f32.mxu0 %v2114
        %v2116 = vand.u32 %v1613, 4294901760
        %2117 = vmatmul.mubr.f32.gmra.mrb[0].mxu0 %v2116
        %v2118 = vpop.f32.mrb[0].mxu0
        %v2119 = vadd.f32 %v1798, %v2118
        %v2120 = vpop.f32.mrb[0].mxu0
        %v2121 = vand.u32 %v1638, 4294901760
        %2122 = vmatprep.mubr.f32.mxu0 %v2121
        %v2123 = vand.u32 %v1614, 4294901760
        %2124 = vmatmul.mubr.f32.gmra.mrb[0].mxu0 %v2123
        %v2125 = vpop.f32.mrb[0].mxu0
        %v2126 = vadd.f32 %v1813, %v2125
        %v2127 = vpop.f32.mrb[0].mxu0
        %v2128 = vand.u32 %v1639, 4294901760
        %2129 = vmatprep.mubr.f32.mxu0 %v2128
        %v2130 = vand.u32 %v1615, 4294901760
        %2131 = vmatmul.mubr.f32.gmra.mrb[0].mxu0 %v2130
        %v2132 = vpop.f32.mrb[0].mxu0
        %v2133 = vadd.f32 %v1828, %v2132
        %v2134 = vpop.f32.mrb[0].mxu0
        %v2135 = vand.u32 %v1640, 4294901760
        %2136 = vmatprep.mubr.f32.mxu0 %v2135
        %v2137 = vand.u32 %v1616, 4294901760
        %2138 = vmatmul.mubr.f32.gmra.mrb[0].mxu0 %v2137
        %v2139 = vpop.f32.mrb[0].mxu0
        %v2140 = vadd.f32 %v1843, %v2139
        %v2141 = vpop.f32.mrb[0].mxu0
        %v2142 = vand.u32 %v1641, 4294901760
        %2143 = vmatprep.mubr.f32.mxu0 %v2142
        %v2144 = vand.u32 %v1617, 4294901760
        %2145 = vmatmul.mubr.f32.gmra.mrb[0].mxu0 %v2144
        %v2146 = vpop.f32.mrb[0].mxu0
        %v2147 = vadd.f32 %v1858, %v2146
        %v2148 = vpop.f32.mrb[0].mxu0
        %v2149 = vand.u32 %v1642, 4294901760
        %2150 = vmatprep.mubr.f32.mxu0 %v2149
        %v2151 = vand.u32 %v1618, 4294901760
        %2152 = vmatmul.mubr.f32.gmra.mrb[0].mxu0 %v2151
        %v2153 = vpop.f32.mrb[0].mxu0
        %v2154 = vadd.f32 %v1873, %v2153
        %v2155 = vpop.f32.mrb[0].mxu0
        %2156 = vdwg.mxu0
        %2157 = vmatprep.subr.mxu0 0.0
        %v2158 = vand.u32 %v1284, 4294901760
        %v2159 = vsub.f32 %v1284, %v2158
        %2160 = vmatpush1.msra.mxu0 %v2159
        %2161 = vmatprep.subr.mxu0 0.0
        %v2162 = vand.u32 %v1285, 4294901760
        %v2163 = vsub.f32 %v1285, %v2162
        %2164 = vmatpush1.msra.mxu0 %v2163
        %2165 = vmatprep.subr.mxu0 0.0
        %v2166 = vand.u32 %v1286, 4294901760
        %v2167 = vsub.f32 %v1286, %v2166
        %2168 = vmatpush1.msra.mxu0 %v2167
        %2169 = vmatprep.subr.mxu0 0.0
        %v2170 = vand.u32 %v1287, 4294901760
        %v2171 = vsub.f32 %v1287, %v2170
        %2172 = vmatpush1.msra.mxu0 %v2171
        %2173 = vmatprep.subr.mxu0 0.0
        %v2174 = vand.u32 %v1288, 4294901760
        %v2175 = vsub.f32 %v1288, %v2174
        %2176 = vmatpush1.msra.mxu0 %v2175
        %2177 = vmatprep.subr.mxu0 0.0
        %v2178 = vand.u32 %v1289, 4294901760
        %v2179 = vsub.f32 %v1289, %v2178
        %2180 = vmatpush1.msra.mxu0 %v2179
        %2181 = vmatprep.subr.mxu0 0.0
        %v2182 = vand.u32 %v1290, 4294901760
        %v2183 = vsub.f32 %v1290, %v2182
        %2184 = vmatpush1.msra.mxu0 %v2183
        %2185 = vmatprep.subr.mxu0 0.0
        %v2186 = vand.u32 %v1291, 4294901760
        %v2187 = vsub.f32 %v1291, %v2186
        %2188 = vmatpush1.msra.mxu0 %v2187
        %2189 = vmatprep.subr.mxu0 0.0
        %v2190 = vand.u32 %v1292, 4294901760
        %v2191 = vsub.f32 %v1292, %v2190
        %2192 = vmatpush1.msra.mxu0 %v2191
        %2193 = vmatprep.subr.mxu0 0.0
        %v2194 = vand.u32 %v1293, 4294901760
        %v2195 = vsub.f32 %v1293, %v2194
        %2196 = vmatpush1.msra.mxu0 %v2195
        %2197 = vmatprep.subr.mxu0 0.0
        %v2198 = vand.u32 %v1294, 4294901760
        %v2199 = vsub.f32 %v1294, %v2198
        %2200 = vmatpush1.msra.mxu0 %v2199
        %2201 = vmatprep.subr.mxu0 0.0
        %v2202 = vand.u32 %v1295, 4294901760
        %v2203 = vsub.f32 %v1295, %v2202
        %2204 = vmatpush1.msra.mxu0 %v2203
        %2205 = vmatprep.subr.mxu0 0.0
        %v2206 = vand.u32 %v1296, 4294901760
        %v2207 = vsub.f32 %v1296, %v2206
        %2208 = vmatpush1.msra.mxu0 %v2207
        %2209 = vmatprep.subr.mxu0 0.0
        %v2210 = vand.u32 %v1297, 4294901760
        %v2211 = vsub.f32 %v1297, %v2210
        %2212 = vmatpush1.msra.mxu0 %v2211
        %2213 = vmatprep.subr.mxu0 0.0
        %v2214 = vand.u32 %v1298, 4294901760
        %v2215 = vsub.f32 %v1298, %v2214
        %2216 = vmatpush1.msra.mxu0 %v2215
        %2217 = vmatprep.subr.mxu0 0.0
        %v2218 = vand.u32 %v1299, 4294901760
        %v2219 = vsub.f32 %v1299, %v2218
        %2220 = vmatpush1.msra.mxu0 %v2219
        %2221 = vmatprep.subr.mxu0 0.0
        %v2222 = vand.u32 %v1300, 4294901760
        %v2223 = vsub.f32 %v1300, %v2222
        %2224 = vmatpush1.msra.mxu0 %v2223
        %2225 = vmatprep.subr.mxu0 0.0
        %v2226 = vand.u32 %v1301, 4294901760
        %v2227 = vsub.f32 %v1301, %v2226
        %2228 = vmatpush1.msra.mxu0 %v2227
        %2229 = vmatprep.subr.mxu0 0.0
        %v2230 = vand.u32 %v1302, 4294901760
        %v2231 = vsub.f32 %v1302, %v2230
        %2232 = vmatpush1.msra.mxu0 %v2231
        %2233 = vmatprep.subr.mxu0 0.0
        %v2234 = vand.u32 %v1303, 4294901760
        %v2235 = vsub.f32 %v1303, %v2234
        %2236 = vmatpush1.msra.mxu0 %v2235
        %2237 = vmatprep.subr.mxu0 0.0
        %v2238 = vand.u32 %v1304, 4294901760
        %v2239 = vsub.f32 %v1304, %v2238
        %2240 = vmatpush1.msra.mxu0 %v2239
        %2241 = vmatprep.subr.mxu0 0.0
        %v2242 = vand.u32 %v1305, 4294901760
        %v2243 = vsub.f32 %v1305, %v2242
        %2244 = vmatpush1.msra.mxu0 %v2243
        %2245 = vmatprep.subr.mxu0 0.0
        %v2246 = vand.u32 %v1306, 4294901760
        %v2247 = vsub.f32 %v1306, %v2246
        %2248 = vmatpush1.msra.mxu0 %v2247
        %2249 = vmatprep.subr.mxu0 0.0
        %v2250 = vand.u32 %v1307, 4294901760
        %v2251 = vsub.f32 %v1307, %v2250
        %2252 = vmatpush1.msra.mxu0 %v2251
        %2253 = vmatprep.subr.mxu0 0.0
        %v2254 = vand.u32 %v1308, 4294901760
        %v2255 = vsub.f32 %v1308, %v2254
        %2256 = vmatpush1.msra.mxu0 %v2255
        %2257 = vmatprep.subr.mxu0 0.0
        %v2258 = vand.u32 %v1309, 4294901760
        %v2259 = vsub.f32 %v1309, %v2258
        %2260 = vmatpush1.msra.mxu0 %v2259
        %2261 = vmatprep.subr.mxu0 0.0
        %v2262 = vand.u32 %v1310, 4294901760
        %v2263 = vsub.f32 %v1310, %v2262
        %2264 = vmatpush1.msra.mxu0 %v2263
        %2265 = vmatprep.subr.mxu0 0.0
        %v2266 = vand.u32 %v1311, 4294901760
        %v2267 = vsub.f32 %v1311, %v2266
        %2268 = vmatpush1.msra.mxu0 %v2267
        %2269 = vmatprep.subr.mxu0 0.0
        %v2270 = vand.u32 %v1312, 4294901760
        %v2271 = vsub.f32 %v1312, %v2270
        %2272 = vmatpush1.msra.mxu0 %v2271
        %2273 = vmatprep.subr.mxu0 0.0
        %v2274 = vand.u32 %v1313, 4294901760
        %v2275 = vsub.f32 %v1313, %v2274
        %2276 = vmatpush1.msra.mxu0 %v2275
        %2277 = vmatprep.subr.mxu0 0.0
        %v2278 = vand.u32 %v1314, 4294901760
        %v2279 = vsub.f32 %v1314, %v2278
        %2280 = vmatpush1.msra.mxu0 %v2279
        %2281 = vmatprep.subr.mxu0 0.0
        %v2282 = vand.u32 %v1315, 4294901760
        %v2283 = vsub.f32 %v1315, %v2282
        %2284 = vmatpush1.msra.mxu0 %v2283
        %v2285 = vand.u32 %v1635, 4294901760
        %v2286 = vsub.f32 %v1635, %v2285
        %2287 = vmatprep.mubr.f32.mxu0 %v2286
        %v2288 = vand.u32 %v1611, 4294901760
        %v2289 = vsub.f32 %v1611, %v2288
        %2290 = vmatmul.mubr.f32.gmra.mrb[0].mxu0 %v2289
        %v2291 = vpop.f32.mrb[0].mxu0
        %v2292 = vadd.f32 %v2105, %v2291
        %v2293 = vpop.f32.mrb[0].mxu0
        %v2294 = vand.u32 %v1636, 4294901760
        %v2295 = vsub.f32 %v1636, %v2294
        %2296 = vmatprep.mubr.f32.mxu0 %v2295
        %v2297 = vand.u32 %v1612, 4294901760
        %v2298 = vsub.f32 %v1612, %v2297
        %2299 = vmatmul.mubr.f32.gmra.mrb[0].mxu0 %v2298
        %v2300 = vpop.f32.mrb[0].mxu0
        %v2301 = vadd.f32 %v2112, %v2300
        %v2302 = vpop.f32.mrb[0].mxu0
        %v2303 = vand.u32 %v1637, 4294901760
        %v2304 = vsub.f32 %v1637, %v2303
        %2305 = vmatprep.mubr.f32.mxu0 %v2304
        %v2306 = vand.u32 %v1613, 4294901760
        %v2307 = vsub.f32 %v1613, %v2306
        %2308 = vmatmul.mubr.f32.gmra.mrb[0].mxu0 %v2307
        %v2309 = vpop.f32.mrb[0].mxu0
        %v2310 = vadd.f32 %v2119, %v2309
        %v2311 = vpop.f32.mrb[0].mxu0
        %v2312 = vand.u32 %v1638, 4294901760
        %v2313 = vsub.f32 %v1638, %v2312
        %2314 = vmatprep.mubr.f32.mxu0 %v2313
        %v2315 = vand.u32 %v1614, 4294901760
        %v2316 = vsub.f32 %v1614, %v2315
        %2317 = vmatmul.mubr.f32.gmra.mrb[0].mxu0 %v2316
        %v2318 = vpop.f32.mrb[0].mxu0
        %v2319 = vadd.f32 %v2126, %v2318
        %v2320 = vpop.f32.mrb[0].mxu0
        %v2321 = vand.u32 %v1639, 4294901760
        %v2322 = vsub.f32 %v1639, %v2321
        %2323 = vmatprep.mubr.f32.mxu0 %v2322
        %v2324 = vand.u32 %v1615, 4294901760
        %v2325 = vsub.f32 %v1615, %v2324
        %2326 = vmatmul.mubr.f32.gmra.mrb[0].mxu0 %v2325
        %v2327 = vpop.f32.mrb[0].mxu0
        %v2328 = vadd.f32 %v2133, %v2327
        %v2329 = vpop.f32.mrb[0].mxu0
        %v2330 = vand.u32 %v1640, 4294901760
        %v2331 = vsub.f32 %v1640, %v2330
        %2332 = vmatprep.mubr.f32.mxu0 %v2331
        %v2333 = vand.u32 %v1616, 4294901760
        %v2334 = vsub.f32 %v1616, %v2333
        %2335 = vmatmul.mubr.f32.gmra.mrb[0].mxu0 %v2334
        %v2336 = vpop.f32.mrb[0].mxu0
        %v2337 = vadd.f32 %v2140, %v2336
        %v2338 = vpop.f32.mrb[0].mxu0
        %v2339 = vand.u32 %v1641, 4294901760
        %v2340 = vsub.f32 %v1641, %v2339
        %2341 = vmatprep.mubr.f32.mxu0 %v2340
        %v2342 = vand.u32 %v1617, 4294901760
        %v2343 = vsub.f32 %v1617, %v2342
        %2344 = vmatmul.mubr.f32.gmra.mrb[0].mxu0 %v2343
        %v2345 = vpop.f32.mrb[0].mxu0
        %v2346 = vadd.f32 %v2147, %v2345
        %v2347 = vpop.f32.mrb[0].mxu0
        %v2348 = vand.u32 %v1642, 4294901760
        %v2349 = vsub.f32 %v1642, %v2348
        %2350 = vmatprep.mubr.f32.mxu0 %v2349
        %v2351 = vand.u32 %v1618, 4294901760
        %v2352 = vsub.f32 %v1618, %v2351
        %2353 = vmatmul.mubr.f32.gmra.mrb[0].mxu0 %v2352
        %v2354 = vpop.f32.mrb[0].mxu0
        %v2355 = vadd.f32 %v2154, %v2354
        %v2356 = vpop.f32.mrb[0].mxu0
        %2357 = vdwg.mxu0
        %2358 = vmatprep.subr.mxu0 0.0
        %v2359 = vand.u32 %v1284, 4294901760
        %2360 = vmatpush1.msra.mxu0 %v2359
        %2361 = vmatprep.subr.mxu0 0.0
        %v2362 = vand.u32 %v1285, 4294901760
        %2363 = vmatpush1.msra.mxu0 %v2362
        %2364 = vmatprep.subr.mxu0 0.0
        %v2365 = vand.u32 %v1286, 4294901760
        %2366 = vmatpush1.msra.mxu0 %v2365
        %2367 = vmatprep.subr.mxu0 0.0
        %v2368 = vand.u32 %v1287, 4294901760
        %2369 = vmatpush1.msra.mxu0 %v2368
        %2370 = vmatprep.subr.mxu0 0.0
        %v2371 = vand.u32 %v1288, 4294901760
        %2372 = vmatpush1.msra.mxu0 %v2371
        %2373 = vmatprep.subr.mxu0 0.0
        %v2374 = vand.u32 %v1289, 4294901760
        %2375 = vmatpush1.msra.mxu0 %v2374
        %2376 = vmatprep.subr.mxu0 0.0
        %v2377 = vand.u32 %v1290, 4294901760
        %2378 = vmatpush1.msra.mxu0 %v2377
        %2379 = vmatprep.subr.mxu0 0.0
        %v2380 = vand.u32 %v1291, 4294901760
        %2381 = vmatpush1.msra.mxu0 %v2380
        %2382 = vmatprep.subr.mxu0 0.0
        %v2383 = vand.u32 %v1292, 4294901760
        %2384 = vmatpush1.msra.mxu0 %v2383
        %2385 = vmatprep.subr.mxu0 0.0
        %v2386 = vand.u32 %v1293, 4294901760
        %2387 = vmatpush1.msra.mxu0 %v2386
        %2388 = vmatprep.subr.mxu0 0.0
        %v2389 = vand.u32 %v1294, 4294901760
        %2390 = vmatpush1.msra.mxu0 %v2389
        %2391 = vmatprep.subr.mxu0 0.0
        %v2392 = vand.u32 %v1295, 4294901760
        %2393 = vmatpush1.msra.mxu0 %v2392
        %2394 = vmatprep.subr.mxu0 0.0
        %v2395 = vand.u32 %v1296, 4294901760
        %2396 = vmatpush1.msra.mxu0 %v2395
        %2397 = vmatprep.subr.mxu0 0.0
        %v2398 = vand.u32 %v1297, 4294901760
        %2399 = vmatpush1.msra.mxu0 %v2398
        %2400 = vmatprep.subr.mxu0 0.0
        %v2401 = vand.u32 %v1298, 4294901760
        %2402 = vmatpush1.msra.mxu0 %v2401
        %2403 = vmatprep.subr.mxu0 0.0
        %v2404 = vand.u32 %v1299, 4294901760
        %2405 = vmatpush1.msra.mxu0 %v2404
        %2406 = vmatprep.subr.mxu0 0.0
        %v2407 = vand.u32 %v1300, 4294901760
        %2408 = vmatpush1.msra.mxu0 %v2407
        %2409 = vmatprep.subr.mxu0 0.0
        %v2410 = vand.u32 %v1301, 4294901760
        %2411 = vmatpush1.msra.mxu0 %v2410
        %2412 = vmatprep.subr.mxu0 0.0
        %v2413 = vand.u32 %v1302, 4294901760
        %2414 = vmatpush1.msra.mxu0 %v2413
        %2415 = vmatprep.subr.mxu0 0.0
        %v2416 = vand.u32 %v1303, 4294901760
        %2417 = vmatpush1.msra.mxu0 %v2416
        %2418 = vmatprep.subr.mxu0 0.0
        %v2419 = vand.u32 %v1304, 4294901760
        %2420 = vmatpush1.msra.mxu0 %v2419
        %2421 = vmatprep.subr.mxu0 0.0
        %v2422 = vand.u32 %v1305, 4294901760
        %2423 = vmatpush1.msra.mxu0 %v2422
        %2424 = vmatprep.subr.mxu0 0.0
        %v2425 = vand.u32 %v1306, 4294901760
        %2426 = vmatpush1.msra.mxu0 %v2425
        %2427 = vmatprep.subr.mxu0 0.0
        %v2428 = vand.u32 %v1307, 4294901760
        %2429 = vmatpush1.msra.mxu0 %v2428
        %2430 = vmatprep.subr.mxu0 0.0
        %v2431 = vand.u32 %v1308, 4294901760
        %2432 = vmatpush1.msra.mxu0 %v2431
        %2433 = vmatprep.subr.mxu0 0.0
        %v2434 = vand.u32 %v1309, 4294901760
        %2435 = vmatpush1.msra.mxu0 %v2434
        %2436 = vmatprep.subr.mxu0 0.0
        %v2437 = vand.u32 %v1310, 4294901760
        %2438 = vmatpush1.msra.mxu0 %v2437
        %2439 = vmatprep.subr.mxu0 0.0
        %v2440 = vand.u32 %v1311, 4294901760
        %2441 = vmatpush1.msra.mxu0 %v2440
        %2442 = vmatprep.subr.mxu0 0.0
        %v2443 = vand.u32 %v1312, 4294901760
        %2444 = vmatpush1.msra.mxu0 %v2443
        %2445 = vmatprep.subr.mxu0 0.0
        %v2446 = vand.u32 %v1313, 4294901760
        %2447 = vmatpush1.msra.mxu0 %v2446
        %2448 = vmatprep.subr.mxu0 0.0
        %v2449 = vand.u32 %v1314, 4294901760
        %2450 = vmatpush1.msra.mxu0 %v2449
        %2451 = vmatprep.subr.mxu0 0.0
        %v2452 = vand.u32 %v1315, 4294901760
        %2453 = vmatpush1.msra.mxu0 %v2452
        %v2454 = vand.u32 %v1635, 4294901760
        %v2455 = vsub.f32 %v1635, %v2454
        %v2456 = vand.u32 %v2455, 4294901760
        %2457 = vmatprep.mubr.f32.mxu0 %v2456
        %v2458 = vand.u32 %v1611, 4294901760
        %v2459 = vsub.f32 %v1611, %v2458
        %v2460 = vand.u32 %v2459, 4294901760
        %2461 = vmatmul.mubr.f32.gmra.mrb[0].mxu0 %v2460
        %v2462 = vpop.f32.mrb[0].mxu0
        %v2463 = vadd.f32 %v2292, %v2462
        %v2464 = vpop.f32.mrb[0].mxu0
        %v2465 = vand.u32 %v1636, 4294901760
        %v2466 = vsub.f32 %v1636, %v2465
        %v2467 = vand.u32 %v2466, 4294901760
        %2468 = vmatprep.mubr.f32.mxu0 %v2467
        %v2469 = vand.u32 %v1612, 4294901760
        %v2470 = vsub.f32 %v1612, %v2469
        %v2471 = vand.u32 %v2470, 4294901760
        %2472 = vmatmul.mubr.f32.gmra.mrb[0].mxu0 %v2471
        %v2473 = vpop.f32.mrb[0].mxu0
        %v2474 = vadd.f32 %v2301, %v2473
        %v2475 = vpop.f32.mrb[0].mxu0
        %v2476 = vand.u32 %v1637, 4294901760
        %v2477 = vsub.f32 %v1637, %v2476
        %v2478 = vand.u32 %v2477, 4294901760
        %2479 = vmatprep.mubr.f32.mxu0 %v2478
        %v2480 = vand.u32 %v1613, 4294901760
        %v2481 = vsub.f32 %v1613, %v2480
        %v2482 = vand.u32 %v2481, 4294901760
        %2483 = vmatmul.mubr.f32.gmra.mrb[0].mxu0 %v2482
        %v2484 = vpop.f32.mrb[0].mxu0
        %v2485 = vadd.f32 %v2310, %v2484
        %v2486 = vpop.f32.mrb[0].mxu0
        %v2487 = vand.u32 %v1638, 4294901760
        %v2488 = vsub.f32 %v1638, %v2487
        %v2489 = vand.u32 %v2488, 4294901760
        %2490 = vmatprep.mubr.f32.mxu0 %v2489
        %v2491 = vand.u32 %v1614, 4294901760
        %v2492 = vsub.f32 %v1614, %v2491
        %v2493 = vand.u32 %v2492, 4294901760
        %2494 = vmatmul.mubr.f32.gmra.mrb[0].mxu0 %v2493
        %v2495 = vpop.f32.mrb[0].mxu0
        %v2496 = vadd.f32 %v2319, %v2495
        %v2497 = vpop.f32.mrb[0].mxu0
        %v2498 = vand.u32 %v1639, 4294901760
        %v2499 = vsub.f32 %v1639, %v2498
        %v2500 = vand.u32 %v2499, 4294901760
        %2501 = vmatprep.mubr.f32.mxu0 %v2500
        %v2502 = vand.u32 %v1615, 4294901760
        %v2503 = vsub.f32 %v1615, %v2502
        %v2504 = vand.u32 %v2503, 4294901760
        %2505 = vmatmul.mubr.f32.gmra.mrb[0].mxu0 %v2504
        %v2506 = vpop.f32.mrb[0].mxu0
        %v2507 = vadd.f32 %v2328, %v2506
        %v2508 = vpop.f32.mrb[0].mxu0
        %v2509 = vand.u32 %v1640, 4294901760
        %v2510 = vsub.f32 %v1640, %v2509
        %v2511 = vand.u32 %v2510, 4294901760
        %2512 = vmatprep.mubr.f32.mxu0 %v2511
        %v2513 = vand.u32 %v1616, 4294901760
        %v2514 = vsub.f32 %v1616, %v2513
        %v2515 = vand.u32 %v2514, 4294901760
        %2516 = vmatmul.mubr.f32.gmra.mrb[0].mxu0 %v2515
        %v2517 = vpop.f32.mrb[0].mxu0
        %v2518 = vadd.f32 %v2337, %v2517
        %v2519 = vpop.f32.mrb[0].mxu0
        %v2520 = vand.u32 %v1641, 4294901760
        %v2521 = vsub.f32 %v1641, %v2520
        %v2522 = vand.u32 %v2521, 4294901760
        %2523 = vmatprep.mubr.f32.mxu0 %v2522
        %v2524 = vand.u32 %v1617, 4294901760
        %v2525 = vsub.f32 %v1617, %v2524
        %v2526 = vand.u32 %v2525, 4294901760
        %2527 = vmatmul.mubr.f32.gmra.mrb[0].mxu0 %v2526
        %v2528 = vpop.f32.mrb[0].mxu0
        %v2529 = vadd.f32 %v2346, %v2528
        %v2530 = vpop.f32.mrb[0].mxu0
        %v2531 = vand.u32 %v1642, 4294901760
        %v2532 = vsub.f32 %v1642, %v2531
        %v2533 = vand.u32 %v2532, 4294901760
        %2534 = vmatprep.mubr.f32.mxu0 %v2533
        %v2535 = vand.u32 %v1618, 4294901760
        %v2536 = vsub.f32 %v1618, %v2535
        %v2537 = vand.u32 %v2536, 4294901760
        %2538 = vmatmul.mubr.f32.gmra.mrb[0].mxu0 %v2537
        %v2539 = vpop.f32.mrb[0].mxu0
        %v2540 = vadd.f32 %v2355, %v2539
        %v2541 = vpop.f32.mrb[0].mxu0
        %2542 = vdwg.mxu0
        %2543 = vmatprep.subr.mxu0 0.0
        %v2544 = vand.u32 %v1284, 4294901760
        %v2545 = vsub.f32 %v1284, %v2544
        %v2546 = vand.u32 %v2545, 4294901760
        %2547 = vmatpush1.msra.mxu0 %v2546
        %2548 = vmatprep.subr.mxu0 0.0
        %v2549 = vand.u32 %v1285, 4294901760
        %v2550 = vsub.f32 %v1285, %v2549
        %v2551 = vand.u32 %v2550, 4294901760
        %2552 = vmatpush1.msra.mxu0 %v2551
        %2553 = vmatprep.subr.mxu0 0.0
        %v2554 = vand.u32 %v1286, 4294901760
        %v2555 = vsub.f32 %v1286, %v2554
        %v2556 = vand.u32 %v2555, 4294901760
        %2557 = vmatpush1.msra.mxu0 %v2556
        %2558 = vmatprep.subr.mxu0 0.0
        %v2559 = vand.u32 %v1287, 4294901760
        %v2560 = vsub.f32 %v1287, %v2559
        %v2561 = vand.u32 %v2560, 4294901760
        %2562 = vmatpush1.msra.mxu0 %v2561
        %2563 = vmatprep.subr.mxu0 0.0
        %v2564 = vand.u32 %v1288, 4294901760
        %v2565 = vsub.f32 %v1288, %v2564
        %v2566 = vand.u32 %v2565, 4294901760
        %2567 = vmatpush1.msra.mxu0 %v2566
        %2568 = vmatprep.subr.mxu0 0.0
        %v2569 = vand.u32 %v1289, 4294901760
        %v2570 = vsub.f32 %v1289, %v2569
        %v2571 = vand.u32 %v2570, 4294901760
        %2572 = vmatpush1.msra.mxu0 %v2571
        %2573 = vmatprep.subr.mxu0 0.0
        %v2574 = vand.u32 %v1290, 4294901760
        %v2575 = vsub.f32 %v1290, %v2574
        %v2576 = vand.u32 %v2575, 4294901760
        %2577 = vmatpush1.msra.mxu0 %v2576
        %2578 = vmatprep.subr.mxu0 0.0
        %v2579 = vand.u32 %v1291, 4294901760
        %v2580 = vsub.f32 %v1291, %v2579
        %v2581 = vand.u32 %v2580, 4294901760
        %2582 = vmatpush1.msra.mxu0 %v2581
        %2583 = vmatprep.subr.mxu0 0.0
        %v2584 = vand.u32 %v1292, 4294901760
        %v2585 = vsub.f32 %v1292, %v2584
        %v2586 = vand.u32 %v2585, 4294901760
        %2587 = vmatpush1.msra.mxu0 %v2586
        %2588 = vmatprep.subr.mxu0 0.0
        %v2589 = vand.u32 %v1293, 4294901760
        %v2590 = vsub.f32 %v1293, %v2589
        %v2591 = vand.u32 %v2590, 4294901760
        %2592 = vmatpush1.msra.mxu0 %v2591
        %2593 = vmatprep.subr.mxu0 0.0
        %v2594 = vand.u32 %v1294, 4294901760
        %v2595 = vsub.f32 %v1294, %v2594
        %v2596 = vand.u32 %v2595, 4294901760
        %2597 = vmatpush1.msra.mxu0 %v2596
        %2598 = vmatprep.subr.mxu0 0.0
        %v2599 = vand.u32 %v1295, 4294901760
        %v2600 = vsub.f32 %v1295, %v2599
        %v2601 = vand.u32 %v2600, 4294901760
        %2602 = vmatpush1.msra.mxu0 %v2601
        %2603 = vmatprep.subr.mxu0 0.0
        %v2604 = vand.u32 %v1296, 4294901760
        %v2605 = vsub.f32 %v1296, %v2604
        %v2606 = vand.u32 %v2605, 4294901760
        %2607 = vmatpush1.msra.mxu0 %v2606
        %2608 = vmatprep.subr.mxu0 0.0
        %v2609 = vand.u32 %v1297, 4294901760
        %v2610 = vsub.f32 %v1297, %v2609
        %v2611 = vand.u32 %v2610, 4294901760
        %2612 = vmatpush1.msra.mxu0 %v2611
        %2613 = vmatprep.subr.mxu0 0.0
        %v2614 = vand.u32 %v1298, 4294901760
        %v2615 = vsub.f32 %v1298, %v2614
        %v2616 = vand.u32 %v2615, 4294901760
        %2617 = vmatpush1.msra.mxu0 %v2616
        %2618 = vmatprep.subr.mxu0 0.0
        %v2619 = vand.u32 %v1299, 4294901760
        %v2620 = vsub.f32 %v1299, %v2619
        %v2621 = vand.u32 %v2620, 4294901760
        %2622 = vmatpush1.msra.mxu0 %v2621
        %2623 = vmatprep.subr.mxu0 0.0
        %v2624 = vand.u32 %v1300, 4294901760
        %v2625 = vsub.f32 %v1300, %v2624
        %v2626 = vand.u32 %v2625, 4294901760
        %2627 = vmatpush1.msra.mxu0 %v2626
        %2628 = vmatprep.subr.mxu0 0.0
        %v2629 = vand.u32 %v1301, 4294901760
        %v2630 = vsub.f32 %v1301, %v2629
        %v2631 = vand.u32 %v2630, 4294901760
        %2632 = vmatpush1.msra.mxu0 %v2631
        %2633 = vmatprep.subr.mxu0 0.0
        %v2634 = vand.u32 %v1302, 4294901760
        %v2635 = vsub.f32 %v1302, %v2634
        %v2636 = vand.u32 %v2635, 4294901760
        %2637 = vmatpush1.msra.mxu0 %v2636
        %2638 = vmatprep.subr.mxu0 0.0
        %v2639 = vand.u32 %v1303, 4294901760
        %v2640 = vsub.f32 %v1303, %v2639
        %v2641 = vand.u32 %v2640, 4294901760
        %2642 = vmatpush1.msra.mxu0 %v2641
        %2643 = vmatprep.subr.mxu0 0.0
        %v2644 = vand.u32 %v1304, 4294901760
        %v2645 = vsub.f32 %v1304, %v2644
        %v2646 = vand.u32 %v2645, 4294901760
        %2647 = vmatpush1.msra.mxu0 %v2646
        %2648 = vmatprep.subr.mxu0 0.0
        %v2649 = vand.u32 %v1305, 4294901760
        %v2650 = vsub.f32 %v1305, %v2649
        %v2651 = vand.u32 %v2650, 4294901760
        %2652 = vmatpush1.msra.mxu0 %v2651
        %2653 = vmatprep.subr.mxu0 0.0
        %v2654 = vand.u32 %v1306, 4294901760
        %v2655 = vsub.f32 %v1306, %v2654
        %v2656 = vand.u32 %v2655, 4294901760
        %2657 = vmatpush1.msra.mxu0 %v2656
        %2658 = vmatprep.subr.mxu0 0.0
        %v2659 = vand.u32 %v1307, 4294901760
        %v2660 = vsub.f32 %v1307, %v2659
        %v2661 = vand.u32 %v2660, 4294901760
        %2662 = vmatpush1.msra.mxu0 %v2661
        %2663 = vmatprep.subr.mxu0 0.0
        %v2664 = vand.u32 %v1308, 4294901760
        %v2665 = vsub.f32 %v1308, %v2664
        %v2666 = vand.u32 %v2665, 4294901760
        %2667 = vmatpush1.msra.mxu0 %v2666
        %2668 = vmatprep.subr.mxu0 0.0
        %v2669 = vand.u32 %v1309, 4294901760
        %v2670 = vsub.f32 %v1309, %v2669
        %v2671 = vand.u32 %v2670, 4294901760
        %2672 = vmatpush1.msra.mxu0 %v2671
        %2673 = vmatprep.subr.mxu0 0.0
        %v2674 = vand.u32 %v1310, 4294901760
        %v2675 = vsub.f32 %v1310, %v2674
        %v2676 = vand.u32 %v2675, 4294901760
        %2677 = vmatpush1.msra.mxu0 %v2676
        %2678 = vmatprep.subr.mxu0 0.0
        %v2679 = vand.u32 %v1311, 4294901760
        %v2680 = vsub.f32 %v1311, %v2679
        %v2681 = vand.u32 %v2680, 4294901760
        %2682 = vmatpush1.msra.mxu0 %v2681
        %2683 = vmatprep.subr.mxu0 0.0
        %v2684 = vand.u32 %v1312, 4294901760
        %v2685 = vsub.f32 %v1312, %v2684
        %v2686 = vand.u32 %v2685, 4294901760
        %2687 = vmatpush1.msra.mxu0 %v2686
        %2688 = vmatprep.subr.mxu0 0.0
        %v2689 = vand.u32 %v1313, 4294901760
        %v2690 = vsub.f32 %v1313, %v2689
        %v2691 = vand.u32 %v2690, 4294901760
        %2692 = vmatpush1.msra.mxu0 %v2691
        %2693 = vmatprep.subr.mxu0 0.0
        %v2694 = vand.u32 %v1314, 4294901760
        %v2695 = vsub.f32 %v1314, %v2694
        %v2696 = vand.u32 %v2695, 4294901760
        %2697 = vmatpush1.msra.mxu0 %v2696
        %2698 = vmatprep.subr.mxu0 0.0
        %v2699 = vand.u32 %v1315, 4294901760
        %v2700 = vsub.f32 %v1315, %v2699
        %v2701 = vand.u32 %v2700, 4294901760
        %2702 = vmatpush1.msra.mxu0 %v2701
        %v2703 = vand.u32 %v1635, 4294901760
        %2704 = vmatprep.mubr.f32.mxu0 %v2703
        %v2705 = vand.u32 %v1611, 4294901760
        %2706 = vmatmul.mubr.f32.gmra.mrb[0].mxu0 %v2705
        %v2707 = vpop.f32.mrb[0].mxu0
        %v2708 = vadd.f32 %v2463, %v2707
        %v2709 = vpop.f32.mrb[0].mxu0
        %v2710 = vand.u32 %v1636, 4294901760
        %2711 = vmatprep.mubr.f32.mxu0 %v2710
        %v2712 = vand.u32 %v1612, 4294901760
        %2713 = vmatmul.mubr.f32.gmra.mrb[0].mxu0 %v2712
        %v2714 = vpop.f32.mrb[0].mxu0
        %v2715 = vadd.f32 %v2474, %v2714
        %v2716 = vpop.f32.mrb[0].mxu0
        %v2717 = vand.u32 %v1637, 4294901760
        %2718 = vmatprep.mubr.f32.mxu0 %v2717
        %v2719 = vand.u32 %v1613, 4294901760
        %2720 = vmatmul.mubr.f32.gmra.mrb[0].mxu0 %v2719
        %v2721 = vpop.f32.mrb[0].mxu0
        %v2722 = vadd.f32 %v2485, %v2721
        %v2723 = vpop.f32.mrb[0].mxu0
        %v2724 = vand.u32 %v1638, 4294901760
        %2725 = vmatprep.mubr.f32.mxu0 %v2724
        %v2726 = vand.u32 %v1614, 4294901760
        %2727 = vmatmul.mubr.f32.gmra.mrb[0].mxu0 %v2726
        %v2728 = vpop.f32.mrb[0].mxu0
        %v2729 = vadd.f32 %v2496, %v2728
        %v2730 = vpop.f32.mrb[0].mxu0
        %v2731 = vand.u32 %v1639, 4294901760
        %2732 = vmatprep.mubr.f32.mxu0 %v2731
        %v2733 = vand.u32 %v1615, 4294901760
        %2734 = vmatmul.mubr.f32.gmra.mrb[0].mxu0 %v2733
        %v2735 = vpop.f32.mrb[0].mxu0
        %v2736 = vadd.f32 %v2507, %v2735
        %v2737 = vpop.f32.mrb[0].mxu0
        %v2738 = vand.u32 %v1640, 4294901760
        %2739 = vmatprep.mubr.f32.mxu0 %v2738
        %v2740 = vand.u32 %v1616, 4294901760
        %2741 = vmatmul.mubr.f32.gmra.mrb[0].mxu0 %v2740
        %v2742 = vpop.f32.mrb[0].mxu0
        %v2743 = vadd.f32 %v2518, %v2742
        %v2744 = vpop.f32.mrb[0].mxu0
        %v2745 = vand.u32 %v1641, 4294901760
        %2746 = vmatprep.mubr.f32.mxu0 %v2745
        %v2747 = vand.u32 %v1617, 4294901760
        %2748 = vmatmul.mubr.f32.gmra.mrb[0].mxu0 %v2747
        %v2749 = vpop.f32.mrb[0].mxu0
        %v2750 = vadd.f32 %v2529, %v2749
        %v2751 = vpop.f32.mrb[0].mxu0
        %v2752 = vand.u32 %v1642, 4294901760
        %2753 = vmatprep.mubr.f32.mxu0 %v2752
        %v2754 = vand.u32 %v1618, 4294901760
        %2755 = vmatmul.mubr.f32.gmra.mrb[0].mxu0 %v2754
        %v2756 = vpop.f32.mrb[0].mxu0
        %v2757 = vadd.f32 %v2540, %v2756
        %v2758 = vpop.f32.mrb[0].mxu0
        %2759 = vdwg.mxu0
        %2760 = vmatprep.subr.mxu0 0.0
        %v2761 = vand.u32 %v1284, 4294901760
        %2762 = vmatpush1.msra.mxu0 %v2761
        %2763 = vmatprep.subr.mxu0 0.0
        %v2764 = vand.u32 %v1285, 4294901760
        %2765 = vmatpush1.msra.mxu0 %v2764
        %2766 = vmatprep.subr.mxu0 0.0
        %v2767 = vand.u32 %v1286, 4294901760
        %2768 = vmatpush1.msra.mxu0 %v2767
        %2769 = vmatprep.subr.mxu0 0.0
        %v2770 = vand.u32 %v1287, 4294901760
        %2771 = vmatpush1.msra.mxu0 %v2770
        %2772 = vmatprep.subr.mxu0 0.0
        %v2773 = vand.u32 %v1288, 4294901760
        %2774 = vmatpush1.msra.mxu0 %v2773
        %2775 = vmatprep.subr.mxu0 0.0
        %v2776 = vand.u32 %v1289, 4294901760
        %2777 = vmatpush1.msra.mxu0 %v2776
        %2778 = vmatprep.subr.mxu0 0.0
        %v2779 = vand.u32 %v1290, 4294901760
        %2780 = vmatpush1.msra.mxu0 %v2779
        %2781 = vmatprep.subr.mxu0 0.0
        %v2782 = vand.u32 %v1291, 4294901760
        %2783 = vmatpush1.msra.mxu0 %v2782
        %2784 = vmatprep.subr.mxu0 0.0
        %v2785 = vand.u32 %v1292, 4294901760
        %2786 = vmatpush1.msra.mxu0 %v2785
        %2787 = vmatprep.subr.mxu0 0.0
        %v2788 = vand.u32 %v1293, 4294901760
        %2789 = vmatpush1.msra.mxu0 %v2788
        %2790 = vmatprep.subr.mxu0 0.0
        %v2791 = vand.u32 %v1294, 4294901760
        %2792 = vmatpush1.msra.mxu0 %v2791
        %2793 = vmatprep.subr.mxu0 0.0
        %v2794 = vand.u32 %v1295, 4294901760
        %2795 = vmatpush1.msra.mxu0 %v2794
        %2796 = vmatprep.subr.mxu0 0.0
        %v2797 = vand.u32 %v1296, 4294901760
        %2798 = vmatpush1.msra.mxu0 %v2797
        %2799 = vmatprep.subr.mxu0 0.0
        %v2800 = vand.u32 %v1297, 4294901760
        %2801 = vmatpush1.msra.mxu0 %v2800
        %2802 = vmatprep.subr.mxu0 0.0
        %v2803 = vand.u32 %v1298, 4294901760
        %2804 = vmatpush1.msra.mxu0 %v2803
        %2805 = vmatprep.subr.mxu0 0.0
        %v2806 = vand.u32 %v1299, 4294901760
        %2807 = vmatpush1.msra.mxu0 %v2806
        %2808 = vmatprep.subr.mxu0 0.0
        %v2809 = vand.u32 %v1300, 4294901760
        %2810 = vmatpush1.msra.mxu0 %v2809
        %2811 = vmatprep.subr.mxu0 0.0
        %v2812 = vand.u32 %v1301, 4294901760
        %2813 = vmatpush1.msra.mxu0 %v2812
        %2814 = vmatprep.subr.mxu0 0.0
        %v2815 = vand.u32 %v1302, 4294901760
        %2816 = vmatpush1.msra.mxu0 %v2815
        %2817 = vmatprep.subr.mxu0 0.0
        %v2818 = vand.u32 %v1303, 4294901760
        %2819 = vmatpush1.msra.mxu0 %v2818
        %2820 = vmatprep.subr.mxu0 0.0
        %v2821 = vand.u32 %v1304, 4294901760
        %2822 = vmatpush1.msra.mxu0 %v2821
        %2823 = vmatprep.subr.mxu0 0.0
        %v2824 = vand.u32 %v1305, 4294901760
        %2825 = vmatpush1.msra.mxu0 %v2824
        %2826 = vmatprep.subr.mxu0 0.0
        %v2827 = vand.u32 %v1306, 4294901760
        %2828 = vmatpush1.msra.mxu0 %v2827
        %2829 = vmatprep.subr.mxu0 0.0
        %v2830 = vand.u32 %v1307, 4294901760
        %2831 = vmatpush1.msra.mxu0 %v2830
        %2832 = vmatprep.subr.mxu0 0.0
        %v2833 = vand.u32 %v1308, 4294901760
        %2834 = vmatpush1.msra.mxu0 %v2833
        %2835 = vmatprep.subr.mxu0 0.0
        %v2836 = vand.u32 %v1309, 4294901760
        %2837 = vmatpush1.msra.mxu0 %v2836
        %2838 = vmatprep.subr.mxu0 0.0
        %v2839 = vand.u32 %v1310, 4294901760
        %2840 = vmatpush1.msra.mxu0 %v2839
        %2841 = vmatprep.subr.mxu0 0.0
        %v2842 = vand.u32 %v1311, 4294901760
        %2843 = vmatpush1.msra.mxu0 %v2842
        %2844 = vmatprep.subr.mxu0 0.0
        %v2845 = vand.u32 %v1312, 4294901760
        %2846 = vmatpush1.msra.mxu0 %v2845
        %2847 = vmatprep.subr.mxu0 0.0
        %v2848 = vand.u32 %v1313, 4294901760
        %2849 = vmatpush1.msra.mxu0 %v2848
        %2850 = vmatprep.subr.mxu0 0.0
        %v2851 = vand.u32 %v1314, 4294901760
        %2852 = vmatpush1.msra.mxu0 %v2851
        %2853 = vmatprep.subr.mxu0 0.0
        %v2854 = vand.u32 %v1315, 4294901760
        %2855 = vmatpush1.msra.mxu0 %v2854
        %v2856 = vand.u32 %v1635, 4294901760
        %2857 = vmatprep.mubr.f32.mxu0 %v2856
        %v2858 = vand.u32 %v1611, 4294901760
        %2859 = vmatmul.mubr.f32.gmra.mrb[0].mxu0 %v2858
        %v2860 = vpop.f32.mrb[0].mxu0
        %v2861 = vadd.f32 %v2708, %v2860
        %v2862 = vpop.f32.mrb[0].mxu0
        %v2863 = vand.u32 %v1636, 4294901760
        %2864 = vmatprep.mubr.f32.mxu0 %v2863
        %v2865 = vand.u32 %v1612, 4294901760
        %2866 = vmatmul.mubr.f32.gmra.mrb[0].mxu0 %v2865
        %v2867 = vpop.f32.mrb[0].mxu0
        %v2868 = vadd.f32 %v2715, %v2867
        %v2869 = vpop.f32.mrb[0].mxu0
        %v2870 = vand.u32 %v1637, 4294901760
        %2871 = vmatprep.mubr.f32.mxu0 %v2870
        %v2872 = vand.u32 %v1613, 4294901760
        %2873 = vmatmul.mubr.f32.gmra.mrb[0].mxu0 %v2872
        %v2874 = vpop.f32.mrb[0].mxu0
        %v2875 = vadd.f32 %v2722, %v2874
        %v2876 = vpop.f32.mrb[0].mxu0
        %v2877 = vand.u32 %v1638, 4294901760
        %2878 = vmatprep.mubr.f32.mxu0 %v2877
        %v2879 = vand.u32 %v1614, 4294901760
        %2880 = vmatmul.mubr.f32.gmra.mrb[0].mxu0 %v2879
        %v2881 = vpop.f32.mrb[0].mxu0
        %v2882 = vadd.f32 %v2729, %v2881
        %v2883 = vpop.f32.mrb[0].mxu0
        %v2884 = vand.u32 %v1639, 4294901760
        %2885 = vmatprep.mubr.f32.mxu0 %v2884
        %v2886 = vand.u32 %v1615, 4294901760
        %2887 = vmatmul.mubr.f32.gmra.mrb[0].mxu0 %v2886
        %v2888 = vpop.f32.mrb[0].mxu0
        %v2889 = vadd.f32 %v2736, %v2888
        %v2890 = vpop.f32.mrb[0].mxu0
        %v2891 = vand.u32 %v1640, 4294901760
        %2892 = vmatprep.mubr.f32.mxu0 %v2891
        %v2893 = vand.u32 %v1616, 4294901760
        %2894 = vmatmul.mubr.f32.gmra.mrb[0].mxu0 %v2893
        %v2895 = vpop.f32.mrb[0].mxu0
        %v2896 = vadd.f32 %v2743, %v2895
        %v2897 = vpop.f32.mrb[0].mxu0
        %v2898 = vand.u32 %v1641, 4294901760
        %2899 = vmatprep.mubr.f32.mxu0 %v2898
        %v2900 = vand.u32 %v1617, 4294901760
        %2901 = vmatmul.mubr.f32.gmra.mrb[0].mxu0 %v2900
        %v2902 = vpop.f32.mrb[0].mxu0
        %v2903 = vadd.f32 %v2750, %v2902
        %v2904 = vpop.f32.mrb[0].mxu0
        %v2905 = vand.u32 %v1642, 4294901760
        %2906 = vmatprep.mubr.f32.mxu0 %v2905
        %v2907 = vand.u32 %v1618, 4294901760
        %2908 = vmatmul.mubr.f32.gmra.mrb[0].mxu0 %v2907
        %v2909 = vpop.f32.mrb[0].mxu0
        %v2910 = vadd.f32 %v2757, %v2909
        %v2911 = vpop.f32.mrb[0].mxu0
        %2912 = vdwg.mxu0
        %2913 = vmatprep.subr.mxu0 0.0
        %v2914 = vand.u32 %v1316, 4294901760
        %2915 = vmatpush1.msra.mxu0 %v2914
        %2916 = vmatprep.subr.mxu0 0.0
        %v2917 = vand.u32 %v1317, 4294901760
        %2918 = vmatpush1.msra.mxu0 %v2917
        %2919 = vmatprep.subr.mxu0 0.0
        %v2920 = vand.u32 %v1318, 4294901760
        %2921 = vmatpush1.msra.mxu0 %v2920
        %2922 = vmatprep.subr.mxu0 0.0
        %v2923 = vand.u32 %v1319, 4294901760
        %2924 = vmatpush1.msra.mxu0 %v2923
        %2925 = vmatprep.subr.mxu0 0.0
        %2926 = vmatpush1.msra.mxu0 0.0
        %2927 = vmatprep.subr.mxu0 0.0
        %2928 = vmatpush1.msra.mxu0 0.0
        %2929 = vmatprep.subr.mxu0 0.0
        %2930 = vmatpush1.msra.mxu0 0.0
        %2931 = vmatprep.subr.mxu0 0.0
        %2932 = vmatpush1.msra.mxu0 0.0
        %2933 = vmatprep.subr.mxu0 0.0
        %2934 = vmatpush1.msra.mxu0 0.0
        %2935 = vmatprep.subr.mxu0 0.0
        %2936 = vmatpush1.msra.mxu0 0.0
        %2937 = vmatprep.subr.mxu0 0.0
        %2938 = vmatpush1.msra.mxu0 0.0
        %2939 = vmatprep.subr.mxu0 0.0
        %2940 = vmatpush1.msra.mxu0 0.0
        %2941 = vmatprep.subr.mxu0 0.0
        %2942 = vmatpush1.msra.mxu0 0.0
        %2943 = vmatprep.subr.mxu0 0.0
        %2944 = vmatpush1.msra.mxu0 0.0
        %2945 = vmatprep.subr.mxu0 0.0
        %2946 = vmatpush1.msra.mxu0 0.0
        %2947 = vmatprep.subr.mxu0 0.0
        %2948 = vmatpush1.msra.mxu0 0.0
        %2949 = vmatprep.subr.mxu0 0.0
        %2950 = vmatpush1.msra.mxu0 0.0
        %2951 = vmatprep.subr.mxu0 0.0
        %2952 = vmatpush1.msra.mxu0 0.0
        %2953 = vmatprep.subr.mxu0 0.0
        %2954 = vmatpush1.msra.mxu0 0.0
        %2955 = vmatprep.subr.mxu0 0.0
        %2956 = vmatpush1.msra.mxu0 0.0
        %2957 = vmatprep.subr.mxu0 0.0
        %2958 = vmatpush1.msra.mxu0 0.0
        %2959 = vmatprep.subr.mxu0 0.0
        %2960 = vmatpush1.msra.mxu0 0.0
        %2961 = vmatprep.subr.mxu0 0.0
        %2962 = vmatpush1.msra.mxu0 0.0
        %2963 = vmatprep.subr.mxu0 0.0
        %2964 = vmatpush1.msra.mxu0 0.0
        %2965 = vmatprep.subr.mxu0 0.0
        %2966 = vmatpush1.msra.mxu0 0.0
        %2967 = vmatprep.subr.mxu0 0.0
        %2968 = vmatpush1.msra.mxu0 0.0
        %2969 = vmatprep.subr.mxu0 0.0
        %2970 = vmatpush1.msra.mxu0 0.0
        %2971 = vmatprep.subr.mxu0 0.0
        %2972 = vmatpush1.msra.mxu0 0.0
        %2973 = vmatprep.subr.mxu0 0.0
        %2974 = vmatpush1.msra.mxu0 0.0
        %2975 = vmatprep.subr.mxu0 0.0
        %2976 = vmatpush1.msra.mxu0 0.0
        %2977 = vmatprep.subr.mxu0 0.0
        %2978 = vmatpush1.msra.mxu0 0.0
        %2979 = vmatprep.subr.mxu0 0.0
        %2980 = vmatpush1.msra.mxu0 0.0
        %2981 = vmatprep.mubr.f32.mxu0 0.0
        %v2982 = vand.u32 %v1643, 4294901760
        %v2983 = vsub.f32 %v1643, %v2982
        %v2984 = vand.u32 %v2983, 4294901760
        %v2985 = vsub.f32 %v2983, %v2984
        %v2986 = vand.u32 %v2985, 4294901760
        %2987 = vmatmul.mubr.f32.gmra.mrb[0].mxu0 %v2986
        %v2988 = vpop.f32.mrb[0].mxu0
        %v2989 = vadd.f32 %v2861, %v2988
        %v2990 = vpop.f32.mrb[0].mxu0
        %2991 = vmatprep.mubr.f32.mxu0 0.0
        %v2992 = vand.u32 %v1645, 4294901760
        %v2993 = vsub.f32 %v1645, %v2992
        %v2994 = vand.u32 %v2993, 4294901760
        %v2995 = vsub.f32 %v2993, %v2994
        %v2996 = vand.u32 %v2995, 4294901760
        %2997 = vmatmul.mubr.f32.gmra.mrb[0].mxu0 %v2996
        %v2998 = vpop.f32.mrb[0].mxu0
        %v2999 = vadd.f32 %v2868, %v2998
        %v3000 = vpop.f32.mrb[0].mxu0
        %3001 = vmatprep.mubr.f32.mxu0 0.0
        %v3002 = vand.u32 %v1647, 4294901760
        %v3003 = vsub.f32 %v1647, %v3002
        %v3004 = vand.u32 %v3003, 4294901760
        %v3005 = vsub.f32 %v3003, %v3004
        %v3006 = vand.u32 %v3005, 4294901760
        %3007 = vmatmul.mubr.f32.gmra.mrb[0].mxu0 %v3006
        %v3008 = vpop.f32.mrb[0].mxu0
        %v3009 = vadd.f32 %v2875, %v3008
        %v3010 = vpop.f32.mrb[0].mxu0
        %3011 = vmatprep.mubr.f32.mxu0 0.0
        %v3012 = vand.u32 %v1649, 4294901760
        %v3013 = vsub.f32 %v1649, %v3012
        %v3014 = vand.u32 %v3013, 4294901760
        %v3015 = vsub.f32 %v3013, %v3014
        %v3016 = vand.u32 %v3015, 4294901760
        %3017 = vmatmul.mubr.f32.gmra.mrb[0].mxu0 %v3016
        %v3018 = vpop.f32.mrb[0].mxu0
        %v3019 = vadd.f32 %v2882, %v3018
        %v3020 = vpop.f32.mrb[0].mxu0
        %3021 = vmatprep.mubr.f32.mxu0 0.0
        %v3022 = vand.u32 %v1651, 4294901760
        %v3023 = vsub.f32 %v1651, %v3022
        %v3024 = vand.u32 %v3023, 4294901760
        %v3025 = vsub.f32 %v3023, %v3024
        %v3026 = vand.u32 %v3025, 4294901760
        %3027 = vmatmul.mubr.f32.gmra.mrb[0].mxu0 %v3026
        %v3028 = vpop.f32.mrb[0].mxu0
        %v3029 = vadd.f32 %v2889, %v3028
        %v3030 = vpop.f32.mrb[0].mxu0
        %3031 = vmatprep.mubr.f32.mxu0 0.0
        %v3032 = vand.u32 %v1653, 4294901760
        %v3033 = vsub.f32 %v1653, %v3032
        %v3034 = vand.u32 %v3033, 4294901760
        %v3035 = vsub.f32 %v3033, %v3034
        %v3036 = vand.u32 %v3035, 4294901760
        %3037 = vmatmul.mubr.f32.gmra.mrb[0].mxu0 %v3036
        %v3038 = vpop.f32.mrb[0].mxu0
        %v3039 = vadd.f32 %v2896, %v3038
        %v3040 = vpop.f32.mrb[0].mxu0
        %3041 = vmatprep.mubr.f32.mxu0 0.0
        %v3042 = vand.u32 %v1655, 4294901760
        %v3043 = vsub.f32 %v1655, %v3042
        %v3044 = vand.u32 %v3043, 4294901760
        %v3045 = vsub.f32 %v3043, %v3044
        %v3046 = vand.u32 %v3045, 4294901760
        %3047 = vmatmul.mubr.f32.gmra.mrb[0].mxu0 %v3046
        %v3048 = vpop.f32.mrb[0].mxu0
        %v3049 = vadd.f32 %v2903, %v3048
        %v3050 = vpop.f32.mrb[0].mxu0
        %3051 = vmatprep.mubr.f32.mxu0 0.0
        %v3052 = vand.u32 %v1657, 4294901760
        %v3053 = vsub.f32 %v1657, %v3052
        %v3054 = vand.u32 %v3053, 4294901760
        %v3055 = vsub.f32 %v3053, %v3054
        %v3056 = vand.u32 %v3055, 4294901760
        %3057 = vmatmul.mubr.f32.gmra.mrb[0].mxu0 %v3056
        %v3058 = vpop.f32.mrb[0].mxu0
        %v3059 = vadd.f32 %v2910, %v3058
        %v3060 = vpop.f32.mrb[0].mxu0
        %3061 = vdwg.mxu0
        %3062 = vmatprep.subr.mxu0 0.0
        %v3063 = vand.u32 %v1316, 4294901760
        %v3064 = vsub.f32 %v1316, %v3063
        %v3065 = vand.u32 %v3064, 4294901760
        %v3066 = vsub.f32 %v3064, %v3065
        %v3067 = vand.u32 %v3066, 4294901760
        %3068 = vmatpush1.msra.mxu0 %v3067
        %3069 = vmatprep.subr.mxu0 0.0
        %v3070 = vand.u32 %v1317, 4294901760
        %v3071 = vsub.f32 %v1317, %v3070
        %v3072 = vand.u32 %v3071, 4294901760
        %v3073 = vsub.f32 %v3071, %v3072
        %v3074 = vand.u32 %v3073, 4294901760
        %3075 = vmatpush1.msra.mxu0 %v3074
        %3076 = vmatprep.subr.mxu0 0.0
        %v3077 = vand.u32 %v1318, 4294901760
        %v3078 = vsub.f32 %v1318, %v3077
        %v3079 = vand.u32 %v3078, 4294901760
        %v3080 = vsub.f32 %v3078, %v3079
        %v3081 = vand.u32 %v3080, 4294901760
        %3082 = vmatpush1.msra.mxu0 %v3081
        %3083 = vmatprep.subr.mxu0 0.0
        %v3084 = vand.u32 %v1319, 4294901760
        %v3085 = vsub.f32 %v1319, %v3084
        %v3086 = vand.u32 %v3085, 4294901760
        %v3087 = vsub.f32 %v3085, %v3086
        %v3088 = vand.u32 %v3087, 4294901760
        %3089 = vmatpush1.msra.mxu0 %v3088
        %3090 = vmatprep.subr.mxu0 0.0
        %3091 = vmatpush1.msra.mxu0 0.0
        %3092 = vmatprep.subr.mxu0 0.0
        %3093 = vmatpush1.msra.mxu0 0.0
        %3094 = vmatprep.subr.mxu0 0.0
        %3095 = vmatpush1.msra.mxu0 0.0
        %3096 = vmatprep.subr.mxu0 0.0
        %3097 = vmatpush1.msra.mxu0 0.0
        %3098 = vmatprep.subr.mxu0 0.0
        %3099 = vmatpush1.msra.mxu0 0.0
        %3100 = vmatprep.subr.mxu0 0.0
        %3101 = vmatpush1.msra.mxu0 0.0
        %3102 = vmatprep.subr.mxu0 0.0
        %3103 = vmatpush1.msra.mxu0 0.0
        %3104 = vmatprep.subr.mxu0 0.0
        %3105 = vmatpush1.msra.mxu0 0.0
        %3106 = vmatprep.subr.mxu0 0.0
        %3107 = vmatpush1.msra.mxu0 0.0
        %3108 = vmatprep.subr.mxu0 0.0
        %3109 = vmatpush1.msra.mxu0 0.0
        %3110 = vmatprep.subr.mxu0 0.0
        %3111 = vmatpush1.msra.mxu0 0.0
        %3112 = vmatprep.subr.mxu0 0.0
        %3113 = vmatpush1.msra.mxu0 0.0
        %3114 = vmatprep.subr.mxu0 0.0
        %3115 = vmatpush1.msra.mxu0 0.0
        %3116 = vmatprep.subr.mxu0 0.0
        %3117 = vmatpush1.msra.mxu0 0.0
        %3118 = vmatprep.subr.mxu0 0.0
        %3119 = vmatpush1.msra.mxu0 0.0
        %3120 = vmatprep.subr.mxu0 0.0
        %3121 = vmatpush1.msra.mxu0 0.0
        %3122 = vmatprep.subr.mxu0 0.0
        %3123 = vmatpush1.msra.mxu0 0.0
        %3124 = vmatprep.subr.mxu0 0.0
        %3125 = vmatpush1.msra.mxu0 0.0
        %3126 = vmatprep.subr.mxu0 0.0
        %3127 = vmatpush1.msra.mxu0 0.0
        %3128 = vmatprep.subr.mxu0 0.0
        %3129 = vmatpush1.msra.mxu0 0.0
        %3130 = vmatprep.subr.mxu0 0.0
        %3131 = vmatpush1.msra.mxu0 0.0
        %3132 = vmatprep.subr.mxu0 0.0
        %3133 = vmatpush1.msra.mxu0 0.0
        %3134 = vmatprep.subr.mxu0 0.0
        %3135 = vmatpush1.msra.mxu0 0.0
        %3136 = vmatprep.subr.mxu0 0.0
        %3137 = vmatpush1.msra.mxu0 0.0
        %3138 = vmatprep.subr.mxu0 0.0
        %3139 = vmatpush1.msra.mxu0 0.0
        %3140 = vmatprep.subr.mxu0 0.0
        %3141 = vmatpush1.msra.mxu0 0.0
        %3142 = vmatprep.subr.mxu0 0.0
        %3143 = vmatpush1.msra.mxu0 0.0
        %3144 = vmatprep.subr.mxu0 0.0
        %3145 = vmatpush1.msra.mxu0 0.0
        %3146 = vmatprep.mubr.f32.mxu0 0.0
        %v3147 = vand.u32 %v1643, 4294901760
        %3148 = vmatmul.mubr.f32.gmra.mrb[0].mxu0 %v3147
        %v3149 = vpop.f32.mrb[0].mxu0
        %v3150 = vadd.f32 %v2989, %v3149
        %v3151 = vpop.f32.mrb[0].mxu0
        %3152 = vmatprep.mubr.f32.mxu0 0.0
        %v3153 = vand.u32 %v1645, 4294901760
        %3154 = vmatmul.mubr.f32.gmra.mrb[0].mxu0 %v3153
        %v3155 = vpop.f32.mrb[0].mxu0
        %v3156 = vadd.f32 %v2999, %v3155
        %v3157 = vpop.f32.mrb[0].mxu0
        %3158 = vmatprep.mubr.f32.mxu0 0.0
        %v3159 = vand.u32 %v1647, 4294901760
        %3160 = vmatmul.mubr.f32.gmra.mrb[0].mxu0 %v3159
        %v3161 = vpop.f32.mrb[0].mxu0
        %v3162 = vadd.f32 %v3009, %v3161
        %v3163 = vpop.f32.mrb[0].mxu0
        %3164 = vmatprep.mubr.f32.mxu0 0.0
        %v3165 = vand.u32 %v1649, 4294901760
        %3166 = vmatmul.mubr.f32.gmra.mrb[0].mxu0 %v3165
        %v3167 = vpop.f32.mrb[0].mxu0
        %v3168 = vadd.f32 %v3019, %v3167
        %v3169 = vpop.f32.mrb[0].mxu0
        %3170 = vmatprep.mubr.f32.mxu0 0.0
        %v3171 = vand.u32 %v1651, 4294901760
        %3172 = vmatmul.mubr.f32.gmra.mrb[0].mxu0 %v3171
        %v3173 = vpop.f32.mrb[0].mxu0
        %v3174 = vadd.f32 %v3029, %v3173
        %v3175 = vpop.f32.mrb[0].mxu0
        %3176 = vmatprep.mubr.f32.mxu0 0.0
        %v3177 = vand.u32 %v1653, 4294901760
        %3178 = vmatmul.mubr.f32.gmra.mrb[0].mxu0 %v3177
        %v3179 = vpop.f32.mrb[0].mxu0
        %v3180 = vadd.f32 %v3039, %v3179
        %v3181 = vpop.f32.mrb[0].mxu0
        %3182 = vmatprep.mubr.f32.mxu0 0.0
        %v3183 = vand.u32 %v1655, 4294901760
        %3184 = vmatmul.mubr.f32.gmra.mrb[0].mxu0 %v3183
        %v3185 = vpop.f32.mrb[0].mxu0
        %v3186 = vadd.f32 %v3049, %v3185
        %v3187 = vpop.f32.mrb[0].mxu0
        %3188 = vmatprep.mubr.f32.mxu0 0.0
        %v3189 = vand.u32 %v1657, 4294901760
        %3190 = vmatmul.mubr.f32.gmra.mrb[0].mxu0 %v3189
        %v3191 = vpop.f32.mrb[0].mxu0
        %v3192 = vadd.f32 %v3059, %v3191
        %v3193 = vpop.f32.mrb[0].mxu0
        %3194 = vdwg.mxu0
        %3195 = vmatprep.subr.mxu0 0.0
        %v3196 = vand.u32 %v1316, 4294901760
        %v3197 = vsub.f32 %v1316, %v3196
        %3198 = vmatpush1.msra.mxu0 %v3197
        %3199 = vmatprep.subr.mxu0 0.0
        %v3200 = vand.u32 %v1317, 4294901760
        %v3201 = vsub.f32 %v1317, %v3200
        %3202 = vmatpush1.msra.mxu0 %v3201
        %3203 = vmatprep.subr.mxu0 0.0
        %v3204 = vand.u32 %v1318, 4294901760
        %v3205 = vsub.f32 %v1318, %v3204
        %3206 = vmatpush1.msra.mxu0 %v3205
        %3207 = vmatprep.subr.mxu0 0.0
        %v3208 = vand.u32 %v1319, 4294901760
        %v3209 = vsub.f32 %v1319, %v3208
        %3210 = vmatpush1.msra.mxu0 %v3209
        %3211 = vmatprep.subr.mxu0 0.0
        %3212 = vmatpush1.msra.mxu0 0.0
        %3213 = vmatprep.subr.mxu0 0.0
        %3214 = vmatpush1.msra.mxu0 0.0
        %3215 = vmatprep.subr.mxu0 0.0
        %3216 = vmatpush1.msra.mxu0 0.0
        %3217 = vmatprep.subr.mxu0 0.0
        %3218 = vmatpush1.msra.mxu0 0.0
        %3219 = vmatprep.subr.mxu0 0.0
        %3220 = vmatpush1.msra.mxu0 0.0
        %3221 = vmatprep.subr.mxu0 0.0
        %3222 = vmatpush1.msra.mxu0 0.0
        %3223 = vmatprep.subr.mxu0 0.0
        %3224 = vmatpush1.msra.mxu0 0.0
        %3225 = vmatprep.subr.mxu0 0.0
        %3226 = vmatpush1.msra.mxu0 0.0
        %3227 = vmatprep.subr.mxu0 0.0
        %3228 = vmatpush1.msra.mxu0 0.0
        %3229 = vmatprep.subr.mxu0 0.0
        %3230 = vmatpush1.msra.mxu0 0.0
        %3231 = vmatprep.subr.mxu0 0.0
        %3232 = vmatpush1.msra.mxu0 0.0
        %3233 = vmatprep.subr.mxu0 0.0
        %3234 = vmatpush1.msra.mxu0 0.0
        %3235 = vmatprep.subr.mxu0 0.0
        %3236 = vmatpush1.msra.mxu0 0.0
        %3237 = vmatprep.subr.mxu0 0.0
        %3238 = vmatpush1.msra.mxu0 0.0
        %3239 = vmatprep.subr.mxu0 0.0
        %3240 = vmatpush1.msra.mxu0 0.0
        %3241 = vmatprep.subr.mxu0 0.0
        %3242 = vmatpush1.msra.mxu0 0.0
        %3243 = vmatprep.subr.mxu0 0.0
        %3244 = vmatpush1.msra.mxu0 0.0
        %3245 = vmatprep.subr.mxu0 0.0
        %3246 = vmatpush1.msra.mxu0 0.0
        %3247 = vmatprep.subr.mxu0 0.0
        %3248 = vmatpush1.msra.mxu0 0.0
        %3249 = vmatprep.subr.mxu0 0.0
        %3250 = vmatpush1.msra.mxu0 0.0
        %3251 = vmatprep.subr.mxu0 0.0
        %3252 = vmatpush1.msra.mxu0 0.0
        %3253 = vmatprep.subr.mxu0 0.0
        %3254 = vmatpush1.msra.mxu0 0.0
        %3255 = vmatprep.subr.mxu0 0.0
        %3256 = vmatpush1.msra.mxu0 0.0
        %3257 = vmatprep.subr.mxu0 0.0
        %3258 = vmatpush1.msra.mxu0 0.0
        %3259 = vmatprep.subr.mxu0 0.0
        %3260 = vmatpush1.msra.mxu0 0.0
        %3261 = vmatprep.subr.mxu0 0.0
        %3262 = vmatpush1.msra.mxu0 0.0
        %3263 = vmatprep.subr.mxu0 0.0
        %3264 = vmatpush1.msra.mxu0 0.0
        %3265 = vmatprep.subr.mxu0 0.0
        %3266 = vmatpush1.msra.mxu0 0.0
        %3267 = vmatprep.mubr.f32.mxu0 0.0
        %v3268 = vand.u32 %v1643, 4294901760
        %v3269 = vsub.f32 %v1643, %v3268
        %3270 = vmatmul.mubr.f32.gmra.mrb[0].mxu0 %v3269
        %v3271 = vpop.f32.mrb[0].mxu0
        %v3272 = vadd.f32 %v3150, %v3271
        %v3273 = vpop.f32.mrb[0].mxu0
        %3274 = vmatprep.mubr.f32.mxu0 0.0
        %v3275 = vand.u32 %v1645, 4294901760
        %v3276 = vsub.f32 %v1645, %v3275
        %3277 = vmatmul.mubr.f32.gmra.mrb[0].mxu0 %v3276
        %v3278 = vpop.f32.mrb[0].mxu0
        %v3279 = vadd.f32 %v3156, %v3278
        %v3280 = vpop.f32.mrb[0].mxu0
        %3281 = vmatprep.mubr.f32.mxu0 0.0
        %v3282 = vand.u32 %v1647, 4294901760
        %v3283 = vsub.f32 %v1647, %v3282
        %3284 = vmatmul.mubr.f32.gmra.mrb[0].mxu0 %v3283
        %v3285 = vpop.f32.mrb[0].mxu0
        %v3286 = vadd.f32 %v3162, %v3285
        %v3287 = vpop.f32.mrb[0].mxu0
        %3288 = vmatprep.mubr.f32.mxu0 0.0
        %v3289 = vand.u32 %v1649, 4294901760
        %v3290 = vsub.f32 %v1649, %v3289
        %3291 = vmatmul.mubr.f32.gmra.mrb[0].mxu0 %v3290
        %v3292 = vpop.f32.mrb[0].mxu0
        %v3293 = vadd.f32 %v3168, %v3292
        %v3294 = vpop.f32.mrb[0].mxu0
        %3295 = vmatprep.mubr.f32.mxu0 0.0
        %v3296 = vand.u32 %v1651, 4294901760
        %v3297 = vsub.f32 %v1651, %v3296
        %3298 = vmatmul.mubr.f32.gmra.mrb[0].mxu0 %v3297
        %v3299 = vpop.f32.mrb[0].mxu0
        %v3300 = vadd.f32 %v3174, %v3299
        %v3301 = vpop.f32.mrb[0].mxu0
        %3302 = vmatprep.mubr.f32.mxu0 0.0
        %v3303 = vand.u32 %v1653, 4294901760
        %v3304 = vsub.f32 %v1653, %v3303
        %3305 = vmatmul.mubr.f32.gmra.mrb[0].mxu0 %v3304
        %v3306 = vpop.f32.mrb[0].mxu0
        %v3307 = vadd.f32 %v3180, %v3306
        %v3308 = vpop.f32.mrb[0].mxu0
        %3309 = vmatprep.mubr.f32.mxu0 0.0
        %v3310 = vand.u32 %v1655, 4294901760
        %v3311 = vsub.f32 %v1655, %v3310
        %3312 = vmatmul.mubr.f32.gmra.mrb[0].mxu0 %v3311
        %v3313 = vpop.f32.mrb[0].mxu0
        %v3314 = vadd.f32 %v3186, %v3313
        %v3315 = vpop.f32.mrb[0].mxu0
        %3316 = vmatprep.mubr.f32.mxu0 0.0
        %v3317 = vand.u32 %v1657, 4294901760
        %v3318 = vsub.f32 %v1657, %v3317
        %3319 = vmatmul.mubr.f32.gmra.mrb[0].mxu0 %v3318
        %v3320 = vpop.f32.mrb[0].mxu0
        %v3321 = vadd.f32 %v3192, %v3320
        %v3322 = vpop.f32.mrb[0].mxu0
        %3323 = vdwg.mxu0
        %3324 = vmatprep.subr.mxu0 0.0
        %v3325 = vand.u32 %v1316, 4294901760
        %3326 = vmatpush1.msra.mxu0 %v3325
        %3327 = vmatprep.subr.mxu0 0.0
        %v3328 = vand.u32 %v1317, 4294901760
        %3329 = vmatpush1.msra.mxu0 %v3328
        %3330 = vmatprep.subr.mxu0 0.0
        %v3331 = vand.u32 %v1318, 4294901760
        %3332 = vmatpush1.msra.mxu0 %v3331
        %3333 = vmatprep.subr.mxu0 0.0
        %v3334 = vand.u32 %v1319, 4294901760
        %3335 = vmatpush1.msra.mxu0 %v3334
        %3336 = vmatprep.subr.mxu0 0.0
        %3337 = vmatpush1.msra.mxu0 0.0
        %3338 = vmatprep.subr.mxu0 0.0
        %3339 = vmatpush1.msra.mxu0 0.0
        %3340 = vmatprep.subr.mxu0 0.0
        %3341 = vmatpush1.msra.mxu0 0.0
        %3342 = vmatprep.subr.mxu0 0.0
        %3343 = vmatpush1.msra.mxu0 0.0
        %3344 = vmatprep.subr.mxu0 0.0
        %3345 = vmatpush1.msra.mxu0 0.0
        %3346 = vmatprep.subr.mxu0 0.0
        %3347 = vmatpush1.msra.mxu0 0.0
        %3348 = vmatprep.subr.mxu0 0.0
        %3349 = vmatpush1.msra.mxu0 0.0
        %3350 = vmatprep.subr.mxu0 0.0
        %3351 = vmatpush1.msra.mxu0 0.0
        %3352 = vmatprep.subr.mxu0 0.0
        %3353 = vmatpush1.msra.mxu0 0.0
        %3354 = vmatprep.subr.mxu0 0.0
        %3355 = vmatpush1.msra.mxu0 0.0
        %3356 = vmatprep.subr.mxu0 0.0
        %3357 = vmatpush1.msra.mxu0 0.0
        %3358 = vmatprep.subr.mxu0 0.0
        %3359 = vmatpush1.msra.mxu0 0.0
        %3360 = vmatprep.subr.mxu0 0.0
        %3361 = vmatpush1.msra.mxu0 0.0
        %3362 = vmatprep.subr.mxu0 0.0
        %3363 = vmatpush1.msra.mxu0 0.0
        %3364 = vmatprep.subr.mxu0 0.0
        %3365 = vmatpush1.msra.mxu0 0.0
        %3366 = vmatprep.subr.mxu0 0.0
        %3367 = vmatpush1.msra.mxu0 0.0
        %3368 = vmatprep.subr.mxu0 0.0
        %3369 = vmatpush1.msra.mxu0 0.0
        %3370 = vmatprep.subr.mxu0 0.0
        %3371 = vmatpush1.msra.mxu0 0.0
        %3372 = vmatprep.subr.mxu0 0.0
        %3373 = vmatpush1.msra.mxu0 0.0
        %3374 = vmatprep.subr.mxu0 0.0
        %3375 = vmatpush1.msra.mxu0 0.0
        %3376 = vmatprep.subr.mxu0 0.0
        %3377 = vmatpush1.msra.mxu0 0.0
        %3378 = vmatprep.subr.mxu0 0.0
        %3379 = vmatpush1.msra.mxu0 0.0
        %3380 = vmatprep.subr.mxu0 0.0
        %3381 = vmatpush1.msra.mxu0 0.0
        %3382 = vmatprep.subr.mxu0 0.0
        %3383 = vmatpush1.msra.mxu0 0.0
        %3384 = vmatprep.subr.mxu0 0.0
        %3385 = vmatpush1.msra.mxu0 0.0
        %3386 = vmatprep.subr.mxu0 0.0
        %3387 = vmatpush1.msra.mxu0 0.0
        %3388 = vmatprep.subr.mxu0 0.0
        %3389 = vmatpush1.msra.mxu0 0.0
        %3390 = vmatprep.subr.mxu0 0.0
        %3391 = vmatpush1.msra.mxu0 0.0
        %3392 = vmatprep.mubr.f32.mxu0 0.0
        %v3393 = vand.u32 %v1643, 4294901760
        %v3394 = vsub.f32 %v1643, %v3393
        %v3395 = vand.u32 %v3394, 4294901760
        %3396 = vmatmul.mubr.f32.gmra.mrb[0].mxu0 %v3395
        %v3397 = vpop.f32.mrb[0].mxu0
        %v3398 = vadd.f32 %v3272, %v3397
        %v3399 = vpop.f32.mrb[0].mxu0
        %3400 = vmatprep.mubr.f32.mxu0 0.0
        %v3401 = vand.u32 %v1645, 4294901760
        %v3402 = vsub.f32 %v1645, %v3401
        %v3403 = vand.u32 %v3402, 4294901760
        %3404 = vmatmul.mubr.f32.gmra.mrb[0].mxu0 %v3403
        %v3405 = vpop.f32.mrb[0].mxu0
        %v3406 = vadd.f32 %v3279, %v3405
        %v3407 = vpop.f32.mrb[0].mxu0
        %3408 = vmatprep.mubr.f32.mxu0 0.0
        %v3409 = vand.u32 %v1647, 4294901760
        %v3410 = vsub.f32 %v1647, %v3409
        %v3411 = vand.u32 %v3410, 4294901760
        %3412 = vmatmul.mubr.f32.gmra.mrb[0].mxu0 %v3411
        %v3413 = vpop.f32.mrb[0].mxu0
        %v3414 = vadd.f32 %v3286, %v3413
        %v3415 = vpop.f32.mrb[0].mxu0
        %3416 = vmatprep.mubr.f32.mxu0 0.0
        %v3417 = vand.u32 %v1649, 4294901760
        %v3418 = vsub.f32 %v1649, %v3417
        %v3419 = vand.u32 %v3418, 4294901760
        %3420 = vmatmul.mubr.f32.gmra.mrb[0].mxu0 %v3419
        %v3421 = vpop.f32.mrb[0].mxu0
        %v3422 = vadd.f32 %v3293, %v3421
        %v3423 = vpop.f32.mrb[0].mxu0
        %3424 = vmatprep.mubr.f32.mxu0 0.0
        %v3425 = vand.u32 %v1651, 4294901760
        %v3426 = vsub.f32 %v1651, %v3425
        %v3427 = vand.u32 %v3426, 4294901760
        %3428 = vmatmul.mubr.f32.gmra.mrb[0].mxu0 %v3427
        %v3429 = vpop.f32.mrb[0].mxu0
        %v3430 = vadd.f32 %v3300, %v3429
        %v3431 = vpop.f32.mrb[0].mxu0
        %3432 = vmatprep.mubr.f32.mxu0 0.0
        %v3433 = vand.u32 %v1653, 4294901760
        %v3434 = vsub.f32 %v1653, %v3433
        %v3435 = vand.u32 %v3434, 4294901760
        %3436 = vmatmul.mubr.f32.gmra.mrb[0].mxu0 %v3435
        %v3437 = vpop.f32.mrb[0].mxu0
        %v3438 = vadd.f32 %v3307, %v3437
        %v3439 = vpop.f32.mrb[0].mxu0
        %3440 = vmatprep.mubr.f32.mxu0 0.0
        %v3441 = vand.u32 %v1655, 4294901760
        %v3442 = vsub.f32 %v1655, %v3441
        %v3443 = vand.u32 %v3442, 4294901760
        %3444 = vmatmul.mubr.f32.gmra.mrb[0].mxu0 %v3443
        %v3445 = vpop.f32.mrb[0].mxu0
        %v3446 = vadd.f32 %v3314, %v3445
        %v3447 = vpop.f32.mrb[0].mxu0
        %3448 = vmatprep.mubr.f32.mxu0 0.0
        %v3449 = vand.u32 %v1657, 4294901760
        %v3450 = vsub.f32 %v1657, %v3449
        %v3451 = vand.u32 %v3450, 4294901760
        %3452 = vmatmul.mubr.f32.gmra.mrb[0].mxu0 %v3451
        %v3453 = vpop.f32.mrb[0].mxu0
        %v3454 = vadd.f32 %v3321, %v3453
        %v3455 = vpop.f32.mrb[0].mxu0
        %3456 = vdwg.mxu0
        %3457 = vmatprep.subr.mxu0 0.0
        %v3458 = vand.u32 %v1316, 4294901760
        %v3459 = vsub.f32 %v1316, %v3458
        %v3460 = vand.u32 %v3459, 4294901760
        %3461 = vmatpush1.msra.mxu0 %v3460
        %3462 = vmatprep.subr.mxu0 0.0
        %v3463 = vand.u32 %v1317, 4294901760
        %v3464 = vsub.f32 %v1317, %v3463
        %v3465 = vand.u32 %v3464, 4294901760
        %3466 = vmatpush1.msra.mxu0 %v3465
        %3467 = vmatprep.subr.mxu0 0.0
        %v3468 = vand.u32 %v1318, 4294901760
        %v3469 = vsub.f32 %v1318, %v3468
        %v3470 = vand.u32 %v3469, 4294901760
        %3471 = vmatpush1.msra.mxu0 %v3470
        %3472 = vmatprep.subr.mxu0 0.0
        %v3473 = vand.u32 %v1319, 4294901760
        %v3474 = vsub.f32 %v1319, %v3473
        %v3475 = vand.u32 %v3474, 4294901760
        %3476 = vmatpush1.msra.mxu0 %v3475
        %3477 = vmatprep.subr.mxu0 0.0
        %3478 = vmatpush1.msra.mxu0 0.0
        %3479 = vmatprep.subr.mxu0 0.0
        %3480 = vmatpush1.msra.mxu0 0.0
        %3481 = vmatprep.subr.mxu0 0.0
        %3482 = vmatpush1.msra.mxu0 0.0
        %3483 = vmatprep.subr.mxu0 0.0
        %3484 = vmatpush1.msra.mxu0 0.0
        %3485 = vmatprep.subr.mxu0 0.0
        %3486 = vmatpush1.msra.mxu0 0.0
        %3487 = vmatprep.subr.mxu0 0.0
        %3488 = vmatpush1.msra.mxu0 0.0
        %3489 = vmatprep.subr.mxu0 0.0
        %3490 = vmatpush1.msra.mxu0 0.0
        %3491 = vmatprep.subr.mxu0 0.0
        %3492 = vmatpush1.msra.mxu0 0.0
        %3493 = vmatprep.subr.mxu0 0.0
        %3494 = vmatpush1.msra.mxu0 0.0
        %3495 = vmatprep.subr.mxu0 0.0
        %3496 = vmatpush1.msra.mxu0 0.0
        %3497 = vmatprep.subr.mxu0 0.0
        %3498 = vmatpush1.msra.mxu0 0.0
        %3499 = vmatprep.subr.mxu0 0.0
        %3500 = vmatpush1.msra.mxu0 0.0
        %3501 = vmatprep.subr.mxu0 0.0
        %3502 = vmatpush1.msra.mxu0 0.0
        %3503 = vmatprep.subr.mxu0 0.0
        %3504 = vmatpush1.msra.mxu0 0.0
        %3505 = vmatprep.subr.mxu0 0.0
        %3506 = vmatpush1.msra.mxu0 0.0
        %3507 = vmatprep.subr.mxu0 0.0
        %3508 = vmatpush1.msra.mxu0 0.0
        %3509 = vmatprep.subr.mxu0 0.0
        %3510 = vmatpush1.msra.mxu0 0.0
        %3511 = vmatprep.subr.mxu0 0.0
        %3512 = vmatpush1.msra.mxu0 0.0
        %3513 = vmatprep.subr.mxu0 0.0
        %3514 = vmatpush1.msra.mxu0 0.0
        %3515 = vmatprep.subr.mxu0 0.0
        %3516 = vmatpush1.msra.mxu0 0.0
        %3517 = vmatprep.subr.mxu0 0.0
        %3518 = vmatpush1.msra.mxu0 0.0
        %3519 = vmatprep.subr.mxu0 0.0
        %3520 = vmatpush1.msra.mxu0 0.0
        %3521 = vmatprep.subr.mxu0 0.0
        %3522 = vmatpush1.msra.mxu0 0.0
        %3523 = vmatprep.subr.mxu0 0.0
        %3524 = vmatpush1.msra.mxu0 0.0
        %3525 = vmatprep.subr.mxu0 0.0
        %3526 = vmatpush1.msra.mxu0 0.0
        %3527 = vmatprep.subr.mxu0 0.0
        %3528 = vmatpush1.msra.mxu0 0.0
        %3529 = vmatprep.subr.mxu0 0.0
        %3530 = vmatpush1.msra.mxu0 0.0
        %3531 = vmatprep.subr.mxu0 0.0
        %3532 = vmatpush1.msra.mxu0 0.0
        %3533 = vmatprep.mubr.f32.mxu0 0.0
        %v3534 = vand.u32 %v1643, 4294901760
        %3535 = vmatmul.mubr.f32.gmra.mrb[0].mxu0 %v3534
        %v3536 = vpop.f32.mrb[0].mxu0
        %v3537 = vadd.f32 %v3398, %v3536
        %v3538 = vpop.f32.mrb[0].mxu0
        %3539 = vmatprep.mubr.f32.mxu0 0.0
        %v3540 = vand.u32 %v1645, 4294901760
        %3541 = vmatmul.mubr.f32.gmra.mrb[0].mxu0 %v3540
        %v3542 = vpop.f32.mrb[0].mxu0
        %v3543 = vadd.f32 %v3406, %v3542
        %v3544 = vpop.f32.mrb[0].mxu0
        %3545 = vmatprep.mubr.f32.mxu0 0.0
        %v3546 = vand.u32 %v1647, 4294901760
        %3547 = vmatmul.mubr.f32.gmra.mrb[0].mxu0 %v3546
        %v3548 = vpop.f32.mrb[0].mxu0
        %v3549 = vadd.f32 %v3414, %v3548
        %v3550 = vpop.f32.mrb[0].mxu0
        %3551 = vmatprep.mubr.f32.mxu0 0.0
        %v3552 = vand.u32 %v1649, 4294901760
        %3553 = vmatmul.mubr.f32.gmra.mrb[0].mxu0 %v3552
        %v3554 = vpop.f32.mrb[0].mxu0
        %v3555 = vadd.f32 %v3422, %v3554
        %v3556 = vpop.f32.mrb[0].mxu0
        %3557 = vmatprep.mubr.f32.mxu0 0.0
        %v3558 = vand.u32 %v1651, 4294901760
        %3559 = vmatmul.mubr.f32.gmra.mrb[0].mxu0 %v3558
        %v3560 = vpop.f32.mrb[0].mxu0
        %v3561 = vadd.f32 %v3430, %v3560
        %v3562 = vpop.f32.mrb[0].mxu0
        %3563 = vmatprep.mubr.f32.mxu0 0.0
        %v3564 = vand.u32 %v1653, 4294901760
        %3565 = vmatmul.mubr.f32.gmra.mrb[0].mxu0 %v3564
        %v3566 = vpop.f32.mrb[0].mxu0
        %v3567 = vadd.f32 %v3438, %v3566
        %v3568 = vpop.f32.mrb[0].mxu0
        %3569 = vmatprep.mubr.f32.mxu0 0.0
        %v3570 = vand.u32 %v1655, 4294901760
        %3571 = vmatmul.mubr.f32.gmra.mrb[0].mxu0 %v3570
        %v3572 = vpop.f32.mrb[0].mxu0
        %v3573 = vadd.f32 %v3446, %v3572
        %v3574 = vpop.f32.mrb[0].mxu0
        %3575 = vmatprep.mubr.f32.mxu0 0.0
        %v3576 = vand.u32 %v1657, 4294901760
        %3577 = vmatmul.mubr.f32.gmra.mrb[0].mxu0 %v3576
        %v3578 = vpop.f32.mrb[0].mxu0
        %v3579 = vadd.f32 %v3454, %v3578
        %v3580 = vpop.f32.mrb[0].mxu0
        %3581 = vdwg.mxu0
        %3582 = vmatprep.subr.mxu0 0.0
        %v3583 = vand.u32 %v1316, 4294901760
        %3584 = vmatpush1.msra.mxu0 %v3583
        %3585 = vmatprep.subr.mxu0 0.0
        %v3586 = vand.u32 %v1317, 4294901760
        %3587 = vmatpush1.msra.mxu0 %v3586
        %3588 = vmatprep.subr.mxu0 0.0
        %v3589 = vand.u32 %v1318, 4294901760
        %3590 = vmatpush1.msra.mxu0 %v3589
        %3591 = vmatprep.subr.mxu0 0.0
        %v3592 = vand.u32 %v1319, 4294901760
        %3593 = vmatpush1.msra.mxu0 %v3592
        %3594 = vmatprep.subr.mxu0 0.0
        %3595 = vmatpush1.msra.mxu0 0.0
        %3596 = vmatprep.subr.mxu0 0.0
        %3597 = vmatpush1.msra.mxu0 0.0
        %3598 = vmatprep.subr.mxu0 0.0
        %3599 = vmatpush1.msra.mxu0 0.0
        %3600 = vmatprep.subr.mxu0 0.0
        %3601 = vmatpush1.msra.mxu0 0.0
        %3602 = vmatprep.subr.mxu0 0.0
        %3603 = vmatpush1.msra.mxu0 0.0
        %3604 = vmatprep.subr.mxu0 0.0
        %3605 = vmatpush1.msra.mxu0 0.0
        %3606 = vmatprep.subr.mxu0 0.0
        %3607 = vmatpush1.msra.mxu0 0.0
        %3608 = vmatprep.subr.mxu0 0.0
        %3609 = vmatpush1.msra.mxu0 0.0
        %3610 = vmatprep.subr.mxu0 0.0
        %3611 = vmatpush1.msra.mxu0 0.0
        %3612 = vmatprep.subr.mxu0 0.0
        %3613 = vmatpush1.msra.mxu0 0.0
        %3614 = vmatprep.subr.mxu0 0.0
        %3615 = vmatpush1.msra.mxu0 0.0
        %3616 = vmatprep.subr.mxu0 0.0
        %3617 = vmatpush1.msra.mxu0 0.0
        %3618 = vmatprep.subr.mxu0 0.0
        %3619 = vmatpush1.msra.mxu0 0.0
        %3620 = vmatprep.subr.mxu0 0.0
        %3621 = vmatpush1.msra.mxu0 0.0
        %3622 = vmatprep.subr.mxu0 0.0
        %3623 = vmatpush1.msra.mxu0 0.0
        %3624 = vmatprep.subr.mxu0 0.0
        %3625 = vmatpush1.msra.mxu0 0.0
        %3626 = vmatprep.subr.mxu0 0.0
        %3627 = vmatpush1.msra.mxu0 0.0
        %3628 = vmatprep.subr.mxu0 0.0
        %3629 = vmatpush1.msra.mxu0 0.0
        %3630 = vmatprep.subr.mxu0 0.0
        %3631 = vmatpush1.msra.mxu0 0.0
        %3632 = vmatprep.subr.mxu0 0.0
        %3633 = vmatpush1.msra.mxu0 0.0
        %3634 = vmatprep.subr.mxu0 0.0
        %3635 = vmatpush1.msra.mxu0 0.0
        %3636 = vmatprep.subr.mxu0 0.0
        %3637 = vmatpush1.msra.mxu0 0.0
        %3638 = vmatprep.subr.mxu0 0.0
        %3639 = vmatpush1.msra.mxu0 0.0
        %3640 = vmatprep.subr.mxu0 0.0
        %3641 = vmatpush1.msra.mxu0 0.0
        %3642 = vmatprep.subr.mxu0 0.0
        %3643 = vmatpush1.msra.mxu0 0.0
        %3644 = vmatprep.subr.mxu0 0.0
        %3645 = vmatpush1.msra.mxu0 0.0
        %3646 = vmatprep.subr.mxu0 0.0
        %3647 = vmatpush1.msra.mxu0 0.0
        %3648 = vmatprep.subr.mxu0 0.0
        %3649 = vmatpush1.msra.mxu0 0.0
        %3650 = vmatprep.mubr.f32.mxu0 0.0
        %v3651 = vand.u32 %v1643, 4294901760
        %3652 = vmatmul.mubr.f32.gmra.mrb[0].mxu0 %v3651
        %v3653 = vpop.f32.mrb[0].mxu0
        %v3654 = vadd.f32 %v3537, %v3653
        %v3655 = vpop.f32.mrb[0].mxu0
        %3656 = vmatprep.mubr.f32.mxu0 0.0
        %v3657 = vand.u32 %v1645, 4294901760
        %3658 = vmatmul.mubr.f32.gmra.mrb[0].mxu0 %v3657
        %v3659 = vpop.f32.mrb[0].mxu0
        %v3660 = vadd.f32 %v3543, %v3659
        %v3661 = vpop.f32.mrb[0].mxu0
        %3662 = vmatprep.mubr.f32.mxu0 0.0
        %v3663 = vand.u32 %v1647, 4294901760
        %3664 = vmatmul.mubr.f32.gmra.mrb[0].mxu0 %v3663
        %v3665 = vpop.f32.mrb[0].mxu0
        %v3666 = vadd.f32 %v3549, %v3665
        %v3667 = vpop.f32.mrb[0].mxu0
        %3668 = vmatprep.mubr.f32.mxu0 0.0
        %v3669 = vand.u32 %v1649, 4294901760
        %3670 = vmatmul.mubr.f32.gmra.mrb[0].mxu0 %v3669
        %v3671 = vpop.f32.mrb[0].mxu0
        %v3672 = vadd.f32 %v3555, %v3671
        %v3673 = vpop.f32.mrb[0].mxu0
        %3674 = vmatprep.mubr.f32.mxu0 0.0
        %v3675 = vand.u32 %v1651, 4294901760
        %3676 = vmatmul.mubr.f32.gmra.mrb[0].mxu0 %v3675
        %v3677 = vpop.f32.mrb[0].mxu0
        %v3678 = vadd.f32 %v3561, %v3677
        %v3679 = vpop.f32.mrb[0].mxu0
        %3680 = vmatprep.mubr.f32.mxu0 0.0
        %v3681 = vand.u32 %v1653, 4294901760
        %3682 = vmatmul.mubr.f32.gmra.mrb[0].mxu0 %v3681
        %v3683 = vpop.f32.mrb[0].mxu0
        %v3684 = vadd.f32 %v3567, %v3683
        %v3685 = vpop.f32.mrb[0].mxu0
        %3686 = vmatprep.mubr.f32.mxu0 0.0
        %v3687 = vand.u32 %v1655, 4294901760
        %3688 = vmatmul.mubr.f32.gmra.mrb[0].mxu0 %v3687
        %v3689 = vpop.f32.mrb[0].mxu0
        %v3690 = vadd.f32 %v3573, %v3689
        %v3691 = vpop.f32.mrb[0].mxu0
        %3692 = vmatprep.mubr.f32.mxu0 0.0
        %v3693 = vand.u32 %v1657, 4294901760
        %3694 = vmatmul.mubr.f32.gmra.mrb[0].mxu0 %v3693
        %v3695 = vpop.f32.mrb[0].mxu0
        %v3696 = vadd.f32 %v3579, %v3695
        %v3697 = vpop.f32.mrb[0].mxu0
        %3698 = vdwg.mxu0
        %v3700 = vlaneseq
        %v3701 = vshrl.u32 %v3700, 7
        %v3702 = vsub.s32 0, %v3701
        %v3703 = vrot.slane %v1320, %v3702
        %v3705 = vadd.f32 %v3654, %v3703
        %v3706 = vadd.f32 %v3660, %v3703
        %v3707 = vadd.f32 %v3666, %v3703
        %v3708 = vadd.f32 %v3672, %v3703
        %v3709 = vadd.f32 %v3678, %v3703
        %v3710 = vadd.f32 %v3684, %v3703
        %v3711 = vadd.f32 %v3690, %v3703
        %v3712 = vadd.f32 %v3696, %v3703
        %vm3713 = vcmp.ge.f32.partialorder %v3705, 0.0
        %vm3714 = vcmp.ge.f32.partialorder %v3706, 0.0
        %vm3715 = vcmp.ge.f32.partialorder %v3707, 0.0
        %vm3716 = vcmp.ge.f32.partialorder %v3708, 0.0
        %vm3717 = vcmp.ge.f32.partialorder %v3709, 0.0
        %vm3718 = vcmp.ge.f32.partialorder %v3710, 0.0
        %vm3719 = vcmp.ge.f32.partialorder %v3711, 0.0
        %vm3720 = vcmp.ge.f32.partialorder %v3712, 0.0
        %v3721 = vmul.f32 %v3705, 0.01
        %v3722 = vmul.f32 %v3706, 0.01
        %v3723 = vmul.f32 %v3707, 0.01
        %v3724 = vmul.f32 %v3708, 0.01
        %v3725 = vmul.f32 %v3709, 0.01
        %v3726 = vmul.f32 %v3710, 0.01
        %v3727 = vmul.f32 %v3711, 0.01
        %v3728 = vmul.f32 %v3712, 0.01
        %v3729 = vsel %vm3713, %v3705, %v3721
        %v3730 = vsel %vm3714, %v3706, %v3722
        %v3731 = vsel %vm3715, %v3707, %v3723
        %v3732 = vsel %vm3716, %v3708, %v3724
        %v3733 = vsel %vm3717, %v3709, %v3725
        %v3734 = vsel %vm3718, %v3710, %v3726
        %v3735 = vsel %vm3719, %v3711, %v3727
        %v3736 = vsel %vm3720, %v3712, %v3728
        %v3737 = vmul.f32 %v3729, 0.75
        %v3738 = vmul.f32 %v3730, 0.75
        %v3739 = vmul.f32 %v3731, 0.75
        %v3740 = vmul.f32 %v3732, 0.75
        %v3741 = vmul.f32 %v3733, 0.75
        %v3742 = vmul.f32 %v3734, 0.75
        %v3743 = vmul.f32 %v3735, 0.75
        %v3744 = vmul.f32 %v3736, 0.75
        %v3745 = vmul.f32 %v3729, 0.25
        %v3746 = vmul.f32 %v3730, 0.25
        %v3747 = vmul.f32 %v3731, 0.25
        %v3748 = vmul.f32 %v3732, 0.25
        %v3749 = vmul.f32 %v3733, 0.25
        %v3750 = vmul.f32 %v3734, 0.25
        %v3751 = vmul.f32 %v3735, 0.25
        %v3752 = vadd.f32 %v3737, %v3745
        %v3753 = vadd.f32 %v3738, %v3745
        %v3754 = vadd.f32 %v3739, %v3746
        %v3755 = vadd.f32 %v3740, %v3747
        %v3756 = vadd.f32 %v3741, %v3748
        %v3757 = vadd.f32 %v3742, %v3749
        %v3758 = vadd.f32 %v3743, %v3750
        %v3759 = vadd.f32 %v3744, %v3751
        %v3760 = vmul.f32 %v3736, 0.25
        %v3761 = vadd.f32 %v3737, %v3746
        %v3762 = vadd.f32 %v3738, %v3747
        %v3763 = vadd.f32 %v3739, %v3748
        %v3764 = vadd.f32 %v3740, %v3749
        %v3765 = vadd.f32 %v3741, %v3750
        %v3766 = vadd.f32 %v3742, %v3751
        %v3767 = vadd.f32 %v3743, %v3760
        %v3768 = vadd.f32 %v3744, %v3760
        %v3785 = vrot.slane %v3752, 7
        %v3786 = vrot.slane %v3761, 7
        %v3787 = vrot.slane %v3753, 7
        %v3788 = vrot.slane %v3762, 7
        %v3789 = vrot.slane %v3754, 7
        %v3790 = vrot.slane %v3763, 7
        %v3791 = vrot.slane %v3755, 7
        %v3792 = vrot.slane %v3764, 7
        %v3793 = vrot.slane %v3756, 7
        %v3794 = vrot.slane %v3765, 7
        %v3795 = vrot.slane %v3757, 7
        %v3796 = vrot.slane %v3766, 7
        %v3797 = vrot.slane %v3758, 7
        %v3798 = vrot.slane %v3767, 7
        %v3799 = vrot.slane %v3759, 7
        %v3800 = vrot.slane %v3768, 7
        %v3817 = vsel %vm361, %v3752, %v3785
        %v3818 = vsel %vm361, %v3761, %v3786
        %v3819 = vsel %vm361, %v3753, %v3787
        %v3820 = vsel %vm361, %v3762, %v3788
        %v3821 = vsel %vm361, %v3754, %v3789
        %v3822 = vsel %vm361, %v3763, %v3790
        %v3823 = vsel %vm361, %v3755, %v3791
        %v3824 = vsel %vm361, %v3764, %v3792
        %v3825 = vsel %vm361, %v3756, %v3793
        %v3826 = vsel %vm361, %v3765, %v3794
        %v3827 = vsel %vm361, %v3757, %v3795
        %v3828 = vsel %vm361, %v3766, %v3796
        %v3829 = vsel %vm361, %v3758, %v3797
        %v3830 = vsel %vm361, %v3767, %v3798
        %v3831 = vsel %vm361, %v3759, %v3799
        %v3832 = vsel %vm361, %v3768, %v3800
        %v3833 = vrot.slane %v3752, 1
        %v3834 = vrot.slane %v3761, 1
        %v3835 = vrot.slane %v3753, 1
        %v3836 = vrot.slane %v3762, 1
        %v3837 = vrot.slane %v3754, 1
        %v3838 = vrot.slane %v3763, 1
        %v3839 = vrot.slane %v3755, 1
        %v3840 = vrot.slane %v3764, 1
        %v3841 = vrot.slane %v3756, 1
        %v3842 = vrot.slane %v3765, 1
        %v3843 = vrot.slane %v3757, 1
        %v3844 = vrot.slane %v3766, 1
        %v3845 = vrot.slane %v3758, 1
        %v3846 = vrot.slane %v3767, 1
        %v3847 = vrot.slane %v3759, 1
        %v3848 = vrot.slane %v3768, 1
        %v3865 = vsel %vm1382, %v3833, %v3752
        %v3866 = vsel %vm1382, %v3834, %v3761
        %v3867 = vsel %vm1382, %v3835, %v3753
        %v3868 = vsel %vm1382, %v3836, %v3762
        %v3869 = vsel %vm1382, %v3837, %v3754
        %v3870 = vsel %vm1382, %v3838, %v3763
        %v3871 = vsel %vm1382, %v3839, %v3755
        %v3872 = vsel %vm1382, %v3840, %v3764
        %v3873 = vsel %vm1382, %v3841, %v3756
        %v3874 = vsel %vm1382, %v3842, %v3765
        %v3875 = vsel %vm1382, %v3843, %v3757
        %v3876 = vsel %vm1382, %v3844, %v3766
        %v3877 = vsel %vm1382, %v3845, %v3758
        %v3878 = vsel %vm1382, %v3846, %v3767
        %v3879 = vsel %vm1382, %v3847, %v3759
        %v3880 = vsel %vm1382, %v3848, %v3768
        %v3881 = vmul.f32 %v3752, 0.75
        %v3882 = vmul.f32 %v3761, 0.75
        %v3883 = vmul.f32 %v3753, 0.75
        %v3884 = vmul.f32 %v3762, 0.75
        %v3885 = vmul.f32 %v3754, 0.75
        %v3886 = vmul.f32 %v3763, 0.75
        %v3887 = vmul.f32 %v3755, 0.75
        %v3888 = vmul.f32 %v3764, 0.75
        %v3889 = vmul.f32 %v3756, 0.75
        %v3890 = vmul.f32 %v3765, 0.75
        %v3891 = vmul.f32 %v3757, 0.75
        %v3892 = vmul.f32 %v3766, 0.75
        %v3893 = vmul.f32 %v3758, 0.75
        %v3894 = vmul.f32 %v3767, 0.75
        %v3895 = vmul.f32 %v3759, 0.75
        %v3896 = vmul.f32 %v3768, 0.75
        %v3897 = vmul.f32 %v3817, 0.25
        %v3898 = vmul.f32 %v3818, 0.25
        %v3899 = vmul.f32 %v3819, 0.25
        %v3900 = vmul.f32 %v3820, 0.25
        %v3901 = vmul.f32 %v3821, 0.25
        %v3902 = vmul.f32 %v3822, 0.25
        %v3903 = vmul.f32 %v3823, 0.25
        %v3904 = vmul.f32 %v3824, 0.25
        %v3905 = vmul.f32 %v3825, 0.25
        %v3906 = vmul.f32 %v3826, 0.25
        %v3907 = vmul.f32 %v3827, 0.25
        %v3908 = vmul.f32 %v3828, 0.25
        %v3909 = vmul.f32 %v3829, 0.25
        %v3910 = vmul.f32 %v3830, 0.25
        %v3911 = vmul.f32 %v3831, 0.25
        %v3912 = vmul.f32 %v3832, 0.25
        %v3913 = vadd.f32 %v3881, %v3897
        %v3914 = vadd.f32 %v3882, %v3898
        %v3915 = vadd.f32 %v3883, %v3899
        %v3916 = vadd.f32 %v3884, %v3900
        %v3917 = vadd.f32 %v3885, %v3901
        %v3918 = vadd.f32 %v3886, %v3902
        %v3919 = vadd.f32 %v3887, %v3903
        %v3920 = vadd.f32 %v3888, %v3904
        %v3921 = vadd.f32 %v3889, %v3905
        %v3922 = vadd.f32 %v3890, %v3906
        %v3923 = vadd.f32 %v3891, %v3907
        %v3924 = vadd.f32 %v3892, %v3908
        %v3925 = vadd.f32 %v3893, %v3909
        %v3926 = vadd.f32 %v3894, %v3910
        %v3927 = vadd.f32 %v3895, %v3911
        %v3928 = vadd.f32 %v3896, %v3912
        %v3929 = vmul.f32 %v3865, 0.25
        %v3930 = vmul.f32 %v3866, 0.25
        %v3931 = vmul.f32 %v3867, 0.25
        %v3932 = vmul.f32 %v3868, 0.25
        %v3933 = vmul.f32 %v3869, 0.25
        %v3934 = vmul.f32 %v3870, 0.25
        %v3935 = vmul.f32 %v3871, 0.25
        %v3936 = vmul.f32 %v3872, 0.25
        %v3937 = vmul.f32 %v3873, 0.25
        %v3938 = vmul.f32 %v3874, 0.25
        %v3939 = vmul.f32 %v3875, 0.25
        %v3940 = vmul.f32 %v3876, 0.25
        %v3941 = vmul.f32 %v3877, 0.25
        %v3942 = vmul.f32 %v3878, 0.25
        %v3943 = vmul.f32 %v3879, 0.25
        %v3944 = vmul.f32 %v3880, 0.25
        %v3945 = vadd.f32 %v3881, %v3929
        %v3946 = vadd.f32 %v3882, %v3930
        %v3947 = vadd.f32 %v3883, %v3931
        %v3948 = vadd.f32 %v3884, %v3932
        %v3949 = vadd.f32 %v3885, %v3933
        %v3950 = vadd.f32 %v3886, %v3934
        %v3951 = vadd.f32 %v3887, %v3935
        %v3952 = vadd.f32 %v3888, %v3936
        %v3953 = vadd.f32 %v3889, %v3937
        %v3954 = vadd.f32 %v3890, %v3938
        %v3955 = vadd.f32 %v3891, %v3939
        %v3956 = vadd.f32 %v3892, %v3940
        %v3957 = vadd.f32 %v3893, %v3941
        %v3958 = vadd.f32 %v3894, %v3942
        %v3959 = vadd.f32 %v3895, %v3943
        %v3960 = vadd.f32 %v3896, %v3944
        %v3977 = vcombine.high %v3913, %v3913
        %v3979 = vunpack.c.l.s4 1966171168
        %v3980 = vunpack.c.0.s8 %v3979
        %v3981 = vlaneseq
        %v3982 = vshrl.u32 %v3981, 7
        %v3983 = vsub.s32 %v3980, %v3982
        %v3984 = vrot.slane %v3913, %v3983
        %v3986 = vunpack.c.l.s4 1966171168
        %v3987 = vunpack.c.0.s8 %v3986
        %v3988 = vlaneseq
        %v3989 = vshrl.u32 %v3988, 7
        %v3990 = vsub.s32 %v3987, %v3989
        %v3991 = vrot.slane %v3977, %v3990
        %v3992 = vcombine.high %v3984, %v3984
        %v3993 = vcombine.high %v3991, %v3991
        %v3995 = vunpack.c.l.s4 1966171168
        %v3996 = vunpack.c.0.s8 %v3995
        %v3997 = vlaneseq
        %v3998 = vshrl.u32 %v3997, 7
        %v3999 = vsub.s32 %v3996, %v3998
        %v4000 = vrot.slane %v3984, %v3999
        %v4002 = vunpack.c.l.s4 1966171168
        %v4003 = vunpack.c.0.s8 %v4002
        %v4004 = vlaneseq
        %v4005 = vshrl.u32 %v4004, 7
        %v4006 = vsub.s32 %v4003, %v4005
        %v4007 = vrot.slane %v3991, %v4006
        %v4009 = vunpack.c.l.s4 1966171168
        %v4010 = vunpack.c.0.s8 %v4009
        %v4011 = vlaneseq
        %v4012 = vshrl.u32 %v4011, 7
        %v4013 = vsub.s32 %v4010, %v4012
        %v4014 = vrot.slane %v3992, %v4013
        %v4016 = vunpack.c.l.s4 1966171168
        %v4017 = vunpack.c.0.s8 %v4016
        %v4018 = vlaneseq
        %v4019 = vshrl.u32 %v4018, 7
        %v4020 = vsub.s32 %v4017, %v4019
        %v4021 = vrot.slane %v3993, %v4020
        %v4022 = vcombine.high %v4000, %v4000
        %v4023 = vcombine.high %v4007, %v4007
        %v4024 = vcombine.high %v4014, %v4014
        %v4025 = vcombine.high %v4021, %v4021
        %v4026 = vcombine.high %v3914, %v3914
        %v4028 = vunpack.c.l.s4 1966171168
        %v4029 = vunpack.c.0.s8 %v4028
        %v4030 = vlaneseq
        %v4031 = vshrl.u32 %v4030, 7
        %v4032 = vsub.s32 %v4029, %v4031
        %v4033 = vrot.slane %v3914, %v4032
        %v4035 = vunpack.c.l.s4 1966171168
        %v4036 = vunpack.c.0.s8 %v4035
        %v4037 = vlaneseq
        %v4038 = vshrl.u32 %v4037, 7
        %v4039 = vsub.s32 %v4036, %v4038
        %v4040 = vrot.slane %v4026, %v4039
        %v4041 = vcombine.high %v4033, %v4033
        %v4042 = vcombine.high %v4040, %v4040
        %v4044 = vunpack.c.l.s4 1966171168
        %v4045 = vunpack.c.0.s8 %v4044
        %v4046 = vlaneseq
        %v4047 = vshrl.u32 %v4046, 7
        %v4048 = vsub.s32 %v4045, %v4047
        %v4049 = vrot.slane %v4033, %v4048
        %v4051 = vunpack.c.l.s4 1966171168
        %v4052 = vunpack.c.0.s8 %v4051
        %v4053 = vlaneseq
        %v4054 = vshrl.u32 %v4053, 7
        %v4055 = vsub.s32 %v4052, %v4054
        %v4056 = vrot.slane %v4040, %v4055
        %v4058 = vunpack.c.l.s4 1966171168
        %v4059 = vunpack.c.0.s8 %v4058
        %v4060 = vlaneseq
        %v4061 = vshrl.u32 %v4060, 7
        %v4062 = vsub.s32 %v4059, %v4061
        %v4063 = vrot.slane %v4041, %v4062
        %v4065 = vunpack.c.l.s4 1966171168
        %v4066 = vunpack.c.0.s8 %v4065
        %v4067 = vlaneseq
        %v4068 = vshrl.u32 %v4067, 7
        %v4069 = vsub.s32 %v4066, %v4068
        %v4070 = vrot.slane %v4042, %v4069
        %v4071 = vcombine.high %v4049, %v4049
        %v4072 = vcombine.high %v4056, %v4056
        %v4073 = vcombine.high %v4063, %v4063
        %v4074 = vcombine.high %v4070, %v4070
        %v4075 = vcombine.high %v3915, %v3915
        %v4077 = vunpack.c.l.s4 1966171168
        %v4078 = vunpack.c.0.s8 %v4077
        %v4079 = vlaneseq
        %v4080 = vshrl.u32 %v4079, 7
        %v4081 = vsub.s32 %v4078, %v4080
        %v4082 = vrot.slane %v3915, %v4081
        %v4084 = vunpack.c.l.s4 1966171168
        %v4085 = vunpack.c.0.s8 %v4084
        %v4086 = vlaneseq
        %v4087 = vshrl.u32 %v4086, 7
        %v4088 = vsub.s32 %v4085, %v4087
        %v4089 = vrot.slane %v4075, %v4088
        %v4090 = vcombine.high %v4082, %v4082
        %v4091 = vcombine.high %v4089, %v4089
        %v4093 = vunpack.c.l.s4 1966171168
        %v4094 = vunpack.c.0.s8 %v4093
        %v4095 = vlaneseq
        %v4096 = vshrl.u32 %v4095, 7
        %v4097 = vsub.s32 %v4094, %v4096
        %v4098 = vrot.slane %v4082, %v4097
        %v4100 = vunpack.c.l.s4 1966171168
        %v4101 = vunpack.c.0.s8 %v4100
        %v4102 = vlaneseq
        %v4103 = vshrl.u32 %v4102, 7
        %v4104 = vsub.s32 %v4101, %v4103
        %v4105 = vrot.slane %v4089, %v4104
        %v4107 = vunpack.c.l.s4 1966171168
        %v4108 = vunpack.c.0.s8 %v4107
        %v4109 = vlaneseq
        %v4110 = vshrl.u32 %v4109, 7
        %v4111 = vsub.s32 %v4108, %v4110
        %v4112 = vrot.slane %v4090, %v4111
        %v4114 = vunpack.c.l.s4 1966171168
        %v4115 = vunpack.c.0.s8 %v4114
        %v4116 = vlaneseq
        %v4117 = vshrl.u32 %v4116, 7
        %v4118 = vsub.s32 %v4115, %v4117
        %v4119 = vrot.slane %v4091, %v4118
        %v4120 = vcombine.high %v4098, %v4098
        %v4121 = vcombine.high %v4105, %v4105
        %v4122 = vcombine.high %v4112, %v4112
        %v4123 = vcombine.high %v4119, %v4119
        %v4124 = vcombine.high %v3916, %v3916
        %v4126 = vunpack.c.l.s4 1966171168
        %v4127 = vunpack.c.0.s8 %v4126
        %v4128 = vlaneseq
        %v4129 = vshrl.u32 %v4128, 7
        %v4130 = vsub.s32 %v4127, %v4129
        %v4131 = vrot.slane %v3916, %v4130
        %v4133 = vunpack.c.l.s4 1966171168
        %v4134 = vunpack.c.0.s8 %v4133
        %v4135 = vlaneseq
        %v4136 = vshrl.u32 %v4135, 7
        %v4137 = vsub.s32 %v4134, %v4136
        %v4138 = vrot.slane %v4124, %v4137
        %v4139 = vcombine.high %v4131, %v4131
        %v4140 = vcombine.high %v4138, %v4138
        %v4142 = vunpack.c.l.s4 1966171168
        %v4143 = vunpack.c.0.s8 %v4142
        %v4144 = vlaneseq
        %v4145 = vshrl.u32 %v4144, 7
        %v4146 = vsub.s32 %v4143, %v4145
        %v4147 = vrot.slane %v4131, %v4146
        %v4149 = vunpack.c.l.s4 1966171168
        %v4150 = vunpack.c.0.s8 %v4149
        %v4151 = vlaneseq
        %v4152 = vshrl.u32 %v4151, 7
        %v4153 = vsub.s32 %v4150, %v4152
        %v4154 = vrot.slane %v4138, %v4153
        %v4156 = vunpack.c.l.s4 1966171168
        %v4157 = vunpack.c.0.s8 %v4156
        %v4158 = vlaneseq
        %v4159 = vshrl.u32 %v4158, 7
        %v4160 = vsub.s32 %v4157, %v4159
        %v4161 = vrot.slane %v4139, %v4160
        %v4163 = vunpack.c.l.s4 1966171168
        %v4164 = vunpack.c.0.s8 %v4163
        %v4165 = vlaneseq
        %v4166 = vshrl.u32 %v4165, 7
        %v4167 = vsub.s32 %v4164, %v4166
        %v4168 = vrot.slane %v4140, %v4167
        %v4169 = vcombine.high %v4147, %v4147
        %v4170 = vcombine.high %v4154, %v4154
        %v4171 = vcombine.high %v4161, %v4161
        %v4172 = vcombine.high %v4168, %v4168
        %v4173 = vcombine.high %v3917, %v3917
        %v4175 = vunpack.c.l.s4 1966171168
        %v4176 = vunpack.c.0.s8 %v4175
        %v4177 = vlaneseq
        %v4178 = vshrl.u32 %v4177, 7
        %v4179 = vsub.s32 %v4176, %v4178
        %v4180 = vrot.slane %v3917, %v4179
        %v4182 = vunpack.c.l.s4 1966171168
        %v4183 = vunpack.c.0.s8 %v4182
        %v4184 = vlaneseq
        %v4185 = vshrl.u32 %v4184, 7
        %v4186 = vsub.s32 %v4183, %v4185
        %v4187 = vrot.slane %v4173, %v4186
        %v4188 = vcombine.high %v4180, %v4180
        %v4189 = vcombine.high %v4187, %v4187
        %v4191 = vunpack.c.l.s4 1966171168
        %v4192 = vunpack.c.0.s8 %v4191
        %v4193 = vlaneseq
        %v4194 = vshrl.u32 %v4193, 7
        %v4195 = vsub.s32 %v4192, %v4194
        %v4196 = vrot.slane %v4180, %v4195
        %v4198 = vunpack.c.l.s4 1966171168
        %v4199 = vunpack.c.0.s8 %v4198
        %v4200 = vlaneseq
        %v4201 = vshrl.u32 %v4200, 7
        %v4202 = vsub.s32 %v4199, %v4201
        %v4203 = vrot.slane %v4187, %v4202
        %v4205 = vunpack.c.l.s4 1966171168
        %v4206 = vunpack.c.0.s8 %v4205
        %v4207 = vlaneseq
        %v4208 = vshrl.u32 %v4207, 7
        %v4209 = vsub.s32 %v4206, %v4208
        %v4210 = vrot.slane %v4188, %v4209
        %v4212 = vunpack.c.l.s4 1966171168
        %v4213 = vunpack.c.0.s8 %v4212
        %v4214 = vlaneseq
        %v4215 = vshrl.u32 %v4214, 7
        %v4216 = vsub.s32 %v4213, %v4215
        %v4217 = vrot.slane %v4189, %v4216
        %v4218 = vcombine.high %v4196, %v4196
        %v4219 = vcombine.high %v4203, %v4203
        %v4220 = vcombine.high %v4210, %v4210
        %v4221 = vcombine.high %v4217, %v4217
        %v4222 = vcombine.high %v3918, %v3918
        %v4224 = vunpack.c.l.s4 1966171168
        %v4225 = vunpack.c.0.s8 %v4224
        %v4226 = vlaneseq
        %v4227 = vshrl.u32 %v4226, 7
        %v4228 = vsub.s32 %v4225, %v4227
        %v4229 = vrot.slane %v3918, %v4228
        %v4231 = vunpack.c.l.s4 1966171168
        %v4232 = vunpack.c.0.s8 %v4231
        %v4233 = vlaneseq
        %v4234 = vshrl.u32 %v4233, 7
        %v4235 = vsub.s32 %v4232, %v4234
        %v4236 = vrot.slane %v4222, %v4235
        %v4237 = vcombine.high %v4229, %v4229
        %v4238 = vcombine.high %v4236, %v4236
        %v4240 = vunpack.c.l.s4 1966171168
        %v4241 = vunpack.c.0.s8 %v4240
        %v4242 = vlaneseq
        %v4243 = vshrl.u32 %v4242, 7
        %v4244 = vsub.s32 %v4241, %v4243
        %v4245 = vrot.slane %v4229, %v4244
        %v4247 = vunpack.c.l.s4 1966171168
        %v4248 = vunpack.c.0.s8 %v4247
        %v4249 = vlaneseq
        %v4250 = vshrl.u32 %v4249, 7
        %v4251 = vsub.s32 %v4248, %v4250
        %v4252 = vrot.slane %v4236, %v4251
        %v4254 = vunpack.c.l.s4 1966171168
        %v4255 = vunpack.c.0.s8 %v4254
        %v4256 = vlaneseq
        %v4257 = vshrl.u32 %v4256, 7
        %v4258 = vsub.s32 %v4255, %v4257
        %v4259 = vrot.slane %v4237, %v4258
        %v4261 = vunpack.c.l.s4 1966171168
        %v4262 = vunpack.c.0.s8 %v4261
        %v4263 = vlaneseq
        %v4264 = vshrl.u32 %v4263, 7
        %v4265 = vsub.s32 %v4262, %v4264
        %v4266 = vrot.slane %v4238, %v4265
        %v4267 = vcombine.high %v4245, %v4245
        %v4268 = vcombine.high %v4252, %v4252
        %v4269 = vcombine.high %v4259, %v4259
        %v4270 = vcombine.high %v4266, %v4266
        %v4271 = vcombine.high %v3919, %v3919
        %v4273 = vunpack.c.l.s4 1966171168
        %v4274 = vunpack.c.0.s8 %v4273
        %v4275 = vlaneseq
        %v4276 = vshrl.u32 %v4275, 7
        %v4277 = vsub.s32 %v4274, %v4276
        %v4278 = vrot.slane %v3919, %v4277
        %v4280 = vunpack.c.l.s4 1966171168
        %v4281 = vunpack.c.0.s8 %v4280
        %v4282 = vlaneseq
        %v4283 = vshrl.u32 %v4282, 7
        %v4284 = vsub.s32 %v4281, %v4283
        %v4285 = vrot.slane %v4271, %v4284
        %v4286 = vcombine.high %v4278, %v4278
        %v4287 = vcombine.high %v4285, %v4285
        %v4289 = vunpack.c.l.s4 1966171168
        %v4290 = vunpack.c.0.s8 %v4289
        %v4291 = vlaneseq
        %v4292 = vshrl.u32 %v4291, 7
        %v4293 = vsub.s32 %v4290, %v4292
        %v4294 = vrot.slane %v4278, %v4293
        %v4296 = vunpack.c.l.s4 1966171168
        %v4297 = vunpack.c.0.s8 %v4296
        %v4298 = vlaneseq
        %v4299 = vshrl.u32 %v4298, 7
        %v4300 = vsub.s32 %v4297, %v4299
        %v4301 = vrot.slane %v4285, %v4300
        %v4303 = vunpack.c.l.s4 1966171168
        %v4304 = vunpack.c.0.s8 %v4303
        %v4305 = vlaneseq
        %v4306 = vshrl.u32 %v4305, 7
        %v4307 = vsub.s32 %v4304, %v4306
        %v4308 = vrot.slane %v4286, %v4307
        %v4310 = vunpack.c.l.s4 1966171168
        %v4311 = vunpack.c.0.s8 %v4310
        %v4312 = vlaneseq
        %v4313 = vshrl.u32 %v4312, 7
        %v4314 = vsub.s32 %v4311, %v4313
        %v4315 = vrot.slane %v4287, %v4314
        %v4316 = vcombine.high %v4294, %v4294
        %v4317 = vcombine.high %v4301, %v4301
        %v4318 = vcombine.high %v4308, %v4308
        %v4319 = vcombine.high %v4315, %v4315
        %v4320 = vcombine.high %v3920, %v3920
        %v4322 = vunpack.c.l.s4 1966171168
        %v4323 = vunpack.c.0.s8 %v4322
        %v4324 = vlaneseq
        %v4325 = vshrl.u32 %v4324, 7
        %v4326 = vsub.s32 %v4323, %v4325
        %v4327 = vrot.slane %v3920, %v4326
        %v4329 = vunpack.c.l.s4 1966171168
        %v4330 = vunpack.c.0.s8 %v4329
        %v4331 = vlaneseq
        %v4332 = vshrl.u32 %v4331, 7
        %v4333 = vsub.s32 %v4330, %v4332
        %v4334 = vrot.slane %v4320, %v4333
        %v4335 = vcombine.high %v4327, %v4327
        %v4336 = vcombine.high %v4334, %v4334
        %v4338 = vunpack.c.l.s4 1966171168
        %v4339 = vunpack.c.0.s8 %v4338
        %v4340 = vlaneseq
        %v4341 = vshrl.u32 %v4340, 7
        %v4342 = vsub.s32 %v4339, %v4341
        %v4343 = vrot.slane %v4327, %v4342
        %v4345 = vunpack.c.l.s4 1966171168
        %v4346 = vunpack.c.0.s8 %v4345
        %v4347 = vlaneseq
        %v4348 = vshrl.u32 %v4347, 7
        %v4349 = vsub.s32 %v4346, %v4348
        %v4350 = vrot.slane %v4334, %v4349
        %v4352 = vunpack.c.l.s4 1966171168
        %v4353 = vunpack.c.0.s8 %v4352
        %v4354 = vlaneseq
        %v4355 = vshrl.u32 %v4354, 7
        %v4356 = vsub.s32 %v4353, %v4355
        %v4357 = vrot.slane %v4335, %v4356
        %v4359 = vunpack.c.l.s4 1966171168
        %v4360 = vunpack.c.0.s8 %v4359
        %v4361 = vlaneseq
        %v4362 = vshrl.u32 %v4361, 7
        %v4363 = vsub.s32 %v4360, %v4362
        %v4364 = vrot.slane %v4336, %v4363
        %v4365 = vcombine.high %v4343, %v4343
        %v4366 = vcombine.high %v4350, %v4350
        %v4367 = vcombine.high %v4357, %v4357
        %v4368 = vcombine.high %v4364, %v4364
        %v4369 = vcombine.high %v3921, %v3921
        %v4371 = vunpack.c.l.s4 1966171168
        %v4372 = vunpack.c.0.s8 %v4371
        %v4373 = vlaneseq
        %v4374 = vshrl.u32 %v4373, 7
        %v4375 = vsub.s32 %v4372, %v4374
        %v4376 = vrot.slane %v3921, %v4375
        %v4378 = vunpack.c.l.s4 1966171168
        %v4379 = vunpack.c.0.s8 %v4378
        %v4380 = vlaneseq
        %v4381 = vshrl.u32 %v4380, 7
        %v4382 = vsub.s32 %v4379, %v4381
        %v4383 = vrot.slane %v4369, %v4382
        %v4384 = vcombine.high %v4376, %v4376
        %v4385 = vcombine.high %v4383, %v4383
        %v4387 = vunpack.c.l.s4 1966171168
        %v4388 = vunpack.c.0.s8 %v4387
        %v4389 = vlaneseq
        %v4390 = vshrl.u32 %v4389, 7
        %v4391 = vsub.s32 %v4388, %v4390
        %v4392 = vrot.slane %v4376, %v4391
        %v4394 = vunpack.c.l.s4 1966171168
        %v4395 = vunpack.c.0.s8 %v4394
        %v4396 = vlaneseq
        %v4397 = vshrl.u32 %v4396, 7
        %v4398 = vsub.s32 %v4395, %v4397
        %v4399 = vrot.slane %v4383, %v4398
        %v4401 = vunpack.c.l.s4 1966171168
        %v4402 = vunpack.c.0.s8 %v4401
        %v4403 = vlaneseq
        %v4404 = vshrl.u32 %v4403, 7
        %v4405 = vsub.s32 %v4402, %v4404
        %v4406 = vrot.slane %v4384, %v4405
        %v4408 = vunpack.c.l.s4 1966171168
        %v4409 = vunpack.c.0.s8 %v4408
        %v4410 = vlaneseq
        %v4411 = vshrl.u32 %v4410, 7
        %v4412 = vsub.s32 %v4409, %v4411
        %v4413 = vrot.slane %v4385, %v4412
        %v4414 = vcombine.high %v4392, %v4392
        %v4415 = vcombine.high %v4399, %v4399
        %v4416 = vcombine.high %v4406, %v4406
        %v4417 = vcombine.high %v4413, %v4413
        %v4418 = vcombine.high %v3922, %v3922
        %v4420 = vunpack.c.l.s4 1966171168
        %v4421 = vunpack.c.0.s8 %v4420
        %v4422 = vlaneseq
        %v4423 = vshrl.u32 %v4422, 7
        %v4424 = vsub.s32 %v4421, %v4423
        %v4425 = vrot.slane %v3922, %v4424
        %v4427 = vunpack.c.l.s4 1966171168
        %v4428 = vunpack.c.0.s8 %v4427
        %v4429 = vlaneseq
        %v4430 = vshrl.u32 %v4429, 7
        %v4431 = vsub.s32 %v4428, %v4430
        %v4432 = vrot.slane %v4418, %v4431
        %v4433 = vcombine.high %v4425, %v4425
        %v4434 = vcombine.high %v4432, %v4432
        %v4436 = vunpack.c.l.s4 1966171168
        %v4437 = vunpack.c.0.s8 %v4436
        %v4438 = vlaneseq
        %v4439 = vshrl.u32 %v4438, 7
        %v4440 = vsub.s32 %v4437, %v4439
        %v4441 = vrot.slane %v4425, %v4440
        %v4443 = vunpack.c.l.s4 1966171168
        %v4444 = vunpack.c.0.s8 %v4443
        %v4445 = vlaneseq
        %v4446 = vshrl.u32 %v4445, 7
        %v4447 = vsub.s32 %v4444, %v4446
        %v4448 = vrot.slane %v4432, %v4447
        %v4450 = vunpack.c.l.s4 1966171168
        %v4451 = vunpack.c.0.s8 %v4450
        %v4452 = vlaneseq
        %v4453 = vshrl.u32 %v4452, 7
        %v4454 = vsub.s32 %v4451, %v4453
        %v4455 = vrot.slane %v4433, %v4454
        %v4457 = vunpack.c.l.s4 1966171168
        %v4458 = vunpack.c.0.s8 %v4457
        %v4459 = vlaneseq
        %v4460 = vshrl.u32 %v4459, 7
        %v4461 = vsub.s32 %v4458, %v4460
        %v4462 = vrot.slane %v4434, %v4461
        %v4463 = vcombine.high %v4441, %v4441
        %v4464 = vcombine.high %v4448, %v4448
        %v4465 = vcombine.high %v4455, %v4455
        %v4466 = vcombine.high %v4462, %v4462
        %v4467 = vcombine.high %v3923, %v3923
        %v4469 = vunpack.c.l.s4 1966171168
        %v4470 = vunpack.c.0.s8 %v4469
        %v4471 = vlaneseq
        %v4472 = vshrl.u32 %v4471, 7
        %v4473 = vsub.s32 %v4470, %v4472
        %v4474 = vrot.slane %v3923, %v4473
        %v4476 = vunpack.c.l.s4 1966171168
        %v4477 = vunpack.c.0.s8 %v4476
        %v4478 = vlaneseq
        %v4479 = vshrl.u32 %v4478, 7
        %v4480 = vsub.s32 %v4477, %v4479
        %v4481 = vrot.slane %v4467, %v4480
        %v4482 = vcombine.high %v4474, %v4474
        %v4483 = vcombine.high %v4481, %v4481
        %v4485 = vunpack.c.l.s4 1966171168
        %v4486 = vunpack.c.0.s8 %v4485
        %v4487 = vlaneseq
        %v4488 = vshrl.u32 %v4487, 7
        %v4489 = vsub.s32 %v4486, %v4488
        %v4490 = vrot.slane %v4474, %v4489
        %v4492 = vunpack.c.l.s4 1966171168
        %v4493 = vunpack.c.0.s8 %v4492
        %v4494 = vlaneseq
        %v4495 = vshrl.u32 %v4494, 7
        %v4496 = vsub.s32 %v4493, %v4495
        %v4497 = vrot.slane %v4481, %v4496
        %v4499 = vunpack.c.l.s4 1966171168
        %v4500 = vunpack.c.0.s8 %v4499
        %v4501 = vlaneseq
        %v4502 = vshrl.u32 %v4501, 7
        %v4503 = vsub.s32 %v4500, %v4502
        %v4504 = vrot.slane %v4482, %v4503
        %v4506 = vunpack.c.l.s4 1966171168
        %v4507 = vunpack.c.0.s8 %v4506
        %v4508 = vlaneseq
        %v4509 = vshrl.u32 %v4508, 7
        %v4510 = vsub.s32 %v4507, %v4509
        %v4511 = vrot.slane %v4483, %v4510
        %v4512 = vcombine.high %v4490, %v4490
        %v4513 = vcombine.high %v4497, %v4497
        %v4514 = vcombine.high %v4504, %v4504
        %v4515 = vcombine.high %v4511, %v4511
        %v4516 = vcombine.high %v3924, %v3924
        %v4518 = vunpack.c.l.s4 1966171168
        %v4519 = vunpack.c.0.s8 %v4518
        %v4520 = vlaneseq
        %v4521 = vshrl.u32 %v4520, 7
        %v4522 = vsub.s32 %v4519, %v4521
        %v4523 = vrot.slane %v3924, %v4522
        %v4525 = vunpack.c.l.s4 1966171168
        %v4526 = vunpack.c.0.s8 %v4525
        %v4527 = vlaneseq
        %v4528 = vshrl.u32 %v4527, 7
        %v4529 = vsub.s32 %v4526, %v4528
        %v4530 = vrot.slane %v4516, %v4529
        %v4531 = vcombine.high %v4523, %v4523
        %v4532 = vcombine.high %v4530, %v4530
        %v4534 = vunpack.c.l.s4 1966171168
        %v4535 = vunpack.c.0.s8 %v4534
        %v4536 = vlaneseq
        %v4537 = vshrl.u32 %v4536, 7
        %v4538 = vsub.s32 %v4535, %v4537
        %v4539 = vrot.slane %v4523, %v4538
        %v4541 = vunpack.c.l.s4 1966171168
        %v4542 = vunpack.c.0.s8 %v4541
        %v4543 = vlaneseq
        %v4544 = vshrl.u32 %v4543, 7
        %v4545 = vsub.s32 %v4542, %v4544
        %v4546 = vrot.slane %v4530, %v4545
        %v4548 = vunpack.c.l.s4 1966171168
        %v4549 = vunpack.c.0.s8 %v4548
        %v4550 = vlaneseq
        %v4551 = vshrl.u32 %v4550, 7
        %v4552 = vsub.s32 %v4549, %v4551
        %v4553 = vrot.slane %v4531, %v4552
        %v4555 = vunpack.c.l.s4 1966171168
        %v4556 = vunpack.c.0.s8 %v4555
        %v4557 = vlaneseq
        %v4558 = vshrl.u32 %v4557, 7
        %v4559 = vsub.s32 %v4556, %v4558
        %v4560 = vrot.slane %v4532, %v4559
        %v4561 = vcombine.high %v4539, %v4539
        %v4562 = vcombine.high %v4546, %v4546
        %v4563 = vcombine.high %v4553, %v4553
        %v4564 = vcombine.high %v4560, %v4560
        %v4565 = vcombine.high %v3925, %v3925
        %v4567 = vunpack.c.l.s4 1966171168
        %v4568 = vunpack.c.0.s8 %v4567
        %v4569 = vlaneseq
        %v4570 = vshrl.u32 %v4569, 7
        %v4571 = vsub.s32 %v4568, %v4570
        %v4572 = vrot.slane %v3925, %v4571
        %v4574 = vunpack.c.l.s4 1966171168
        %v4575 = vunpack.c.0.s8 %v4574
        %v4576 = vlaneseq
        %v4577 = vshrl.u32 %v4576, 7
        %v4578 = vsub.s32 %v4575, %v4577
        %v4579 = vrot.slane %v4565, %v4578
        %v4580 = vcombine.high %v4572, %v4572
        %v4581 = vcombine.high %v4579, %v4579
        %v4583 = vunpack.c.l.s4 1966171168
        %v4584 = vunpack.c.0.s8 %v4583
        %v4585 = vlaneseq
        %v4586 = vshrl.u32 %v4585, 7
        %v4587 = vsub.s32 %v4584, %v4586
        %v4588 = vrot.slane %v4572, %v4587
        %v4590 = vunpack.c.l.s4 1966171168
        %v4591 = vunpack.c.0.s8 %v4590
        %v4592 = vlaneseq
        %v4593 = vshrl.u32 %v4592, 7
        %v4594 = vsub.s32 %v4591, %v4593
        %v4595 = vrot.slane %v4579, %v4594
        %v4597 = vunpack.c.l.s4 1966171168
        %v4598 = vunpack.c.0.s8 %v4597
        %v4599 = vlaneseq
        %v4600 = vshrl.u32 %v4599, 7
        %v4601 = vsub.s32 %v4598, %v4600
        %v4602 = vrot.slane %v4580, %v4601
        %v4604 = vunpack.c.l.s4 1966171168
        %v4605 = vunpack.c.0.s8 %v4604
        %v4606 = vlaneseq
        %v4607 = vshrl.u32 %v4606, 7
        %v4608 = vsub.s32 %v4605, %v4607
        %v4609 = vrot.slane %v4581, %v4608
        %v4610 = vcombine.high %v4588, %v4588
        %v4611 = vcombine.high %v4595, %v4595
        %v4612 = vcombine.high %v4602, %v4602
        %v4613 = vcombine.high %v4609, %v4609
        %v4614 = vcombine.high %v3926, %v3926
        %v4616 = vunpack.c.l.s4 1966171168
        %v4617 = vunpack.c.0.s8 %v4616
        %v4618 = vlaneseq
        %v4619 = vshrl.u32 %v4618, 7
        %v4620 = vsub.s32 %v4617, %v4619
        %v4621 = vrot.slane %v3926, %v4620
        %v4623 = vunpack.c.l.s4 1966171168
        %v4624 = vunpack.c.0.s8 %v4623
        %v4625 = vlaneseq
        %v4626 = vshrl.u32 %v4625, 7
        %v4627 = vsub.s32 %v4624, %v4626
        %v4628 = vrot.slane %v4614, %v4627
        %v4629 = vcombine.high %v4621, %v4621
        %v4630 = vcombine.high %v4628, %v4628
        %v4632 = vunpack.c.l.s4 1966171168
        %v4633 = vunpack.c.0.s8 %v4632
        %v4634 = vlaneseq
        %v4635 = vshrl.u32 %v4634, 7
        %v4636 = vsub.s32 %v4633, %v4635
        %v4637 = vrot.slane %v4621, %v4636
        %v4639 = vunpack.c.l.s4 1966171168
        %v4640 = vunpack.c.0.s8 %v4639
        %v4641 = vlaneseq
        %v4642 = vshrl.u32 %v4641, 7
        %v4643 = vsub.s32 %v4640, %v4642
        %v4644 = vrot.slane %v4628, %v4643
        %v4646 = vunpack.c.l.s4 1966171168
        %v4647 = vunpack.c.0.s8 %v4646
        %v4648 = vlaneseq
        %v4649 = vshrl.u32 %v4648, 7
        %v4650 = vsub.s32 %v4647, %v4649
        %v4651 = vrot.slane %v4629, %v4650
        %v4653 = vunpack.c.l.s4 1966171168
        %v4654 = vunpack.c.0.s8 %v4653
        %v4655 = vlaneseq
        %v4656 = vshrl.u32 %v4655, 7
        %v4657 = vsub.s32 %v4654, %v4656
        %v4658 = vrot.slane %v4630, %v4657
        %v4659 = vcombine.high %v4637, %v4637
        %v4660 = vcombine.high %v4644, %v4644
        %v4661 = vcombine.high %v4651, %v4651
        %v4662 = vcombine.high %v4658, %v4658
        %v4663 = vcombine.high %v3927, %v3927
        %v4665 = vunpack.c.l.s4 1966171168
        %v4666 = vunpack.c.0.s8 %v4665
        %v4667 = vlaneseq
        %v4668 = vshrl.u32 %v4667, 7
        %v4669 = vsub.s32 %v4666, %v4668
        %v4670 = vrot.slane %v3927, %v4669
        %v4672 = vunpack.c.l.s4 1966171168
        %v4673 = vunpack.c.0.s8 %v4672
        %v4674 = vlaneseq
        %v4675 = vshrl.u32 %v4674, 7
        %v4676 = vsub.s32 %v4673, %v4675
        %v4677 = vrot.slane %v4663, %v4676
        %v4678 = vcombine.high %v4670, %v4670
        %v4679 = vcombine.high %v4677, %v4677
        %v4681 = vunpack.c.l.s4 1966171168
        %v4682 = vunpack.c.0.s8 %v4681
        %v4683 = vlaneseq
        %v4684 = vshrl.u32 %v4683, 7
        %v4685 = vsub.s32 %v4682, %v4684
        %v4686 = vrot.slane %v4670, %v4685
        %v4688 = vunpack.c.l.s4 1966171168
        %v4689 = vunpack.c.0.s8 %v4688
        %v4690 = vlaneseq
        %v4691 = vshrl.u32 %v4690, 7
        %v4692 = vsub.s32 %v4689, %v4691
        %v4693 = vrot.slane %v4677, %v4692
        %v4695 = vunpack.c.l.s4 1966171168
        %v4696 = vunpack.c.0.s8 %v4695
        %v4697 = vlaneseq
        %v4698 = vshrl.u32 %v4697, 7
        %v4699 = vsub.s32 %v4696, %v4698
        %v4700 = vrot.slane %v4678, %v4699
        %v4702 = vunpack.c.l.s4 1966171168
        %v4703 = vunpack.c.0.s8 %v4702
        %v4704 = vlaneseq
        %v4705 = vshrl.u32 %v4704, 7
        %v4706 = vsub.s32 %v4703, %v4705
        %v4707 = vrot.slane %v4679, %v4706
        %v4708 = vcombine.high %v4686, %v4686
        %v4709 = vcombine.high %v4693, %v4693
        %v4710 = vcombine.high %v4700, %v4700
        %v4711 = vcombine.high %v4707, %v4707
        %v4712 = vcombine.high %v3928, %v3928
        %v4714 = vunpack.c.l.s4 1966171168
        %v4715 = vunpack.c.0.s8 %v4714
        %v4716 = vlaneseq
        %v4717 = vshrl.u32 %v4716, 7
        %v4718 = vsub.s32 %v4715, %v4717
        %v4719 = vrot.slane %v3928, %v4718
        %v4721 = vunpack.c.l.s4 1966171168
        %v4722 = vunpack.c.0.s8 %v4721
        %v4723 = vlaneseq
        %v4724 = vshrl.u32 %v4723, 7
        %v4725 = vsub.s32 %v4722, %v4724
        %v4726 = vrot.slane %v4712, %v4725
        %v4727 = vcombine.high %v4719, %v4719
        %v4728 = vcombine.high %v4726, %v4726
        %v4730 = vunpack.c.l.s4 1966171168
        %v4731 = vunpack.c.0.s8 %v4730
        %v4732 = vlaneseq
        %v4733 = vshrl.u32 %v4732, 7
        %v4734 = vsub.s32 %v4731, %v4733
        %v4735 = vrot.slane %v4719, %v4734
        %v4737 = vunpack.c.l.s4 1966171168
        %v4738 = vunpack.c.0.s8 %v4737
        %v4739 = vlaneseq
        %v4740 = vshrl.u32 %v4739, 7
        %v4741 = vsub.s32 %v4738, %v4740
        %v4742 = vrot.slane %v4726, %v4741
        %v4744 = vunpack.c.l.s4 1966171168
        %v4745 = vunpack.c.0.s8 %v4744
        %v4746 = vlaneseq
        %v4747 = vshrl.u32 %v4746, 7
        %v4748 = vsub.s32 %v4745, %v4747
        %v4749 = vrot.slane %v4727, %v4748
        %v4751 = vunpack.c.l.s4 1966171168
        %v4752 = vunpack.c.0.s8 %v4751
        %v4753 = vlaneseq
        %v4754 = vshrl.u32 %v4753, 7
        %v4755 = vsub.s32 %v4752, %v4754
        %v4756 = vrot.slane %v4728, %v4755
        %v4757 = vcombine.high %v4735, %v4735
        %v4758 = vcombine.high %v4742, %v4742
        %v4759 = vcombine.high %v4749, %v4749
        %v4760 = vcombine.high %v4756, %v4756
        %v4905 = vcombine.high %v3945, %v3945
        %v4907 = vunpack.c.l.s4 1966171168
        %v4908 = vunpack.c.0.s8 %v4907
        %v4909 = vlaneseq
        %v4910 = vshrl.u32 %v4909, 7
        %v4911 = vsub.s32 %v4908, %v4910
        %v4912 = vrot.slane %v3945, %v4911
        %v4914 = vunpack.c.l.s4 1966171168
        %v4915 = vunpack.c.0.s8 %v4914
        %v4916 = vlaneseq
        %v4917 = vshrl.u32 %v4916, 7
        %v4918 = vsub.s32 %v4915, %v4917
        %v4919 = vrot.slane %v4905, %v4918
        %v4920 = vcombine.high %v4912, %v4912
        %v4921 = vcombine.high %v4919, %v4919
        %v4923 = vunpack.c.l.s4 1966171168
        %v4924 = vunpack.c.0.s8 %v4923
        %v4925 = vlaneseq
        %v4926 = vshrl.u32 %v4925, 7
        %v4927 = vsub.s32 %v4924, %v4926
        %v4928 = vrot.slane %v4912, %v4927
        %v4930 = vunpack.c.l.s4 1966171168
        %v4931 = vunpack.c.0.s8 %v4930
        %v4932 = vlaneseq
        %v4933 = vshrl.u32 %v4932, 7
        %v4934 = vsub.s32 %v4931, %v4933
        %v4935 = vrot.slane %v4919, %v4934
        %v4937 = vunpack.c.l.s4 1966171168
        %v4938 = vunpack.c.0.s8 %v4937
        %v4939 = vlaneseq
        %v4940 = vshrl.u32 %v4939, 7
        %v4941 = vsub.s32 %v4938, %v4940
        %v4942 = vrot.slane %v4920, %v4941
        %v4944 = vunpack.c.l.s4 1966171168
        %v4945 = vunpack.c.0.s8 %v4944
        %v4946 = vlaneseq
        %v4947 = vshrl.u32 %v4946, 7
        %v4948 = vsub.s32 %v4945, %v4947
        %v4949 = vrot.slane %v4921, %v4948
        %v4950 = vcombine.high %v4928, %v4928
        %v4951 = vcombine.high %v4935, %v4935
        %v4952 = vcombine.high %v4942, %v4942
        %v4953 = vcombine.high %v4949, %v4949
        %v4954 = vcombine.high %v3946, %v3946
        %v4956 = vunpack.c.l.s4 1966171168
        %v4957 = vunpack.c.0.s8 %v4956
        %v4958 = vlaneseq
        %v4959 = vshrl.u32 %v4958, 7
        %v4960 = vsub.s32 %v4957, %v4959
        %v4961 = vrot.slane %v3946, %v4960
        %v4963 = vunpack.c.l.s4 1966171168
        %v4964 = vunpack.c.0.s8 %v4963
        %v4965 = vlaneseq
        %v4966 = vshrl.u32 %v4965, 7
        %v4967 = vsub.s32 %v4964, %v4966
        %v4968 = vrot.slane %v4954, %v4967
        %v4969 = vcombine.high %v4961, %v4961
        %v4970 = vcombine.high %v4968, %v4968
        %v4972 = vunpack.c.l.s4 1966171168
        %v4973 = vunpack.c.0.s8 %v4972
        %v4974 = vlaneseq
        %v4975 = vshrl.u32 %v4974, 7
        %v4976 = vsub.s32 %v4973, %v4975
        %v4977 = vrot.slane %v4961, %v4976
        %v4979 = vunpack.c.l.s4 1966171168
        %v4980 = vunpack.c.0.s8 %v4979
        %v4981 = vlaneseq
        %v4982 = vshrl.u32 %v4981, 7
        %v4983 = vsub.s32 %v4980, %v4982
        %v4984 = vrot.slane %v4968, %v4983
        %v4986 = vunpack.c.l.s4 1966171168
        %v4987 = vunpack.c.0.s8 %v4986
        %v4988 = vlaneseq
        %v4989 = vshrl.u32 %v4988, 7
        %v4990 = vsub.s32 %v4987, %v4989
        %v4991 = vrot.slane %v4969, %v4990
        %v4993 = vunpack.c.l.s4 1966171168
        %v4994 = vunpack.c.0.s8 %v4993
        %v4995 = vlaneseq
        %v4996 = vshrl.u32 %v4995, 7
        %v4997 = vsub.s32 %v4994, %v4996
        %v4998 = vrot.slane %v4970, %v4997
        %v4999 = vcombine.high %v4977, %v4977
        %v5000 = vcombine.high %v4984, %v4984
        %v5001 = vcombine.high %v4991, %v4991
        %v5002 = vcombine.high %v4998, %v4998
        %v5003 = vcombine.high %v3947, %v3947
        %v5005 = vunpack.c.l.s4 1966171168
        %v5006 = vunpack.c.0.s8 %v5005
        %v5007 = vlaneseq
        %v5008 = vshrl.u32 %v5007, 7
        %v5009 = vsub.s32 %v5006, %v5008
        %v5010 = vrot.slane %v3947, %v5009
        %v5012 = vunpack.c.l.s4 1966171168
        %v5013 = vunpack.c.0.s8 %v5012
        %v5014 = vlaneseq
        %v5015 = vshrl.u32 %v5014, 7
        %v5016 = vsub.s32 %v5013, %v5015
        %v5017 = vrot.slane %v5003, %v5016
        %v5018 = vcombine.high %v5010, %v5010
        %v5019 = vcombine.high %v5017, %v5017
        %v5021 = vunpack.c.l.s4 1966171168
        %v5022 = vunpack.c.0.s8 %v5021
        %v5023 = vlaneseq
        %v5024 = vshrl.u32 %v5023, 7
        %v5025 = vsub.s32 %v5022, %v5024
        %v5026 = vrot.slane %v5010, %v5025
        %v5028 = vunpack.c.l.s4 1966171168
        %v5029 = vunpack.c.0.s8 %v5028
        %v5030 = vlaneseq
        %v5031 = vshrl.u32 %v5030, 7
        %v5032 = vsub.s32 %v5029, %v5031
        %v5033 = vrot.slane %v5017, %v5032
        %v5035 = vunpack.c.l.s4 1966171168
        %v5036 = vunpack.c.0.s8 %v5035
        %v5037 = vlaneseq
        %v5038 = vshrl.u32 %v5037, 7
        %v5039 = vsub.s32 %v5036, %v5038
        %v5040 = vrot.slane %v5018, %v5039
        %v5042 = vunpack.c.l.s4 1966171168
        %v5043 = vunpack.c.0.s8 %v5042
        %v5044 = vlaneseq
        %v5045 = vshrl.u32 %v5044, 7
        %v5046 = vsub.s32 %v5043, %v5045
        %v5047 = vrot.slane %v5019, %v5046
        %v5048 = vcombine.high %v5026, %v5026
        %v5049 = vcombine.high %v5033, %v5033
        %v5050 = vcombine.high %v5040, %v5040
        %v5051 = vcombine.high %v5047, %v5047
        %v5052 = vcombine.high %v3948, %v3948
        %v5054 = vunpack.c.l.s4 1966171168
        %v5055 = vunpack.c.0.s8 %v5054
        %v5056 = vlaneseq
        %v5057 = vshrl.u32 %v5056, 7
        %v5058 = vsub.s32 %v5055, %v5057
        %v5059 = vrot.slane %v3948, %v5058
        %v5061 = vunpack.c.l.s4 1966171168
        %v5062 = vunpack.c.0.s8 %v5061
        %v5063 = vlaneseq
        %v5064 = vshrl.u32 %v5063, 7
        %v5065 = vsub.s32 %v5062, %v5064
        %v5066 = vrot.slane %v5052, %v5065
        %v5067 = vcombine.high %v5059, %v5059
        %v5068 = vcombine.high %v5066, %v5066
        %v5070 = vunpack.c.l.s4 1966171168
        %v5071 = vunpack.c.0.s8 %v5070
        %v5072 = vlaneseq
        %v5073 = vshrl.u32 %v5072, 7
        %v5074 = vsub.s32 %v5071, %v5073
        %v5075 = vrot.slane %v5059, %v5074
        %v5077 = vunpack.c.l.s4 1966171168
        %v5078 = vunpack.c.0.s8 %v5077
        %v5079 = vlaneseq
        %v5080 = vshrl.u32 %v5079, 7
        %v5081 = vsub.s32 %v5078, %v5080
        %v5082 = vrot.slane %v5066, %v5081
        %v5084 = vunpack.c.l.s4 1966171168
        %v5085 = vunpack.c.0.s8 %v5084
        %v5086 = vlaneseq
        %v5087 = vshrl.u32 %v5086, 7
        %v5088 = vsub.s32 %v5085, %v5087
        %v5089 = vrot.slane %v5067, %v5088
        %v5091 = vunpack.c.l.s4 1966171168
        %v5092 = vunpack.c.0.s8 %v5091
        %v5093 = vlaneseq
        %v5094 = vshrl.u32 %v5093, 7
        %v5095 = vsub.s32 %v5092, %v5094
        %v5096 = vrot.slane %v5068, %v5095
        %v5097 = vcombine.high %v5075, %v5075
        %v5098 = vcombine.high %v5082, %v5082
        %v5099 = vcombine.high %v5089, %v5089
        %v5100 = vcombine.high %v5096, %v5096
        %v5101 = vcombine.high %v3949, %v3949
        %v5103 = vunpack.c.l.s4 1966171168
        %v5104 = vunpack.c.0.s8 %v5103
        %v5105 = vlaneseq
        %v5106 = vshrl.u32 %v5105, 7
        %v5107 = vsub.s32 %v5104, %v5106
        %v5108 = vrot.slane %v3949, %v5107
        %v5110 = vunpack.c.l.s4 1966171168
        %v5111 = vunpack.c.0.s8 %v5110
        %v5112 = vlaneseq
        %v5113 = vshrl.u32 %v5112, 7
        %v5114 = vsub.s32 %v5111, %v5113
        %v5115 = vrot.slane %v5101, %v5114
        %v5116 = vcombine.high %v5108, %v5108
        %v5117 = vcombine.high %v5115, %v5115
        %v5119 = vunpack.c.l.s4 1966171168
        %v5120 = vunpack.c.0.s8 %v5119
        %v5121 = vlaneseq
        %v5122 = vshrl.u32 %v5121, 7
        %v5123 = vsub.s32 %v5120, %v5122
        %v5124 = vrot.slane %v5108, %v5123
        %v5126 = vunpack.c.l.s4 1966171168
        %v5127 = vunpack.c.0.s8 %v5126
        %v5128 = vlaneseq
        %v5129 = vshrl.u32 %v5128, 7
        %v5130 = vsub.s32 %v5127, %v5129
        %v5131 = vrot.slane %v5115, %v5130
        %v5133 = vunpack.c.l.s4 1966171168
        %v5134 = vunpack.c.0.s8 %v5133
        %v5135 = vlaneseq
        %v5136 = vshrl.u32 %v5135, 7
        %v5137 = vsub.s32 %v5134, %v5136
        %v5138 = vrot.slane %v5116, %v5137
        %v5140 = vunpack.c.l.s4 1966171168
        %v5141 = vunpack.c.0.s8 %v5140
        %v5142 = vlaneseq
        %v5143 = vshrl.u32 %v5142, 7
        %v5144 = vsub.s32 %v5141, %v5143
        %v5145 = vrot.slane %v5117, %v5144
        %v5146 = vcombine.high %v5124, %v5124
        %v5147 = vcombine.high %v5131, %v5131
        %v5148 = vcombine.high %v5138, %v5138
        %v5149 = vcombine.high %v5145, %v5145
        %v5150 = vcombine.high %v3950, %v3950
        %v5152 = vunpack.c.l.s4 1966171168
        %v5153 = vunpack.c.0.s8 %v5152
        %v5154 = vlaneseq
        %v5155 = vshrl.u32 %v5154, 7
        %v5156 = vsub.s32 %v5153, %v5155
        %v5157 = vrot.slane %v3950, %v5156
        %v5159 = vunpack.c.l.s4 1966171168
        %v5160 = vunpack.c.0.s8 %v5159
        %v5161 = vlaneseq
        %v5162 = vshrl.u32 %v5161, 7
        %v5163 = vsub.s32 %v5160, %v5162
        %v5164 = vrot.slane %v5150, %v5163
        %v5165 = vcombine.high %v5157, %v5157
        %v5166 = vcombine.high %v5164, %v5164
        %v5168 = vunpack.c.l.s4 1966171168
        %v5169 = vunpack.c.0.s8 %v5168
        %v5170 = vlaneseq
        %v5171 = vshrl.u32 %v5170, 7
        %v5172 = vsub.s32 %v5169, %v5171
        %v5173 = vrot.slane %v5157, %v5172
        %v5175 = vunpack.c.l.s4 1966171168
        %v5176 = vunpack.c.0.s8 %v5175
        %v5177 = vlaneseq
        %v5178 = vshrl.u32 %v5177, 7
        %v5179 = vsub.s32 %v5176, %v5178
        %v5180 = vrot.slane %v5164, %v5179
        %v5182 = vunpack.c.l.s4 1966171168
        %v5183 = vunpack.c.0.s8 %v5182
        %v5184 = vlaneseq
        %v5185 = vshrl.u32 %v5184, 7
        %v5186 = vsub.s32 %v5183, %v5185
        %v5187 = vrot.slane %v5165, %v5186
        %v5189 = vunpack.c.l.s4 1966171168
        %v5190 = vunpack.c.0.s8 %v5189
        %v5191 = vlaneseq
        %v5192 = vshrl.u32 %v5191, 7
        %v5193 = vsub.s32 %v5190, %v5192
        %v5194 = vrot.slane %v5166, %v5193
        %v5195 = vcombine.high %v5173, %v5173
        %v5196 = vcombine.high %v5180, %v5180
        %v5197 = vcombine.high %v5187, %v5187
        %v5198 = vcombine.high %v5194, %v5194
        %v5199 = vcombine.high %v3951, %v3951
        %v5201 = vunpack.c.l.s4 1966171168
        %v5202 = vunpack.c.0.s8 %v5201
        %v5203 = vlaneseq
        %v5204 = vshrl.u32 %v5203, 7
        %v5205 = vsub.s32 %v5202, %v5204
        %v5206 = vrot.slane %v3951, %v5205
        %v5208 = vunpack.c.l.s4 1966171168
        %v5209 = vunpack.c.0.s8 %v5208
        %v5210 = vlaneseq
        %v5211 = vshrl.u32 %v5210, 7
        %v5212 = vsub.s32 %v5209, %v5211
        %v5213 = vrot.slane %v5199, %v5212
        %v5214 = vcombine.high %v5206, %v5206
        %v5215 = vcombine.high %v5213, %v5213
        %v5217 = vunpack.c.l.s4 1966171168
        %v5218 = vunpack.c.0.s8 %v5217
        %v5219 = vlaneseq
        %v5220 = vshrl.u32 %v5219, 7
        %v5221 = vsub.s32 %v5218, %v5220
        %v5222 = vrot.slane %v5206, %v5221
        %v5224 = vunpack.c.l.s4 1966171168
        %v5225 = vunpack.c.0.s8 %v5224
        %v5226 = vlaneseq
        %v5227 = vshrl.u32 %v5226, 7
        %v5228 = vsub.s32 %v5225, %v5227
        %v5229 = vrot.slane %v5213, %v5228
        %v5231 = vunpack.c.l.s4 1966171168
        %v5232 = vunpack.c.0.s8 %v5231
        %v5233 = vlaneseq
        %v5234 = vshrl.u32 %v5233, 7
        %v5235 = vsub.s32 %v5232, %v5234
        %v5236 = vrot.slane %v5214, %v5235
        %v5238 = vunpack.c.l.s4 1966171168
        %v5239 = vunpack.c.0.s8 %v5238
        %v5240 = vlaneseq
        %v5241 = vshrl.u32 %v5240, 7
        %v5242 = vsub.s32 %v5239, %v5241
        %v5243 = vrot.slane %v5215, %v5242
        %v5244 = vcombine.high %v5222, %v5222
        %v5245 = vcombine.high %v5229, %v5229
        %v5246 = vcombine.high %v5236, %v5236
        %v5247 = vcombine.high %v5243, %v5243
        %v5248 = vcombine.high %v3952, %v3952
        %v5250 = vunpack.c.l.s4 1966171168
        %v5251 = vunpack.c.0.s8 %v5250
        %v5252 = vlaneseq
        %v5253 = vshrl.u32 %v5252, 7
        %v5254 = vsub.s32 %v5251, %v5253
        %v5255 = vrot.slane %v3952, %v5254
        %v5257 = vunpack.c.l.s4 1966171168
        %v5258 = vunpack.c.0.s8 %v5257
        %v5259 = vlaneseq
        %v5260 = vshrl.u32 %v5259, 7
        %v5261 = vsub.s32 %v5258, %v5260
        %v5262 = vrot.slane %v5248, %v5261
        %v5263 = vcombine.high %v5255, %v5255
        %v5264 = vcombine.high %v5262, %v5262
        %v5266 = vunpack.c.l.s4 1966171168
        %v5267 = vunpack.c.0.s8 %v5266
        %v5268 = vlaneseq
        %v5269 = vshrl.u32 %v5268, 7
        %v5270 = vsub.s32 %v5267, %v5269
        %v5271 = vrot.slane %v5255, %v5270
        %v5273 = vunpack.c.l.s4 1966171168
        %v5274 = vunpack.c.0.s8 %v5273
        %v5275 = vlaneseq
        %v5276 = vshrl.u32 %v5275, 7
        %v5277 = vsub.s32 %v5274, %v5276
        %v5278 = vrot.slane %v5262, %v5277
        %v5280 = vunpack.c.l.s4 1966171168
        %v5281 = vunpack.c.0.s8 %v5280
        %v5282 = vlaneseq
        %v5283 = vshrl.u32 %v5282, 7
        %v5284 = vsub.s32 %v5281, %v5283
        %v5285 = vrot.slane %v5263, %v5284
        %v5287 = vunpack.c.l.s4 1966171168
        %v5288 = vunpack.c.0.s8 %v5287
        %v5289 = vlaneseq
        %v5290 = vshrl.u32 %v5289, 7
        %v5291 = vsub.s32 %v5288, %v5290
        %v5292 = vrot.slane %v5264, %v5291
        %v5293 = vcombine.high %v5271, %v5271
        %v5294 = vcombine.high %v5278, %v5278
        %v5295 = vcombine.high %v5285, %v5285
        %v5296 = vcombine.high %v5292, %v5292
        %v5297 = vcombine.high %v3953, %v3953
        %v5299 = vunpack.c.l.s4 1966171168
        %v5300 = vunpack.c.0.s8 %v5299
        %v5301 = vlaneseq
        %v5302 = vshrl.u32 %v5301, 7
        %v5303 = vsub.s32 %v5300, %v5302
        %v5304 = vrot.slane %v3953, %v5303
        %v5306 = vunpack.c.l.s4 1966171168
        %v5307 = vunpack.c.0.s8 %v5306
        %v5308 = vlaneseq
        %v5309 = vshrl.u32 %v5308, 7
        %v5310 = vsub.s32 %v5307, %v5309
        %v5311 = vrot.slane %v5297, %v5310
        %v5312 = vcombine.high %v5304, %v5304
        %v5313 = vcombine.high %v5311, %v5311
        %v5315 = vunpack.c.l.s4 1966171168
        %v5316 = vunpack.c.0.s8 %v5315
        %v5317 = vlaneseq
        %v5318 = vshrl.u32 %v5317, 7
        %v5319 = vsub.s32 %v5316, %v5318
        %v5320 = vrot.slane %v5304, %v5319
        %v5322 = vunpack.c.l.s4 1966171168
        %v5323 = vunpack.c.0.s8 %v5322
        %v5324 = vlaneseq
        %v5325 = vshrl.u32 %v5324, 7
        %v5326 = vsub.s32 %v5323, %v5325
        %v5327 = vrot.slane %v5311, %v5326
        %v5329 = vunpack.c.l.s4 1966171168
        %v5330 = vunpack.c.0.s8 %v5329
        %v5331 = vlaneseq
        %v5332 = vshrl.u32 %v5331, 7
        %v5333 = vsub.s32 %v5330, %v5332
        %v5334 = vrot.slane %v5312, %v5333
        %v5336 = vunpack.c.l.s4 1966171168
        %v5337 = vunpack.c.0.s8 %v5336
        %v5338 = vlaneseq
        %v5339 = vshrl.u32 %v5338, 7
        %v5340 = vsub.s32 %v5337, %v5339
        %v5341 = vrot.slane %v5313, %v5340
        %v5342 = vcombine.high %v5320, %v5320
        %v5343 = vcombine.high %v5327, %v5327
        %v5344 = vcombine.high %v5334, %v5334
        %v5345 = vcombine.high %v5341, %v5341
        %v5346 = vcombine.high %v3954, %v3954
        %v5348 = vunpack.c.l.s4 1966171168
        %v5349 = vunpack.c.0.s8 %v5348
        %v5350 = vlaneseq
        %v5351 = vshrl.u32 %v5350, 7
        %v5352 = vsub.s32 %v5349, %v5351
        %v5353 = vrot.slane %v3954, %v5352
        %v5355 = vunpack.c.l.s4 1966171168
        %v5356 = vunpack.c.0.s8 %v5355
        %v5357 = vlaneseq
        %v5358 = vshrl.u32 %v5357, 7
        %v5359 = vsub.s32 %v5356, %v5358
        %v5360 = vrot.slane %v5346, %v5359
        %v5361 = vcombine.high %v5353, %v5353
        %v5362 = vcombine.high %v5360, %v5360
        %v5364 = vunpack.c.l.s4 1966171168
        %v5365 = vunpack.c.0.s8 %v5364
        %v5366 = vlaneseq
        %v5367 = vshrl.u32 %v5366, 7
        %v5368 = vsub.s32 %v5365, %v5367
        %v5369 = vrot.slane %v5353, %v5368
        %v5371 = vunpack.c.l.s4 1966171168
        %v5372 = vunpack.c.0.s8 %v5371
        %v5373 = vlaneseq
        %v5374 = vshrl.u32 %v5373, 7
        %v5375 = vsub.s32 %v5372, %v5374
        %v5376 = vrot.slane %v5360, %v5375
        %v5378 = vunpack.c.l.s4 1966171168
        %v5379 = vunpack.c.0.s8 %v5378
        %v5380 = vlaneseq
        %v5381 = vshrl.u32 %v5380, 7
        %v5382 = vsub.s32 %v5379, %v5381
        %v5383 = vrot.slane %v5361, %v5382
        %v5385 = vunpack.c.l.s4 1966171168
        %v5386 = vunpack.c.0.s8 %v5385
        %v5387 = vlaneseq
        %v5388 = vshrl.u32 %v5387, 7
        %v5389 = vsub.s32 %v5386, %v5388
        %v5390 = vrot.slane %v5362, %v5389
        %v5391 = vcombine.high %v5369, %v5369
        %v5392 = vcombine.high %v5376, %v5376
        %v5393 = vcombine.high %v5383, %v5383
        %v5394 = vcombine.high %v5390, %v5390
        %v5395 = vcombine.high %v3955, %v3955
        %v5397 = vunpack.c.l.s4 1966171168
        %v5398 = vunpack.c.0.s8 %v5397
        %v5399 = vlaneseq
        %v5400 = vshrl.u32 %v5399, 7
        %v5401 = vsub.s32 %v5398, %v5400
        %v5402 = vrot.slane %v3955, %v5401
        %v5404 = vunpack.c.l.s4 1966171168
        %v5405 = vunpack.c.0.s8 %v5404
        %v5406 = vlaneseq
        %v5407 = vshrl.u32 %v5406, 7
        %v5408 = vsub.s32 %v5405, %v5407
        %v5409 = vrot.slane %v5395, %v5408
        %v5410 = vcombine.high %v5402, %v5402
        %v5411 = vcombine.high %v5409, %v5409
        %v5413 = vunpack.c.l.s4 1966171168
        %v5414 = vunpack.c.0.s8 %v5413
        %v5415 = vlaneseq
        %v5416 = vshrl.u32 %v5415, 7
        %v5417 = vsub.s32 %v5414, %v5416
        %v5418 = vrot.slane %v5402, %v5417
        %v5420 = vunpack.c.l.s4 1966171168
        %v5421 = vunpack.c.0.s8 %v5420
        %v5422 = vlaneseq
        %v5423 = vshrl.u32 %v5422, 7
        %v5424 = vsub.s32 %v5421, %v5423
        %v5425 = vrot.slane %v5409, %v5424
        %v5427 = vunpack.c.l.s4 1966171168
        %v5428 = vunpack.c.0.s8 %v5427
        %v5429 = vlaneseq
        %v5430 = vshrl.u32 %v5429, 7
        %v5431 = vsub.s32 %v5428, %v5430
        %v5432 = vrot.slane %v5410, %v5431
        %v5434 = vunpack.c.l.s4 1966171168
        %v5435 = vunpack.c.0.s8 %v5434
        %v5436 = vlaneseq
        %v5437 = vshrl.u32 %v5436, 7
        %v5438 = vsub.s32 %v5435, %v5437
        %v5439 = vrot.slane %v5411, %v5438
        %v5440 = vcombine.high %v5418, %v5418
        %v5441 = vcombine.high %v5425, %v5425
        %v5442 = vcombine.high %v5432, %v5432
        %v5443 = vcombine.high %v5439, %v5439
        %v5444 = vcombine.high %v3956, %v3956
        %v5446 = vunpack.c.l.s4 1966171168
        %v5447 = vunpack.c.0.s8 %v5446
        %v5448 = vlaneseq
        %v5449 = vshrl.u32 %v5448, 7
        %v5450 = vsub.s32 %v5447, %v5449
        %v5451 = vrot.slane %v3956, %v5450
        %v5453 = vunpack.c.l.s4 1966171168
        %v5454 = vunpack.c.0.s8 %v5453
        %v5455 = vlaneseq
        %v5456 = vshrl.u32 %v5455, 7
        %v5457 = vsub.s32 %v5454, %v5456
        %v5458 = vrot.slane %v5444, %v5457
        %v5459 = vcombine.high %v5451, %v5451
        %v5460 = vcombine.high %v5458, %v5458
        %v5462 = vunpack.c.l.s4 1966171168
        %v5463 = vunpack.c.0.s8 %v5462
        %v5464 = vlaneseq
        %v5465 = vshrl.u32 %v5464, 7
        %v5466 = vsub.s32 %v5463, %v5465
        %v5467 = vrot.slane %v5451, %v5466
        %v5469 = vunpack.c.l.s4 1966171168
        %v5470 = vunpack.c.0.s8 %v5469
        %v5471 = vlaneseq
        %v5472 = vshrl.u32 %v5471, 7
        %v5473 = vsub.s32 %v5470, %v5472
        %v5474 = vrot.slane %v5458, %v5473
        %v5476 = vunpack.c.l.s4 1966171168
        %v5477 = vunpack.c.0.s8 %v5476
        %v5478 = vlaneseq
        %v5479 = vshrl.u32 %v5478, 7
        %v5480 = vsub.s32 %v5477, %v5479
        %v5481 = vrot.slane %v5459, %v5480
        %v5483 = vunpack.c.l.s4 1966171168
        %v5484 = vunpack.c.0.s8 %v5483
        %v5485 = vlaneseq
        %v5486 = vshrl.u32 %v5485, 7
        %v5487 = vsub.s32 %v5484, %v5486
        %v5488 = vrot.slane %v5460, %v5487
        %v5489 = vcombine.high %v5467, %v5467
        %v5490 = vcombine.high %v5474, %v5474
        %v5491 = vcombine.high %v5481, %v5481
        %v5492 = vcombine.high %v5488, %v5488
        %v5493 = vcombine.high %v3957, %v3957
        %v5495 = vunpack.c.l.s4 1966171168
        %v5496 = vunpack.c.0.s8 %v5495
        %v5497 = vlaneseq
        %v5498 = vshrl.u32 %v5497, 7
        %v5499 = vsub.s32 %v5496, %v5498
        %v5500 = vrot.slane %v3957, %v5499
        %v5502 = vunpack.c.l.s4 1966171168
        %v5503 = vunpack.c.0.s8 %v5502
        %v5504 = vlaneseq
        %v5505 = vshrl.u32 %v5504, 7
        %v5506 = vsub.s32 %v5503, %v5505
        %v5507 = vrot.slane %v5493, %v5506
        %v5508 = vcombine.high %v5500, %v5500
        %v5509 = vcombine.high %v5507, %v5507
        %v5511 = vunpack.c.l.s4 1966171168
        %v5512 = vunpack.c.0.s8 %v5511
        %v5513 = vlaneseq
        %v5514 = vshrl.u32 %v5513, 7
        %v5515 = vsub.s32 %v5512, %v5514
        %v5516 = vrot.slane %v5500, %v5515
        %v5518 = vunpack.c.l.s4 1966171168
        %v5519 = vunpack.c.0.s8 %v5518
        %v5520 = vlaneseq
        %v5521 = vshrl.u32 %v5520, 7
        %v5522 = vsub.s32 %v5519, %v5521
        %v5523 = vrot.slane %v5507, %v5522
        %v5525 = vunpack.c.l.s4 1966171168
        %v5526 = vunpack.c.0.s8 %v5525
        %v5527 = vlaneseq
        %v5528 = vshrl.u32 %v5527, 7
        %v5529 = vsub.s32 %v5526, %v5528
        %v5530 = vrot.slane %v5508, %v5529
        %v5532 = vunpack.c.l.s4 1966171168
        %v5533 = vunpack.c.0.s8 %v5532
        %v5534 = vlaneseq
        %v5535 = vshrl.u32 %v5534, 7
        %v5536 = vsub.s32 %v5533, %v5535
        %v5537 = vrot.slane %v5509, %v5536
        %v5538 = vcombine.high %v5516, %v5516
        %v5539 = vcombine.high %v5523, %v5523
        %v5540 = vcombine.high %v5530, %v5530
        %v5541 = vcombine.high %v5537, %v5537
        %v5542 = vcombine.high %v3958, %v3958
        %v5544 = vunpack.c.l.s4 1966171168
        %v5545 = vunpack.c.0.s8 %v5544
        %v5546 = vlaneseq
        %v5547 = vshrl.u32 %v5546, 7
        %v5548 = vsub.s32 %v5545, %v5547
        %v5549 = vrot.slane %v3958, %v5548
        %v5551 = vunpack.c.l.s4 1966171168
        %v5552 = vunpack.c.0.s8 %v5551
        %v5553 = vlaneseq
        %v5554 = vshrl.u32 %v5553, 7
        %v5555 = vsub.s32 %v5552, %v5554
        %v5556 = vrot.slane %v5542, %v5555
        %v5557 = vcombine.high %v5549, %v5549
        %v5558 = vcombine.high %v5556, %v5556
        %v5560 = vunpack.c.l.s4 1966171168
        %v5561 = vunpack.c.0.s8 %v5560
        %v5562 = vlaneseq
        %v5563 = vshrl.u32 %v5562, 7
        %v5564 = vsub.s32 %v5561, %v5563
        %v5565 = vrot.slane %v5549, %v5564
        %v5567 = vunpack.c.l.s4 1966171168
        %v5568 = vunpack.c.0.s8 %v5567
        %v5569 = vlaneseq
        %v5570 = vshrl.u32 %v5569, 7
        %v5571 = vsub.s32 %v5568, %v5570
        %v5572 = vrot.slane %v5556, %v5571
        %v5574 = vunpack.c.l.s4 1966171168
        %v5575 = vunpack.c.0.s8 %v5574
        %v5576 = vlaneseq
        %v5577 = vshrl.u32 %v5576, 7
        %v5578 = vsub.s32 %v5575, %v5577
        %v5579 = vrot.slane %v5557, %v5578
        %v5581 = vunpack.c.l.s4 1966171168
        %v5582 = vunpack.c.0.s8 %v5581
        %v5583 = vlaneseq
        %v5584 = vshrl.u32 %v5583, 7
        %v5585 = vsub.s32 %v5582, %v5584
        %v5586 = vrot.slane %v5558, %v5585
        %v5587 = vcombine.high %v5565, %v5565
        %v5588 = vcombine.high %v5572, %v5572
        %v5589 = vcombine.high %v5579, %v5579
        %v5590 = vcombine.high %v5586, %v5586
        %v5591 = vcombine.high %v3959, %v3959
        %v5593 = vunpack.c.l.s4 1966171168
        %v5594 = vunpack.c.0.s8 %v5593
        %v5595 = vlaneseq
        %v5596 = vshrl.u32 %v5595, 7
        %v5597 = vsub.s32 %v5594, %v5596
        %v5598 = vrot.slane %v3959, %v5597
        %v5600 = vunpack.c.l.s4 1966171168
        %v5601 = vunpack.c.0.s8 %v5600
        %v5602 = vlaneseq
        %v5603 = vshrl.u32 %v5602, 7
        %v5604 = vsub.s32 %v5601, %v5603
        %v5605 = vrot.slane %v5591, %v5604
        %v5606 = vcombine.high %v5598, %v5598
        %v5607 = vcombine.high %v5605, %v5605
        %v5609 = vunpack.c.l.s4 1966171168
        %v5610 = vunpack.c.0.s8 %v5609
        %v5611 = vlaneseq
        %v5612 = vshrl.u32 %v5611, 7
        %v5613 = vsub.s32 %v5610, %v5612
        %v5614 = vrot.slane %v5598, %v5613
        %v5616 = vunpack.c.l.s4 1966171168
        %v5617 = vunpack.c.0.s8 %v5616
        %v5618 = vlaneseq
        %v5619 = vshrl.u32 %v5618, 7
        %v5620 = vsub.s32 %v5617, %v5619
        %v5621 = vrot.slane %v5605, %v5620
        %v5623 = vunpack.c.l.s4 1966171168
        %v5624 = vunpack.c.0.s8 %v5623
        %v5625 = vlaneseq
        %v5626 = vshrl.u32 %v5625, 7
        %v5627 = vsub.s32 %v5624, %v5626
        %v5628 = vrot.slane %v5606, %v5627
        %v5630 = vunpack.c.l.s4 1966171168
        %v5631 = vunpack.c.0.s8 %v5630
        %v5632 = vlaneseq
        %v5633 = vshrl.u32 %v5632, 7
        %v5634 = vsub.s32 %v5631, %v5633
        %v5635 = vrot.slane %v5607, %v5634
        %v5636 = vcombine.high %v5614, %v5614
        %v5637 = vcombine.high %v5621, %v5621
        %v5638 = vcombine.high %v5628, %v5628
        %v5639 = vcombine.high %v5635, %v5635
        %v5640 = vcombine.high %v3960, %v3960
        %v5642 = vunpack.c.l.s4 1966171168
        %v5643 = vunpack.c.0.s8 %v5642
        %v5644 = vlaneseq
        %v5645 = vshrl.u32 %v5644, 7
        %v5646 = vsub.s32 %v5643, %v5645
        %v5647 = vrot.slane %v3960, %v5646
        %v5649 = vunpack.c.l.s4 1966171168
        %v5650 = vunpack.c.0.s8 %v5649
        %v5651 = vlaneseq
        %v5652 = vshrl.u32 %v5651, 7
        %v5653 = vsub.s32 %v5650, %v5652
        %v5654 = vrot.slane %v5640, %v5653
        %v5655 = vcombine.high %v5647, %v5647
        %v5656 = vcombine.high %v5654, %v5654
        %v5658 = vunpack.c.l.s4 1966171168
        %v5659 = vunpack.c.0.s8 %v5658
        %v5660 = vlaneseq
        %v5661 = vshrl.u32 %v5660, 7
        %v5662 = vsub.s32 %v5659, %v5661
        %v5663 = vrot.slane %v5647, %v5662
        %v5665 = vunpack.c.l.s4 1966171168
        %v5666 = vunpack.c.0.s8 %v5665
        %v5667 = vlaneseq
        %v5668 = vshrl.u32 %v5667, 7
        %v5669 = vsub.s32 %v5666, %v5668
        %v5670 = vrot.slane %v5654, %v5669
        %v5672 = vunpack.c.l.s4 1966171168
        %v5673 = vunpack.c.0.s8 %v5672
        %v5674 = vlaneseq
        %v5675 = vshrl.u32 %v5674, 7
        %v5676 = vsub.s32 %v5673, %v5675
        %v5677 = vrot.slane %v5655, %v5676
        %v5679 = vunpack.c.l.s4 1966171168
        %v5680 = vunpack.c.0.s8 %v5679
        %v5681 = vlaneseq
        %v5682 = vshrl.u32 %v5681, 7
        %v5683 = vsub.s32 %v5680, %v5682
        %v5684 = vrot.slane %v5656, %v5683
        %v5685 = vcombine.high %v5663, %v5663
        %v5686 = vcombine.high %v5670, %v5670
        %v5687 = vcombine.high %v5677, %v5677
        %v5688 = vcombine.high %v5684, %v5684
        %v5689 = vlaneseq
        %v5690 = vshrl.u32 %v5689, 7
        %v5691 = vsub.s32 0, %v5690
        %v5692 = vrot.slane %v4928, %v5691
        %v5693 = vlaneseq
        %v5694 = vshrl.u32 %v5693, 7
        %v5695 = vsub.s32 0, %v5694
        %v5696 = vrot.slane %v4942, %v5695
        %v5697 = vlaneseq
        %v5698 = vshrl.u32 %v5697, 7
        %v5699 = vsub.s32 0, %v5698
        %v5700 = vrot.slane %v4950, %v5699
        %v5701 = vlaneseq
        %v5702 = vshrl.u32 %v5701, 7
        %v5703 = vsub.s32 0, %v5702
        %v5704 = vrot.slane %v4952, %v5703
        %v5705 = vlaneseq
        %v5706 = vshrl.u32 %v5705, 7
        %v5707 = vsub.s32 0, %v5706
        %v5708 = vrot.slane %v4935, %v5707
        %v5709 = vlaneseq
        %v5710 = vshrl.u32 %v5709, 7
        %v5711 = vsub.s32 0, %v5710
        %v5712 = vrot.slane %v4949, %v5711
        %v5713 = vlaneseq
        %v5714 = vshrl.u32 %v5713, 7
        %v5715 = vsub.s32 0, %v5714
        %v5716 = vrot.slane %v4951, %v5715
        %v5717 = vlaneseq
        %v5718 = vshrl.u32 %v5717, 7
        %v5719 = vsub.s32 0, %v5718
        %v5720 = vrot.slane %v4953, %v5719
        %v5721 = vlaneseq
        %v5722 = vshrl.u32 %v5721, 7
        %v5723 = vsub.s32 0, %v5722
        %v5724 = vrot.slane %v4977, %v5723
        %v5725 = vlaneseq
        %v5726 = vshrl.u32 %v5725, 7
        %v5727 = vsub.s32 0, %v5726
        %v5728 = vrot.slane %v4991, %v5727
        %v5729 = vlaneseq
        %v5730 = vshrl.u32 %v5729, 7
        %v5731 = vsub.s32 0, %v5730
        %v5732 = vrot.slane %v4999, %v5731
        %v5733 = vlaneseq
        %v5734 = vshrl.u32 %v5733, 7
        %v5735 = vsub.s32 0, %v5734
        %v5736 = vrot.slane %v5001, %v5735
        %v5737 = vlaneseq
        %v5738 = vshrl.u32 %v5737, 7
        %v5739 = vsub.s32 0, %v5738
        %v5740 = vrot.slane %v4984, %v5739
        %v5741 = vlaneseq
        %v5742 = vshrl.u32 %v5741, 7
        %v5743 = vsub.s32 0, %v5742
        %v5744 = vrot.slane %v4998, %v5743
        %v5745 = vlaneseq
        %v5746 = vshrl.u32 %v5745, 7
        %v5747 = vsub.s32 0, %v5746
        %v5748 = vrot.slane %v5000, %v5747
        %v5749 = vlaneseq
        %v5750 = vshrl.u32 %v5749, 7
        %v5751 = vsub.s32 0, %v5750
        %v5752 = vrot.slane %v5002, %v5751
        %v5753 = vlaneseq
        %v5754 = vshrl.u32 %v5753, 7
        %v5755 = vsub.s32 0, %v5754
        %v5756 = vrot.slane %v5026, %v5755
        %v5757 = vlaneseq
        %v5758 = vshrl.u32 %v5757, 7
        %v5759 = vsub.s32 0, %v5758
        %v5760 = vrot.slane %v5040, %v5759
        %v5761 = vlaneseq
        %v5762 = vshrl.u32 %v5761, 7
        %v5763 = vsub.s32 0, %v5762
        %v5764 = vrot.slane %v5048, %v5763
        %v5765 = vlaneseq
        %v5766 = vshrl.u32 %v5765, 7
        %v5767 = vsub.s32 0, %v5766
        %v5768 = vrot.slane %v5050, %v5767
        %v5769 = vlaneseq
        %v5770 = vshrl.u32 %v5769, 7
        %v5771 = vsub.s32 0, %v5770
        %v5772 = vrot.slane %v5033, %v5771
        %v5773 = vlaneseq
        %v5774 = vshrl.u32 %v5773, 7
        %v5775 = vsub.s32 0, %v5774
        %v5776 = vrot.slane %v5047, %v5775
        %v5777 = vlaneseq
        %v5778 = vshrl.u32 %v5777, 7
        %v5779 = vsub.s32 0, %v5778
        %v5780 = vrot.slane %v5049, %v5779
        %v5781 = vlaneseq
        %v5782 = vshrl.u32 %v5781, 7
        %v5783 = vsub.s32 0, %v5782
        %v5784 = vrot.slane %v5051, %v5783
        %v5785 = vlaneseq
        %v5786 = vshrl.u32 %v5785, 7
        %v5787 = vsub.s32 0, %v5786
        %v5788 = vrot.slane %v5075, %v5787
        %v5789 = vlaneseq
        %v5790 = vshrl.u32 %v5789, 7
        %v5791 = vsub.s32 0, %v5790
        %v5792 = vrot.slane %v5089, %v5791
        %v5793 = vlaneseq
        %v5794 = vshrl.u32 %v5793, 7
        %v5795 = vsub.s32 0, %v5794
        %v5796 = vrot.slane %v5097, %v5795
        %v5797 = vlaneseq
        %v5798 = vshrl.u32 %v5797, 7
        %v5799 = vsub.s32 0, %v5798
        %v5800 = vrot.slane %v5099, %v5799
        %v5801 = vlaneseq
        %v5802 = vshrl.u32 %v5801, 7
        %v5803 = vsub.s32 0, %v5802
        %v5804 = vrot.slane %v5082, %v5803
        %v5805 = vlaneseq
        %v5806 = vshrl.u32 %v5805, 7
        %v5807 = vsub.s32 0, %v5806
        %v5808 = vrot.slane %v5096, %v5807
        %v5809 = vlaneseq
        %v5810 = vshrl.u32 %v5809, 7
        %v5811 = vsub.s32 0, %v5810
        %v5812 = vrot.slane %v5098, %v5811
        %v5813 = vlaneseq
        %v5814 = vshrl.u32 %v5813, 7
        %v5815 = vsub.s32 0, %v5814
        %v5816 = vrot.slane %v5100, %v5815
        %v5817 = vlaneseq
        %v5818 = vshrl.u32 %v5817, 7
        %v5819 = vsub.s32 0, %v5818
        %v5820 = vrot.slane %v5124, %v5819
        %v5821 = vlaneseq
        %v5822 = vshrl.u32 %v5821, 7
        %v5823 = vsub.s32 0, %v5822
        %v5824 = vrot.slane %v5138, %v5823
        %v5825 = vlaneseq
        %v5826 = vshrl.u32 %v5825, 7
        %v5827 = vsub.s32 0, %v5826
        %v5828 = vrot.slane %v5146, %v5827
        %v5829 = vlaneseq
        %v5830 = vshrl.u32 %v5829, 7
        %v5831 = vsub.s32 0, %v5830
        %v5832 = vrot.slane %v5148, %v5831
        %v5833 = vlaneseq
        %v5834 = vshrl.u32 %v5833, 7
        %v5835 = vsub.s32 0, %v5834
        %v5836 = vrot.slane %v5131, %v5835
        %v5837 = vlaneseq
        %v5838 = vshrl.u32 %v5837, 7
        %v5839 = vsub.s32 0, %v5838
        %v5840 = vrot.slane %v5145, %v5839
        %v5841 = vlaneseq
        %v5842 = vshrl.u32 %v5841, 7
        %v5843 = vsub.s32 0, %v5842
        %v5844 = vrot.slane %v5147, %v5843
        %v5845 = vlaneseq
        %v5846 = vshrl.u32 %v5845, 7
        %v5847 = vsub.s32 0, %v5846
        %v5848 = vrot.slane %v5149, %v5847
        %v5849 = vlaneseq
        %v5850 = vshrl.u32 %v5849, 7
        %v5851 = vsub.s32 0, %v5850
        %v5852 = vrot.slane %v5173, %v5851
        %v5853 = vlaneseq
        %v5854 = vshrl.u32 %v5853, 7
        %v5855 = vsub.s32 0, %v5854
        %v5856 = vrot.slane %v5187, %v5855
        %v5857 = vlaneseq
        %v5858 = vshrl.u32 %v5857, 7
        %v5859 = vsub.s32 0, %v5858
        %v5860 = vrot.slane %v5195, %v5859
        %v5861 = vlaneseq
        %v5862 = vshrl.u32 %v5861, 7
        %v5863 = vsub.s32 0, %v5862
        %v5864 = vrot.slane %v5197, %v5863
        %v5865 = vlaneseq
        %v5866 = vshrl.u32 %v5865, 7
        %v5867 = vsub.s32 0, %v5866
        %v5868 = vrot.slane %v5180, %v5867
        %v5869 = vlaneseq
        %v5870 = vshrl.u32 %v5869, 7
        %v5871 = vsub.s32 0, %v5870
        %v5872 = vrot.slane %v5194, %v5871
        %v5873 = vlaneseq
        %v5874 = vshrl.u32 %v5873, 7
        %v5875 = vsub.s32 0, %v5874
        %v5876 = vrot.slane %v5196, %v5875
        %v5877 = vlaneseq
        %v5878 = vshrl.u32 %v5877, 7
        %v5879 = vsub.s32 0, %v5878
        %v5880 = vrot.slane %v5198, %v5879
        %v5881 = vlaneseq
        %v5882 = vshrl.u32 %v5881, 7
        %v5883 = vsub.s32 0, %v5882
        %v5884 = vrot.slane %v5222, %v5883
        %v5885 = vlaneseq
        %v5886 = vshrl.u32 %v5885, 7
        %v5887 = vsub.s32 0, %v5886
        %v5888 = vrot.slane %v5236, %v5887
        %v5889 = vlaneseq
        %v5890 = vshrl.u32 %v5889, 7
        %v5891 = vsub.s32 0, %v5890
        %v5892 = vrot.slane %v5244, %v5891
        %v5893 = vlaneseq
        %v5894 = vshrl.u32 %v5893, 7
        %v5895 = vsub.s32 0, %v5894
        %v5896 = vrot.slane %v5246, %v5895
        %v5897 = vlaneseq
        %v5898 = vshrl.u32 %v5897, 7
        %v5899 = vsub.s32 0, %v5898
        %v5900 = vrot.slane %v5229, %v5899
        %v5901 = vlaneseq
        %v5902 = vshrl.u32 %v5901, 7
        %v5903 = vsub.s32 0, %v5902
        %v5904 = vrot.slane %v5243, %v5903
        %v5905 = vlaneseq
        %v5906 = vshrl.u32 %v5905, 7
        %v5907 = vsub.s32 0, %v5906
        %v5908 = vrot.slane %v5245, %v5907
        %v5909 = vlaneseq
        %v5910 = vshrl.u32 %v5909, 7
        %v5911 = vsub.s32 0, %v5910
        %v5912 = vrot.slane %v5247, %v5911
        %v5913 = vlaneseq
        %v5914 = vshrl.u32 %v5913, 7
        %v5915 = vsub.s32 0, %v5914
        %v5916 = vrot.slane %v5271, %v5915
        %v5917 = vlaneseq
        %v5918 = vshrl.u32 %v5917, 7
        %v5919 = vsub.s32 0, %v5918
        %v5920 = vrot.slane %v5285, %v5919
        %v5921 = vlaneseq
        %v5922 = vshrl.u32 %v5921, 7
        %v5923 = vsub.s32 0, %v5922
        %v5924 = vrot.slane %v5293, %v5923
        %v5925 = vlaneseq
        %v5926 = vshrl.u32 %v5925, 7
        %v5927 = vsub.s32 0, %v5926
        %v5928 = vrot.slane %v5295, %v5927
        %v5929 = vlaneseq
        %v5930 = vshrl.u32 %v5929, 7
        %v5931 = vsub.s32 0, %v5930
        %v5932 = vrot.slane %v5278, %v5931
        %v5933 = vlaneseq
        %v5934 = vshrl.u32 %v5933, 7
        %v5935 = vsub.s32 0, %v5934
        %v5936 = vrot.slane %v5292, %v5935
        %v5937 = vlaneseq
        %v5938 = vshrl.u32 %v5937, 7
        %v5939 = vsub.s32 0, %v5938
        %v5940 = vrot.slane %v5294, %v5939
        %v5941 = vlaneseq
        %v5942 = vshrl.u32 %v5941, 7
        %v5943 = vsub.s32 0, %v5942
        %v5944 = vrot.slane %v5296, %v5943
        %v5945 = vlaneseq
        %v5946 = vshrl.u32 %v5945, 7
        %v5947 = vsub.s32 0, %v5946
        %v5948 = vrot.slane %v5320, %v5947
        %v5949 = vlaneseq
        %v5950 = vshrl.u32 %v5949, 7
        %v5951 = vsub.s32 0, %v5950
        %v5952 = vrot.slane %v5334, %v5951
        %v5953 = vlaneseq
        %v5954 = vshrl.u32 %v5953, 7
        %v5955 = vsub.s32 0, %v5954
        %v5956 = vrot.slane %v5342, %v5955
        %v5957 = vlaneseq
        %v5958 = vshrl.u32 %v5957, 7
        %v5959 = vsub.s32 0, %v5958
        %v5960 = vrot.slane %v5344, %v5959
        %v5961 = vlaneseq
        %v5962 = vshrl.u32 %v5961, 7
        %v5963 = vsub.s32 0, %v5962
        %v5964 = vrot.slane %v5327, %v5963
        %v5965 = vlaneseq
        %v5966 = vshrl.u32 %v5965, 7
        %v5967 = vsub.s32 0, %v5966
        %v5968 = vrot.slane %v5341, %v5967
        %v5969 = vlaneseq
        %v5970 = vshrl.u32 %v5969, 7
        %v5971 = vsub.s32 0, %v5970
        %v5972 = vrot.slane %v5343, %v5971
        %v5973 = vlaneseq
        %v5974 = vshrl.u32 %v5973, 7
        %v5975 = vsub.s32 0, %v5974
        %v5976 = vrot.slane %v5345, %v5975
        %v5977 = vlaneseq
        %v5978 = vshrl.u32 %v5977, 7
        %v5979 = vsub.s32 0, %v5978
        %v5980 = vrot.slane %v5369, %v5979
        %v5981 = vlaneseq
        %v5982 = vshrl.u32 %v5981, 7
        %v5983 = vsub.s32 0, %v5982
        %v5984 = vrot.slane %v5383, %v5983
        %v5985 = vlaneseq
        %v5986 = vshrl.u32 %v5985, 7
        %v5987 = vsub.s32 0, %v5986
        %v5988 = vrot.slane %v5391, %v5987
        %v5989 = vlaneseq
        %v5990 = vshrl.u32 %v5989, 7
        %v5991 = vsub.s32 0, %v5990
        %v5992 = vrot.slane %v5393, %v5991
        %v5993 = vlaneseq
        %v5994 = vshrl.u32 %v5993, 7
        %v5995 = vsub.s32 0, %v5994
        %v5996 = vrot.slane %v5376, %v5995
        %v5997 = vlaneseq
        %v5998 = vshrl.u32 %v5997, 7
        %v5999 = vsub.s32 0, %v5998
        %v6000 = vrot.slane %v5390, %v5999
        %v6001 = vlaneseq
        %v6002 = vshrl.u32 %v6001, 7
        %v6003 = vsub.s32 0, %v6002
        %v6004 = vrot.slane %v5392, %v6003
        %v6005 = vlaneseq
        %v6006 = vshrl.u32 %v6005, 7
        %v6007 = vsub.s32 0, %v6006
        %v6008 = vrot.slane %v5394, %v6007
        %v6009 = vlaneseq
        %v6010 = vshrl.u32 %v6009, 7
        %v6011 = vsub.s32 0, %v6010
        %v6012 = vrot.slane %v5418, %v6011
        %v6013 = vlaneseq
        %v6014 = vshrl.u32 %v6013, 7
        %v6015 = vsub.s32 0, %v6014
        %v6016 = vrot.slane %v5432, %v6015
        %v6017 = vlaneseq
        %v6018 = vshrl.u32 %v6017, 7
        %v6019 = vsub.s32 0, %v6018
        %v6020 = vrot.slane %v5440, %v6019
        %v6021 = vlaneseq
        %v6022 = vshrl.u32 %v6021, 7
        %v6023 = vsub.s32 0, %v6022
        %v6024 = vrot.slane %v5442, %v6023
        %v6025 = vlaneseq
        %v6026 = vshrl.u32 %v6025, 7
        %v6027 = vsub.s32 0, %v6026
        %v6028 = vrot.slane %v5425, %v6027
        %v6029 = vlaneseq
        %v6030 = vshrl.u32 %v6029, 7
        %v6031 = vsub.s32 0, %v6030
        %v6032 = vrot.slane %v5439, %v6031
        %v6033 = vlaneseq
        %v6034 = vshrl.u32 %v6033, 7
        %v6035 = vsub.s32 0, %v6034
        %v6036 = vrot.slane %v5441, %v6035
        %v6037 = vlaneseq
        %v6038 = vshrl.u32 %v6037, 7
        %v6039 = vsub.s32 0, %v6038
        %v6040 = vrot.slane %v5443, %v6039
        %v6041 = vlaneseq
        %v6042 = vshrl.u32 %v6041, 7
        %v6043 = vsub.s32 0, %v6042
        %v6044 = vrot.slane %v5467, %v6043
        %v6045 = vlaneseq
        %v6046 = vshrl.u32 %v6045, 7
        %v6047 = vsub.s32 0, %v6046
        %v6048 = vrot.slane %v5481, %v6047
        %v6049 = vlaneseq
        %v6050 = vshrl.u32 %v6049, 7
        %v6051 = vsub.s32 0, %v6050
        %v6052 = vrot.slane %v5489, %v6051
        %v6053 = vlaneseq
        %v6054 = vshrl.u32 %v6053, 7
        %v6055 = vsub.s32 0, %v6054
        %v6056 = vrot.slane %v5491, %v6055
        %v6057 = vlaneseq
        %v6058 = vshrl.u32 %v6057, 7
        %v6059 = vsub.s32 0, %v6058
        %v6060 = vrot.slane %v5474, %v6059
        %v6061 = vlaneseq
        %v6062 = vshrl.u32 %v6061, 7
        %v6063 = vsub.s32 0, %v6062
        %v6064 = vrot.slane %v5488, %v6063
        %v6065 = vlaneseq
        %v6066 = vshrl.u32 %v6065, 7
        %v6067 = vsub.s32 0, %v6066
        %v6068 = vrot.slane %v5490, %v6067
        %v6069 = vlaneseq
        %v6070 = vshrl.u32 %v6069, 7
        %v6071 = vsub.s32 0, %v6070
        %v6072 = vrot.slane %v5492, %v6071
        %v6073 = vlaneseq
        %v6074 = vshrl.u32 %v6073, 7
        %v6075 = vsub.s32 0, %v6074
        %v6076 = vrot.slane %v5516, %v6075
        %v6077 = vlaneseq
        %v6078 = vshrl.u32 %v6077, 7
        %v6079 = vsub.s32 0, %v6078
        %v6080 = vrot.slane %v5530, %v6079
        %v6081 = vlaneseq
        %v6082 = vshrl.u32 %v6081, 7
        %v6083 = vsub.s32 0, %v6082
        %v6084 = vrot.slane %v5538, %v6083
        %v6085 = vlaneseq
        %v6086 = vshrl.u32 %v6085, 7
        %v6087 = vsub.s32 0, %v6086
        %v6088 = vrot.slane %v5540, %v6087
        %v6089 = vlaneseq
        %v6090 = vshrl.u32 %v6089, 7
        %v6091 = vsub.s32 0, %v6090
        %v6092 = vrot.slane %v5523, %v6091
        %v6093 = vlaneseq
        %v6094 = vshrl.u32 %v6093, 7
        %v6095 = vsub.s32 0, %v6094
        %v6096 = vrot.slane %v5537, %v6095
        %v6097 = vlaneseq
        %v6098 = vshrl.u32 %v6097, 7
        %v6099 = vsub.s32 0, %v6098
        %v6100 = vrot.slane %v5539, %v6099
        %v6101 = vlaneseq
        %v6102 = vshrl.u32 %v6101, 7
        %v6103 = vsub.s32 0, %v6102
        %v6104 = vrot.slane %v5541, %v6103
        %v6105 = vlaneseq
        %v6106 = vshrl.u32 %v6105, 7
        %v6107 = vsub.s32 0, %v6106
        %v6108 = vrot.slane %v5565, %v6107
        %v6109 = vlaneseq
        %v6110 = vshrl.u32 %v6109, 7
        %v6111 = vsub.s32 0, %v6110
        %v6112 = vrot.slane %v5579, %v6111
        %v6113 = vlaneseq
        %v6114 = vshrl.u32 %v6113, 7
        %v6115 = vsub.s32 0, %v6114
        %v6116 = vrot.slane %v5587, %v6115
        %v6117 = vlaneseq
        %v6118 = vshrl.u32 %v6117, 7
        %v6119 = vsub.s32 0, %v6118
        %v6120 = vrot.slane %v5589, %v6119
        %v6121 = vlaneseq
        %v6122 = vshrl.u32 %v6121, 7
        %v6123 = vsub.s32 0, %v6122
        %v6124 = vrot.slane %v5572, %v6123
        %v6125 = vlaneseq
        %v6126 = vshrl.u32 %v6125, 7
        %v6127 = vsub.s32 0, %v6126
        %v6128 = vrot.slane %v5586, %v6127
        %v6129 = vlaneseq
        %v6130 = vshrl.u32 %v6129, 7
        %v6131 = vsub.s32 0, %v6130
        %v6132 = vrot.slane %v5588, %v6131
        %v6133 = vlaneseq
        %v6134 = vshrl.u32 %v6133, 7
        %v6135 = vsub.s32 0, %v6134
        %v6136 = vrot.slane %v5590, %v6135
        %v6137 = vlaneseq
        %v6138 = vshrl.u32 %v6137, 7
        %v6139 = vsub.s32 0, %v6138
        %v6140 = vrot.slane %v5614, %v6139
        %v6141 = vlaneseq
        %v6142 = vshrl.u32 %v6141, 7
        %v6143 = vsub.s32 0, %v6142
        %v6144 = vrot.slane %v5628, %v6143
        %v6145 = vlaneseq
        %v6146 = vshrl.u32 %v6145, 7
        %v6147 = vsub.s32 0, %v6146
        %v6148 = vrot.slane %v5636, %v6147
        %v6149 = vlaneseq
        %v6150 = vshrl.u32 %v6149, 7
        %v6151 = vsub.s32 0, %v6150
        %v6152 = vrot.slane %v5638, %v6151
        %v6153 = vlaneseq
        %v6154 = vshrl.u32 %v6153, 7
        %v6155 = vsub.s32 0, %v6154
        %v6156 = vrot.slane %v5621, %v6155
        %v6157 = vlaneseq
        %v6158 = vshrl.u32 %v6157, 7
        %v6159 = vsub.s32 0, %v6158
        %v6160 = vrot.slane %v5635, %v6159
        %v6161 = vlaneseq
        %v6162 = vshrl.u32 %v6161, 7
        %v6163 = vsub.s32 0, %v6162
        %v6164 = vrot.slane %v5637, %v6163
        %v6165 = vlaneseq
        %v6166 = vshrl.u32 %v6165, 7
        %v6167 = vsub.s32 0, %v6166
        %v6168 = vrot.slane %v5639, %v6167
        %v6169 = vlaneseq
        %v6170 = vshrl.u32 %v6169, 7
        %v6171 = vsub.s32 0, %v6170
        %v6172 = vrot.slane %v5663, %v6171
        %v6173 = vlaneseq
        %v6174 = vshrl.u32 %v6173, 7
        %v6175 = vsub.s32 0, %v6174
        %v6176 = vrot.slane %v5677, %v6175
        %v6177 = vlaneseq
        %v6178 = vshrl.u32 %v6177, 7
        %v6179 = vsub.s32 0, %v6178
        %v6180 = vrot.slane %v5685, %v6179
        %v6181 = vlaneseq
        %v6182 = vshrl.u32 %v6181, 7
        %v6183 = vsub.s32 0, %v6182
        %v6184 = vrot.slane %v5687, %v6183
        %v6185 = vlaneseq
        %v6186 = vshrl.u32 %v6185, 7
        %v6187 = vsub.s32 0, %v6186
        %v6188 = vrot.slane %v5670, %v6187
        %v6189 = vlaneseq
        %v6190 = vshrl.u32 %v6189, 7
        %v6191 = vsub.s32 0, %v6190
        %v6192 = vrot.slane %v5684, %v6191
        %v6193 = vlaneseq
        %v6194 = vshrl.u32 %v6193, 7
        %v6195 = vsub.s32 0, %v6194
        %v6196 = vrot.slane %v5686, %v6195
        %v6197 = vlaneseq
        %v6198 = vshrl.u32 %v6197, 7
        %v6199 = vsub.s32 0, %v6198
        %v6200 = vrot.slane %v5688, %v6199
        %v6329 = vsel %vm361, %v4000, %v5692
        %v6330 = vsel %vm361, %v4014, %v5696
        %v6331 = vsel %vm361, %v4022, %v5700
        %v6332 = vsel %vm361, %v4024, %v5704
        %v6333 = vsel %vm361, %v4007, %v5708
        %v6334 = vsel %vm361, %v4021, %v5712
        %v6335 = vsel %vm361, %v4023, %v5716
        %v6336 = vsel %vm361, %v4025, %v5720
        %v6337 = vsel %vm361, %v4049, %v5724
        %v6338 = vsel %vm361, %v4063, %v5728
        %v6339 = vsel %vm361, %v4071, %v5732
        %v6340 = vsel %vm361, %v4073, %v5736
        %v6341 = vsel %vm361, %v4056, %v5740
        %v6342 = vsel %vm361, %v4070, %v5744
        %v6343 = vsel %vm361, %v4072, %v5748
        %v6344 = vsel %vm361, %v4074, %v5752
        %v6345 = vsel %vm361, %v4098, %v5756
        %v6346 = vsel %vm361, %v4112, %v5760
        %v6347 = vsel %vm361, %v4120, %v5764
        %v6348 = vsel %vm361, %v4122, %v5768
        %v6349 = vsel %vm361, %v4105, %v5772
        %v6350 = vsel %vm361, %v4119, %v5776
        %v6351 = vsel %vm361, %v4121, %v5780
        %v6352 = vsel %vm361, %v4123, %v5784
        %v6353 = vsel %vm361, %v4147, %v5788
        %v6354 = vsel %vm361, %v4161, %v5792
        %v6355 = vsel %vm361, %v4169, %v5796
        %v6356 = vsel %vm361, %v4171, %v5800
        %v6357 = vsel %vm361, %v4154, %v5804
        %v6358 = vsel %vm361, %v4168, %v5808
        %v6359 = vsel %vm361, %v4170, %v5812
        %v6360 = vsel %vm361, %v4172, %v5816
        %v6361 = vsel %vm361, %v4196, %v5820
        %v6362 = vsel %vm361, %v4210, %v5824
        %v6363 = vsel %vm361, %v4218, %v5828
        %v6364 = vsel %vm361, %v4220, %v5832
        %v6365 = vsel %vm361, %v4203, %v5836
        %v6366 = vsel %vm361, %v4217, %v5840
        %v6367 = vsel %vm361, %v4219, %v5844
        %v6368 = vsel %vm361, %v4221, %v5848
        %v6369 = vsel %vm361, %v4245, %v5852
        %v6370 = vsel %vm361, %v4259, %v5856
        %v6371 = vsel %vm361, %v4267, %v5860
        %v6372 = vsel %vm361, %v4269, %v5864
        %v6373 = vsel %vm361, %v4252, %v5868
        %v6374 = vsel %vm361, %v4266, %v5872
        %v6375 = vsel %vm361, %v4268, %v5876
        %v6376 = vsel %vm361, %v4270, %v5880
        %v6377 = vsel %vm361, %v4294, %v5884
        %v6378 = vsel %vm361, %v4308, %v5888
        %v6379 = vsel %vm361, %v4316, %v5892
        %v6380 = vsel %vm361, %v4318, %v5896
        %v6381 = vsel %vm361, %v4301, %v5900
        %v6382 = vsel %vm361, %v4315, %v5904
        %v6383 = vsel %vm361, %v4317, %v5908
        %v6384 = vsel %vm361, %v4319, %v5912
        %v6385 = vsel %vm361, %v4343, %v5916
        %v6386 = vsel %vm361, %v4357, %v5920
        %v6387 = vsel %vm361, %v4365, %v5924
        %v6388 = vsel %vm361, %v4367, %v5928
        %v6389 = vsel %vm361, %v4350, %v5932
        %v6390 = vsel %vm361, %v4364, %v5936
        %v6391 = vsel %vm361, %v4366, %v5940
        %v6392 = vsel %vm361, %v4368, %v5944
        %v6393 = vsel %vm361, %v4392, %v5948
        %v6394 = vsel %vm361, %v4406, %v5952
        %v6395 = vsel %vm361, %v4414, %v5956
        %v6396 = vsel %vm361, %v4416, %v5960
        %v6397 = vsel %vm361, %v4399, %v5964
        %v6398 = vsel %vm361, %v4413, %v5968
        %v6399 = vsel %vm361, %v4415, %v5972
        %v6400 = vsel %vm361, %v4417, %v5976
        %v6401 = vsel %vm361, %v4441, %v5980
        %v6402 = vsel %vm361, %v4455, %v5984
        %v6403 = vsel %vm361, %v4463, %v5988
        %v6404 = vsel %vm361, %v4465, %v5992
        %v6405 = vsel %vm361, %v4448, %v5996
        %v6406 = vsel %vm361, %v4462, %v6000
        %v6407 = vsel %vm361, %v4464, %v6004
        %v6408 = vsel %vm361, %v4466, %v6008
        %v6409 = vsel %vm361, %v4490, %v6012
        %v6410 = vsel %vm361, %v4504, %v6016
        %v6411 = vsel %vm361, %v4512, %v6020
        %v6412 = vsel %vm361, %v4514, %v6024
        %v6413 = vsel %vm361, %v4497, %v6028
        %v6414 = vsel %vm361, %v4511, %v6032
        %v6415 = vsel %vm361, %v4513, %v6036
        %v6416 = vsel %vm361, %v4515, %v6040
        %v6417 = vsel %vm361, %v4539, %v6044
        %v6418 = vsel %vm361, %v4553, %v6048
        %v6419 = vsel %vm361, %v4561, %v6052
        %v6420 = vsel %vm361, %v4563, %v6056
        %v6421 = vsel %vm361, %v4546, %v6060
        %v6422 = vsel %vm361, %v4560, %v6064
        %v6423 = vsel %vm361, %v4562, %v6068
        %v6424 = vsel %vm361, %v4564, %v6072
        %v6425 = vsel %vm361, %v4588, %v6076
        %v6426 = vsel %vm361, %v4602, %v6080
        %v6427 = vsel %vm361, %v4610, %v6084
        %v6428 = vsel %vm361, %v4612, %v6088
        %v6429 = vsel %vm361, %v4595, %v6092
        %v6430 = vsel %vm361, %v4609, %v6096
        %v6431 = vsel %vm361, %v4611, %v6100
        %v6432 = vsel %vm361, %v4613, %v6104
        %v6433 = vsel %vm361, %v4637, %v6108
        %v6434 = vsel %vm361, %v4651, %v6112
        %v6435 = vsel %vm361, %v4659, %v6116
        %v6436 = vsel %vm361, %v4661, %v6120
        %v6437 = vsel %vm361, %v4644, %v6124
        %v6438 = vsel %vm361, %v4658, %v6128
        %v6439 = vsel %vm361, %v4660, %v6132
        %v6440 = vsel %vm361, %v4662, %v6136
        %v6441 = vsel %vm361, %v4686, %v6140
        %v6442 = vsel %vm361, %v4700, %v6144
        %v6443 = vsel %vm361, %v4708, %v6148
        %v6444 = vsel %vm361, %v4710, %v6152
        %v6445 = vsel %vm361, %v4693, %v6156
        %v6446 = vsel %vm361, %v4707, %v6160
        %v6447 = vsel %vm361, %v4709, %v6164
        %v6448 = vsel %vm361, %v4711, %v6168
        %v6449 = vsel %vm361, %v4735, %v6172
        %v6450 = vsel %vm361, %v4749, %v6176
        %v6451 = vsel %vm361, %v4757, %v6180
        %v6452 = vsel %vm361, %v4759, %v6184
        %v6453 = vsel %vm361, %v4742, %v6188
        %v6454 = vsel %vm361, %v4756, %v6192
        %v6455 = vsel %vm361, %v4758, %v6196
        %v6456 = vsel %vm361, %v4760, %v6200
        %v6457 = vld [vmem:[%s316] sm:$0xff]
        %v6458 = vld [vmem:[%s316 + $0x8] sm:$0xff]
        %v6459 = vld [vmem:[%s316 + $0x10] sm:$0xff]
        %v6460 = vld [vmem:[%s316 + $0x18] sm:$0xff]
        %v6461 = vld [vmem:[%s316 + $0x20] sm:$0xff]
        %v6462 = vld [vmem:[%s316 + $0x28] sm:$0xff]
        %v6463 = vld [vmem:[%s316 + $0x30] sm:$0xff]
        %v6464 = vld [vmem:[%s316 + $0x38] sm:$0xff]
        %v6465 = vld [vmem:[%s316 + $0x40] sm:$0xff]
        %v6466 = vld [vmem:[%s316 + $0x48] sm:$0xff]
        %v6467 = vld [vmem:[%s316 + $0x50] sm:$0xff]
        %v6468 = vld [vmem:[%s316 + $0x58] sm:$0xff]
        %v6469 = vld [vmem:[%s316 + $0x60] sm:$0xff]
        %v6470 = vld [vmem:[%s316 + $0x68] sm:$0xff]
        %v6471 = vld [vmem:[%s316 + $0x70] sm:$0xff]
        %v6472 = vld [vmem:[%s316 + $0x78] sm:$0xff]
        %v6473 = vld [vmem:[%s316 + $0x80] sm:$0xff]
        %v6474 = vld [vmem:[%s316 + $0x88] sm:$0xff]
        %v6475 = vld [vmem:[%s316 + $0x90] sm:$0xff]
        %v6476 = vld [vmem:[%s316 + $0x98] sm:$0xff]
        %v6477 = vld [vmem:[%s316 + $0xa0] sm:$0xff]
        %v6478 = vld [vmem:[%s316 + $0xa8] sm:$0xff]
        %v6479 = vld [vmem:[%s316 + $0xb0] sm:$0xff]
        %v6480 = vld [vmem:[%s316 + $0xb8] sm:$0xff]
        %v6481 = vld [vmem:[%s316 + $0xc0] sm:$0xff]
        %v6482 = vld [vmem:[%s316 + $0xc8] sm:$0xff]
        %v6483 = vld [vmem:[%s316 + $0xd0] sm:$0xff]
        %v6484 = vld [vmem:[%s316 + $0xd8] sm:$0xff]
        %v6485 = vld [vmem:[%s316 + $0xe0] sm:$0xff]
        %v6486 = vld [vmem:[%s316 + $0xe8] sm:$0xff]
        %v6487 = vld [vmem:[%s316 + $0xf0] sm:$0xff]
        %v6488 = vld [vmem:[%s316 + $0xf8] sm:$0xff]
        %v6617 = vcombine.low %v6329, %v6330
        %v6618 = vcombine.low %v6331, %v6332
        %v6620 = vunpack.c.l.s4 1983009808
        %v6621 = vunpack.c.0.s8 %v6620
        %v6622 = vlaneseq
        %v6623 = vshrl.u32 %v6622, 7
        %v6624 = vsub.s32 %v6621, %v6623
        %v6625 = vrot.slane %v6617, %v6624
        %v6627 = vunpack.c.l.s4 1983009808
        %v6628 = vunpack.c.0.s8 %v6627
        %v6629 = vlaneseq
        %v6630 = vshrl.u32 %v6629, 7
        %v6631 = vsub.s32 %v6628, %v6630
        %v6632 = vrot.slane %v6618, %v6631
        %v6633 = vcombine.low %v6625, %v6632
        %v6634 = vcombine.low %v6333, %v6334
        %v6635 = vcombine.low %v6335, %v6336
        %v6637 = vunpack.c.l.s4 1983009808
        %v6638 = vunpack.c.0.s8 %v6637
        %v6639 = vlaneseq
        %v6640 = vshrl.u32 %v6639, 7
        %v6641 = vsub.s32 %v6638, %v6640
        %v6642 = vrot.slane %v6634, %v6641
        %v6644 = vunpack.c.l.s4 1983009808
        %v6645 = vunpack.c.0.s8 %v6644
        %v6646 = vlaneseq
        %v6647 = vshrl.u32 %v6646, 7
        %v6648 = vsub.s32 %v6645, %v6647
        %v6649 = vrot.slane %v6635, %v6648
        %v6650 = vcombine.low %v6642, %v6649
        %v6651 = vcombine.low %v6337, %v6338
        %v6652 = vcombine.low %v6339, %v6340
        %v6654 = vunpack.c.l.s4 1983009808
        %v6655 = vunpack.c.0.s8 %v6654
        %v6656 = vlaneseq
        %v6657 = vshrl.u32 %v6656, 7
        %v6658 = vsub.s32 %v6655, %v6657
        %v6659 = vrot.slane %v6651, %v6658
        %v6661 = vunpack.c.l.s4 1983009808
        %v6662 = vunpack.c.0.s8 %v6661
        %v6663 = vlaneseq
        %v6664 = vshrl.u32 %v6663, 7
        %v6665 = vsub.s32 %v6662, %v6664
        %v6666 = vrot.slane %v6652, %v6665
        %v6667 = vcombine.low %v6659, %v6666
        %v6668 = vcombine.low %v6341, %v6342
        %v6669 = vcombine.low %v6343, %v6344
        %v6671 = vunpack.c.l.s4 1983009808
        %v6672 = vunpack.c.0.s8 %v6671
        %v6673 = vlaneseq
        %v6674 = vshrl.u32 %v6673, 7
        %v6675 = vsub.s32 %v6672, %v6674
        %v6676 = vrot.slane %v6668, %v6675
        %v6678 = vunpack.c.l.s4 1983009808
        %v6679 = vunpack.c.0.s8 %v6678
        %v6680 = vlaneseq
        %v6681 = vshrl.u32 %v6680, 7
        %v6682 = vsub.s32 %v6679, %v6681
        %v6683 = vrot.slane %v6669, %v6682
        %v6684 = vcombine.low %v6676, %v6683
        %v6685 = vcombine.low %v6345, %v6346
        %v6686 = vcombine.low %v6347, %v6348
        %v6688 = vunpack.c.l.s4 1983009808
        %v6689 = vunpack.c.0.s8 %v6688
        %v6690 = vlaneseq
        %v6691 = vshrl.u32 %v6690, 7
        %v6692 = vsub.s32 %v6689, %v6691
        %v6693 = vrot.slane %v6685, %v6692
        %v6695 = vunpack.c.l.s4 1983009808
        %v6696 = vunpack.c.0.s8 %v6695
        %v6697 = vlaneseq
        %v6698 = vshrl.u32 %v6697, 7
        %v6699 = vsub.s32 %v6696, %v6698
        %v6700 = vrot.slane %v6686, %v6699
        %v6701 = vcombine.low %v6693, %v6700
        %v6702 = vcombine.low %v6349, %v6350
        %v6703 = vcombine.low %v6351, %v6352
        %v6705 = vunpack.c.l.s4 1983009808
        %v6706 = vunpack.c.0.s8 %v6705
        %v6707 = vlaneseq
        %v6708 = vshrl.u32 %v6707, 7
        %v6709 = vsub.s32 %v6706, %v6708
        %v6710 = vrot.slane %v6702, %v6709
        %v6712 = vunpack.c.l.s4 1983009808
        %v6713 = vunpack.c.0.s8 %v6712
        %v6714 = vlaneseq
        %v6715 = vshrl.u32 %v6714, 7
        %v6716 = vsub.s32 %v6713, %v6715
        %v6717 = vrot.slane %v6703, %v6716
        %v6718 = vcombine.low %v6710, %v6717
        %v6719 = vcombine.low %v6353, %v6354
        %v6720 = vcombine.low %v6355, %v6356
        %v6722 = vunpack.c.l.s4 1983009808
        %v6723 = vunpack.c.0.s8 %v6722
        %v6724 = vlaneseq
        %v6725 = vshrl.u32 %v6724, 7
        %v6726 = vsub.s32 %v6723, %v6725
        %v6727 = vrot.slane %v6719, %v6726
        %v6729 = vunpack.c.l.s4 1983009808
        %v6730 = vunpack.c.0.s8 %v6729
        %v6731 = vlaneseq
        %v6732 = vshrl.u32 %v6731, 7
        %v6733 = vsub.s32 %v6730, %v6732
        %v6734 = vrot.slane %v6720, %v6733
        %v6735 = vcombine.low %v6727, %v6734
        %v6736 = vcombine.low %v6357, %v6358
        %v6737 = vcombine.low %v6359, %v6360
        %v6739 = vunpack.c.l.s4 1983009808
        %v6740 = vunpack.c.0.s8 %v6739
        %v6741 = vlaneseq
        %v6742 = vshrl.u32 %v6741, 7
        %v6743 = vsub.s32 %v6740, %v6742
        %v6744 = vrot.slane %v6736, %v6743
        %v6746 = vunpack.c.l.s4 1983009808
        %v6747 = vunpack.c.0.s8 %v6746
        %v6748 = vlaneseq
        %v6749 = vshrl.u32 %v6748, 7
        %v6750 = vsub.s32 %v6747, %v6749
        %v6751 = vrot.slane %v6737, %v6750
        %v6752 = vcombine.low %v6744, %v6751
        %v6753 = vcombine.low %v6361, %v6362
        %v6754 = vcombine.low %v6363, %v6364
        %v6756 = vunpack.c.l.s4 1983009808
        %v6757 = vunpack.c.0.s8 %v6756
        %v6758 = vlaneseq
        %v6759 = vshrl.u32 %v6758, 7
        %v6760 = vsub.s32 %v6757, %v6759
        %v6761 = vrot.slane %v6753, %v6760
        %v6763 = vunpack.c.l.s4 1983009808
        %v6764 = vunpack.c.0.s8 %v6763
        %v6765 = vlaneseq
        %v6766 = vshrl.u32 %v6765, 7
        %v6767 = vsub.s32 %v6764, %v6766
        %v6768 = vrot.slane %v6754, %v6767
        %v6769 = vcombine.low %v6761, %v6768
        %v6770 = vcombine.low %v6365, %v6366
        %v6771 = vcombine.low %v6367, %v6368
        %v6773 = vunpack.c.l.s4 1983009808
        %v6774 = vunpack.c.0.s8 %v6773
        %v6775 = vlaneseq
        %v6776 = vshrl.u32 %v6775, 7
        %v6777 = vsub.s32 %v6774, %v6776
        %v6778 = vrot.slane %v6770, %v6777
        %v6780 = vunpack.c.l.s4 1983009808
        %v6781 = vunpack.c.0.s8 %v6780
        %v6782 = vlaneseq
        %v6783 = vshrl.u32 %v6782, 7
        %v6784 = vsub.s32 %v6781, %v6783
        %v6785 = vrot.slane %v6771, %v6784
        %v6786 = vcombine.low %v6778, %v6785
        %v6787 = vcombine.low %v6369, %v6370
        %v6788 = vcombine.low %v6371, %v6372
        %v6790 = vunpack.c.l.s4 1983009808
        %v6791 = vunpack.c.0.s8 %v6790
        %v6792 = vlaneseq
        %v6793 = vshrl.u32 %v6792, 7
        %v6794 = vsub.s32 %v6791, %v6793
        %v6795 = vrot.slane %v6787, %v6794
        %v6797 = vunpack.c.l.s4 1983009808
        %v6798 = vunpack.c.0.s8 %v6797
        %v6799 = vlaneseq
        %v6800 = vshrl.u32 %v6799, 7
        %v6801 = vsub.s32 %v6798, %v6800
        %v6802 = vrot.slane %v6788, %v6801
        %v6803 = vcombine.low %v6795, %v6802
        %v6804 = vcombine.low %v6373, %v6374
        %v6805 = vcombine.low %v6375, %v6376
        %v6807 = vunpack.c.l.s4 1983009808
        %v6808 = vunpack.c.0.s8 %v6807
        %v6809 = vlaneseq
        %v6810 = vshrl.u32 %v6809, 7
        %v6811 = vsub.s32 %v6808, %v6810
        %v6812 = vrot.slane %v6804, %v6811
        %v6814 = vunpack.c.l.s4 1983009808
        %v6815 = vunpack.c.0.s8 %v6814
        %v6816 = vlaneseq
        %v6817 = vshrl.u32 %v6816, 7
        %v6818 = vsub.s32 %v6815, %v6817
        %v6819 = vrot.slane %v6805, %v6818
        %v6820 = vcombine.low %v6812, %v6819
        %v6821 = vcombine.low %v6377, %v6378
        %v6822 = vcombine.low %v6379, %v6380
        %v6824 = vunpack.c.l.s4 1983009808
        %v6825 = vunpack.c.0.s8 %v6824
        %v6826 = vlaneseq
        %v6827 = vshrl.u32 %v6826, 7
        %v6828 = vsub.s32 %v6825, %v6827
        %v6829 = vrot.slane %v6821, %v6828
        %v6831 = vunpack.c.l.s4 1983009808
        %v6832 = vunpack.c.0.s8 %v6831
        %v6833 = vlaneseq
        %v6834 = vshrl.u32 %v6833, 7
        %v6835 = vsub.s32 %v6832, %v6834
        %v6836 = vrot.slane %v6822, %v6835
        %v6837 = vcombine.low %v6829, %v6836
        %v6838 = vcombine.low %v6381, %v6382
        %v6839 = vcombine.low %v6383, %v6384
        %v6841 = vunpack.c.l.s4 1983009808
        %v6842 = vunpack.c.0.s8 %v6841
        %v6843 = vlaneseq
        %v6844 = vshrl.u32 %v6843, 7
        %v6845 = vsub.s32 %v6842, %v6844
        %v6846 = vrot.slane %v6838, %v6845
        %v6848 = vunpack.c.l.s4 1983009808
        %v6849 = vunpack.c.0.s8 %v6848
        %v6850 = vlaneseq
        %v6851 = vshrl.u32 %v6850, 7
        %v6852 = vsub.s32 %v6849, %v6851
        %v6853 = vrot.slane %v6839, %v6852
        %v6854 = vcombine.low %v6846, %v6853
        %v6855 = vcombine.low %v6385, %v6386
        %v6856 = vcombine.low %v6387, %v6388
        %v6858 = vunpack.c.l.s4 1983009808
        %v6859 = vunpack.c.0.s8 %v6858
        %v6860 = vlaneseq
        %v6861 = vshrl.u32 %v6860, 7
        %v6862 = vsub.s32 %v6859, %v6861
        %v6863 = vrot.slane %v6855, %v6862
        %v6865 = vunpack.c.l.s4 1983009808
        %v6866 = vunpack.c.0.s8 %v6865
        %v6867 = vlaneseq
        %v6868 = vshrl.u32 %v6867, 7
        %v6869 = vsub.s32 %v6866, %v6868
        %v6870 = vrot.slane %v6856, %v6869
        %v6871 = vcombine.low %v6863, %v6870
        %v6872 = vcombine.low %v6389, %v6390
        %v6873 = vcombine.low %v6391, %v6392
        %v6875 = vunpack.c.l.s4 1983009808
        %v6876 = vunpack.c.0.s8 %v6875
        %v6877 = vlaneseq
        %v6878 = vshrl.u32 %v6877, 7
        %v6879 = vsub.s32 %v6876, %v6878
        %v6880 = vrot.slane %v6872, %v6879
        %v6882 = vunpack.c.l.s4 1983009808
        %v6883 = vunpack.c.0.s8 %v6882
        %v6884 = vlaneseq
        %v6885 = vshrl.u32 %v6884, 7
        %v6886 = vsub.s32 %v6883, %v6885
        %v6887 = vrot.slane %v6873, %v6886
        %v6888 = vcombine.low %v6880, %v6887
        %v6889 = vcombine.low %v6393, %v6394
        %v6890 = vcombine.low %v6395, %v6396
        %v6892 = vunpack.c.l.s4 1983009808
        %v6893 = vunpack.c.0.s8 %v6892
        %v6894 = vlaneseq
        %v6895 = vshrl.u32 %v6894, 7
        %v6896 = vsub.s32 %v6893, %v6895
        %v6897 = vrot.slane %v6889, %v6896
        %v6899 = vunpack.c.l.s4 1983009808
        %v6900 = vunpack.c.0.s8 %v6899
        %v6901 = vlaneseq
        %v6902 = vshrl.u32 %v6901, 7
        %v6903 = vsub.s32 %v6900, %v6902
        %v6904 = vrot.slane %v6890, %v6903
        %v6905 = vcombine.low %v6897, %v6904
        %v6906 = vcombine.low %v6397, %v6398
        %v6907 = vcombine.low %v6399, %v6400
        %v6909 = vunpack.c.l.s4 1983009808
        %v6910 = vunpack.c.0.s8 %v6909
        %v6911 = vlaneseq
        %v6912 = vshrl.u32 %v6911, 7
        %v6913 = vsub.s32 %v6910, %v6912
        %v6914 = vrot.slane %v6906, %v6913
        %v6916 = vunpack.c.l.s4 1983009808
        %v6917 = vunpack.c.0.s8 %v6916
        %v6918 = vlaneseq
        %v6919 = vshrl.u32 %v6918, 7
        %v6920 = vsub.s32 %v6917, %v6919
        %v6921 = vrot.slane %v6907, %v6920
        %v6922 = vcombine.low %v6914, %v6921
        %v6923 = vcombine.low %v6401, %v6402
        %v6924 = vcombine.low %v6403, %v6404
        %v6926 = vunpack.c.l.s4 1983009808
        %v6927 = vunpack.c.0.s8 %v6926
        %v6928 = vlaneseq
        %v6929 = vshrl.u32 %v6928, 7
        %v6930 = vsub.s32 %v6927, %v6929
        %v6931 = vrot.slane %v6923, %v6930
        %v6933 = vunpack.c.l.s4 1983009808
        %v6934 = vunpack.c.0.s8 %v6933
        %v6935 = vlaneseq
        %v6936 = vshrl.u32 %v6935, 7
        %v6937 = vsub.s32 %v6934, %v6936
        %v6938 = vrot.slane %v6924, %v6937
        %v6939 = vcombine.low %v6931, %v6938
        %v6940 = vcombine.low %v6405, %v6406
        %v6941 = vcombine.low %v6407, %v6408
        %v6943 = vunpack.c.l.s4 1983009808
        %v6944 = vunpack.c.0.s8 %v6943
        %v6945 = vlaneseq
        %v6946 = vshrl.u32 %v6945, 7
        %v6947 = vsub.s32 %v6944, %v6946
        %v6948 = vrot.slane %v6940, %v6947
        %v6950 = vunpack.c.l.s4 1983009808
        %v6951 = vunpack.c.0.s8 %v6950
        %v6952 = vlaneseq
        %v6953 = vshrl.u32 %v6952, 7
        %v6954 = vsub.s32 %v6951, %v6953
        %v6955 = vrot.slane %v6941, %v6954
        %v6956 = vcombine.low %v6948, %v6955
        %v6957 = vcombine.low %v6409, %v6410
        %v6958 = vcombine.low %v6411, %v6412
        %v6960 = vunpack.c.l.s4 1983009808
        %v6961 = vunpack.c.0.s8 %v6960
        %v6962 = vlaneseq
        %v6963 = vshrl.u32 %v6962, 7
        %v6964 = vsub.s32 %v6961, %v6963
        %v6965 = vrot.slane %v6957, %v6964
        %v6967 = vunpack.c.l.s4 1983009808
        %v6968 = vunpack.c.0.s8 %v6967
        %v6969 = vlaneseq
        %v6970 = vshrl.u32 %v6969, 7
        %v6971 = vsub.s32 %v6968, %v6970
        %v6972 = vrot.slane %v6958, %v6971
        %v6973 = vcombine.low %v6965, %v6972
        %v6974 = vcombine.low %v6413, %v6414
        %v6975 = vcombine.low %v6415, %v6416
        %v6977 = vunpack.c.l.s4 1983009808
        %v6978 = vunpack.c.0.s8 %v6977
        %v6979 = vlaneseq
        %v6980 = vshrl.u32 %v6979, 7
        %v6981 = vsub.s32 %v6978, %v6980
        %v6982 = vrot.slane %v6974, %v6981
        %v6984 = vunpack.c.l.s4 1983009808
        %v6985 = vunpack.c.0.s8 %v6984
        %v6986 = vlaneseq
        %v6987 = vshrl.u32 %v6986, 7
        %v6988 = vsub.s32 %v6985, %v6987
        %v6989 = vrot.slane %v6975, %v6988
        %v6990 = vcombine.low %v6982, %v6989
        %v6991 = vcombine.low %v6417, %v6418
        %v6992 = vcombine.low %v6419, %v6420
        %v6994 = vunpack.c.l.s4 1983009808
        %v6995 = vunpack.c.0.s8 %v6994
        %v6996 = vlaneseq
        %v6997 = vshrl.u32 %v6996, 7
        %v6998 = vsub.s32 %v6995, %v6997
        %v6999 = vrot.slane %v6991, %v6998
        %v7001 = vunpack.c.l.s4 1983009808
        %v7002 = vunpack.c.0.s8 %v7001
        %v7003 = vlaneseq
        %v7004 = vshrl.u32 %v7003, 7
        %v7005 = vsub.s32 %v7002, %v7004
        %v7006 = vrot.slane %v6992, %v7005
        %v7007 = vcombine.low %v6999, %v7006
        %v7008 = vcombine.low %v6421, %v6422
        %v7009 = vcombine.low %v6423, %v6424
        %v7011 = vunpack.c.l.s4 1983009808
        %v7012 = vunpack.c.0.s8 %v7011
        %v7013 = vlaneseq
        %v7014 = vshrl.u32 %v7013, 7
        %v7015 = vsub.s32 %v7012, %v7014
        %v7016 = vrot.slane %v7008, %v7015
        %v7018 = vunpack.c.l.s4 1983009808
        %v7019 = vunpack.c.0.s8 %v7018
        %v7020 = vlaneseq
        %v7021 = vshrl.u32 %v7020, 7
        %v7022 = vsub.s32 %v7019, %v7021
        %v7023 = vrot.slane %v7009, %v7022
        %v7024 = vcombine.low %v7016, %v7023
        %v7025 = vcombine.low %v6425, %v6426
        %v7026 = vcombine.low %v6427, %v6428
        %v7028 = vunpack.c.l.s4 1983009808
        %v7029 = vunpack.c.0.s8 %v7028
        %v7030 = vlaneseq
        %v7031 = vshrl.u32 %v7030, 7
        %v7032 = vsub.s32 %v7029, %v7031
        %v7033 = vrot.slane %v7025, %v7032
        %v7035 = vunpack.c.l.s4 1983009808
        %v7036 = vunpack.c.0.s8 %v7035
        %v7037 = vlaneseq
        %v7038 = vshrl.u32 %v7037, 7
        %v7039 = vsub.s32 %v7036, %v7038
        %v7040 = vrot.slane %v7026, %v7039
        %v7041 = vcombine.low %v7033, %v7040
        %v7042 = vcombine.low %v6429, %v6430
        %v7043 = vcombine.low %v6431, %v6432
        %v7045 = vunpack.c.l.s4 1983009808
        %v7046 = vunpack.c.0.s8 %v7045
        %v7047 = vlaneseq
        %v7048 = vshrl.u32 %v7047, 7
        %v7049 = vsub.s32 %v7046, %v7048
        %v7050 = vrot.slane %v7042, %v7049
        %v7052 = vunpack.c.l.s4 1983009808
        %v7053 = vunpack.c.0.s8 %v7052
        %v7054 = vlaneseq
        %v7055 = vshrl.u32 %v7054, 7
        %v7056 = vsub.s32 %v7053, %v7055
        %v7057 = vrot.slane %v7043, %v7056
        %v7058 = vcombine.low %v7050, %v7057
        %v7059 = vcombine.low %v6433, %v6434
        %v7060 = vcombine.low %v6435, %v6436
        %v7062 = vunpack.c.l.s4 1983009808
        %v7063 = vunpack.c.0.s8 %v7062
        %v7064 = vlaneseq
        %v7065 = vshrl.u32 %v7064, 7
        %v7066 = vsub.s32 %v7063, %v7065
        %v7067 = vrot.slane %v7059, %v7066
        %v7069 = vunpack.c.l.s4 1983009808
        %v7070 = vunpack.c.0.s8 %v7069
        %v7071 = vlaneseq
        %v7072 = vshrl.u32 %v7071, 7
        %v7073 = vsub.s32 %v7070, %v7072
        %v7074 = vrot.slane %v7060, %v7073
        %v7075 = vcombine.low %v7067, %v7074
        %v7076 = vcombine.low %v6437, %v6438
        %v7077 = vcombine.low %v6439, %v6440
        %v7079 = vunpack.c.l.s4 1983009808
        %v7080 = vunpack.c.0.s8 %v7079
        %v7081 = vlaneseq
        %v7082 = vshrl.u32 %v7081, 7
        %v7083 = vsub.s32 %v7080, %v7082
        %v7084 = vrot.slane %v7076, %v7083
        %v7086 = vunpack.c.l.s4 1983009808
        %v7087 = vunpack.c.0.s8 %v7086
        %v7088 = vlaneseq
        %v7089 = vshrl.u32 %v7088, 7
        %v7090 = vsub.s32 %v7087, %v7089
        %v7091 = vrot.slane %v7077, %v7090
        %v7092 = vcombine.low %v7084, %v7091
        %v7093 = vcombine.low %v6441, %v6442
        %v7094 = vcombine.low %v6443, %v6444
        %v7096 = vunpack.c.l.s4 1983009808
        %v7097 = vunpack.c.0.s8 %v7096
        %v7098 = vlaneseq
        %v7099 = vshrl.u32 %v7098, 7
        %v7100 = vsub.s32 %v7097, %v7099
        %v7101 = vrot.slane %v7093, %v7100
        %v7103 = vunpack.c.l.s4 1983009808
        %v7104 = vunpack.c.0.s8 %v7103
        %v7105 = vlaneseq
        %v7106 = vshrl.u32 %v7105, 7
        %v7107 = vsub.s32 %v7104, %v7106
        %v7108 = vrot.slane %v7094, %v7107
        %v7109 = vcombine.low %v7101, %v7108
        %v7110 = vcombine.low %v6445, %v6446
        %v7111 = vcombine.low %v6447, %v6448
        %v7113 = vunpack.c.l.s4 1983009808
        %v7114 = vunpack.c.0.s8 %v7113
        %v7115 = vlaneseq
        %v7116 = vshrl.u32 %v7115, 7
        %v7117 = vsub.s32 %v7114, %v7116
        %v7118 = vrot.slane %v7110, %v7117
        %v7120 = vunpack.c.l.s4 1983009808
        %v7121 = vunpack.c.0.s8 %v7120
        %v7122 = vlaneseq
        %v7123 = vshrl.u32 %v7122, 7
        %v7124 = vsub.s32 %v7121, %v7123
        %v7125 = vrot.slane %v7111, %v7124
        %v7126 = vcombine.low %v7118, %v7125
        %v7127 = vcombine.low %v6449, %v6450
        %v7128 = vcombine.low %v6451, %v6452
        %v7130 = vunpack.c.l.s4 1983009808
        %v7131 = vunpack.c.0.s8 %v7130
        %v7132 = vlaneseq
        %v7133 = vshrl.u32 %v7132, 7
        %v7134 = vsub.s32 %v7131, %v7133
        %v7135 = vrot.slane %v7127, %v7134
        %v7137 = vunpack.c.l.s4 1983009808
        %v7138 = vunpack.c.0.s8 %v7137
        %v7139 = vlaneseq
        %v7140 = vshrl.u32 %v7139, 7
        %v7141 = vsub.s32 %v7138, %v7140
        %v7142 = vrot.slane %v7128, %v7141
        %v7143 = vcombine.low %v7135, %v7142
        %v7144 = vcombine.low %v6453, %v6454
        %v7145 = vcombine.low %v6455, %v6456
        %v7147 = vunpack.c.l.s4 1983009808
        %v7148 = vunpack.c.0.s8 %v7147
        %v7149 = vlaneseq
        %v7150 = vshrl.u32 %v7149, 7
        %v7151 = vsub.s32 %v7148, %v7150
        %v7152 = vrot.slane %v7144, %v7151
        %v7154 = vunpack.c.l.s4 1983009808
        %v7155 = vunpack.c.0.s8 %v7154
        %v7156 = vlaneseq
        %v7157 = vshrl.u32 %v7156, 7
        %v7158 = vsub.s32 %v7155, %v7157
        %v7159 = vrot.slane %v7145, %v7158
        %v7160 = vcombine.low %v7152, %v7159
        %7225 = vrot.lane.b32.xlu0 %v6457, 8
        %v7226 = vpop.permute.xlu0 %7225
        %7227 = vrot.lane.b32.xlu0 %v6458, 8
        %v7228 = vpop.permute.xlu0 %7227
        %7229 = vrot.lane.b32.xlu0 %v6459, 8
        %v7230 = vpop.permute.xlu0 %7229
        %7231 = vrot.lane.b32.xlu0 %v6460, 8
        %v7232 = vpop.permute.xlu0 %7231
        %7233 = vrot.lane.b32.xlu0 %v6461, 8
        %v7234 = vpop.permute.xlu0 %7233
        %7235 = vrot.lane.b32.xlu0 %v6462, 8
        %v7236 = vpop.permute.xlu0 %7235
        %7237 = vrot.lane.b32.xlu0 %v6463, 8
        %v7238 = vpop.permute.xlu0 %7237
        %7239 = vrot.lane.b32.xlu0 %v6464, 8
        %v7240 = vpop.permute.xlu0 %7239
        %7241 = vrot.lane.b32.xlu0 %v6465, 8
        %v7242 = vpop.permute.xlu0 %7241
        %7243 = vrot.lane.b32.xlu0 %v6466, 8
        %v7244 = vpop.permute.xlu0 %7243
        %7245 = vrot.lane.b32.xlu0 %v6467, 8
        %v7246 = vpop.permute.xlu0 %7245
        %7247 = vrot.lane.b32.xlu0 %v6468, 8
        %v7248 = vpop.permute.xlu0 %7247
        %7249 = vrot.lane.b32.xlu0 %v6469, 8
        %v7250 = vpop.permute.xlu0 %7249
        %7251 = vrot.lane.b32.xlu0 %v6470, 8
        %v7252 = vpop.permute.xlu0 %7251
        %7253 = vrot.lane.b32.xlu0 %v6471, 8
        %v7254 = vpop.permute.xlu0 %7253
        %7255 = vrot.lane.b32.xlu0 %v6472, 8
        %v7256 = vpop.permute.xlu0 %7255
        %7257 = vrot.lane.b32.xlu0 %v6473, 8
        %v7258 = vpop.permute.xlu0 %7257
        %7259 = vrot.lane.b32.xlu0 %v6474, 8
        %v7260 = vpop.permute.xlu0 %7259
        %7261 = vrot.lane.b32.xlu0 %v6475, 8
        %v7262 = vpop.permute.xlu0 %7261
        %7263 = vrot.lane.b32.xlu0 %v6476, 8
        %v7264 = vpop.permute.xlu0 %7263
        %7265 = vrot.lane.b32.xlu0 %v6477, 8
        %v7266 = vpop.permute.xlu0 %7265
        %7267 = vrot.lane.b32.xlu0 %v6478, 8
        %v7268 = vpop.permute.xlu0 %7267
        %7269 = vrot.lane.b32.xlu0 %v6479, 8
        %v7270 = vpop.permute.xlu0 %7269
        %7271 = vrot.lane.b32.xlu0 %v6480, 8
        %v7272 = vpop.permute.xlu0 %7271
        %7273 = vrot.lane.b32.xlu0 %v6481, 8
        %v7274 = vpop.permute.xlu0 %7273
        %7275 = vrot.lane.b32.xlu0 %v6482, 8
        %v7276 = vpop.permute.xlu0 %7275
        %7277 = vrot.lane.b32.xlu0 %v6483, 8
        %v7278 = vpop.permute.xlu0 %7277
        %7279 = vrot.lane.b32.xlu0 %v6484, 8
        %v7280 = vpop.permute.xlu0 %7279
        %7281 = vrot.lane.b32.xlu0 %v6485, 8
        %v7282 = vpop.permute.xlu0 %7281
        %7283 = vrot.lane.b32.xlu0 %v6486, 8
        %v7284 = vpop.permute.xlu0 %7283
        %7285 = vrot.lane.b32.xlu0 %v6487, 8
        %v7286 = vpop.permute.xlu0 %7285
        %7287 = vrot.lane.b32.xlu0 %v6488, 8
        %v7288 = vpop.permute.xlu0 %7287
        %vm7321 = vcmask 64512
        %v7322 = vsel %vm7321, %v6633, %v7226
        %v7323 = vsel %vm7321, %v6650, %v7228
        %v7324 = vsel %vm7321, %v6667, %v7230
        %v7325 = vsel %vm7321, %v6684, %v7232
        %v7326 = vsel %vm7321, %v6701, %v7234
        %v7327 = vsel %vm7321, %v6718, %v7236
        %v7328 = vsel %vm7321, %v6735, %v7238
        %v7329 = vsel %vm7321, %v6752, %v7240
        %v7330 = vsel %vm7321, %v6769, %v7242
        %v7331 = vsel %vm7321, %v6786, %v7244
        %v7332 = vsel %vm7321, %v6803, %v7246
        %v7333 = vsel %vm7321, %v6820, %v7248
        %v7334 = vsel %vm7321, %v6837, %v7250
        %v7335 = vsel %vm7321, %v6854, %v7252
        %v7336 = vsel %vm7321, %v6871, %v7254
        %v7337 = vsel %vm7321, %v6888, %v7256
        %v7338 = vsel %vm7321, %v6905, %v7258
        %v7339 = vsel %vm7321, %v6922, %v7260
        %v7340 = vsel %vm7321, %v6939, %v7262
        %v7341 = vsel %vm7321, %v6956, %v7264
        %v7342 = vsel %vm7321, %v6973, %v7266
        %v7343 = vsel %vm7321, %v6990, %v7268
        %v7344 = vsel %vm7321, %v7007, %v7270
        %v7345 = vsel %vm7321, %v7024, %v7272
        %v7346 = vsel %vm7321, %v7041, %v7274
        %v7347 = vsel %vm7321, %v7058, %v7276
        %v7348 = vsel %vm7321, %v7075, %v7278
        %v7349 = vsel %vm7321, %v7092, %v7280
        %v7350 = vsel %vm7321, %v7109, %v7282
        %v7351 = vsel %vm7321, %v7126, %v7284
        %v7352 = vsel %vm7321, %v7143, %v7286
        %v7353 = vsel %vm7321, %v7160, %v7288
        %v7354 = vld [vmem:[%s5] sm:$0xff]
        %v7355 = vld [vmem:[%s5 + $0x8] sm:$0xff]
        %v7356 = vld [vmem:[%s5 + $0x10] sm:$0xff]
        %v7357 = vld [vmem:[%s5 + $0x18] sm:$0xff]
        %v7358 = vld [vmem:[%s5 + $0x20] sm:$0xff]
        %v7359 = vld [vmem:[%s5 + $0x28] sm:$0xff]
        %v7360 = vld [vmem:[%s5 + $0x30] sm:$0xff]
        %v7361 = vld [vmem:[%s5 + $0x38] sm:$0xff]
        %v7362 = vld [vmem:[%s5 + $0x40] sm:$0xff]
        %v7363 = vld [vmem:[%s5 + $0x48] sm:$0xff]
        %v7364 = vld [vmem:[%s5 + $0x50] sm:$0xff]
        %v7365 = vld [vmem:[%s5 + $0x58] sm:$0xff]
        %v7366 = vld [vmem:[%s5 + $0x60] sm:$0xff]
        %v7367 = vld [vmem:[%s5 + $0x68] sm:$0xff]
        %v7368 = vld [vmem:[%s5 + $0x70] sm:$0xff]
        %v7369 = vld [vmem:[%s5 + $0x78] sm:$0xff]
        %v7370 = vld [vmem:[%s5 + $0x80] sm:$0xff]
        %v7371 = vld [vmem:[%s5 + $0x88] sm:$0xff]
        %v7372 = vld [vmem:[%s6] sm:$0x1]
        %v7405 = vsel %vm361, %v1330, %v1330
        %v7406 = vrot.slane %v7322, 7
        %v7407 = vrot.slane %v7323, 7
        %v7408 = vsel %vm361, %v7406, %v7407
        %v7409 = vrot.slane %v7324, 7
        %v7410 = vrot.slane %v7325, 7
        %v7411 = vsel %vm361, %v7409, %v7410
        %v7412 = vrot.slane %v7326, 7
        %v7413 = vrot.slane %v7327, 7
        %v7414 = vsel %vm361, %v7412, %v7413
        %v7415 = vrot.slane %v7328, 7
        %v7416 = vrot.slane %v7329, 7
        %v7417 = vsel %vm361, %v7415, %v7416
        %v7418 = vrot.slane %v7330, 7
        %v7419 = vrot.slane %v7331, 7
        %v7420 = vsel %vm361, %v7418, %v7419
        %v7421 = vrot.slane %v7332, 7
        %v7422 = vrot.slane %v7333, 7
        %v7423 = vsel %vm361, %v7421, %v7422
        %v7424 = vrot.slane %v7334, 7
        %v7425 = vrot.slane %v7335, 7
        %v7426 = vsel %vm361, %v7424, %v7425
        %v7427 = vrot.slane %v7336, 7
        %v7428 = vrot.slane %v7337, 7
        %v7429 = vsel %vm361, %v7427, %v7428
        %v7430 = vrot.slane %v7338, 7
        %v7431 = vrot.slane %v7339, 7
        %v7432 = vsel %vm361, %v7430, %v7431
        %v7433 = vrot.slane %v7340, 7
        %v7434 = vrot.slane %v7341, 7
        %v7435 = vsel %vm361, %v7433, %v7434
        %v7436 = vrot.slane %v7342, 7
        %v7437 = vrot.slane %v7343, 7
        %v7438 = vsel %vm361, %v7436, %v7437
        %v7439 = vrot.slane %v7344, 7
        %v7440 = vrot.slane %v7345, 7
        %v7441 = vsel %vm361, %v7439, %v7440
        %v7442 = vrot.slane %v7346, 7
        %v7443 = vrot.slane %v7347, 7
        %v7444 = vsel %vm361, %v7442, %v7443
        %v7445 = vrot.slane %v7348, 7
        %v7446 = vrot.slane %v7349, 7
        %v7447 = vsel %vm361, %v7445, %v7446
        %v7448 = vrot.slane %v7350, 7
        %v7449 = vrot.slane %v7351, 7
        %v7450 = vsel %vm361, %v7448, %v7449
        %v7451 = vrot.slane %v7352, 7
        %v7452 = vrot.slane %v7353, 7
        %v7453 = vsel %vm361, %v7451, %v7452
        %v7502 = vsel %vm361, 0.0, %v7406
        %v7503 = vsel %vm361, 0.0, %v7409
        %v7504 = vsel %vm361, 0.0, %v7412
        %v7505 = vsel %vm361, 0.0, %v7415
        %v7506 = vsel %vm361, 0.0, %v7418
        %v7507 = vsel %vm361, 0.0, %v7421
        %v7508 = vsel %vm361, 0.0, %v7424
        %v7509 = vsel %vm361, 0.0, %v7427
        %v7510 = vsel %vm361, 0.0, %v7430
        %v7511 = vsel %vm361, 0.0, %v7433
        %v7512 = vsel %vm361, 0.0, %v7436
        %v7513 = vsel %vm361, 0.0, %v7439
        %v7514 = vsel %vm361, 0.0, %v7442
        %v7515 = vsel %vm361, 0.0, %v7445
        %v7516 = vsel %vm361, 0.0, %v7448
        %v7517 = vsel %vm361, 0.0, %v7451
        %v7518 = vsel %vm361, %v7407, 0.0
        %v7519 = vsel %vm361, %v7410, 0.0
        %v7520 = vsel %vm361, %v7413, 0.0
        %v7521 = vsel %vm361, %v7416, 0.0
        %v7522 = vsel %vm361, %v7419, 0.0
        %v7523 = vsel %vm361, %v7422, 0.0
        %v7524 = vsel %vm361, %v7425, 0.0
        %v7525 = vsel %vm361, %v7428, 0.0
        %v7526 = vsel %vm361, %v7431, 0.0
        %v7527 = vsel %vm361, %v7434, 0.0
        %v7528 = vsel %vm361, %v7437, 0.0
        %v7529 = vsel %vm361, %v7440, 0.0
        %v7530 = vsel %vm361, %v7443, 0.0
        %v7531 = vsel %vm361, %v7446, 0.0
        %v7532 = vsel %vm361, %v7449, 0.0
        %v7533 = vsel %vm361, %v7452, 0.0
        %v7564 = vrot.slane %v7405, 1
        %v7565 = vsel %vm1382, %v1383, %v7564
        %v7566 = vsel %vm1382, %v7564, %v1384
        %v7567 = vrot.slane %v7502, 1
        %v7568 = vrot.slane %v7408, 1
        %v7569 = vsel %vm1382, %v7567, %v7568
        %v7570 = vrot.slane %v7518, 1
        %v7571 = vsel %vm1382, %v7568, %v7570
        %v7572 = vrot.slane %v7503, 1
        %v7573 = vrot.slane %v7411, 1
        %v7574 = vsel %vm1382, %v7572, %v7573
        %v7575 = vrot.slane %v7519, 1
        %v7576 = vsel %vm1382, %v7573, %v7575
        %v7577 = vrot.slane %v7504, 1
        %v7578 = vrot.slane %v7414, 1
        %v7579 = vsel %vm1382, %v7577, %v7578
        %v7580 = vrot.slane %v7520, 1
        %v7581 = vsel %vm1382, %v7578, %v7580
        %v7582 = vrot.slane %v7505, 1
        %v7583 = vrot.slane %v7417, 1
        %v7584 = vsel %vm1382, %v7582, %v7583
        %v7585 = vrot.slane %v7521, 1
        %v7586 = vsel %vm1382, %v7583, %v7585
        %v7587 = vrot.slane %v7506, 1
        %v7588 = vrot.slane %v7420, 1
        %v7589 = vsel %vm1382, %v7587, %v7588
        %v7590 = vrot.slane %v7522, 1
        %v7591 = vsel %vm1382, %v7588, %v7590
        %v7592 = vrot.slane %v7507, 1
        %v7593 = vrot.slane %v7423, 1
        %v7594 = vsel %vm1382, %v7592, %v7593
        %v7595 = vrot.slane %v7523, 1
        %v7596 = vsel %vm1382, %v7593, %v7595
        %v7597 = vrot.slane %v7508, 1
        %v7598 = vrot.slane %v7426, 1
        %v7599 = vsel %vm1382, %v7597, %v7598
        %v7600 = vrot.slane %v7524, 1
        %v7601 = vsel %vm1382, %v7598, %v7600
        %v7602 = vrot.slane %v7509, 1
        %v7603 = vrot.slane %v7429, 1
        %v7604 = vsel %vm1382, %v7602, %v7603
        %v7605 = vrot.slane %v7525, 1
        %v7606 = vsel %vm1382, %v7603, %v7605
        %v7607 = vrot.slane %v7510, 1
        %v7608 = vrot.slane %v7432, 1
        %v7609 = vsel %vm1382, %v7607, %v7608
        %v7610 = vrot.slane %v7526, 1
        %v7611 = vsel %vm1382, %v7608, %v7610
        %v7612 = vrot.slane %v7511, 1
        %v7613 = vrot.slane %v7435, 1
        %v7614 = vsel %vm1382, %v7612, %v7613
        %v7615 = vrot.slane %v7527, 1
        %v7616 = vsel %vm1382, %v7613, %v7615
        %v7617 = vrot.slane %v7512, 1
        %v7618 = vrot.slane %v7438, 1
        %v7619 = vsel %vm1382, %v7617, %v7618
        %v7620 = vrot.slane %v7528, 1
        %v7621 = vsel %vm1382, %v7618, %v7620
        %v7622 = vrot.slane %v7513, 1
        %v7623 = vrot.slane %v7441, 1
        %v7624 = vsel %vm1382, %v7622, %v7623
        %v7625 = vrot.slane %v7529, 1
        %v7626 = vsel %vm1382, %v7623, %v7625
        %v7627 = vrot.slane %v7514, 1
        %v7628 = vrot.slane %v7444, 1
        %v7629 = vsel %vm1382, %v7627, %v7628
        %v7630 = vrot.slane %v7530, 1
        %v7631 = vsel %vm1382, %v7628, %v7630
        %v7632 = vrot.slane %v7515, 1
        %v7633 = vrot.slane %v7447, 1
        %v7634 = vsel %vm1382, %v7632, %v7633
        %v7635 = vrot.slane %v7531, 1
        %v7636 = vsel %vm1382, %v7633, %v7635
        %v7637 = vrot.slane %v7516, 1
        %v7638 = vrot.slane %v7450, 1
        %v7639 = vsel %vm1382, %v7637, %v7638
        %v7640 = vrot.slane %v7532, 1
        %v7641 = vsel %vm1382, %v7638, %v7640
        %7642 = vrot.lane.b32.xlu0 %v7565, 16
        %v7643 = vpop.permute.xlu0 %7642
        %7644 = vrot.lane.b32.xlu0 %v7566, 16
        %v7645 = vpop.permute.xlu0 %7644
        %7646 = vrot.lane.b32.xlu0 %v7569, 16
        %v7647 = vpop.permute.xlu0 %7646
        %7648 = vrot.lane.b32.xlu0 %v7571, 16
        %v7649 = vpop.permute.xlu0 %7648
        %7650 = vrot.lane.b32.xlu0 %v7574, 16
        %v7651 = vpop.permute.xlu0 %7650
        %7652 = vrot.lane.b32.xlu0 %v7576, 16
        %v7653 = vpop.permute.xlu0 %7652
        %7654 = vrot.lane.b32.xlu0 %v7579, 16
        %v7655 = vpop.permute.xlu0 %7654
        %7656 = vrot.lane.b32.xlu0 %v7581, 16
        %v7657 = vpop.permute.xlu0 %7656
        %7658 = vrot.lane.b32.xlu0 %v7584, 16
        %v7659 = vpop.permute.xlu0 %7658
        %7660 = vrot.lane.b32.xlu0 %v7586, 16
        %v7661 = vpop.permute.xlu0 %7660
        %7662 = vrot.lane.b32.xlu0 %v7589, 16
        %v7663 = vpop.permute.xlu0 %7662
        %7664 = vrot.lane.b32.xlu0 %v7591, 16
        %v7665 = vpop.permute.xlu0 %7664
        %7666 = vrot.lane.b32.xlu0 %v7594, 16
        %v7667 = vpop.permute.xlu0 %7666
        %7668 = vrot.lane.b32.xlu0 %v7596, 16
        %v7669 = vpop.permute.xlu0 %7668
        %7670 = vrot.lane.b32.xlu0 %v7599, 16
        %v7671 = vpop.permute.xlu0 %7670
        %7672 = vrot.lane.b32.xlu0 %v7601, 16
        %v7673 = vpop.permute.xlu0 %7672
        %7674 = vrot.lane.b32.xlu0 %v7604, 16
        %v7675 = vpop.permute.xlu0 %7674
        %7676 = vrot.lane.b32.xlu0 %v7606, 16
        %v7677 = vpop.permute.xlu0 %7676
        %7678 = vrot.lane.b32.xlu0 %v7609, 16
        %v7679 = vpop.permute.xlu0 %7678
        %7680 = vrot.lane.b32.xlu0 %v7611, 16
        %v7681 = vpop.permute.xlu0 %7680
        %7682 = vrot.lane.b32.xlu0 %v7614, 16
        %v7683 = vpop.permute.xlu0 %7682
        %7684 = vrot.lane.b32.xlu0 %v7616, 16
        %v7685 = vpop.permute.xlu0 %7684
        %7686 = vrot.lane.b32.xlu0 %v7619, 16
        %v7687 = vpop.permute.xlu0 %7686
        %7688 = vrot.lane.b32.xlu0 %v7621, 16
        %v7689 = vpop.permute.xlu0 %7688
        %7690 = vrot.lane.b32.xlu0 %v7624, 16
        %v7691 = vpop.permute.xlu0 %7690
        %7692 = vrot.lane.b32.xlu0 %v7626, 16
        %v7693 = vpop.permute.xlu0 %7692
        %7694 = vrot.lane.b32.xlu0 %v7629, 16
        %v7695 = vpop.permute.xlu0 %7694
        %7696 = vrot.lane.b32.xlu0 %v7631, 16
        %v7697 = vpop.permute.xlu0 %7696
        %7698 = vrot.lane.b32.xlu0 %v7634, 16
        %v7699 = vpop.permute.xlu0 %7698
        %7700 = vrot.lane.b32.xlu0 %v7636, 16
        %v7701 = vpop.permute.xlu0 %7700
        %7702 = vrot.lane.b32.xlu0 %v7639, 16
        %v7703 = vpop.permute.xlu0 %7702
        %7704 = vrot.lane.b32.xlu0 %v7641, 16
        %v7705 = vpop.permute.xlu0 %7704
        %v7738 = vrot.slane %v7405, 2
        %v7739 = vsel %vm1431, %v1432, %v7738
        %v7740 = vsel %vm1431, %v7738, %v1433
        %v7741 = vrot.slane %v7502, 2
        %v7742 = vrot.slane %v7408, 2
        %v7743 = vsel %vm1431, %v7741, %v7742
        %v7744 = vrot.slane %v7518, 2
        %v7745 = vsel %vm1431, %v7742, %v7744
        %v7746 = vrot.slane %v7503, 2
        %v7747 = vrot.slane %v7411, 2
        %v7748 = vsel %vm1431, %v7746, %v7747
        %v7749 = vrot.slane %v7519, 2
        %v7750 = vsel %vm1431, %v7747, %v7749
        %v7751 = vrot.slane %v7504, 2
        %v7752 = vrot.slane %v7414, 2
        %v7753 = vsel %vm1431, %v7751, %v7752
        %v7754 = vrot.slane %v7520, 2
        %v7755 = vsel %vm1431, %v7752, %v7754
        %v7756 = vrot.slane %v7505, 2
        %v7757 = vrot.slane %v7417, 2
        %v7758 = vsel %vm1431, %v7756, %v7757
        %v7759 = vrot.slane %v7521, 2
        %v7760 = vsel %vm1431, %v7757, %v7759
        %v7761 = vrot.slane %v7506, 2
        %v7762 = vrot.slane %v7420, 2
        %v7763 = vsel %vm1431, %v7761, %v7762
        %v7764 = vrot.slane %v7522, 2
        %v7765 = vsel %vm1431, %v7762, %v7764
        %v7766 = vrot.slane %v7507, 2
        %v7767 = vrot.slane %v7423, 2
        %v7768 = vsel %vm1431, %v7766, %v7767
        %v7769 = vrot.slane %v7523, 2
        %v7770 = vsel %vm1431, %v7767, %v7769
        %v7771 = vrot.slane %v7508, 2
        %v7772 = vrot.slane %v7426, 2
        %v7773 = vsel %vm1431, %v7771, %v7772
        %v7774 = vrot.slane %v7524, 2
        %v7775 = vsel %vm1431, %v7772, %v7774
        %v7776 = vrot.slane %v7509, 2
        %v7777 = vrot.slane %v7429, 2
        %v7778 = vsel %vm1431, %v7776, %v7777
        %v7779 = vrot.slane %v7525, 2
        %v7780 = vsel %vm1431, %v7777, %v7779
        %v7781 = vrot.slane %v7510, 2
        %v7782 = vrot.slane %v7432, 2
        %v7783 = vsel %vm1431, %v7781, %v7782
        %v7784 = vrot.slane %v7526, 2
        %v7785 = vsel %vm1431, %v7782, %v7784
        %v7786 = vrot.slane %v7511, 2
        %v7787 = vrot.slane %v7435, 2
        %v7788 = vsel %vm1431, %v7786, %v7787
        %v7789 = vrot.slane %v7527, 2
        %v7790 = vsel %vm1431, %v7787, %v7789
        %v7791 = vrot.slane %v7512, 2
        %v7792 = vrot.slane %v7438, 2
        %v7793 = vsel %vm1431, %v7791, %v7792
        %v7794 = vrot.slane %v7528, 2
        %v7795 = vsel %vm1431, %v7792, %v7794
        %v7796 = vrot.slane %v7513, 2
        %v7797 = vrot.slane %v7441, 2
        %v7798 = vsel %vm1431, %v7796, %v7797
        %v7799 = vrot.slane %v7529, 2
        %v7800 = vsel %vm1431, %v7797, %v7799
        %v7801 = vrot.slane %v7514, 2
        %v7802 = vrot.slane %v7444, 2
        %v7803 = vsel %vm1431, %v7801, %v7802
        %v7804 = vrot.slane %v7530, 2
        %v7805 = vsel %vm1431, %v7802, %v7804
        %v7806 = vrot.slane %v7515, 2
        %v7807 = vrot.slane %v7447, 2
        %v7808 = vsel %vm1431, %v7806, %v7807
        %v7809 = vrot.slane %v7531, 2
        %v7810 = vsel %vm1431, %v7807, %v7809
        %v7811 = vrot.slane %v7516, 2
        %v7812 = vrot.slane %v7450, 2
        %v7813 = vsel %vm1431, %v7811, %v7812
        %v7814 = vrot.slane %v7532, 2
        %v7815 = vsel %vm1431, %v7812, %v7814
        %7816 = vrot.lane.b32.xlu0 %v7739, 32
        %v7817 = vpop.permute.xlu0 %7816
        %7818 = vrot.lane.b32.xlu0 %v7740, 32
        %v7819 = vpop.permute.xlu0 %7818
        %7820 = vrot.lane.b32.xlu0 %v7743, 32
        %v7821 = vpop.permute.xlu0 %7820
        %7822 = vrot.lane.b32.xlu0 %v7745, 32
        %v7823 = vpop.permute.xlu0 %7822
        %7824 = vrot.lane.b32.xlu0 %v7748, 32
        %v7825 = vpop.permute.xlu0 %7824
        %7826 = vrot.lane.b32.xlu0 %v7750, 32
        %v7827 = vpop.permute.xlu0 %7826
        %7828 = vrot.lane.b32.xlu0 %v7753, 32
        %v7829 = vpop.permute.xlu0 %7828
        %7830 = vrot.lane.b32.xlu0 %v7755, 32
        %v7831 = vpop.permute.xlu0 %7830
        %7832 = vrot.lane.b32.xlu0 %v7758, 32
        %v7833 = vpop.permute.xlu0 %7832
        %7834 = vrot.lane.b32.xlu0 %v7760, 32
        %v7835 = vpop.permute.xlu0 %7834
        %7836 = vrot.lane.b32.xlu0 %v7763, 32
        %v7837 = vpop.permute.xlu0 %7836
        %7838 = vrot.lane.b32.xlu0 %v7765, 32
        %v7839 = vpop.permute.xlu0 %7838
        %7840 = vrot.lane.b32.xlu0 %v7768, 32
        %v7841 = vpop.permute.xlu0 %7840
        %7842 = vrot.lane.b32.xlu0 %v7770, 32
        %v7843 = vpop.permute.xlu0 %7842
        %7844 = vrot.lane.b32.xlu0 %v7773, 32
        %v7845 = vpop.permute.xlu0 %7844
        %7846 = vrot.lane.b32.xlu0 %v7775, 32
        %v7847 = vpop.permute.xlu0 %7846
        %7848 = vrot.lane.b32.xlu0 %v7778, 32
        %v7849 = vpop.permute.xlu0 %7848
        %7850 = vrot.lane.b32.xlu0 %v7780, 32
        %v7851 = vpop.permute.xlu0 %7850
        %7852 = vrot.lane.b32.xlu0 %v7783, 32
        %v7853 = vpop.permute.xlu0 %7852
        %7854 = vrot.lane.b32.xlu0 %v7785, 32
        %v7855 = vpop.permute.xlu0 %7854
        %7856 = vrot.lane.b32.xlu0 %v7788, 32
        %v7857 = vpop.permute.xlu0 %7856
        %7858 = vrot.lane.b32.xlu0 %v7790, 32
        %v7859 = vpop.permute.xlu0 %7858
        %7860 = vrot.lane.b32.xlu0 %v7793, 32
        %v7861 = vpop.permute.xlu0 %7860
        %7862 = vrot.lane.b32.xlu0 %v7795, 32
        %v7863 = vpop.permute.xlu0 %7862
        %7864 = vrot.lane.b32.xlu0 %v7798, 32
        %v7865 = vpop.permute.xlu0 %7864
        %7866 = vrot.lane.b32.xlu0 %v7800, 32
        %v7867 = vpop.permute.xlu0 %7866
        %7868 = vrot.lane.b32.xlu0 %v7803, 32
        %v7869 = vpop.permute.xlu0 %7868
        %7870 = vrot.lane.b32.xlu0 %v7805, 32
        %v7871 = vpop.permute.xlu0 %7870
        %7872 = vrot.lane.b32.xlu0 %v7808, 32
        %v7873 = vpop.permute.xlu0 %7872
        %7874 = vrot.lane.b32.xlu0 %v7810, 32
        %v7875 = vpop.permute.xlu0 %7874
        %7876 = vrot.lane.b32.xlu0 %v7813, 32
        %v7877 = vpop.permute.xlu0 %7876
        %7878 = vrot.lane.b32.xlu0 %v7815, 32
        %v7879 = vpop.permute.xlu0 %7878
        %7913 = vrot.lane.b32.xlu0 %v7502, 48
        %v7914 = vpop.permute.xlu0 %7913
        %7915 = vrot.lane.b32.xlu0 %v7408, 48
        %v7916 = vpop.permute.xlu0 %7915
        %7917 = vrot.lane.b32.xlu0 %v7503, 48
        %v7918 = vpop.permute.xlu0 %7917
        %7919 = vrot.lane.b32.xlu0 %v7411, 48
        %v7920 = vpop.permute.xlu0 %7919
        %7921 = vrot.lane.b32.xlu0 %v7504, 48
        %v7922 = vpop.permute.xlu0 %7921
        %7923 = vrot.lane.b32.xlu0 %v7414, 48
        %v7924 = vpop.permute.xlu0 %7923
        %7925 = vrot.lane.b32.xlu0 %v7505, 48
        %v7926 = vpop.permute.xlu0 %7925
        %7927 = vrot.lane.b32.xlu0 %v7417, 48
        %v7928 = vpop.permute.xlu0 %7927
        %7929 = vrot.lane.b32.xlu0 %v7506, 48
        %v7930 = vpop.permute.xlu0 %7929
        %7931 = vrot.lane.b32.xlu0 %v7420, 48
        %v7932 = vpop.permute.xlu0 %7931
        %7933 = vrot.lane.b32.xlu0 %v7507, 48
        %v7934 = vpop.permute.xlu0 %7933
        %7935 = vrot.lane.b32.xlu0 %v7423, 48
        %v7936 = vpop.permute.xlu0 %7935
        %7937 = vrot.lane.b32.xlu0 %v7508, 48
        %v7938 = vpop.permute.xlu0 %7937
        %7939 = vrot.lane.b32.xlu0 %v7426, 48
        %v7940 = vpop.permute.xlu0 %7939
        %7941 = vrot.lane.b32.xlu0 %v7509, 48
        %v7942 = vpop.permute.xlu0 %7941
        %7943 = vrot.lane.b32.xlu0 %v7429, 48
        %v7944 = vpop.permute.xlu0 %7943
        %7945 = vrot.lane.b32.xlu0 %v7510, 48
        %v7946 = vpop.permute.xlu0 %7945
        %7947 = vrot.lane.b32.xlu0 %v7432, 48
        %v7948 = vpop.permute.xlu0 %7947
        %7949 = vrot.lane.b32.xlu0 %v7511, 48
        %v7950 = vpop.permute.xlu0 %7949
        %7951 = vrot.lane.b32.xlu0 %v7435, 48
        %v7952 = vpop.permute.xlu0 %7951
        %7953 = vrot.lane.b32.xlu0 %v7512, 48
        %v7954 = vpop.permute.xlu0 %7953
        %7955 = vrot.lane.b32.xlu0 %v7438, 48
        %v7956 = vpop.permute.xlu0 %7955
        %7957 = vrot.lane.b32.xlu0 %v7513, 48
        %v7958 = vpop.permute.xlu0 %7957
        %7959 = vrot.lane.b32.xlu0 %v7441, 48
        %v7960 = vpop.permute.xlu0 %7959
        %7961 = vrot.lane.b32.xlu0 %v7514, 48
        %v7962 = vpop.permute.xlu0 %7961
        %7963 = vrot.lane.b32.xlu0 %v7444, 48
        %v7964 = vpop.permute.xlu0 %7963
        %7965 = vrot.lane.b32.xlu0 %v7515, 48
        %v7966 = vpop.permute.xlu0 %7965
        %7967 = vrot.lane.b32.xlu0 %v7447, 48
        %v7968 = vpop.permute.xlu0 %7967
        %7969 = vrot.lane.b32.xlu0 %v7516, 48
        %v7970 = vpop.permute.xlu0 %7969
        %7971 = vrot.lane.b32.xlu0 %v7450, 48
        %v7972 = vpop.permute.xlu0 %7971
        %7973 = vrot.lane.b32.xlu0 %v7517, 48
        %v7974 = vpop.permute.xlu0 %7973
        %7975 = vrot.lane.b32.xlu0 %v7453, 48
        %v7976 = vpop.permute.xlu0 %7975
        %v8010 = vrot.slane %v7517, 1
        %v8011 = vrot.slane %v7453, 1
        %v8012 = vsel %vm1382, %v8010, %v8011
        %v8013 = vrot.slane %v7533, 1
        %v8014 = vsel %vm1382, %v8011, %v8013
        %8015 = vrot.lane.b32.xlu0 %v7569, 64
        %v8016 = vpop.permute.xlu0 %8015
        %8017 = vrot.lane.b32.xlu0 %v7571, 64
        %v8018 = vpop.permute.xlu0 %8017
        %8019 = vrot.lane.b32.xlu0 %v7574, 64
        %v8020 = vpop.permute.xlu0 %8019
        %8021 = vrot.lane.b32.xlu0 %v7576, 64
        %v8022 = vpop.permute.xlu0 %8021
        %8023 = vrot.lane.b32.xlu0 %v7579, 64
        %v8024 = vpop.permute.xlu0 %8023
        %8025 = vrot.lane.b32.xlu0 %v7581, 64
        %v8026 = vpop.permute.xlu0 %8025
        %8027 = vrot.lane.b32.xlu0 %v7584, 64
        %v8028 = vpop.permute.xlu0 %8027
        %8029 = vrot.lane.b32.xlu0 %v7586, 64
        %v8030 = vpop.permute.xlu0 %8029
        %8031 = vrot.lane.b32.xlu0 %v7589, 64
        %v8032 = vpop.permute.xlu0 %8031
        %8033 = vrot.lane.b32.xlu0 %v7591, 64
        %v8034 = vpop.permute.xlu0 %8033
        %8035 = vrot.lane.b32.xlu0 %v7594, 64
        %v8036 = vpop.permute.xlu0 %8035
        %8037 = vrot.lane.b32.xlu0 %v7596, 64
        %v8038 = vpop.permute.xlu0 %8037
        %8039 = vrot.lane.b32.xlu0 %v7599, 64
        %v8040 = vpop.permute.xlu0 %8039
        %8041 = vrot.lane.b32.xlu0 %v7601, 64
        %v8042 = vpop.permute.xlu0 %8041
        %8043 = vrot.lane.b32.xlu0 %v7604, 64
        %v8044 = vpop.permute.xlu0 %8043
        %8045 = vrot.lane.b32.xlu0 %v7606, 64
        %v8046 = vpop.permute.xlu0 %8045
        %8047 = vrot.lane.b32.xlu0 %v7609, 64
        %v8048 = vpop.permute.xlu0 %8047
        %8049 = vrot.lane.b32.xlu0 %v7611, 64
        %v8050 = vpop.permute.xlu0 %8049
        %8051 = vrot.lane.b32.xlu0 %v7614, 64
        %v8052 = vpop.permute.xlu0 %8051
        %8053 = vrot.lane.b32.xlu0 %v7616, 64
        %v8054 = vpop.permute.xlu0 %8053
        %8055 = vrot.lane.b32.xlu0 %v7619, 64
        %v8056 = vpop.permute.xlu0 %8055
        %8057 = vrot.lane.b32.xlu0 %v7621, 64
        %v8058 = vpop.permute.xlu0 %8057
        %8059 = vrot.lane.b32.xlu0 %v7624, 64
        %v8060 = vpop.permute.xlu0 %8059
        %8061 = vrot.lane.b32.xlu0 %v7626, 64
        %v8062 = vpop.permute.xlu0 %8061
        %8063 = vrot.lane.b32.xlu0 %v7629, 64
        %v8064 = vpop.permute.xlu0 %8063
        %8065 = vrot.lane.b32.xlu0 %v7631, 64
        %v8066 = vpop.permute.xlu0 %8065
        %8067 = vrot.lane.b32.xlu0 %v7634, 64
        %v8068 = vpop.permute.xlu0 %8067
        %8069 = vrot.lane.b32.xlu0 %v7636, 64
        %v8070 = vpop.permute.xlu0 %8069
        %8071 = vrot.lane.b32.xlu0 %v7639, 64
        %v8072 = vpop.permute.xlu0 %8071
        %8073 = vrot.lane.b32.xlu0 %v7641, 64
        %v8074 = vpop.permute.xlu0 %8073
        %8075 = vrot.lane.b32.xlu0 %v8012, 64
        %v8076 = vpop.permute.xlu0 %8075
        %8077 = vrot.lane.b32.xlu0 %v8014, 64
        %v8078 = vpop.permute.xlu0 %8077
        %v8111 = vrot.slane %v7517, 2
        %v8112 = vrot.slane %v7453, 2
        %v8113 = vsel %vm1431, %v8111, %v8112
        %v8114 = vrot.slane %v7533, 2
        %v8115 = vsel %vm1431, %v8112, %v8114
        %8116 = vrot.lane.b32.xlu0 %v7743, 80
        %v8117 = vpop.permute.xlu0 %8116
        %8118 = vrot.lane.b32.xlu0 %v7745, 80
        %v8119 = vpop.permute.xlu0 %8118
        %8120 = vrot.lane.b32.xlu0 %v7748, 80
        %v8121 = vpop.permute.xlu0 %8120
        %8122 = vrot.lane.b32.xlu0 %v7750, 80
        %v8123 = vpop.permute.xlu0 %8122
        %8124 = vrot.lane.b32.xlu0 %v7753, 80
        %v8125 = vpop.permute.xlu0 %8124
        %8126 = vrot.lane.b32.xlu0 %v7755, 80
        %v8127 = vpop.permute.xlu0 %8126
        %8128 = vrot.lane.b32.xlu0 %v7758, 80
        %v8129 = vpop.permute.xlu0 %8128
        %8130 = vrot.lane.b32.xlu0 %v7760, 80
        %v8131 = vpop.permute.xlu0 %8130
        %8132 = vrot.lane.b32.xlu0 %v7763, 80
        %v8133 = vpop.permute.xlu0 %8132
        %8134 = vrot.lane.b32.xlu0 %v7765, 80
        %v8135 = vpop.permute.xlu0 %8134
        %8136 = vrot.lane.b32.xlu0 %v7768, 80
        %v8137 = vpop.permute.xlu0 %8136
        %8138 = vrot.lane.b32.xlu0 %v7770, 80
        %v8139 = vpop.permute.xlu0 %8138
        %8140 = vrot.lane.b32.xlu0 %v7773, 80
        %v8141 = vpop.permute.xlu0 %8140
        %8142 = vrot.lane.b32.xlu0 %v7775, 80
        %v8143 = vpop.permute.xlu0 %8142
        %8144 = vrot.lane.b32.xlu0 %v7778, 80
        %v8145 = vpop.permute.xlu0 %8144
        %8146 = vrot.lane.b32.xlu0 %v7780, 80
        %v8147 = vpop.permute.xlu0 %8146
        %8148 = vrot.lane.b32.xlu0 %v7783, 80
        %v8149 = vpop.permute.xlu0 %8148
        %8150 = vrot.lane.b32.xlu0 %v7785, 80
        %v8151 = vpop.permute.xlu0 %8150
        %8152 = vrot.lane.b32.xlu0 %v7788, 80
        %v8153 = vpop.permute.xlu0 %8152
        %8154 = vrot.lane.b32.xlu0 %v7790, 80
        %v8155 = vpop.permute.xlu0 %8154
        %8156 = vrot.lane.b32.xlu0 %v7793, 80
        %v8157 = vpop.permute.xlu0 %8156
        %8158 = vrot.lane.b32.xlu0 %v7795, 80
        %v8159 = vpop.permute.xlu0 %8158
        %8160 = vrot.lane.b32.xlu0 %v7798, 80
        %v8161 = vpop.permute.xlu0 %8160
        %8162 = vrot.lane.b32.xlu0 %v7800, 80
        %v8163 = vpop.permute.xlu0 %8162
        %8164 = vrot.lane.b32.xlu0 %v7803, 80
        %v8165 = vpop.permute.xlu0 %8164
        %8166 = vrot.lane.b32.xlu0 %v7805, 80
        %v8167 = vpop.permute.xlu0 %8166
        %8168 = vrot.lane.b32.xlu0 %v7808, 80
        %v8169 = vpop.permute.xlu0 %8168
        %8170 = vrot.lane.b32.xlu0 %v7810, 80
        %v8171 = vpop.permute.xlu0 %8170
        %8172 = vrot.lane.b32.xlu0 %v7813, 80
        %v8173 = vpop.permute.xlu0 %8172
        %8174 = vrot.lane.b32.xlu0 %v7815, 80
        %v8175 = vpop.permute.xlu0 %8174
        %8176 = vrot.lane.b32.xlu0 %v8113, 80
        %v8177 = vpop.permute.xlu0 %8176
        %8178 = vrot.lane.b32.xlu0 %v8115, 80
        %v8179 = vpop.permute.xlu0 %8178
        %8212 = vrot.lane.b32.xlu0 %v7503, 96
        %v8213 = vpop.permute.xlu0 %8212
        %8214 = vrot.lane.b32.xlu0 %v7411, 96
        %v8215 = vpop.permute.xlu0 %8214
        %8216 = vrot.lane.b32.xlu0 %v7504, 96
        %v8217 = vpop.permute.xlu0 %8216
        %8218 = vrot.lane.b32.xlu0 %v7414, 96
        %v8219 = vpop.permute.xlu0 %8218
        %8220 = vrot.lane.b32.xlu0 %v7505, 96
        %v8221 = vpop.permute.xlu0 %8220
        %8222 = vrot.lane.b32.xlu0 %v7417, 96
        %v8223 = vpop.permute.xlu0 %8222
        %8224 = vrot.lane.b32.xlu0 %v7506, 96
        %v8225 = vpop.permute.xlu0 %8224
        %8226 = vrot.lane.b32.xlu0 %v7420, 96
        %v8227 = vpop.permute.xlu0 %8226
        %8228 = vrot.lane.b32.xlu0 %v7507, 96
        %v8229 = vpop.permute.xlu0 %8228
        %8230 = vrot.lane.b32.xlu0 %v7423, 96
        %v8231 = vpop.permute.xlu0 %8230
        %8232 = vrot.lane.b32.xlu0 %v7508, 96
        %v8233 = vpop.permute.xlu0 %8232
        %8234 = vrot.lane.b32.xlu0 %v7426, 96
        %v8235 = vpop.permute.xlu0 %8234
        %8236 = vrot.lane.b32.xlu0 %v7509, 96
        %v8237 = vpop.permute.xlu0 %8236
        %8238 = vrot.lane.b32.xlu0 %v7429, 96
        %v8239 = vpop.permute.xlu0 %8238
        %8240 = vrot.lane.b32.xlu0 %v7510, 96
        %v8241 = vpop.permute.xlu0 %8240
        %8242 = vrot.lane.b32.xlu0 %v7432, 96
        %v8243 = vpop.permute.xlu0 %8242
        %8244 = vrot.lane.b32.xlu0 %v7511, 96
        %v8245 = vpop.permute.xlu0 %8244
        %8246 = vrot.lane.b32.xlu0 %v7435, 96
        %v8247 = vpop.permute.xlu0 %8246
        %8248 = vrot.lane.b32.xlu0 %v7512, 96
        %v8249 = vpop.permute.xlu0 %8248
        %8250 = vrot.lane.b32.xlu0 %v7438, 96
        %v8251 = vpop.permute.xlu0 %8250
        %8252 = vrot.lane.b32.xlu0 %v7513, 96
        %v8253 = vpop.permute.xlu0 %8252
        %8254 = vrot.lane.b32.xlu0 %v7441, 96
        %v8255 = vpop.permute.xlu0 %8254
        %8256 = vrot.lane.b32.xlu0 %v7514, 96
        %v8257 = vpop.permute.xlu0 %8256
        %8258 = vrot.lane.b32.xlu0 %v7444, 96
        %v8259 = vpop.permute.xlu0 %8258
        %8260 = vrot.lane.b32.xlu0 %v7515, 96
        %v8261 = vpop.permute.xlu0 %8260
        %8262 = vrot.lane.b32.xlu0 %v7447, 96
        %v8263 = vpop.permute.xlu0 %8262
        %8264 = vrot.lane.b32.xlu0 %v7516, 96
        %v8265 = vpop.permute.xlu0 %8264
        %8266 = vrot.lane.b32.xlu0 %v7450, 96
        %v8267 = vpop.permute.xlu0 %8266
        %8268 = vrot.lane.b32.xlu0 %v7517, 96
        %v8269 = vpop.permute.xlu0 %8268
        %8270 = vrot.lane.b32.xlu0 %v7453, 96
        %v8271 = vpop.permute.xlu0 %8270
        %8272 = vrot.lane.b32.xlu0 %v1348, 96
        %v8273 = vpop.permute.xlu0 %8272
        %8274 = vrot.lane.b32.xlu0 %v7405, 96
        %v8275 = vpop.permute.xlu0 %8274
        %8308 = vrot.lane.b32.xlu0 %v7574, 112
        %v8309 = vpop.permute.xlu0 %8308
        %8310 = vrot.lane.b32.xlu0 %v7576, 112
        %v8311 = vpop.permute.xlu0 %8310
        %8312 = vrot.lane.b32.xlu0 %v7579, 112
        %v8313 = vpop.permute.xlu0 %8312
        %8314 = vrot.lane.b32.xlu0 %v7581, 112
        %v8315 = vpop.permute.xlu0 %8314
        %8316 = vrot.lane.b32.xlu0 %v7584, 112
        %v8317 = vpop.permute.xlu0 %8316
        %8318 = vrot.lane.b32.xlu0 %v7586, 112
        %v8319 = vpop.permute.xlu0 %8318
        %8320 = vrot.lane.b32.xlu0 %v7589, 112
        %v8321 = vpop.permute.xlu0 %8320
        %8322 = vrot.lane.b32.xlu0 %v7591, 112
        %v8323 = vpop.permute.xlu0 %8322
        %8324 = vrot.lane.b32.xlu0 %v7594, 112
        %v8325 = vpop.permute.xlu0 %8324
        %8326 = vrot.lane.b32.xlu0 %v7596, 112
        %v8327 = vpop.permute.xlu0 %8326
        %8328 = vrot.lane.b32.xlu0 %v7599, 112
        %v8329 = vpop.permute.xlu0 %8328
        %8330 = vrot.lane.b32.xlu0 %v7601, 112
        %v8331 = vpop.permute.xlu0 %8330
        %8332 = vrot.lane.b32.xlu0 %v7604, 112
        %v8333 = vpop.permute.xlu0 %8332
        %8334 = vrot.lane.b32.xlu0 %v7606, 112
        %v8335 = vpop.permute.xlu0 %8334
        %8336 = vrot.lane.b32.xlu0 %v7609, 112
        %v8337 = vpop.permute.xlu0 %8336
        %8338 = vrot.lane.b32.xlu0 %v7611, 112
        %v8339 = vpop.permute.xlu0 %8338
        %8340 = vrot.lane.b32.xlu0 %v7614, 112
        %v8341 = vpop.permute.xlu0 %8340
        %8342 = vrot.lane.b32.xlu0 %v7616, 112
        %v8343 = vpop.permute.xlu0 %8342
        %8344 = vrot.lane.b32.xlu0 %v7619, 112
        %v8345 = vpop.permute.xlu0 %8344
        %8346 = vrot.lane.b32.xlu0 %v7621, 112
        %v8347 = vpop.permute.xlu0 %8346
        %8348 = vrot.lane.b32.xlu0 %v7624, 112
        %v8349 = vpop.permute.xlu0 %8348
        %8350 = vrot.lane.b32.xlu0 %v7626, 112
        %v8351 = vpop.permute.xlu0 %8350
        %8352 = vrot.lane.b32.xlu0 %v7629, 112
        %v8353 = vpop.permute.xlu0 %8352
        %8354 = vrot.lane.b32.xlu0 %v7631, 112
        %v8355 = vpop.permute.xlu0 %8354
        %8356 = vrot.lane.b32.xlu0 %v7634, 112
        %v8357 = vpop.permute.xlu0 %8356
        %8358 = vrot.lane.b32.xlu0 %v7636, 112
        %v8359 = vpop.permute.xlu0 %8358
        %8360 = vrot.lane.b32.xlu0 %v7639, 112
        %v8361 = vpop.permute.xlu0 %8360
        %8362 = vrot.lane.b32.xlu0 %v7641, 112
        %v8363 = vpop.permute.xlu0 %8362
        %8364 = vrot.lane.b32.xlu0 %v8012, 112
        %v8365 = vpop.permute.xlu0 %8364
        %8366 = vrot.lane.b32.xlu0 %v8014, 112
        %v8367 = vpop.permute.xlu0 %8366
        %8368 = vrot.lane.b32.xlu0 %v7565, 112
        %v8369 = vpop.permute.xlu0 %8368
        %8370 = vrot.lane.b32.xlu0 %v7566, 112
        %v8371 = vpop.permute.xlu0 %8370
        %v8404 = vsel %vm1275, %v1348, %v7643
        %v8405 = vsel %vm1275, %v7405, %v7645
        %v8406 = vsel %vm1275, %v7502, %v7647
        %v8407 = vsel %vm1275, %v7408, %v7649
        %v8408 = vsel %vm1275, %v7503, %v7651
        %v8409 = vsel %vm1275, %v7411, %v7653
        %v8410 = vsel %vm1275, %v7504, %v7655
        %v8411 = vsel %vm1275, %v7414, %v7657
        %v8412 = vsel %vm1275, %v7505, %v7659
        %v8413 = vsel %vm1275, %v7417, %v7661
        %v8414 = vsel %vm1275, %v7506, %v7663
        %v8415 = vsel %vm1275, %v7420, %v7665
        %v8416 = vsel %vm1275, %v7507, %v7667
        %v8417 = vsel %vm1275, %v7423, %v7669
        %v8418 = vsel %vm1275, %v7508, %v7671
        %v8419 = vsel %vm1275, %v7426, %v7673
        %v8420 = vsel %vm1275, %v7509, %v7675
        %v8421 = vsel %vm1275, %v7429, %v7677
        %v8422 = vsel %vm1275, %v7510, %v7679
        %v8423 = vsel %vm1275, %v7432, %v7681
        %v8424 = vsel %vm1275, %v7511, %v7683
        %v8425 = vsel %vm1275, %v7435, %v7685
        %v8426 = vsel %vm1275, %v7512, %v7687
        %v8427 = vsel %vm1275, %v7438, %v7689
        %v8428 = vsel %vm1275, %v7513, %v7691
        %v8429 = vsel %vm1275, %v7441, %v7693
        %v8430 = vsel %vm1275, %v7514, %v7695
        %v8431 = vsel %vm1275, %v7444, %v7697
        %v8432 = vsel %vm1275, %v7515, %v7699
        %v8433 = vsel %vm1275, %v7447, %v7701
        %v8434 = vsel %vm1275, %v7516, %v7703
        %v8435 = vsel %vm1275, %v7450, %v7705
        %v8436 = vsel %vm1592, %v8404, %v7817
        %v8437 = vsel %vm1592, %v8405, %v7819
        %v8438 = vsel %vm1592, %v8406, %v7821
        %v8439 = vsel %vm1592, %v8407, %v7823
        %v8440 = vsel %vm1592, %v8408, %v7825
        %v8441 = vsel %vm1592, %v8409, %v7827
        %v8442 = vsel %vm1592, %v8410, %v7829
        %v8443 = vsel %vm1592, %v8411, %v7831
        %v8444 = vsel %vm1592, %v8412, %v7833
        %v8445 = vsel %vm1592, %v8413, %v7835
        %v8446 = vsel %vm1592, %v8414, %v7837
        %v8447 = vsel %vm1592, %v8415, %v7839
        %v8448 = vsel %vm1592, %v8416, %v7841
        %v8449 = vsel %vm1592, %v8417, %v7843
        %v8450 = vsel %vm1592, %v8418, %v7845
        %v8451 = vsel %vm1592, %v8419, %v7847
        %v8452 = vsel %vm1592, %v8420, %v7849
        %v8453 = vsel %vm1592, %v8421, %v7851
        %v8454 = vsel %vm1592, %v8422, %v7853
        %v8455 = vsel %vm1592, %v8423, %v7855
        %v8456 = vsel %vm1592, %v8424, %v7857
        %v8457 = vsel %vm1592, %v8425, %v7859
        %v8458 = vsel %vm1592, %v8426, %v7861
        %v8459 = vsel %vm1592, %v8427, %v7863
        %v8460 = vsel %vm1592, %v8428, %v7865
        %v8461 = vsel %vm1592, %v8429, %v7867
        %v8462 = vsel %vm1592, %v8430, %v7869
        %v8463 = vsel %vm1592, %v8431, %v7871
        %v8464 = vsel %vm1592, %v8432, %v7873
        %v8465 = vsel %vm1592, %v8433, %v7875
        %v8466 = vsel %vm1592, %v8434, %v7877
        %v8467 = vsel %vm1592, %v8435, %v7879
        %vm8468 = vcmask 392192
        %v8469 = vsel %vm8468, %v8436, %v7914
        %v8470 = vsel %vm8468, %v8437, %v7916
        %v8471 = vsel %vm8468, %v8438, %v7918
        %v8472 = vsel %vm8468, %v8439, %v7920
        %v8473 = vsel %vm8468, %v8440, %v7922
        %v8474 = vsel %vm8468, %v8441, %v7924
        %v8475 = vsel %vm8468, %v8442, %v7926
        %v8476 = vsel %vm8468, %v8443, %v7928
        %v8477 = vsel %vm8468, %v8444, %v7930
        %v8478 = vsel %vm8468, %v8445, %v7932
        %v8479 = vsel %vm8468, %v8446, %v7934
        %v8480 = vsel %vm8468, %v8447, %v7936
        %v8481 = vsel %vm8468, %v8448, %v7938
        %v8482 = vsel %vm8468, %v8449, %v7940
        %v8483 = vsel %vm8468, %v8450, %v7942
        %v8484 = vsel %vm8468, %v8451, %v7944
        %v8485 = vsel %vm8468, %v8452, %v7946
        %v8486 = vsel %vm8468, %v8453, %v7948
        %v8487 = vsel %vm8468, %v8454, %v7950
        %v8488 = vsel %vm8468, %v8455, %v7952
        %v8489 = vsel %vm8468, %v8456, %v7954
        %v8490 = vsel %vm8468, %v8457, %v7956
        %v8491 = vsel %vm8468, %v8458, %v7958
        %v8492 = vsel %vm8468, %v8459, %v7960
        %v8493 = vsel %vm8468, %v8460, %v7962
        %v8494 = vsel %vm8468, %v8461, %v7964
        %v8495 = vsel %vm8468, %v8462, %v7966
        %v8496 = vsel %vm8468, %v8463, %v7968
        %v8497 = vsel %vm8468, %v8464, %v7970
        %v8498 = vsel %vm8468, %v8465, %v7972
        %v8499 = vsel %vm8468, %v8466, %v7974
        %v8500 = vsel %vm8468, %v8467, %v7976
        %v8501 = vsel %vm1601, %v8469, %v8016
        %v8502 = vsel %vm1601, %v8470, %v8018
        %v8503 = vsel %vm1601, %v8471, %v8020
        %v8504 = vsel %vm1601, %v8472, %v8022
        %v8505 = vsel %vm1601, %v8473, %v8024
        %v8506 = vsel %vm1601, %v8474, %v8026
        %v8507 = vsel %vm1601, %v8475, %v8028
        %v8508 = vsel %vm1601, %v8476, %v8030
        %v8509 = vsel %vm1601, %v8477, %v8032
        %v8510 = vsel %vm1601, %v8478, %v8034
        %v8511 = vsel %vm1601, %v8479, %v8036
        %v8512 = vsel %vm1601, %v8480, %v8038
        %v8513 = vsel %vm1601, %v8481, %v8040
        %v8514 = vsel %vm1601, %v8482, %v8042
        %v8515 = vsel %vm1601, %v8483, %v8044
        %v8516 = vsel %vm1601, %v8484, %v8046
        %v8517 = vsel %vm1601, %v8485, %v8048
        %v8518 = vsel %vm1601, %v8486, %v8050
        %v8519 = vsel %vm1601, %v8487, %v8052
        %v8520 = vsel %vm1601, %v8488, %v8054
        %v8521 = vsel %vm1601, %v8489, %v8056
        %v8522 = vsel %vm1601, %v8490, %v8058
        %v8523 = vsel %vm1601, %v8491, %v8060
        %v8524 = vsel %vm1601, %v8492, %v8062
        %v8525 = vsel %vm1601, %v8493, %v8064
        %v8526 = vsel %vm1601, %v8494, %v8066
        %v8527 = vsel %vm1601, %v8495, %v8068
        %v8528 = vsel %vm1601, %v8496, %v8070
        %v8529 = vsel %vm1601, %v8497, %v8072
        %v8530 = vsel %vm1601, %v8498, %v8074
        %v8531 = vsel %vm1601, %v8499, %v8076
        %v8532 = vsel %vm1601, %v8500, %v8078
        %vm8533 = vcmask 654336
        %v8534 = vsel %vm8533, %v8501, %v8117
        %v8535 = vsel %vm8533, %v8502, %v8119
        %v8536 = vsel %vm8533, %v8503, %v8121
        %v8537 = vsel %vm8533, %v8504, %v8123
        %v8538 = vsel %vm8533, %v8505, %v8125
        %v8539 = vsel %vm8533, %v8506, %v8127
        %v8540 = vsel %vm8533, %v8507, %v8129
        %v8541 = vsel %vm8533, %v8508, %v8131
        %v8542 = vsel %vm8533, %v8509, %v8133
        %v8543 = vsel %vm8533, %v8510, %v8135
        %v8544 = vsel %vm8533, %v8511, %v8137
        %v8545 = vsel %vm8533, %v8512, %v8139
        %v8546 = vsel %vm8533, %v8513, %v8141
        %v8547 = vsel %vm8533, %v8514, %v8143
        %v8548 = vsel %vm8533, %v8515, %v8145
        %v8549 = vsel %vm8533, %v8516, %v8147
        %v8550 = vsel %vm8533, %v8517, %v8149
        %v8551 = vsel %vm8533, %v8518, %v8151
        %v8552 = vsel %vm8533, %v8519, %v8153
        %v8553 = vsel %vm8533, %v8520, %v8155
        %v8554 = vsel %vm8533, %v8521, %v8157
        %v8555 = vsel %vm8533, %v8522, %v8159
        %v8556 = vsel %vm8533, %v8523, %v8161
        %v8557 = vsel %vm8533, %v8524, %v8163
        %v8558 = vsel %vm8533, %v8525, %v8165
        %v8559 = vsel %vm8533, %v8526, %v8167
        %v8560 = vsel %vm8533, %v8527, %v8169
        %v8561 = vsel %vm8533, %v8528, %v8171
        %v8562 = vsel %vm8533, %v8529, %v8173
        %v8563 = vsel %vm8533, %v8530, %v8175
        %v8564 = vsel %vm8533, %v8531, %v8177
        %v8565 = vsel %vm8533, %v8532, %v8179
        %v8566 = vsel %vm1610, %v8534, %v8213
        %v8567 = vsel %vm1610, %v8535, %v8215
        %v8568 = vsel %vm1610, %v8536, %v8217
        %v8569 = vsel %vm1610, %v8537, %v8219
        %v8570 = vsel %vm1610, %v8538, %v8221
        %v8571 = vsel %vm1610, %v8539, %v8223
        %v8572 = vsel %vm1610, %v8540, %v8225
        %v8573 = vsel %vm1610, %v8541, %v8227
        %v8574 = vsel %vm1610, %v8542, %v8229
        %v8575 = vsel %vm1610, %v8543, %v8231
        %v8576 = vsel %vm1610, %v8544, %v8233
        %v8577 = vsel %vm1610, %v8545, %v8235
        %v8578 = vsel %vm1610, %v8546, %v8237
        %v8579 = vsel %vm1610, %v8547, %v8239
        %v8580 = vsel %vm1610, %v8548, %v8241
        %v8581 = vsel %vm1610, %v8549, %v8243
        %v8582 = vsel %vm1610, %v8550, %v8245
        %v8583 = vsel %vm1610, %v8551, %v8247
        %v8584 = vsel %vm1610, %v8552, %v8249
        %v8585 = vsel %vm1610, %v8553, %v8251
        %v8586 = vsel %vm1610, %v8554, %v8253
        %v8587 = vsel %vm1610, %v8555, %v8255
        %v8588 = vsel %vm1610, %v8556, %v8257
        %v8589 = vsel %vm1610, %v8557, %v8259
        %v8590 = vsel %vm1610, %v8558, %v8261
        %v8591 = vsel %vm1610, %v8559, %v8263
        %v8592 = vsel %vm1610, %v8560, %v8265
        %v8593 = vsel %vm1610, %v8561, %v8267
        %v8594 = vsel %vm1610, %v8562, %v8269
        %v8595 = vsel %vm1610, %v8563, %v8271
        %v8596 = vsel %vm1610, %v8564, %v8273
        %v8597 = vsel %vm1610, %v8565, %v8275
        %vm8598 = vcmask 916480
        %v8599 = vsel %vm8598, %v8566, %v8309
        %v8600 = vsel %vm8598, %v8567, %v8311
        %v8601 = vsel %vm8598, %v8568, %v8313
        %v8602 = vsel %vm8598, %v8569, %v8315
        %v8603 = vsel %vm8598, %v8570, %v8317
        %v8604 = vsel %vm8598, %v8571, %v8319
        %v8605 = vsel %vm8598, %v8572, %v8321
        %v8606 = vsel %vm8598, %v8573, %v8323
        %v8607 = vsel %vm8598, %v8574, %v8325
        %v8608 = vsel %vm8598, %v8575, %v8327
        %v8609 = vsel %vm8598, %v8576, %v8329
        %v8610 = vsel %vm8598, %v8577, %v8331
        %v8611 = vsel %vm8598, %v8578, %v8333
        %v8612 = vsel %vm8598, %v8579, %v8335
        %v8613 = vsel %vm8598, %v8580, %v8337
        %v8614 = vsel %vm8598, %v8581, %v8339
        %v8615 = vsel %vm8598, %v8582, %v8341
        %v8616 = vsel %vm8598, %v8583, %v8343
        %v8617 = vsel %vm8598, %v8584, %v8345
        %v8618 = vsel %vm8598, %v8585, %v8347
        %v8619 = vsel %vm8598, %v8586, %v8349
        %v8620 = vsel %vm8598, %v8587, %v8351
        %v8621 = vsel %vm8598, %v8588, %v8353
        %v8622 = vsel %vm8598, %v8589, %v8355
        %v8623 = vsel %vm8598, %v8590, %v8357
        %v8624 = vsel %vm8598, %v8591, %v8359
        %v8625 = vsel %vm8598, %v8592, %v8361
        %v8626 = vsel %vm8598, %v8593, %v8363
        %v8627 = vsel %vm8598, %v8594, %v8365
        %v8628 = vsel %vm8598, %v8595, %v8367
        %v8629 = vsel %vm8598, %v8596, %v8369
        %v8630 = vsel %vm8598, %v8597, %v8371
        %v8631 = vsel %vm1275, %v7748, 0
        %v8633 = vsel %vm1275, %v7750, 0
        %v8635 = vsel %vm1275, %v7753, 0
        %v8637 = vsel %vm1275, %v7755, 0
        %v8639 = vsel %vm1275, %v7758, 0
        %v8641 = vsel %vm1275, %v7760, 0
        %v8643 = vsel %vm1275, %v7763, 0
        %v8645 = vsel %vm1275, %v7765, 0
        %v8647 = vsel %vm1275, %v7768, 0
        %v8649 = vsel %vm1275, %v7770, 0
        %v8651 = vsel %vm1275, %v7773, 0
        %v8653 = vsel %vm1275, %v7775, 0
        %v8655 = vsel %vm1275, %v7778, 0
        %v8657 = vsel %vm1275, %v7780, 0
        %v8659 = vsel %vm1275, %v7783, 0
        %v8661 = vsel %vm1275, %v7785, 0
        %v8663 = vsel %vm1275, %v7788, 0
        %v8665 = vsel %vm1275, %v7790, 0
        %v8667 = vsel %vm1275, %v7793, 0
        %v8669 = vsel %vm1275, %v7795, 0
        %v8671 = vsel %vm1275, %v7798, 0
        %v8673 = vsel %vm1275, %v7800, 0
        %v8675 = vsel %vm1275, %v7803, 0
        %v8677 = vsel %vm1275, %v7805, 0
        %v8679 = vsel %vm1275, %v7808, 0
        %v8681 = vsel %vm1275, %v7810, 0
        %v8683 = vsel %vm1275, %v7813, 0
        %v8685 = vsel %vm1275, %v7815, 0
        %v8687 = vsel %vm1275, %v8113, 0
        %v8689 = vsel %vm1275, %v8115, 0
        %v8691 = vsel %vm1275, %v7739, 0
        %v8693 = vsel %vm1275, %v7740, 0
        %8695 = vmatprep.subr.mxu0 0.0
        %v8696 = vand.u32 %v7354, 4294901760
        %8697 = vmatpush1.msra.mxu0 %v8696
        %8698 = vmatprep.subr.mxu0 0.0
        %v8699 = vand.u32 %v7355, 4294901760
        %8700 = vmatpush1.msra.mxu0 %v8699
        %8701 = vmatprep.subr.mxu0 0.0
        %v8702 = vand.u32 %v7356, 4294901760
        %8703 = vmatpush1.msra.mxu0 %v8702
        %8704 = vmatprep.subr.mxu0 0.0
        %v8705 = vand.u32 %v7357, 4294901760
        %8706 = vmatpush1.msra.mxu0 %v8705
        %8707 = vmatprep.subr.mxu0 0.0
        %v8708 = vand.u32 %v7358, 4294901760
        %8709 = vmatpush1.msra.mxu0 %v8708
        %8710 = vmatprep.subr.mxu0 0.0
        %v8711 = vand.u32 %v7359, 4294901760
        %8712 = vmatpush1.msra.mxu0 %v8711
        %8713 = vmatprep.subr.mxu0 0.0
        %v8714 = vand.u32 %v7360, 4294901760
        %8715 = vmatpush1.msra.mxu0 %v8714
        %8716 = vmatprep.subr.mxu0 0.0
        %v8717 = vand.u32 %v7361, 4294901760
        %8718 = vmatpush1.msra.mxu0 %v8717
        %8719 = vmatprep.subr.mxu0 0.0
        %v8720 = vand.u32 %v7362, 4294901760
        %8721 = vmatpush1.msra.mxu0 %v8720
        %8722 = vmatprep.subr.mxu0 0.0
        %v8723 = vand.u32 %v7363, 4294901760
        %8724 = vmatpush1.msra.mxu0 %v8723
        %8725 = vmatprep.subr.mxu0 0.0
        %v8726 = vand.u32 %v7364, 4294901760
        %8727 = vmatpush1.msra.mxu0 %v8726
        %8728 = vmatprep.subr.mxu0 0.0
        %v8729 = vand.u32 %v7365, 4294901760
        %8730 = vmatpush1.msra.mxu0 %v8729
        %8731 = vmatprep.subr.mxu0 0.0
        %v8732 = vand.u32 %v7366, 4294901760
        %8733 = vmatpush1.msra.mxu0 %v8732
        %8734 = vmatprep.subr.mxu0 0.0
        %v8735 = vand.u32 %v7367, 4294901760
        %8736 = vmatpush1.msra.mxu0 %v8735
        %8737 = vmatprep.subr.mxu0 0.0
        %v8738 = vand.u32 %v7368, 4294901760
        %8739 = vmatpush1.msra.mxu0 %v8738
        %8740 = vmatprep.subr.mxu0 0.0
        %v8741 = vand.u32 %v7369, 4294901760
        %8742 = vmatpush1.msra.mxu0 %v8741
        %8743 = vmatprep.subr.mxu0 0.0
        %v8744 = vand.u32 %v7370, 4294901760
        %8745 = vmatpush1.msra.mxu0 %v8744
        %8746 = vmatprep.subr.mxu0 0.0
        %v8747 = vand.u32 %v7371, 4294901760
        %8748 = vmatpush1.msra.mxu0 %v8747
        %8749 = vmatprep.subr.mxu0 0.0
        %8750 = vmatpush1.msra.mxu0 0.0
        %8751 = vmatprep.subr.mxu0 0.0
        %8752 = vmatpush1.msra.mxu0 0.0
        %8753 = vmatprep.subr.mxu0 0.0
        %8754 = vmatpush1.msra.mxu0 0.0
        %8755 = vmatprep.subr.mxu0 0.0
        %8756 = vmatpush1.msra.mxu0 0.0
        %8757 = vmatprep.subr.mxu0 0.0
        %8758 = vmatpush1.msra.mxu0 0.0
        %8759 = vmatprep.subr.mxu0 0.0
        %8760 = vmatpush1.msra.mxu0 0.0
        %8761 = vmatprep.subr.mxu0 0.0
        %8762 = vmatpush1.msra.mxu0 0.0
        %8763 = vmatprep.subr.mxu0 0.0
        %8764 = vmatpush1.msra.mxu0 0.0
        %8765 = vmatprep.subr.mxu0 0.0
        %8766 = vmatpush1.msra.mxu0 0.0
        %8767 = vmatprep.subr.mxu0 0.0
        %8768 = vmatpush1.msra.mxu0 0.0
        %8769 = vmatprep.subr.mxu0 0.0
        %8770 = vmatpush1.msra.mxu0 0.0
        %8771 = vmatprep.subr.mxu0 0.0
        %8772 = vmatpush1.msra.mxu0 0.0
        %8773 = vmatprep.subr.mxu0 0.0
        %8774 = vmatpush1.msra.mxu0 0.0
        %8775 = vmatprep.subr.mxu0 0.0
        %8776 = vmatpush1.msra.mxu0 0.0
        %v8777 = vand.u32 %v8631, 4294901760
        %v8778 = vsub.f32 %v8631, %v8777
        %v8779 = vand.u32 %v8778, 4294901760
        %v8780 = vsub.f32 %v8778, %v8779
        %v8781 = vand.u32 %v8780, 4294901760
        %8782 = vmatprep.mubr.f32.mxu0 %v8781
        %v8783 = vand.u32 %v8599, 4294901760
        %v8784 = vsub.f32 %v8599, %v8783
        %v8785 = vand.u32 %v8784, 4294901760
        %v8786 = vsub.f32 %v8784, %v8785
        %v8787 = vand.u32 %v8786, 4294901760
        %8788 = vmatmul.mubr.f32.gmra.mrb[0].mxu0 %v8787
        %v8789 = vpop.f32.mrb[0].mxu0
        %v8790 = vadd.f32 0.0, %v8789
        %v8791 = vpop.f32.mrb[0].mxu0
        %v8792 = vand.u32 %v8633, 4294901760
        %v8793 = vsub.f32 %v8633, %v8792
        %v8794 = vand.u32 %v8793, 4294901760
        %v8795 = vsub.f32 %v8793, %v8794
        %v8796 = vand.u32 %v8795, 4294901760
        %8797 = vmatprep.mubr.f32.mxu0 %v8796
        %v8798 = vand.u32 %v8600, 4294901760
        %v8799 = vsub.f32 %v8600, %v8798
        %v8800 = vand.u32 %v8799, 4294901760
        %v8801 = vsub.f32 %v8799, %v8800
        %v8802 = vand.u32 %v8801, 4294901760
        %8803 = vmatmul.mubr.f32.gmra.mrb[0].mxu0 %v8802
        %v8804 = vpop.f32.mrb[0].mxu0
        %v8805 = vadd.f32 0.0, %v8804
        %v8806 = vpop.f32.mrb[0].mxu0
        %v8807 = vand.u32 %v8635, 4294901760
        %v8808 = vsub.f32 %v8635, %v8807
        %v8809 = vand.u32 %v8808, 4294901760
        %v8810 = vsub.f32 %v8808, %v8809
        %v8811 = vand.u32 %v8810, 4294901760
        %8812 = vmatprep.mubr.f32.mxu0 %v8811
        %v8813 = vand.u32 %v8601, 4294901760
        %v8814 = vsub.f32 %v8601, %v8813
        %v8815 = vand.u32 %v8814, 4294901760
        %v8816 = vsub.f32 %v8814, %v8815
        %v8817 = vand.u32 %v8816, 4294901760
        %8818 = vmatmul.mubr.f32.gmra.mrb[0].mxu0 %v8817
        %v8819 = vpop.f32.mrb[0].mxu0
        %v8820 = vadd.f32 0.0, %v8819
        %v8821 = vpop.f32.mrb[0].mxu0
        %v8822 = vand.u32 %v8637, 4294901760
        %v8823 = vsub.f32 %v8637, %v8822
        %v8824 = vand.u32 %v8823, 4294901760
        %v8825 = vsub.f32 %v8823, %v8824
        %v8826 = vand.u32 %v8825, 4294901760
        %8827 = vmatprep.mubr.f32.mxu0 %v8826
        %v8828 = vand.u32 %v8602, 4294901760
        %v8829 = vsub.f32 %v8602, %v8828
        %v8830 = vand.u32 %v8829, 4294901760
        %v8831 = vsub.f32 %v8829, %v8830
        %v8832 = vand.u32 %v8831, 4294901760
        %8833 = vmatmul.mubr.f32.gmra.mrb[0].mxu0 %v8832
        %v8834 = vpop.f32.mrb[0].mxu0
        %v8835 = vadd.f32 0.0, %v8834
        %v8836 = vpop.f32.mrb[0].mxu0
        %v8837 = vand.u32 %v8639, 4294901760
        %v8838 = vsub.f32 %v8639, %v8837
        %v8839 = vand.u32 %v8838, 4294901760
        %v8840 = vsub.f32 %v8838, %v8839
        %v8841 = vand.u32 %v8840, 4294901760
        %8842 = vmatprep.mubr.f32.mxu0 %v8841
        %v8843 = vand.u32 %v8603, 4294901760
        %v8844 = vsub.f32 %v8603, %v8843
        %v8845 = vand.u32 %v8844, 4294901760
        %v8846 = vsub.f32 %v8844, %v8845
        %v8847 = vand.u32 %v8846, 4294901760
        %8848 = vmatmul.mubr.f32.gmra.mrb[0].mxu0 %v8847
        %v8849 = vpop.f32.mrb[0].mxu0
        %v8850 = vadd.f32 0.0, %v8849
        %v8851 = vpop.f32.mrb[0].mxu0
        %v8852 = vand.u32 %v8641, 4294901760
        %v8853 = vsub.f32 %v8641, %v8852
        %v8854 = vand.u32 %v8853, 4294901760
        %v8855 = vsub.f32 %v8853, %v8854
        %v8856 = vand.u32 %v8855, 4294901760
        %8857 = vmatprep.mubr.f32.mxu0 %v8856
        %v8858 = vand.u32 %v8604, 4294901760
        %v8859 = vsub.f32 %v8604, %v8858
        %v8860 = vand.u32 %v8859, 4294901760
        %v8861 = vsub.f32 %v8859, %v8860
        %v8862 = vand.u32 %v8861, 4294901760
        %8863 = vmatmul.mubr.f32.gmra.mrb[0].mxu0 %v8862
        %v8864 = vpop.f32.mrb[0].mxu0
        %v8865 = vadd.f32 0.0, %v8864
        %v8866 = vpop.f32.mrb[0].mxu0
        %v8867 = vand.u32 %v8643, 4294901760
        %v8868 = vsub.f32 %v8643, %v8867
        %v8869 = vand.u32 %v8868, 4294901760
        %v8870 = vsub.f32 %v8868, %v8869
        %v8871 = vand.u32 %v8870, 4294901760
        %8872 = vmatprep.mubr.f32.mxu0 %v8871
        %v8873 = vand.u32 %v8605, 4294901760
        %v8874 = vsub.f32 %v8605, %v8873
        %v8875 = vand.u32 %v8874, 4294901760
        %v8876 = vsub.f32 %v8874, %v8875
        %v8877 = vand.u32 %v8876, 4294901760
        %8878 = vmatmul.mubr.f32.gmra.mrb[0].mxu0 %v8877
        %v8879 = vpop.f32.mrb[0].mxu0
        %v8880 = vadd.f32 0.0, %v8879
        %v8881 = vpop.f32.mrb[0].mxu0
        %v8882 = vand.u32 %v8645, 4294901760
        %v8883 = vsub.f32 %v8645, %v8882
        %v8884 = vand.u32 %v8883, 4294901760
        %v8885 = vsub.f32 %v8883, %v8884
        %v8886 = vand.u32 %v8885, 4294901760
        %8887 = vmatprep.mubr.f32.mxu0 %v8886
        %v8888 = vand.u32 %v8606, 4294901760
        %v8889 = vsub.f32 %v8606, %v8888
        %v8890 = vand.u32 %v8889, 4294901760
        %v8891 = vsub.f32 %v8889, %v8890
        %v8892 = vand.u32 %v8891, 4294901760
        %8893 = vmatmul.mubr.f32.gmra.mrb[0].mxu0 %v8892
        %v8894 = vpop.f32.mrb[0].mxu0
        %v8895 = vadd.f32 0.0, %v8894
        %v8896 = vpop.f32.mrb[0].mxu0
        %v8897 = vand.u32 %v8647, 4294901760
        %v8898 = vsub.f32 %v8647, %v8897
        %v8899 = vand.u32 %v8898, 4294901760
        %v8900 = vsub.f32 %v8898, %v8899
        %v8901 = vand.u32 %v8900, 4294901760
        %8902 = vmatprep.mubr.f32.mxu0 %v8901
        %v8903 = vand.u32 %v8607, 4294901760
        %v8904 = vsub.f32 %v8607, %v8903
        %v8905 = vand.u32 %v8904, 4294901760
        %v8906 = vsub.f32 %v8904, %v8905
        %v8907 = vand.u32 %v8906, 4294901760
        %8908 = vmatmul.mubr.f32.gmra.mrb[0].mxu0 %v8907
        %v8909 = vpop.f32.mrb[0].mxu0
        %v8910 = vadd.f32 0.0, %v8909
        %v8911 = vpop.f32.mrb[0].mxu0
        %v8912 = vand.u32 %v8649, 4294901760
        %v8913 = vsub.f32 %v8649, %v8912
        %v8914 = vand.u32 %v8913, 4294901760
        %v8915 = vsub.f32 %v8913, %v8914
        %v8916 = vand.u32 %v8915, 4294901760
        %8917 = vmatprep.mubr.f32.mxu0 %v8916
        %v8918 = vand.u32 %v8608, 4294901760
        %v8919 = vsub.f32 %v8608, %v8918
        %v8920 = vand.u32 %v8919, 4294901760
        %v8921 = vsub.f32 %v8919, %v8920
        %v8922 = vand.u32 %v8921, 4294901760
        %8923 = vmatmul.mubr.f32.gmra.mrb[0].mxu0 %v8922
        %v8924 = vpop.f32.mrb[0].mxu0
        %v8925 = vadd.f32 0.0, %v8924
        %v8926 = vpop.f32.mrb[0].mxu0
        %v8927 = vand.u32 %v8651, 4294901760
        %v8928 = vsub.f32 %v8651, %v8927
        %v8929 = vand.u32 %v8928, 4294901760
        %v8930 = vsub.f32 %v8928, %v8929
        %v8931 = vand.u32 %v8930, 4294901760
        %8932 = vmatprep.mubr.f32.mxu0 %v8931
        %v8933 = vand.u32 %v8609, 4294901760
        %v8934 = vsub.f32 %v8609, %v8933
        %v8935 = vand.u32 %v8934, 4294901760
        %v8936 = vsub.f32 %v8934, %v8935
        %v8937 = vand.u32 %v8936, 4294901760
        %8938 = vmatmul.mubr.f32.gmra.mrb[0].mxu0 %v8937
        %v8939 = vpop.f32.mrb[0].mxu0
        %v8940 = vadd.f32 0.0, %v8939
        %v8941 = vpop.f32.mrb[0].mxu0
        %v8942 = vand.u32 %v8653, 4294901760
        %v8943 = vsub.f32 %v8653, %v8942
        %v8944 = vand.u32 %v8943, 4294901760
        %v8945 = vsub.f32 %v8943, %v8944
        %v8946 = vand.u32 %v8945, 4294901760
        %8947 = vmatprep.mubr.f32.mxu0 %v8946
        %v8948 = vand.u32 %v8610, 4294901760
        %v8949 = vsub.f32 %v8610, %v8948
        %v8950 = vand.u32 %v8949, 4294901760
        %v8951 = vsub.f32 %v8949, %v8950
        %v8952 = vand.u32 %v8951, 4294901760
        %8953 = vmatmul.mubr.f32.gmra.mrb[0].mxu0 %v8952
        %v8954 = vpop.f32.mrb[0].mxu0
        %v8955 = vadd.f32 0.0, %v8954
        %v8956 = vpop.f32.mrb[0].mxu0
        %v8957 = vand.u32 %v8655, 4294901760
        %v8958 = vsub.f32 %v8655, %v8957
        %v8959 = vand.u32 %v8958, 4294901760
        %v8960 = vsub.f32 %v8958, %v8959
        %v8961 = vand.u32 %v8960, 4294901760
        %8962 = vmatprep.mubr.f32.mxu0 %v8961
        %v8963 = vand.u32 %v8611, 4294901760
        %v8964 = vsub.f32 %v8611, %v8963
        %v8965 = vand.u32 %v8964, 4294901760
        %v8966 = vsub.f32 %v8964, %v8965
        %v8967 = vand.u32 %v8966, 4294901760
        %8968 = vmatmul.mubr.f32.gmra.mrb[0].mxu0 %v8967
        %v8969 = vpop.f32.mrb[0].mxu0
        %v8970 = vadd.f32 0.0, %v8969
        %v8971 = vpop.f32.mrb[0].mxu0
        %v8972 = vand.u32 %v8657, 4294901760
        %v8973 = vsub.f32 %v8657, %v8972
        %v8974 = vand.u32 %v8973, 4294901760
        %v8975 = vsub.f32 %v8973, %v8974
        %v8976 = vand.u32 %v8975, 4294901760
        %8977 = vmatprep.mubr.f32.mxu0 %v8976
        %v8978 = vand.u32 %v8612, 4294901760
        %v8979 = vsub.f32 %v8612, %v8978
        %v8980 = vand.u32 %v8979, 4294901760
        %v8981 = vsub.f32 %v8979, %v8980
        %v8982 = vand.u32 %v8981, 4294901760
        %8983 = vmatmul.mubr.f32.gmra.mrb[0].mxu0 %v8982
        %v8984 = vpop.f32.mrb[0].mxu0
        %v8985 = vadd.f32 0.0, %v8984
        %v8986 = vpop.f32.mrb[0].mxu0
        %v8987 = vand.u32 %v8659, 4294901760
        %v8988 = vsub.f32 %v8659, %v8987
        %v8989 = vand.u32 %v8988, 4294901760
        %v8990 = vsub.f32 %v8988, %v8989
        %v8991 = vand.u32 %v8990, 4294901760
        %8992 = vmatprep.mubr.f32.mxu0 %v8991
        %v8993 = vand.u32 %v8613, 4294901760
        %v8994 = vsub.f32 %v8613, %v8993
        %v8995 = vand.u32 %v8994, 4294901760
        %v8996 = vsub.f32 %v8994, %v8995
        %v8997 = vand.u32 %v8996, 4294901760
        %8998 = vmatmul.mubr.f32.gmra.mrb[0].mxu0 %v8997
        %v8999 = vpop.f32.mrb[0].mxu0
        %v9000 = vadd.f32 0.0, %v8999
        %v9001 = vpop.f32.mrb[0].mxu0
        %v9002 = vand.u32 %v8661, 4294901760
        %v9003 = vsub.f32 %v8661, %v9002
        %v9004 = vand.u32 %v9003, 4294901760
        %v9005 = vsub.f32 %v9003, %v9004
        %v9006 = vand.u32 %v9005, 4294901760
        %9007 = vmatprep.mubr.f32.mxu0 %v9006
        %v9008 = vand.u32 %v8614, 4294901760
        %v9009 = vsub.f32 %v8614, %v9008
        %v9010 = vand.u32 %v9009, 4294901760
        %v9011 = vsub.f32 %v9009, %v9010
        %v9012 = vand.u32 %v9011, 4294901760
        %9013 = vmatmul.mubr.f32.gmra.mrb[0].mxu0 %v9012
        %v9014 = vpop.f32.mrb[0].mxu0
        %v9015 = vadd.f32 0.0, %v9014
        %v9016 = vpop.f32.mrb[0].mxu0
        %v9017 = vand.u32 %v8663, 4294901760
        %v9018 = vsub.f32 %v8663, %v9017
        %v9019 = vand.u32 %v9018, 4294901760
        %v9020 = vsub.f32 %v9018, %v9019
        %v9021 = vand.u32 %v9020, 4294901760
        %9022 = vmatprep.mubr.f32.mxu0 %v9021
        %v9023 = vand.u32 %v8615, 4294901760
        %v9024 = vsub.f32 %v8615, %v9023
        %v9025 = vand.u32 %v9024, 4294901760
        %v9026 = vsub.f32 %v9024, %v9025
        %v9027 = vand.u32 %v9026, 4294901760
        %9028 = vmatmul.mubr.f32.gmra.mrb[0].mxu0 %v9027
        %v9029 = vpop.f32.mrb[0].mxu0
        %v9030 = vadd.f32 0.0, %v9029
        %v9031 = vpop.f32.mrb[0].mxu0
        %v9032 = vand.u32 %v8665, 4294901760
        %v9033 = vsub.f32 %v8665, %v9032
        %v9034 = vand.u32 %v9033, 4294901760
        %v9035 = vsub.f32 %v9033, %v9034
        %v9036 = vand.u32 %v9035, 4294901760
        %9037 = vmatprep.mubr.f32.mxu0 %v9036
        %v9038 = vand.u32 %v8616, 4294901760
        %v9039 = vsub.f32 %v8616, %v9038
        %v9040 = vand.u32 %v9039, 4294901760
        %v9041 = vsub.f32 %v9039, %v9040
        %v9042 = vand.u32 %v9041, 4294901760
        %9043 = vmatmul.mubr.f32.gmra.mrb[0].mxu0 %v9042
        %v9044 = vpop.f32.mrb[0].mxu0
        %v9045 = vadd.f32 0.0, %v9044
        %v9046 = vpop.f32.mrb[0].mxu0
        %v9047 = vand.u32 %v8667, 4294901760
        %v9048 = vsub.f32 %v8667, %v9047
        %v9049 = vand.u32 %v9048, 4294901760
        %v9050 = vsub.f32 %v9048, %v9049
        %v9051 = vand.u32 %v9050, 4294901760
        %9052 = vmatprep.mubr.f32.mxu0 %v9051
        %v9053 = vand.u32 %v8617, 4294901760
        %v9054 = vsub.f32 %v8617, %v9053
        %v9055 = vand.u32 %v9054, 4294901760
        %v9056 = vsub.f32 %v9054, %v9055
        %v9057 = vand.u32 %v9056, 4294901760
        %9058 = vmatmul.mubr.f32.gmra.mrb[0].mxu0 %v9057
        %v9059 = vpop.f32.mrb[0].mxu0
        %v9060 = vadd.f32 0.0, %v9059
        %v9061 = vpop.f32.mrb[0].mxu0
        %v9062 = vand.u32 %v8669, 4294901760
        %v9063 = vsub.f32 %v8669, %v9062
        %v9064 = vand.u32 %v9063, 4294901760
        %v9065 = vsub.f32 %v9063, %v9064
        %v9066 = vand.u32 %v9065, 4294901760
        %9067 = vmatprep.mubr.f32.mxu0 %v9066
        %v9068 = vand.u32 %v8618, 4294901760
        %v9069 = vsub.f32 %v8618, %v9068
        %v9070 = vand.u32 %v9069, 4294901760
        %v9071 = vsub.f32 %v9069, %v9070
        %v9072 = vand.u32 %v9071, 4294901760
        %9073 = vmatmul.mubr.f32.gmra.mrb[0].mxu0 %v9072
        %v9074 = vpop.f32.mrb[0].mxu0
        %v9075 = vadd.f32 0.0, %v9074
        %v9076 = vpop.f32.mrb[0].mxu0
        %v9077 = vand.u32 %v8671, 4294901760
        %v9078 = vsub.f32 %v8671, %v9077
        %v9079 = vand.u32 %v9078, 4294901760
        %v9080 = vsub.f32 %v9078, %v9079
        %v9081 = vand.u32 %v9080, 4294901760
        %9082 = vmatprep.mubr.f32.mxu0 %v9081
        %v9083 = vand.u32 %v8619, 4294901760
        %v9084 = vsub.f32 %v8619, %v9083
        %v9085 = vand.u32 %v9084, 4294901760
        %v9086 = vsub.f32 %v9084, %v9085
        %v9087 = vand.u32 %v9086, 4294901760
        %9088 = vmatmul.mubr.f32.gmra.mrb[0].mxu0 %v9087
        %v9089 = vpop.f32.mrb[0].mxu0
        %v9090 = vadd.f32 0.0, %v9089
        %v9091 = vpop.f32.mrb[0].mxu0
        %v9092 = vand.u32 %v8673, 4294901760
        %v9093 = vsub.f32 %v8673, %v9092
        %v9094 = vand.u32 %v9093, 4294901760
        %v9095 = vsub.f32 %v9093, %v9094
        %v9096 = vand.u32 %v9095, 4294901760
        %9097 = vmatprep.mubr.f32.mxu0 %v9096
        %v9098 = vand.u32 %v8620, 4294901760
        %v9099 = vsub.f32 %v8620, %v9098
        %v9100 = vand.u32 %v9099, 4294901760
        %v9101 = vsub.f32 %v9099, %v9100
        %v9102 = vand.u32 %v9101, 4294901760
        %9103 = vmatmul.mubr.f32.gmra.mrb[0].mxu0 %v9102
        %v9104 = vpop.f32.mrb[0].mxu0
        %v9105 = vadd.f32 0.0, %v9104
        %v9106 = vpop.f32.mrb[0].mxu0
        %v9107 = vand.u32 %v8675, 4294901760
        %v9108 = vsub.f32 %v8675, %v9107
        %v9109 = vand.u32 %v9108, 4294901760
        %v9110 = vsub.f32 %v9108, %v9109
        %v9111 = vand.u32 %v9110, 4294901760
        %9112 = vmatprep.mubr.f32.mxu0 %v9111
        %v9113 = vand.u32 %v8621, 4294901760
        %v9114 = vsub.f32 %v8621, %v9113
        %v9115 = vand.u32 %v9114, 4294901760
        %v9116 = vsub.f32 %v9114, %v9115
        %v9117 = vand.u32 %v9116, 4294901760
        %9118 = vmatmul.mubr.f32.gmra.mrb[0].mxu0 %v9117
        %v9119 = vpop.f32.mrb[0].mxu0
        %v9120 = vadd.f32 0.0, %v9119
        %v9121 = vpop.f32.mrb[0].mxu0
        %v9122 = vand.u32 %v8677, 4294901760
        %v9123 = vsub.f32 %v8677, %v9122
        %v9124 = vand.u32 %v9123, 4294901760
        %v9125 = vsub.f32 %v9123, %v9124
        %v9126 = vand.u32 %v9125, 4294901760
        %9127 = vmatprep.mubr.f32.mxu0 %v9126
        %v9128 = vand.u32 %v8622, 4294901760
        %v9129 = vsub.f32 %v8622, %v9128
        %v9130 = vand.u32 %v9129, 4294901760
        %v9131 = vsub.f32 %v9129, %v9130
        %v9132 = vand.u32 %v9131, 4294901760
        %9133 = vmatmul.mubr.f32.gmra.mrb[0].mxu0 %v9132
        %v9134 = vpop.f32.mrb[0].mxu0
        %v9135 = vadd.f32 0.0, %v9134
        %v9136 = vpop.f32.mrb[0].mxu0
        %v9137 = vand.u32 %v8679, 4294901760
        %v9138 = vsub.f32 %v8679, %v9137
        %v9139 = vand.u32 %v9138, 4294901760
        %v9140 = vsub.f32 %v9138, %v9139
        %v9141 = vand.u32 %v9140, 4294901760
        %9142 = vmatprep.mubr.f32.mxu0 %v9141
        %v9143 = vand.u32 %v8623, 4294901760
        %v9144 = vsub.f32 %v8623, %v9143
        %v9145 = vand.u32 %v9144, 4294901760
        %v9146 = vsub.f32 %v9144, %v9145
        %v9147 = vand.u32 %v9146, 4294901760
        %9148 = vmatmul.mubr.f32.gmra.mrb[0].mxu0 %v9147
        %v9149 = vpop.f32.mrb[0].mxu0
        %v9150 = vadd.f32 0.0, %v9149
        %v9151 = vpop.f32.mrb[0].mxu0
        %v9152 = vand.u32 %v8681, 4294901760
        %v9153 = vsub.f32 %v8681, %v9152
        %v9154 = vand.u32 %v9153, 4294901760
        %v9155 = vsub.f32 %v9153, %v9154
        %v9156 = vand.u32 %v9155, 4294901760
        %9157 = vmatprep.mubr.f32.mxu0 %v9156
        %v9158 = vand.u32 %v8624, 4294901760
        %v9159 = vsub.f32 %v8624, %v9158
        %v9160 = vand.u32 %v9159, 4294901760
        %v9161 = vsub.f32 %v9159, %v9160
        %v9162 = vand.u32 %v9161, 4294901760
        %9163 = vmatmul.mubr.f32.gmra.mrb[0].mxu0 %v9162
        %v9164 = vpop.f32.mrb[0].mxu0
        %v9165 = vadd.f32 0.0, %v9164
        %v9166 = vpop.f32.mrb[0].mxu0
        %v9167 = vand.u32 %v8683, 4294901760
        %v9168 = vsub.f32 %v8683, %v9167
        %v9169 = vand.u32 %v9168, 4294901760
        %v9170 = vsub.f32 %v9168, %v9169
        %v9171 = vand.u32 %v9170, 4294901760
        %9172 = vmatprep.mubr.f32.mxu0 %v9171
        %v9173 = vand.u32 %v8625, 4294901760
        %v9174 = vsub.f32 %v8625, %v9173
        %v9175 = vand.u32 %v9174, 4294901760
        %v9176 = vsub.f32 %v9174, %v9175
        %v9177 = vand.u32 %v9176, 4294901760
        %9178 = vmatmul.mubr.f32.gmra.mrb[0].mxu0 %v9177
        %v9179 = vpop.f32.mrb[0].mxu0
        %v9180 = vadd.f32 0.0, %v9179
        %v9181 = vpop.f32.mrb[0].mxu0
        %v9182 = vand.u32 %v8685, 4294901760
        %v9183 = vsub.f32 %v8685, %v9182
        %v9184 = vand.u32 %v9183, 4294901760
        %v9185 = vsub.f32 %v9183, %v9184
        %v9186 = vand.u32 %v9185, 4294901760
        %9187 = vmatprep.mubr.f32.mxu0 %v9186
        %v9188 = vand.u32 %v8626, 4294901760
        %v9189 = vsub.f32 %v8626, %v9188
        %v9190 = vand.u32 %v9189, 4294901760
        %v9191 = vsub.f32 %v9189, %v9190
        %v9192 = vand.u32 %v9191, 4294901760
        %9193 = vmatmul.mubr.f32.gmra.mrb[0].mxu0 %v9192
        %v9194 = vpop.f32.mrb[0].mxu0
        %v9195 = vadd.f32 0.0, %v9194
        %v9196 = vpop.f32.mrb[0].mxu0
        %v9197 = vand.u32 %v8687, 4294901760
        %v9198 = vsub.f32 %v8687, %v9197
        %v9199 = vand.u32 %v9198, 4294901760
        %v9200 = vsub.f32 %v9198, %v9199
        %v9201 = vand.u32 %v9200, 4294901760
        %9202 = vmatprep.mubr.f32.mxu0 %v9201
        %v9203 = vand.u32 %v8627, 4294901760
        %v9204 = vsub.f32 %v8627, %v9203
        %v9205 = vand.u32 %v9204, 4294901760
        %v9206 = vsub.f32 %v9204, %v9205
        %v9207 = vand.u32 %v9206, 4294901760
        %9208 = vmatmul.mubr.f32.gmra.mrb[0].mxu0 %v9207
        %v9209 = vpop.f32.mrb[0].mxu0
        %v9210 = vadd.f32 0.0, %v9209
        %v9211 = vpop.f32.mrb[0].mxu0
        %v9212 = vand.u32 %v8689, 4294901760
        %v9213 = vsub.f32 %v8689, %v9212
        %v9214 = vand.u32 %v9213, 4294901760
        %v9215 = vsub.f32 %v9213, %v9214
        %v9216 = vand.u32 %v9215, 4294901760
        %9217 = vmatprep.mubr.f32.mxu0 %v9216
        %v9218 = vand.u32 %v8628, 4294901760
        %v9219 = vsub.f32 %v8628, %v9218
        %v9220 = vand.u32 %v9219, 4294901760
        %v9221 = vsub.f32 %v9219, %v9220
        %v9222 = vand.u32 %v9221, 4294901760
        %9223 = vmatmul.mubr.f32.gmra.mrb[0].mxu0 %v9222
        %v9224 = vpop.f32.mrb[0].mxu0
        %v9225 = vadd.f32 0.0, %v9224
        %v9226 = vpop.f32.mrb[0].mxu0
        %v9227 = vand.u32 %v8691, 4294901760
        %v9228 = vsub.f32 %v8691, %v9227
        %v9229 = vand.u32 %v9228, 4294901760
        %v9230 = vsub.f32 %v9228, %v9229
        %v9231 = vand.u32 %v9230, 4294901760
        %9232 = vmatprep.mubr.f32.mxu0 %v9231
        %v9233 = vand.u32 %v8629, 4294901760
        %v9234 = vsub.f32 %v8629, %v9233
        %v9235 = vand.u32 %v9234, 4294901760
        %v9236 = vsub.f32 %v9234, %v9235
        %v9237 = vand.u32 %v9236, 4294901760
        %9238 = vmatmul.mubr.f32.gmra.mrb[0].mxu0 %v9237
        %v9239 = vpop.f32.mrb[0].mxu0
        %v9240 = vadd.f32 0.0, %v9239
        %v9241 = vpop.f32.mrb[0].mxu0
        %v9242 = vand.u32 %v8693, 4294901760
        %v9243 = vsub.f32 %v8693, %v9242
        %v9244 = vand.u32 %v9243, 4294901760
        %v9245 = vsub.f32 %v9243, %v9244
        %v9246 = vand.u32 %v9245, 4294901760
        %9247 = vmatprep.mubr.f32.mxu0 %v9246
        %v9248 = vand.u32 %v8630, 4294901760
        %v9249 = vsub.f32 %v8630, %v9248
        %v9250 = vand.u32 %v9249, 4294901760
        %v9251 = vsub.f32 %v9249, %v9250
        %v9252 = vand.u32 %v9251, 4294901760
        %9253 = vmatmul.mubr.f32.gmra.mrb[0].mxu0 %v9252
        %v9254 = vpop.f32.mrb[0].mxu0
        %v9255 = vadd.f32 0.0, %v9254
        %v9256 = vpop.f32.mrb[0].mxu0
        %9257 = vdwg.mxu0
        %9258 = vmatprep.subr.mxu0 0.0
        %v9259 = vand.u32 %v7354, 4294901760
        %v9260 = vsub.f32 %v7354, %v9259
        %v9261 = vand.u32 %v9260, 4294901760
        %v9262 = vsub.f32 %v9260, %v9261
        %v9263 = vand.u32 %v9262, 4294901760
        %9264 = vmatpush1.msra.mxu0 %v9263
        %9265 = vmatprep.subr.mxu0 0.0
        %v9266 = vand.u32 %v7355, 4294901760
        %v9267 = vsub.f32 %v7355, %v9266
        %v9268 = vand.u32 %v9267, 4294901760
        %v9269 = vsub.f32 %v9267, %v9268
        %v9270 = vand.u32 %v9269, 4294901760
        %9271 = vmatpush1.msra.mxu0 %v9270
        %9272 = vmatprep.subr.mxu0 0.0
        %v9273 = vand.u32 %v7356, 4294901760
        %v9274 = vsub.f32 %v7356, %v9273
        %v9275 = vand.u32 %v9274, 4294901760
        %v9276 = vsub.f32 %v9274, %v9275
        %v9277 = vand.u32 %v9276, 4294901760
        %9278 = vmatpush1.msra.mxu0 %v9277
        %9279 = vmatprep.subr.mxu0 0.0
        %v9280 = vand.u32 %v7357, 4294901760
        %v9281 = vsub.f32 %v7357, %v9280
        %v9282 = vand.u32 %v9281, 4294901760
        %v9283 = vsub.f32 %v9281, %v9282
        %v9284 = vand.u32 %v9283, 4294901760
        %9285 = vmatpush1.msra.mxu0 %v9284
        %9286 = vmatprep.subr.mxu0 0.0
        %v9287 = vand.u32 %v7358, 4294901760
        %v9288 = vsub.f32 %v7358, %v9287
        %v9289 = vand.u32 %v9288, 4294901760
        %v9290 = vsub.f32 %v9288, %v9289
        %v9291 = vand.u32 %v9290, 4294901760
        %9292 = vmatpush1.msra.mxu0 %v9291
        %9293 = vmatprep.subr.mxu0 0.0
        %v9294 = vand.u32 %v7359, 4294901760
        %v9295 = vsub.f32 %v7359, %v9294
        %v9296 = vand.u32 %v9295, 4294901760
        %v9297 = vsub.f32 %v9295, %v9296
        %v9298 = vand.u32 %v9297, 4294901760
        %9299 = vmatpush1.msra.mxu0 %v9298
        %9300 = vmatprep.subr.mxu0 0.0
        %v9301 = vand.u32 %v7360, 4294901760
        %v9302 = vsub.f32 %v7360, %v9301
        %v9303 = vand.u32 %v9302, 4294901760
        %v9304 = vsub.f32 %v9302, %v9303
        %v9305 = vand.u32 %v9304, 4294901760
        %9306 = vmatpush1.msra.mxu0 %v9305
        %9307 = vmatprep.subr.mxu0 0.0
        %v9308 = vand.u32 %v7361, 4294901760
        %v9309 = vsub.f32 %v7361, %v9308
        %v9310 = vand.u32 %v9309, 4294901760
        %v9311 = vsub.f32 %v9309, %v9310
        %v9312 = vand.u32 %v9311, 4294901760
        %9313 = vmatpush1.msra.mxu0 %v9312
        %9314 = vmatprep.subr.mxu0 0.0
        %v9315 = vand.u32 %v7362, 4294901760
        %v9316 = vsub.f32 %v7362, %v9315
        %v9317 = vand.u32 %v9316, 4294901760
        %v9318 = vsub.f32 %v9316, %v9317
        %v9319 = vand.u32 %v9318, 4294901760
        %9320 = vmatpush1.msra.mxu0 %v9319
        %9321 = vmatprep.subr.mxu0 0.0
        %v9322 = vand.u32 %v7363, 4294901760
        %v9323 = vsub.f32 %v7363, %v9322
        %v9324 = vand.u32 %v9323, 4294901760
        %v9325 = vsub.f32 %v9323, %v9324
        %v9326 = vand.u32 %v9325, 4294901760
        %9327 = vmatpush1.msra.mxu0 %v9326
        %9328 = vmatprep.subr.mxu0 0.0
        %v9329 = vand.u32 %v7364, 4294901760
        %v9330 = vsub.f32 %v7364, %v9329
        %v9331 = vand.u32 %v9330, 4294901760
        %v9332 = vsub.f32 %v9330, %v9331
        %v9333 = vand.u32 %v9332, 4294901760
        %9334 = vmatpush1.msra.mxu0 %v9333
        %9335 = vmatprep.subr.mxu0 0.0
        %v9336 = vand.u32 %v7365, 4294901760
        %v9337 = vsub.f32 %v7365, %v9336
        %v9338 = vand.u32 %v9337, 4294901760
        %v9339 = vsub.f32 %v9337, %v9338
        %v9340 = vand.u32 %v9339, 4294901760
        %9341 = vmatpush1.msra.mxu0 %v9340
        %9342 = vmatprep.subr.mxu0 0.0
        %v9343 = vand.u32 %v7366, 4294901760
        %v9344 = vsub.f32 %v7366, %v9343
        %v9345 = vand.u32 %v9344, 4294901760
        %v9346 = vsub.f32 %v9344, %v9345
        %v9347 = vand.u32 %v9346, 4294901760
        %9348 = vmatpush1.msra.mxu0 %v9347
        %9349 = vmatprep.subr.mxu0 0.0
        %v9350 = vand.u32 %v7367, 4294901760
        %v9351 = vsub.f32 %v7367, %v9350
        %v9352 = vand.u32 %v9351, 4294901760
        %v9353 = vsub.f32 %v9351, %v9352
        %v9354 = vand.u32 %v9353, 4294901760
        %9355 = vmatpush1.msra.mxu0 %v9354
        %9356 = vmatprep.subr.mxu0 0.0
        %v9357 = vand.u32 %v7368, 4294901760
        %v9358 = vsub.f32 %v7368, %v9357
        %v9359 = vand.u32 %v9358, 4294901760
        %v9360 = vsub.f32 %v9358, %v9359
        %v9361 = vand.u32 %v9360, 4294901760
        %9362 = vmatpush1.msra.mxu0 %v9361
        %9363 = vmatprep.subr.mxu0 0.0
        %v9364 = vand.u32 %v7369, 4294901760
        %v9365 = vsub.f32 %v7369, %v9364
        %v9366 = vand.u32 %v9365, 4294901760
        %v9367 = vsub.f32 %v9365, %v9366
        %v9368 = vand.u32 %v9367, 4294901760
        %9369 = vmatpush1.msra.mxu0 %v9368
        %9370 = vmatprep.subr.mxu0 0.0
        %v9371 = vand.u32 %v7370, 4294901760
        %v9372 = vsub.f32 %v7370, %v9371
        %v9373 = vand.u32 %v9372, 4294901760
        %v9374 = vsub.f32 %v9372, %v9373
        %v9375 = vand.u32 %v9374, 4294901760
        %9376 = vmatpush1.msra.mxu0 %v9375
        %9377 = vmatprep.subr.mxu0 0.0
        %v9378 = vand.u32 %v7371, 4294901760
        %v9379 = vsub.f32 %v7371, %v9378
        %v9380 = vand.u32 %v9379, 4294901760
        %v9381 = vsub.f32 %v9379, %v9380
        %v9382 = vand.u32 %v9381, 4294901760
        %9383 = vmatpush1.msra.mxu0 %v9382
        %9384 = vmatprep.subr.mxu0 0.0
        %9385 = vmatpush1.msra.mxu0 0.0
        %9386 = vmatprep.subr.mxu0 0.0
        %9387 = vmatpush1.msra.mxu0 0.0
        %9388 = vmatprep.subr.mxu0 0.0
        %9389 = vmatpush1.msra.mxu0 0.0
        %9390 = vmatprep.subr.mxu0 0.0
        %9391 = vmatpush1.msra.mxu0 0.0
        %9392 = vmatprep.subr.mxu0 0.0
        %9393 = vmatpush1.msra.mxu0 0.0
        %9394 = vmatprep.subr.mxu0 0.0
        %9395 = vmatpush1.msra.mxu0 0.0
        %9396 = vmatprep.subr.mxu0 0.0
        %9397 = vmatpush1.msra.mxu0 0.0
        %9398 = vmatprep.subr.mxu0 0.0
        %9399 = vmatpush1.msra.mxu0 0.0
        %9400 = vmatprep.subr.mxu0 0.0
        %9401 = vmatpush1.msra.mxu0 0.0
        %9402 = vmatprep.subr.mxu0 0.0
        %9403 = vmatpush1.msra.mxu0 0.0
        %9404 = vmatprep.subr.mxu0 0.0
        %9405 = vmatpush1.msra.mxu0 0.0
        %9406 = vmatprep.subr.mxu0 0.0
        %9407 = vmatpush1.msra.mxu0 0.0
        %9408 = vmatprep.subr.mxu0 0.0
        %9409 = vmatpush1.msra.mxu0 0.0
        %9410 = vmatprep.subr.mxu0 0.0
        %9411 = vmatpush1.msra.mxu0 0.0
        %v9412 = vand.u32 %v8631, 4294901760
        %9413 = vmatprep.mubr.f32.mxu0 %v9412
        %v9414 = vand.u32 %v8599, 4294901760
        %9415 = vmatmul.mubr.f32.gmra.mrb[0].mxu0 %v9414
        %v9416 = vpop.f32.mrb[0].mxu0
        %v9417 = vadd.f32 %v8790, %v9416
        %v9418 = vpop.f32.mrb[0].mxu0
        %v9419 = vand.u32 %v8633, 4294901760
        %9420 = vmatprep.mubr.f32.mxu0 %v9419
        %v9421 = vand.u32 %v8600, 4294901760
        %9422 = vmatmul.mubr.f32.gmra.mrb[0].mxu0 %v9421
        %v9423 = vpop.f32.mrb[0].mxu0
        %v9424 = vadd.f32 %v8805, %v9423
        %v9425 = vpop.f32.mrb[0].mxu0
        %v9426 = vand.u32 %v8635, 4294901760
        %9427 = vmatprep.mubr.f32.mxu0 %v9426
        %v9428 = vand.u32 %v8601, 4294901760
        %9429 = vmatmul.mubr.f32.gmra.mrb[0].mxu0 %v9428
        %v9430 = vpop.f32.mrb[0].mxu0
        %v9431 = vadd.f32 %v8820, %v9430
        %v9432 = vpop.f32.mrb[0].mxu0
        %v9433 = vand.u32 %v8637, 4294901760
        %9434 = vmatprep.mubr.f32.mxu0 %v9433
        %v9435 = vand.u32 %v8602, 4294901760
        %9436 = vmatmul.mubr.f32.gmra.mrb[0].mxu0 %v9435
        %v9437 = vpop.f32.mrb[0].mxu0
        %v9438 = vadd.f32 %v8835, %v9437
        %v9439 = vpop.f32.mrb[0].mxu0
        %v9440 = vand.u32 %v8639, 4294901760
        %9441 = vmatprep.mubr.f32.mxu0 %v9440
        %v9442 = vand.u32 %v8603, 4294901760
        %9443 = vmatmul.mubr.f32.gmra.mrb[0].mxu0 %v9442
        %v9444 = vpop.f32.mrb[0].mxu0
        %v9445 = vadd.f32 %v8850, %v9444
        %v9446 = vpop.f32.mrb[0].mxu0
        %v9447 = vand.u32 %v8641, 4294901760
        %9448 = vmatprep.mubr.f32.mxu0 %v9447
        %v9449 = vand.u32 %v8604, 4294901760
        %9450 = vmatmul.mubr.f32.gmra.mrb[0].mxu0 %v9449
        %v9451 = vpop.f32.mrb[0].mxu0
        %v9452 = vadd.f32 %v8865, %v9451
        %v9453 = vpop.f32.mrb[0].mxu0
        %v9454 = vand.u32 %v8643, 4294901760
        %9455 = vmatprep.mubr.f32.mxu0 %v9454
        %v9456 = vand.u32 %v8605, 4294901760
        %9457 = vmatmul.mubr.f32.gmra.mrb[0].mxu0 %v9456
        %v9458 = vpop.f32.mrb[0].mxu0
        %v9459 = vadd.f32 %v8880, %v9458
        %v9460 = vpop.f32.mrb[0].mxu0
        %v9461 = vand.u32 %v8645, 4294901760
        %9462 = vmatprep.mubr.f32.mxu0 %v9461
        %v9463 = vand.u32 %v8606, 4294901760
        %9464 = vmatmul.mubr.f32.gmra.mrb[0].mxu0 %v9463
        %v9465 = vpop.f32.mrb[0].mxu0
        %v9466 = vadd.f32 %v8895, %v9465
        %v9467 = vpop.f32.mrb[0].mxu0
        %v9468 = vand.u32 %v8647, 4294901760
        %9469 = vmatprep.mubr.f32.mxu0 %v9468
        %v9470 = vand.u32 %v8607, 4294901760
        %9471 = vmatmul.mubr.f32.gmra.mrb[0].mxu0 %v9470
        %v9472 = vpop.f32.mrb[0].mxu0
        %v9473 = vadd.f32 %v8910, %v9472
        %v9474 = vpop.f32.mrb[0].mxu0
        %v9475 = vand.u32 %v8649, 4294901760
        %9476 = vmatprep.mubr.f32.mxu0 %v9475
        %v9477 = vand.u32 %v8608, 4294901760
        %9478 = vmatmul.mubr.f32.gmra.mrb[0].mxu0 %v9477
        %v9479 = vpop.f32.mrb[0].mxu0
        %v9480 = vadd.f32 %v8925, %v9479
        %v9481 = vpop.f32.mrb[0].mxu0
        %v9482 = vand.u32 %v8651, 4294901760
        %9483 = vmatprep.mubr.f32.mxu0 %v9482
        %v9484 = vand.u32 %v8609, 4294901760
        %9485 = vmatmul.mubr.f32.gmra.mrb[0].mxu0 %v9484
        %v9486 = vpop.f32.mrb[0].mxu0
        %v9487 = vadd.f32 %v8940, %v9486
        %v9488 = vpop.f32.mrb[0].mxu0
        %v9489 = vand.u32 %v8653, 4294901760
        %9490 = vmatprep.mubr.f32.mxu0 %v9489
        %v9491 = vand.u32 %v8610, 4294901760
        %9492 = vmatmul.mubr.f32.gmra.mrb[0].mxu0 %v9491
        %v9493 = vpop.f32.mrb[0].mxu0
        %v9494 = vadd.f32 %v8955, %v9493
        %v9495 = vpop.f32.mrb[0].mxu0
        %v9496 = vand.u32 %v8655, 4294901760
        %9497 = vmatprep.mubr.f32.mxu0 %v9496
        %v9498 = vand.u32 %v8611, 4294901760
        %9499 = vmatmul.mubr.f32.gmra.mrb[0].mxu0 %v9498
        %v9500 = vpop.f32.mrb[0].mxu0
        %v9501 = vadd.f32 %v8970, %v9500
        %v9502 = vpop.f32.mrb[0].mxu0
        %v9503 = vand.u32 %v8657, 4294901760
        %9504 = vmatprep.mubr.f32.mxu0 %v9503
        %v9505 = vand.u32 %v8612, 4294901760
        %9506 = vmatmul.mubr.f32.gmra.mrb[0].mxu0 %v9505
        %v9507 = vpop.f32.mrb[0].mxu0
        %v9508 = vadd.f32 %v8985, %v9507
        %v9509 = vpop.f32.mrb[0].mxu0
        %v9510 = vand.u32 %v8659, 4294901760
        %9511 = vmatprep.mubr.f32.mxu0 %v9510
        %v9512 = vand.u32 %v8613, 4294901760
        %9513 = vmatmul.mubr.f32.gmra.mrb[0].mxu0 %v9512
        %v9514 = vpop.f32.mrb[0].mxu0
        %v9515 = vadd.f32 %v9000, %v9514
        %v9516 = vpop.f32.mrb[0].mxu0
        %v9517 = vand.u32 %v8661, 4294901760
        %9518 = vmatprep.mubr.f32.mxu0 %v9517
        %v9519 = vand.u32 %v8614, 4294901760
        %9520 = vmatmul.mubr.f32.gmra.mrb[0].mxu0 %v9519
        %v9521 = vpop.f32.mrb[0].mxu0
        %v9522 = vadd.f32 %v9015, %v9521
        %v9523 = vpop.f32.mrb[0].mxu0
        %v9524 = vand.u32 %v8663, 4294901760
        %9525 = vmatprep.mubr.f32.mxu0 %v9524
        %v9526 = vand.u32 %v8615, 4294901760
        %9527 = vmatmul.mubr.f32.gmra.mrb[0].mxu0 %v9526
        %v9528 = vpop.f32.mrb[0].mxu0
        %v9529 = vadd.f32 %v9030, %v9528
        %v9530 = vpop.f32.mrb[0].mxu0
        %v9531 = vand.u32 %v8665, 4294901760
        %9532 = vmatprep.mubr.f32.mxu0 %v9531
        %v9533 = vand.u32 %v8616, 4294901760
        %9534 = vmatmul.mubr.f32.gmra.mrb[0].mxu0 %v9533
        %v9535 = vpop.f32.mrb[0].mxu0
        %v9536 = vadd.f32 %v9045, %v9535
        %v9537 = vpop.f32.mrb[0].mxu0
        %v9538 = vand.u32 %v8667, 4294901760
        %9539 = vmatprep.mubr.f32.mxu0 %v9538
        %v9540 = vand.u32 %v8617, 4294901760
        %9541 = vmatmul.mubr.f32.gmra.mrb[0].mxu0 %v9540
        %v9542 = vpop.f32.mrb[0].mxu0
        %v9543 = vadd.f32 %v9060, %v9542
        %v9544 = vpop.f32.mrb[0].mxu0
        %v9545 = vand.u32 %v8669, 4294901760
        %9546 = vmatprep.mubr.f32.mxu0 %v9545
        %v9547 = vand.u32 %v8618, 4294901760
        %9548 = vmatmul.mubr.f32.gmra.mrb[0].mxu0 %v9547
        %v9549 = vpop.f32.mrb[0].mxu0
        %v9550 = vadd.f32 %v9075, %v9549
        %v9551 = vpop.f32.mrb[0].mxu0
        %v9552 = vand.u32 %v8671, 4294901760
        %9553 = vmatprep.mubr.f32.mxu0 %v9552
        %v9554 = vand.u32 %v8619, 4294901760
        %9555 = vmatmul.mubr.f32.gmra.mrb[0].mxu0 %v9554
        %v9556 = vpop.f32.mrb[0].mxu0
        %v9557 = vadd.f32 %v9090, %v9556
        %v9558 = vpop.f32.mrb[0].mxu0
        %v9559 = vand.u32 %v8673, 4294901760
        %9560 = vmatprep.mubr.f32.mxu0 %v9559
        %v9561 = vand.u32 %v8620, 4294901760
        %9562 = vmatmul.mubr.f32.gmra.mrb[0].mxu0 %v9561
        %v9563 = vpop.f32.mrb[0].mxu0
        %v9564 = vadd.f32 %v9105, %v9563
        %v9565 = vpop.f32.mrb[0].mxu0
        %v9566 = vand.u32 %v8675, 4294901760
        %9567 = vmatprep.mubr.f32.mxu0 %v9566
        %v9568 = vand.u32 %v8621, 4294901760
        %9569 = vmatmul.mubr.f32.gmra.mrb[0].mxu0 %v9568
        %v9570 = vpop.f32.mrb[0].mxu0
        %v9571 = vadd.f32 %v9120, %v9570
        %v9572 = vpop.f32.mrb[0].mxu0
        %v9573 = vand.u32 %v8677, 4294901760
        %9574 = vmatprep.mubr.f32.mxu0 %v9573
        %v9575 = vand.u32 %v8622, 4294901760
        %9576 = vmatmul.mubr.f32.gmra.mrb[0].mxu0 %v9575
        %v9577 = vpop.f32.mrb[0].mxu0
        %v9578 = vadd.f32 %v9135, %v9577
        %v9579 = vpop.f32.mrb[0].mxu0
        %v9580 = vand.u32 %v8679, 4294901760
        %9581 = vmatprep.mubr.f32.mxu0 %v9580
        %v9582 = vand.u32 %v8623, 4294901760
        %9583 = vmatmul.mubr.f32.gmra.mrb[0].mxu0 %v9582
        %v9584 = vpop.f32.mrb[0].mxu0
        %v9585 = vadd.f32 %v9150, %v9584
        %v9586 = vpop.f32.mrb[0].mxu0
        %v9587 = vand.u32 %v8681, 4294901760
        %9588 = vmatprep.mubr.f32.mxu0 %v9587
        %v9589 = vand.u32 %v8624, 4294901760
        %9590 = vmatmul.mubr.f32.gmra.mrb[0].mxu0 %v9589
        %v9591 = vpop.f32.mrb[0].mxu0
        %v9592 = vadd.f32 %v9165, %v9591
        %v9593 = vpop.f32.mrb[0].mxu0
        %v9594 = vand.u32 %v8683, 4294901760
        %9595 = vmatprep.mubr.f32.mxu0 %v9594
        %v9596 = vand.u32 %v8625, 4294901760
        %9597 = vmatmul.mubr.f32.gmra.mrb[0].mxu0 %v9596
        %v9598 = vpop.f32.mrb[0].mxu0
        %v9599 = vadd.f32 %v9180, %v9598
        %v9600 = vpop.f32.mrb[0].mxu0
        %v9601 = vand.u32 %v8685, 4294901760
        %9602 = vmatprep.mubr.f32.mxu0 %v9601
        %v9603 = vand.u32 %v8626, 4294901760
        %9604 = vmatmul.mubr.f32.gmra.mrb[0].mxu0 %v9603
        %v9605 = vpop.f32.mrb[0].mxu0
        %v9606 = vadd.f32 %v9195, %v9605
        %v9607 = vpop.f32.mrb[0].mxu0
        %v9608 = vand.u32 %v8687, 4294901760
        %9609 = vmatprep.mubr.f32.mxu0 %v9608
        %v9610 = vand.u32 %v8627, 4294901760
        %9611 = vmatmul.mubr.f32.gmra.mrb[0].mxu0 %v9610
        %v9612 = vpop.f32.mrb[0].mxu0
        %v9613 = vadd.f32 %v9210, %v9612
        %v9614 = vpop.f32.mrb[0].mxu0
        %v9615 = vand.u32 %v8689, 4294901760
        %9616 = vmatprep.mubr.f32.mxu0 %v9615
        %v9617 = vand.u32 %v8628, 4294901760
        %9618 = vmatmul.mubr.f32.gmra.mrb[0].mxu0 %v9617
        %v9619 = vpop.f32.mrb[0].mxu0
        %v9620 = vadd.f32 %v9225, %v9619
        %v9621 = vpop.f32.mrb[0].mxu0
        %v9622 = vand.u32 %v8691, 4294901760
        %9623 = vmatprep.mubr.f32.mxu0 %v9622
        %v9624 = vand.u32 %v8629, 4294901760
        %9625 = vmatmul.mubr.f32.gmra.mrb[0].mxu0 %v9624
        %v9626 = vpop.f32.mrb[0].mxu0
        %v9627 = vadd.f32 %v9240, %v9626
        %v9628 = vpop.f32.mrb[0].mxu0
        %v9629 = vand.u32 %v8693, 4294901760
        %9630 = vmatprep.mubr.f32.mxu0 %v9629
        %v9631 = vand.u32 %v8630, 4294901760
        %9632 = vmatmul.mubr.f32.gmra.mrb[0].mxu0 %v9631
        %v9633 = vpop.f32.mrb[0].mxu0
        %v9634 = vadd.f32 %v9255, %v9633
        %v9635 = vpop.f32.mrb[0].mxu0
        %9636 = vdwg.mxu0
        %9637 = vmatprep.subr.mxu0 0.0
        %v9638 = vand.u32 %v7354, 4294901760
        %v9639 = vsub.f32 %v7354, %v9638
        %9640 = vmatpush1.msra.mxu0 %v9639
        %9641 = vmatprep.subr.mxu0 0.0
        %v9642 = vand.u32 %v7355, 4294901760
        %v9643 = vsub.f32 %v7355, %v9642
        %9644 = vmatpush1.msra.mxu0 %v9643
        %9645 = vmatprep.subr.mxu0 0.0
        %v9646 = vand.u32 %v7356, 4294901760
        %v9647 = vsub.f32 %v7356, %v9646
        %9648 = vmatpush1.msra.mxu0 %v9647
        %9649 = vmatprep.subr.mxu0 0.0
        %v9650 = vand.u32 %v7357, 4294901760
        %v9651 = vsub.f32 %v7357, %v9650
        %9652 = vmatpush1.msra.mxu0 %v9651
        %9653 = vmatprep.subr.mxu0 0.0
        %v9654 = vand.u32 %v7358, 4294901760
        %v9655 = vsub.f32 %v7358, %v9654
        %9656 = vmatpush1.msra.mxu0 %v9655
        %9657 = vmatprep.subr.mxu0 0.0
        %v9658 = vand.u32 %v7359, 4294901760
        %v9659 = vsub.f32 %v7359, %v9658
        %9660 = vmatpush1.msra.mxu0 %v9659
        %9661 = vmatprep.subr.mxu0 0.0
        %v9662 = vand.u32 %v7360, 4294901760
        %v9663 = vsub.f32 %v7360, %v9662
        %9664 = vmatpush1.msra.mxu0 %v9663
        %9665 = vmatprep.subr.mxu0 0.0
        %v9666 = vand.u32 %v7361, 4294901760
        %v9667 = vsub.f32 %v7361, %v9666
        %9668 = vmatpush1.msra.mxu0 %v9667
        %9669 = vmatprep.subr.mxu0 0.0
        %v9670 = vand.u32 %v7362, 4294901760
        %v9671 = vsub.f32 %v7362, %v9670
        %9672 = vmatpush1.msra.mxu0 %v9671
        %9673 = vmatprep.subr.mxu0 0.0
        %v9674 = vand.u32 %v7363, 4294901760
        %v9675 = vsub.f32 %v7363, %v9674
        %9676 = vmatpush1.msra.mxu0 %v9675
        %9677 = vmatprep.subr.mxu0 0.0
        %v9678 = vand.u32 %v7364, 4294901760
        %v9679 = vsub.f32 %v7364, %v9678
        %9680 = vmatpush1.msra.mxu0 %v9679
        %9681 = vmatprep.subr.mxu0 0.0
        %v9682 = vand.u32 %v7365, 4294901760
        %v9683 = vsub.f32 %v7365, %v9682
        %9684 = vmatpush1.msra.mxu0 %v9683
        %9685 = vmatprep.subr.mxu0 0.0
        %v9686 = vand.u32 %v7366, 4294901760
        %v9687 = vsub.f32 %v7366, %v9686
        %9688 = vmatpush1.msra.mxu0 %v9687
        %9689 = vmatprep.subr.mxu0 0.0
        %v9690 = vand.u32 %v7367, 4294901760
        %v9691 = vsub.f32 %v7367, %v9690
        %9692 = vmatpush1.msra.mxu0 %v9691
        %9693 = vmatprep.subr.mxu0 0.0
        %v9694 = vand.u32 %v7368, 4294901760
        %v9695 = vsub.f32 %v7368, %v9694
        %9696 = vmatpush1.msra.mxu0 %v9695
        %9697 = vmatprep.subr.mxu0 0.0
        %v9698 = vand.u32 %v7369, 4294901760
        %v9699 = vsub.f32 %v7369, %v9698
        %9700 = vmatpush1.msra.mxu0 %v9699
        %9701 = vmatprep.subr.mxu0 0.0
        %v9702 = vand.u32 %v7370, 4294901760
        %v9703 = vsub.f32 %v7370, %v9702
        %9704 = vmatpush1.msra.mxu0 %v9703
        %9705 = vmatprep.subr.mxu0 0.0
        %v9706 = vand.u32 %v7371, 4294901760
        %v9707 = vsub.f32 %v7371, %v9706
        %9708 = vmatpush1.msra.mxu0 %v9707
        %9709 = vmatprep.subr.mxu0 0.0
        %9710 = vmatpush1.msra.mxu0 0.0
        %9711 = vmatprep.subr.mxu0 0.0
        %9712 = vmatpush1.msra.mxu0 0.0
        %9713 = vmatprep.subr.mxu0 0.0
        %9714 = vmatpush1.msra.mxu0 0.0
        %9715 = vmatprep.subr.mxu0 0.0
        %9716 = vmatpush1.msra.mxu0 0.0
        %9717 = vmatprep.subr.mxu0 0.0
        %9718 = vmatpush1.msra.mxu0 0.0
        %9719 = vmatprep.subr.mxu0 0.0
        %9720 = vmatpush1.msra.mxu0 0.0
        %9721 = vmatprep.subr.mxu0 0.0
        %9722 = vmatpush1.msra.mxu0 0.0
        %9723 = vmatprep.subr.mxu0 0.0
        %9724 = vmatpush1.msra.mxu0 0.0
        %9725 = vmatprep.subr.mxu0 0.0
        %9726 = vmatpush1.msra.mxu0 0.0
        %9727 = vmatprep.subr.mxu0 0.0
        %9728 = vmatpush1.msra.mxu0 0.0
        %9729 = vmatprep.subr.mxu0 0.0
        %9730 = vmatpush1.msra.mxu0 0.0
        %9731 = vmatprep.subr.mxu0 0.0
        %9732 = vmatpush1.msra.mxu0 0.0
        %9733 = vmatprep.subr.mxu0 0.0
        %9734 = vmatpush1.msra.mxu0 0.0
        %9735 = vmatprep.subr.mxu0 0.0
        %9736 = vmatpush1.msra.mxu0 0.0
        %v9737 = vand.u32 %v8631, 4294901760
        %v9738 = vsub.f32 %v8631, %v9737
        %9739 = vmatprep.mubr.f32.mxu0 %v9738
        %v9740 = vand.u32 %v8599, 4294901760
        %v9741 = vsub.f32 %v8599, %v9740
        %9742 = vmatmul.mubr.f32.gmra.mrb[0].mxu0 %v9741
        %v9743 = vpop.f32.mrb[0].mxu0
        %v9744 = vadd.f32 %v9417, %v9743
        %v9745 = vpop.f32.mrb[0].mxu0
        %v9746 = vand.u32 %v8633, 4294901760
        %v9747 = vsub.f32 %v8633, %v9746
        %9748 = vmatprep.mubr.f32.mxu0 %v9747
        %v9749 = vand.u32 %v8600, 4294901760
        %v9750 = vsub.f32 %v8600, %v9749
        %9751 = vmatmul.mubr.f32.gmra.mrb[0].mxu0 %v9750
        %v9752 = vpop.f32.mrb[0].mxu0
        %v9753 = vadd.f32 %v9424, %v9752
        %v9754 = vpop.f32.mrb[0].mxu0
        %v9755 = vand.u32 %v8635, 4294901760
        %v9756 = vsub.f32 %v8635, %v9755
        %9757 = vmatprep.mubr.f32.mxu0 %v9756
        %v9758 = vand.u32 %v8601, 4294901760
        %v9759 = vsub.f32 %v8601, %v9758
        %9760 = vmatmul.mubr.f32.gmra.mrb[0].mxu0 %v9759
        %v9761 = vpop.f32.mrb[0].mxu0
        %v9762 = vadd.f32 %v9431, %v9761
        %v9763 = vpop.f32.mrb[0].mxu0
        %v9764 = vand.u32 %v8637, 4294901760
        %v9765 = vsub.f32 %v8637, %v9764
        %9766 = vmatprep.mubr.f32.mxu0 %v9765
        %v9767 = vand.u32 %v8602, 4294901760
        %v9768 = vsub.f32 %v8602, %v9767
        %9769 = vmatmul.mubr.f32.gmra.mrb[0].mxu0 %v9768
        %v9770 = vpop.f32.mrb[0].mxu0
        %v9771 = vadd.f32 %v9438, %v9770
        %v9772 = vpop.f32.mrb[0].mxu0
        %v9773 = vand.u32 %v8639, 4294901760
        %v9774 = vsub.f32 %v8639, %v9773
        %9775 = vmatprep.mubr.f32.mxu0 %v9774
        %v9776 = vand.u32 %v8603, 4294901760
        %v9777 = vsub.f32 %v8603, %v9776
        %9778 = vmatmul.mubr.f32.gmra.mrb[0].mxu0 %v9777
        %v9779 = vpop.f32.mrb[0].mxu0
        %v9780 = vadd.f32 %v9445, %v9779
        %v9781 = vpop.f32.mrb[0].mxu0
        %v9782 = vand.u32 %v8641, 4294901760
        %v9783 = vsub.f32 %v8641, %v9782
        %9784 = vmatprep.mubr.f32.mxu0 %v9783
        %v9785 = vand.u32 %v8604, 4294901760
        %v9786 = vsub.f32 %v8604, %v9785
        %9787 = vmatmul.mubr.f32.gmra.mrb[0].mxu0 %v9786
        %v9788 = vpop.f32.mrb[0].mxu0
        %v9789 = vadd.f32 %v9452, %v9788
        %v9790 = vpop.f32.mrb[0].mxu0
        %v9791 = vand.u32 %v8643, 4294901760
        %v9792 = vsub.f32 %v8643, %v9791
        %9793 = vmatprep.mubr.f32.mxu0 %v9792
        %v9794 = vand.u32 %v8605, 4294901760
        %v9795 = vsub.f32 %v8605, %v9794
        %9796 = vmatmul.mubr.f32.gmra.mrb[0].mxu0 %v9795
        %v9797 = vpop.f32.mrb[0].mxu0
        %v9798 = vadd.f32 %v9459, %v9797
        %v9799 = vpop.f32.mrb[0].mxu0
        %v9800 = vand.u32 %v8645, 4294901760
        %v9801 = vsub.f32 %v8645, %v9800
        %9802 = vmatprep.mubr.f32.mxu0 %v9801
        %v9803 = vand.u32 %v8606, 4294901760
        %v9804 = vsub.f32 %v8606, %v9803
        %9805 = vmatmul.mubr.f32.gmra.mrb[0].mxu0 %v9804
        %v9806 = vpop.f32.mrb[0].mxu0
        %v9807 = vadd.f32 %v9466, %v9806
        %v9808 = vpop.f32.mrb[0].mxu0
        %v9809 = vand.u32 %v8647, 4294901760
        %v9810 = vsub.f32 %v8647, %v9809
        %9811 = vmatprep.mubr.f32.mxu0 %v9810
        %v9812 = vand.u32 %v8607, 4294901760
        %v9813 = vsub.f32 %v8607, %v9812
        %9814 = vmatmul.mubr.f32.gmra.mrb[0].mxu0 %v9813
        %v9815 = vpop.f32.mrb[0].mxu0
        %v9816 = vadd.f32 %v9473, %v9815
        %v9817 = vpop.f32.mrb[0].mxu0
        %v9818 = vand.u32 %v8649, 4294901760
        %v9819 = vsub.f32 %v8649, %v9818
        %9820 = vmatprep.mubr.f32.mxu0 %v9819
        %v9821 = vand.u32 %v8608, 4294901760
        %v9822 = vsub.f32 %v8608, %v9821
        %9823 = vmatmul.mubr.f32.gmra.mrb[0].mxu0 %v9822
        %v9824 = vpop.f32.mrb[0].mxu0
        %v9825 = vadd.f32 %v9480, %v9824
        %v9826 = vpop.f32.mrb[0].mxu0
        %v9827 = vand.u32 %v8651, 4294901760
        %v9828 = vsub.f32 %v8651, %v9827
        %9829 = vmatprep.mubr.f32.mxu0 %v9828
        %v9830 = vand.u32 %v8609, 4294901760
        %v9831 = vsub.f32 %v8609, %v9830
        %9832 = vmatmul.mubr.f32.gmra.mrb[0].mxu0 %v9831
        %v9833 = vpop.f32.mrb[0].mxu0
        %v9834 = vadd.f32 %v9487, %v9833
        %v9835 = vpop.f32.mrb[0].mxu0
        %v9836 = vand.u32 %v8653, 4294901760
        %v9837 = vsub.f32 %v8653, %v9836
        %9838 = vmatprep.mubr.f32.mxu0 %v9837
        %v9839 = vand.u32 %v8610, 4294901760
        %v9840 = vsub.f32 %v8610, %v9839
        %9841 = vmatmul.mubr.f32.gmra.mrb[0].mxu0 %v9840
        %v9842 = vpop.f32.mrb[0].mxu0
        %v9843 = vadd.f32 %v9494, %v9842
        %v9844 = vpop.f32.mrb[0].mxu0
        %v9845 = vand.u32 %v8655, 4294901760
        %v9846 = vsub.f32 %v8655, %v9845
        %9847 = vmatprep.mubr.f32.mxu0 %v9846
        %v9848 = vand.u32 %v8611, 4294901760
        %v9849 = vsub.f32 %v8611, %v9848
        %9850 = vmatmul.mubr.f32.gmra.mrb[0].mxu0 %v9849
        %v9851 = vpop.f32.mrb[0].mxu0
        %v9852 = vadd.f32 %v9501, %v9851
        %v9853 = vpop.f32.mrb[0].mxu0
        %v9854 = vand.u32 %v8657, 4294901760
        %v9855 = vsub.f32 %v8657, %v9854
        %9856 = vmatprep.mubr.f32.mxu0 %v9855
        %v9857 = vand.u32 %v8612, 4294901760
        %v9858 = vsub.f32 %v8612, %v9857
        %9859 = vmatmul.mubr.f32.gmra.mrb[0].mxu0 %v9858
        %v9860 = vpop.f32.mrb[0].mxu0
        %v9861 = vadd.f32 %v9508, %v9860
        %v9862 = vpop.f32.mrb[0].mxu0
        %v9863 = vand.u32 %v8659, 4294901760
        %v9864 = vsub.f32 %v8659, %v9863
        %9865 = vmatprep.mubr.f32.mxu0 %v9864
        %v9866 = vand.u32 %v8613, 4294901760
        %v9867 = vsub.f32 %v8613, %v9866
        %9868 = vmatmul.mubr.f32.gmra.mrb[0].mxu0 %v9867
        %v9869 = vpop.f32.mrb[0].mxu0
        %v9870 = vadd.f32 %v9515, %v9869
        %v9871 = vpop.f32.mrb[0].mxu0
        %v9872 = vand.u32 %v8661, 4294901760
        %v9873 = vsub.f32 %v8661, %v9872
        %9874 = vmatprep.mubr.f32.mxu0 %v9873
        %v9875 = vand.u32 %v8614, 4294901760
        %v9876 = vsub.f32 %v8614, %v9875
        %9877 = vmatmul.mubr.f32.gmra.mrb[0].mxu0 %v9876
        %v9878 = vpop.f32.mrb[0].mxu0
        %v9879 = vadd.f32 %v9522, %v9878
        %v9880 = vpop.f32.mrb[0].mxu0
        %v9881 = vand.u32 %v8663, 4294901760
        %v9882 = vsub.f32 %v8663, %v9881
        %9883 = vmatprep.mubr.f32.mxu0 %v9882
        %v9884 = vand.u32 %v8615, 4294901760
        %v9885 = vsub.f32 %v8615, %v9884
        %9886 = vmatmul.mubr.f32.gmra.mrb[0].mxu0 %v9885
        %v9887 = vpop.f32.mrb[0].mxu0
        %v9888 = vadd.f32 %v9529, %v9887
        %v9889 = vpop.f32.mrb[0].mxu0
        %v9890 = vand.u32 %v8665, 4294901760
        %v9891 = vsub.f32 %v8665, %v9890
        %9892 = vmatprep.mubr.f32.mxu0 %v9891
        %v9893 = vand.u32 %v8616, 4294901760
        %v9894 = vsub.f32 %v8616, %v9893
        %9895 = vmatmul.mubr.f32.gmra.mrb[0].mxu0 %v9894
        %v9896 = vpop.f32.mrb[0].mxu0
        %v9897 = vadd.f32 %v9536, %v9896
        %v9898 = vpop.f32.mrb[0].mxu0
        %v9899 = vand.u32 %v8667, 4294901760
        %v9900 = vsub.f32 %v8667, %v9899
        %9901 = vmatprep.mubr.f32.mxu0 %v9900
        %v9902 = vand.u32 %v8617, 4294901760
        %v9903 = vsub.f32 %v8617, %v9902
        %9904 = vmatmul.mubr.f32.gmra.mrb[0].mxu0 %v9903
        %v9905 = vpop.f32.mrb[0].mxu0
        %v9906 = vadd.f32 %v9543, %v9905
        %v9907 = vpop.f32.mrb[0].mxu0
        %v9908 = vand.u32 %v8669, 4294901760
        %v9909 = vsub.f32 %v8669, %v9908
        %9910 = vmatprep.mubr.f32.mxu0 %v9909
        %v9911 = vand.u32 %v8618, 4294901760
        %v9912 = vsub.f32 %v8618, %v9911
        %9913 = vmatmul.mubr.f32.gmra.mrb[0].mxu0 %v9912
        %v9914 = vpop.f32.mrb[0].mxu0
        %v9915 = vadd.f32 %v9550, %v9914
        %v9916 = vpop.f32.mrb[0].mxu0
        %v9917 = vand.u32 %v8671, 4294901760
        %v9918 = vsub.f32 %v8671, %v9917
        %9919 = vmatprep.mubr.f32.mxu0 %v9918
        %v9920 = vand.u32 %v8619, 4294901760
        %v9921 = vsub.f32 %v8619, %v9920
        %9922 = vmatmul.mubr.f32.gmra.mrb[0].mxu0 %v9921
        %v9923 = vpop.f32.mrb[0].mxu0
        %v9924 = vadd.f32 %v9557, %v9923
        %v9925 = vpop.f32.mrb[0].mxu0
        %v9926 = vand.u32 %v8673, 4294901760
        %v9927 = vsub.f32 %v8673, %v9926
        %9928 = vmatprep.mubr.f32.mxu0 %v9927
        %v9929 = vand.u32 %v8620, 4294901760
        %v9930 = vsub.f32 %v8620, %v9929
        %9931 = vmatmul.mubr.f32.gmra.mrb[0].mxu0 %v9930
        %v9932 = vpop.f32.mrb[0].mxu0
        %v9933 = vadd.f32 %v9564, %v9932
        %v9934 = vpop.f32.mrb[0].mxu0
        %v9935 = vand.u32 %v8675, 4294901760
        %v9936 = vsub.f32 %v8675, %v9935
        %9937 = vmatprep.mubr.f32.mxu0 %v9936
        %v9938 = vand.u32 %v8621, 4294901760
        %v9939 = vsub.f32 %v8621, %v9938
        %9940 = vmatmul.mubr.f32.gmra.mrb[0].mxu0 %v9939
        %v9941 = vpop.f32.mrb[0].mxu0
        %v9942 = vadd.f32 %v9571, %v9941
        %v9943 = vpop.f32.mrb[0].mxu0
        %v9944 = vand.u32 %v8677, 4294901760
        %v9945 = vsub.f32 %v8677, %v9944
        %9946 = vmatprep.mubr.f32.mxu0 %v9945
        %v9947 = vand.u32 %v8622, 4294901760
        %v9948 = vsub.f32 %v8622, %v9947
        %9949 = vmatmul.mubr.f32.gmra.mrb[0].mxu0 %v9948
        %v9950 = vpop.f32.mrb[0].mxu0
        %v9951 = vadd.f32 %v9578, %v9950
        %v9952 = vpop.f32.mrb[0].mxu0
        %v9953 = vand.u32 %v8679, 4294901760
        %v9954 = vsub.f32 %v8679, %v9953
        %9955 = vmatprep.mubr.f32.mxu0 %v9954
        %v9956 = vand.u32 %v8623, 4294901760
        %v9957 = vsub.f32 %v8623, %v9956
        %9958 = vmatmul.mubr.f32.gmra.mrb[0].mxu0 %v9957
        %v9959 = vpop.f32.mrb[0].mxu0
        %v9960 = vadd.f32 %v9585, %v9959
        %v9961 = vpop.f32.mrb[0].mxu0
        %v9962 = vand.u32 %v8681, 4294901760
        %v9963 = vsub.f32 %v8681, %v9962
        %9964 = vmatprep.mubr.f32.mxu0 %v9963
        %v9965 = vand.u32 %v8624, 4294901760
        %v9966 = vsub.f32 %v8624, %v9965
        %9967 = vmatmul.mubr.f32.gmra.mrb[0].mxu0 %v9966
        %v9968 = vpop.f32.mrb[0].mxu0
        %v9969 = vadd.f32 %v9592, %v9968
        %v9970 = vpop.f32.mrb[0].mxu0
        %v9971 = vand.u32 %v8683, 4294901760
        %v9972 = vsub.f32 %v8683, %v9971
        %9973 = vmatprep.mubr.f32.mxu0 %v9972
        %v9974 = vand.u32 %v8625, 4294901760
        %v9975 = vsub.f32 %v8625, %v9974
        %9976 = vmatmul.mubr.f32.gmra.mrb[0].mxu0 %v9975
        %v9977 = vpop.f32.mrb[0].mxu0
        %v9978 = vadd.f32 %v9599, %v9977
        %v9979 = vpop.f32.mrb[0].mxu0
        %v9980 = vand.u32 %v8685, 4294901760
        %v9981 = vsub.f32 %v8685, %v9980
        %9982 = vmatprep.mubr.f32.mxu0 %v9981
        %v9983 = vand.u32 %v8626, 4294901760
        %v9984 = vsub.f32 %v8626, %v9983
        %9985 = vmatmul.mubr.f32.gmra.mrb[0].mxu0 %v9984
        %v9986 = vpop.f32.mrb[0].mxu0
        %v9987 = vadd.f32 %v9606, %v9986
        %v9988 = vpop.f32.mrb[0].mxu0
        %v9989 = vand.u32 %v8687, 4294901760
        %v9990 = vsub.f32 %v8687, %v9989
        %9991 = vmatprep.mubr.f32.mxu0 %v9990
        %v9992 = vand.u32 %v8627, 4294901760
        %v9993 = vsub.f32 %v8627, %v9992
        %9994 = vmatmul.mubr.f32.gmra.mrb[0].mxu0 %v9993
        %v9995 = vpop.f32.mrb[0].mxu0
        %v9996 = vadd.f32 %v9613, %v9995
        %v9997 = vpop.f32.mrb[0].mxu0
        %v9998 = vand.u32 %v8689, 4294901760
        %v9999 = vsub.f32 %v8689, %v9998
        %10000 = vmatprep.mubr.f32.mxu0 %v9999
        %v10001 = vand.u32 %v8628, 4294901760
        %v10002 = vsub.f32 %v8628, %v10001
        %10003 = vmatmul.mubr.f32.gmra.mrb[0].mxu0 %v10002
        %v10004 = vpop.f32.mrb[0].mxu0
        %v10005 = vadd.f32 %v9620, %v10004
        %v10006 = vpop.f32.mrb[0].mxu0
        %v10007 = vand.u32 %v8691, 4294901760
        %v10008 = vsub.f32 %v8691, %v10007
        %10009 = vmatprep.mubr.f32.mxu0 %v10008
        %v10010 = vand.u32 %v8629, 4294901760
        %v10011 = vsub.f32 %v8629, %v10010
        %10012 = vmatmul.mubr.f32.gmra.mrb[0].mxu0 %v10011
        %v10013 = vpop.f32.mrb[0].mxu0
        %v10014 = vadd.f32 %v9627, %v10013
        %v10015 = vpop.f32.mrb[0].mxu0
        %v10016 = vand.u32 %v8693, 4294901760
        %v10017 = vsub.f32 %v8693, %v10016
        %10018 = vmatprep.mubr.f32.mxu0 %v10017
        %v10019 = vand.u32 %v8630, 4294901760
        %v10020 = vsub.f32 %v8630, %v10019
        %10021 = vmatmul.mubr.f32.gmra.mrb[0].mxu0 %v10020
        %v10022 = vpop.f32.mrb[0].mxu0
        %v10023 = vadd.f32 %v9634, %v10022
        %v10024 = vpop.f32.mrb[0].mxu0
        %10025 = vdwg.mxu0
        %10026 = vmatprep.subr.mxu0 0.0
        %v10027 = vand.u32 %v7354, 4294901760
        %10028 = vmatpush1.msra.mxu0 %v10027
        %10029 = vmatprep.subr.mxu0 0.0
        %v10030 = vand.u32 %v7355, 4294901760
        %10031 = vmatpush1.msra.mxu0 %v10030
        %10032 = vmatprep.subr.mxu0 0.0
        %v10033 = vand.u32 %v7356, 4294901760
        %10034 = vmatpush1.msra.mxu0 %v10033
        %10035 = vmatprep.subr.mxu0 0.0
        %v10036 = vand.u32 %v7357, 4294901760
        %10037 = vmatpush1.msra.mxu0 %v10036
        %10038 = vmatprep.subr.mxu0 0.0
        %v10039 = vand.u32 %v7358, 4294901760
        %10040 = vmatpush1.msra.mxu0 %v10039
        %10041 = vmatprep.subr.mxu0 0.0
        %v10042 = vand.u32 %v7359, 4294901760
        %10043 = vmatpush1.msra.mxu0 %v10042
        %10044 = vmatprep.subr.mxu0 0.0
        %v10045 = vand.u32 %v7360, 4294901760
        %10046 = vmatpush1.msra.mxu0 %v10045
        %10047 = vmatprep.subr.mxu0 0.0
        %v10048 = vand.u32 %v7361, 4294901760
        %10049 = vmatpush1.msra.mxu0 %v10048
        %10050 = vmatprep.subr.mxu0 0.0
        %v10051 = vand.u32 %v7362, 4294901760
        %10052 = vmatpush1.msra.mxu0 %v10051
        %10053 = vmatprep.subr.mxu0 0.0
        %v10054 = vand.u32 %v7363, 4294901760
        %10055 = vmatpush1.msra.mxu0 %v10054
        %10056 = vmatprep.subr.mxu0 0.0
        %v10057 = vand.u32 %v7364, 4294901760
        %10058 = vmatpush1.msra.mxu0 %v10057
        %10059 = vmatprep.subr.mxu0 0.0
        %v10060 = vand.u32 %v7365, 4294901760
        %10061 = vmatpush1.msra.mxu0 %v10060
        %10062 = vmatprep.subr.mxu0 0.0
        %v10063 = vand.u32 %v7366, 4294901760
        %10064 = vmatpush1.msra.mxu0 %v10063
        %10065 = vmatprep.subr.mxu0 0.0
        %v10066 = vand.u32 %v7367, 4294901760
        %10067 = vmatpush1.msra.mxu0 %v10066
        %10068 = vmatprep.subr.mxu0 0.0
        %v10069 = vand.u32 %v7368, 4294901760
        %10070 = vmatpush1.msra.mxu0 %v10069
        %10071 = vmatprep.subr.mxu0 0.0
        %v10072 = vand.u32 %v7369, 4294901760
        %10073 = vmatpush1.msra.mxu0 %v10072
        %10074 = vmatprep.subr.mxu0 0.0
        %v10075 = vand.u32 %v7370, 4294901760
        %10076 = vmatpush1.msra.mxu0 %v10075
        %10077 = vmatprep.subr.mxu0 0.0
        %v10078 = vand.u32 %v7371, 4294901760
        %10079 = vmatpush1.msra.mxu0 %v10078
        %10080 = vmatprep.subr.mxu0 0.0
        %10081 = vmatpush1.msra.mxu0 0.0
        %10082 = vmatprep.subr.mxu0 0.0
        %10083 = vmatpush1.msra.mxu0 0.0
        %10084 = vmatprep.subr.mxu0 0.0
        %10085 = vmatpush1.msra.mxu0 0.0
        %10086 = vmatprep.subr.mxu0 0.0
        %10087 = vmatpush1.msra.mxu0 0.0
        %10088 = vmatprep.subr.mxu0 0.0
        %10089 = vmatpush1.msra.mxu0 0.0
        %10090 = vmatprep.subr.mxu0 0.0
        %10091 = vmatpush1.msra.mxu0 0.0
        %10092 = vmatprep.subr.mxu0 0.0
        %10093 = vmatpush1.msra.mxu0 0.0
        %10094 = vmatprep.subr.mxu0 0.0
        %10095 = vmatpush1.msra.mxu0 0.0
        %10096 = vmatprep.subr.mxu0 0.0
        %10097 = vmatpush1.msra.mxu0 0.0
        %10098 = vmatprep.subr.mxu0 0.0
        %10099 = vmatpush1.msra.mxu0 0.0
        %10100 = vmatprep.subr.mxu0 0.0
        %10101 = vmatpush1.msra.mxu0 0.0
        %10102 = vmatprep.subr.mxu0 0.0
        %10103 = vmatpush1.msra.mxu0 0.0
        %10104 = vmatprep.subr.mxu0 0.0
        %10105 = vmatpush1.msra.mxu0 0.0
        %10106 = vmatprep.subr.mxu0 0.0
        %10107 = vmatpush1.msra.mxu0 0.0
        %v10108 = vand.u32 %v8631, 4294901760
        %v10109 = vsub.f32 %v8631, %v10108
        %v10110 = vand.u32 %v10109, 4294901760
        %10111 = vmatprep.mubr.f32.mxu0 %v10110
        %v10112 = vand.u32 %v8599, 4294901760
        %v10113 = vsub.f32 %v8599, %v10112
        %v10114 = vand.u32 %v10113, 4294901760
        %10115 = vmatmul.mubr.f32.gmra.mrb[0].mxu0 %v10114
        %v10116 = vpop.f32.mrb[0].mxu0
        %v10117 = vadd.f32 %v9744, %v10116
        %v10118 = vpop.f32.mrb[0].mxu0
        %v10119 = vand.u32 %v8633, 4294901760
        %v10120 = vsub.f32 %v8633, %v10119
        %v10121 = vand.u32 %v10120, 4294901760
        %10122 = vmatprep.mubr.f32.mxu0 %v10121
        %v10123 = vand.u32 %v8600, 4294901760
        %v10124 = vsub.f32 %v8600, %v10123
        %v10125 = vand.u32 %v10124, 4294901760
        %10126 = vmatmul.mubr.f32.gmra.mrb[0].mxu0 %v10125
        %v10127 = vpop.f32.mrb[0].mxu0
        %v10128 = vadd.f32 %v9753, %v10127
        %v10129 = vpop.f32.mrb[0].mxu0
        %v10130 = vand.u32 %v8635, 4294901760
        %v10131 = vsub.f32 %v8635, %v10130
        %v10132 = vand.u32 %v10131, 4294901760
        %10133 = vmatprep.mubr.f32.mxu0 %v10132
        %v10134 = vand.u32 %v8601, 4294901760
        %v10135 = vsub.f32 %v8601, %v10134
        %v10136 = vand.u32 %v10135, 4294901760
        %10137 = vmatmul.mubr.f32.gmra.mrb[0].mxu0 %v10136
        %v10138 = vpop.f32.mrb[0].mxu0
        %v10139 = vadd.f32 %v9762, %v10138
        %v10140 = vpop.f32.mrb[0].mxu0
        %v10141 = vand.u32 %v8637, 4294901760
        %v10142 = vsub.f32 %v8637, %v10141
        %v10143 = vand.u32 %v10142, 4294901760
        %10144 = vmatprep.mubr.f32.mxu0 %v10143
        %v10145 = vand.u32 %v8602, 4294901760
        %v10146 = vsub.f32 %v8602, %v10145
        %v10147 = vand.u32 %v10146, 4294901760
        %10148 = vmatmul.mubr.f32.gmra.mrb[0].mxu0 %v10147
        %v10149 = vpop.f32.mrb[0].mxu0
        %v10150 = vadd.f32 %v9771, %v10149
        %v10151 = vpop.f32.mrb[0].mxu0
        %v10152 = vand.u32 %v8639, 4294901760
        %v10153 = vsub.f32 %v8639, %v10152
        %v10154 = vand.u32 %v10153, 4294901760
        %10155 = vmatprep.mubr.f32.mxu0 %v10154
        %v10156 = vand.u32 %v8603, 4294901760
        %v10157 = vsub.f32 %v8603, %v10156
        %v10158 = vand.u32 %v10157, 4294901760
        %10159 = vmatmul.mubr.f32.gmra.mrb[0].mxu0 %v10158
        %v10160 = vpop.f32.mrb[0].mxu0
        %v10161 = vadd.f32 %v9780, %v10160
        %v10162 = vpop.f32.mrb[0].mxu0
        %v10163 = vand.u32 %v8641, 4294901760
        %v10164 = vsub.f32 %v8641, %v10163
        %v10165 = vand.u32 %v10164, 4294901760
        %10166 = vmatprep.mubr.f32.mxu0 %v10165
        %v10167 = vand.u32 %v8604, 4294901760
        %v10168 = vsub.f32 %v8604, %v10167
        %v10169 = vand.u32 %v10168, 4294901760
        %10170 = vmatmul.mubr.f32.gmra.mrb[0].mxu0 %v10169
        %v10171 = vpop.f32.mrb[0].mxu0
        %v10172 = vadd.f32 %v9789, %v10171
        %v10173 = vpop.f32.mrb[0].mxu0
        %v10174 = vand.u32 %v8643, 4294901760
        %v10175 = vsub.f32 %v8643, %v10174
        %v10176 = vand.u32 %v10175, 4294901760
        %10177 = vmatprep.mubr.f32.mxu0 %v10176
        %v10178 = vand.u32 %v8605, 4294901760
        %v10179 = vsub.f32 %v8605, %v10178
        %v10180 = vand.u32 %v10179, 4294901760
        %10181 = vmatmul.mubr.f32.gmra.mrb[0].mxu0 %v10180
        %v10182 = vpop.f32.mrb[0].mxu0
        %v10183 = vadd.f32 %v9798, %v10182
        %v10184 = vpop.f32.mrb[0].mxu0
        %v10185 = vand.u32 %v8645, 4294901760
        %v10186 = vsub.f32 %v8645, %v10185
        %v10187 = vand.u32 %v10186, 4294901760
        %10188 = vmatprep.mubr.f32.mxu0 %v10187
        %v10189 = vand.u32 %v8606, 4294901760
        %v10190 = vsub.f32 %v8606, %v10189
        %v10191 = vand.u32 %v10190, 4294901760
        %10192 = vmatmul.mubr.f32.gmra.mrb[0].mxu0 %v10191
        %v10193 = vpop.f32.mrb[0].mxu0
        %v10194 = vadd.f32 %v9807, %v10193
        %v10195 = vpop.f32.mrb[0].mxu0
        %v10196 = vand.u32 %v8647, 4294901760
        %v10197 = vsub.f32 %v8647, %v10196
        %v10198 = vand.u32 %v10197, 4294901760
        %10199 = vmatprep.mubr.f32.mxu0 %v10198
        %v10200 = vand.u32 %v8607, 4294901760
        %v10201 = vsub.f32 %v8607, %v10200
        %v10202 = vand.u32 %v10201, 4294901760
        %10203 = vmatmul.mubr.f32.gmra.mrb[0].mxu0 %v10202
        %v10204 = vpop.f32.mrb[0].mxu0
        %v10205 = vadd.f32 %v9816, %v10204
        %v10206 = vpop.f32.mrb[0].mxu0
        %v10207 = vand.u32 %v8649, 4294901760
        %v10208 = vsub.f32 %v8649, %v10207
        %v10209 = vand.u32 %v10208, 4294901760
        %10210 = vmatprep.mubr.f32.mxu0 %v10209
        %v10211 = vand.u32 %v8608, 4294901760
        %v10212 = vsub.f32 %v8608, %v10211
        %v10213 = vand.u32 %v10212, 4294901760
        %10214 = vmatmul.mubr.f32.gmra.mrb[0].mxu0 %v10213
        %v10215 = vpop.f32.mrb[0].mxu0
        %v10216 = vadd.f32 %v9825, %v10215
        %v10217 = vpop.f32.mrb[0].mxu0
        %v10218 = vand.u32 %v8651, 4294901760
        %v10219 = vsub.f32 %v8651, %v10218
        %v10220 = vand.u32 %v10219, 4294901760
        %10221 = vmatprep.mubr.f32.mxu0 %v10220
        %v10222 = vand.u32 %v8609, 4294901760
        %v10223 = vsub.f32 %v8609, %v10222
        %v10224 = vand.u32 %v10223, 4294901760
        %10225 = vmatmul.mubr.f32.gmra.mrb[0].mxu0 %v10224
        %v10226 = vpop.f32.mrb[0].mxu0
        %v10227 = vadd.f32 %v9834, %v10226
        %v10228 = vpop.f32.mrb[0].mxu0
        %v10229 = vand.u32 %v8653, 4294901760
        %v10230 = vsub.f32 %v8653, %v10229
        %v10231 = vand.u32 %v10230, 4294901760
        %10232 = vmatprep.mubr.f32.mxu0 %v10231
        %v10233 = vand.u32 %v8610, 4294901760
        %v10234 = vsub.f32 %v8610, %v10233
        %v10235 = vand.u32 %v10234, 4294901760
        %10236 = vmatmul.mubr.f32.gmra.mrb[0].mxu0 %v10235
        %v10237 = vpop.f32.mrb[0].mxu0
        %v10238 = vadd.f32 %v9843, %v10237
        %v10239 = vpop.f32.mrb[0].mxu0
        %v10240 = vand.u32 %v8655, 4294901760
        %v10241 = vsub.f32 %v8655, %v10240
        %v10242 = vand.u32 %v10241, 4294901760
        %10243 = vmatprep.mubr.f32.mxu0 %v10242
        %v10244 = vand.u32 %v8611, 4294901760
        %v10245 = vsub.f32 %v8611, %v10244
        %v10246 = vand.u32 %v10245, 4294901760
        %10247 = vmatmul.mubr.f32.gmra.mrb[0].mxu0 %v10246
        %v10248 = vpop.f32.mrb[0].mxu0
        %v10249 = vadd.f32 %v9852, %v10248
        %v10250 = vpop.f32.mrb[0].mxu0
        %v10251 = vand.u32 %v8657, 4294901760
        %v10252 = vsub.f32 %v8657, %v10251
        %v10253 = vand.u32 %v10252, 4294901760
        %10254 = vmatprep.mubr.f32.mxu0 %v10253
        %v10255 = vand.u32 %v8612, 4294901760
        %v10256 = vsub.f32 %v8612, %v10255
        %v10257 = vand.u32 %v10256, 4294901760
        %10258 = vmatmul.mubr.f32.gmra.mrb[0].mxu0 %v10257
        %v10259 = vpop.f32.mrb[0].mxu0
        %v10260 = vadd.f32 %v9861, %v10259
        %v10261 = vpop.f32.mrb[0].mxu0
        %v10262 = vand.u32 %v8659, 4294901760
        %v10263 = vsub.f32 %v8659, %v10262
        %v10264 = vand.u32 %v10263, 4294901760
        %10265 = vmatprep.mubr.f32.mxu0 %v10264
        %v10266 = vand.u32 %v8613, 4294901760
        %v10267 = vsub.f32 %v8613, %v10266
        %v10268 = vand.u32 %v10267, 4294901760
        %10269 = vmatmul.mubr.f32.gmra.mrb[0].mxu0 %v10268
        %v10270 = vpop.f32.mrb[0].mxu0
        %v10271 = vadd.f32 %v9870, %v10270
        %v10272 = vpop.f32.mrb[0].mxu0
        %v10273 = vand.u32 %v8661, 4294901760
        %v10274 = vsub.f32 %v8661, %v10273
        %v10275 = vand.u32 %v10274, 4294901760
        %10276 = vmatprep.mubr.f32.mxu0 %v10275
        %v10277 = vand.u32 %v8614, 4294901760
        %v10278 = vsub.f32 %v8614, %v10277
        %v10279 = vand.u32 %v10278, 4294901760
        %10280 = vmatmul.mubr.f32.gmra.mrb[0].mxu0 %v10279
        %v10281 = vpop.f32.mrb[0].mxu0
        %v10282 = vadd.f32 %v9879, %v10281
        %v10283 = vpop.f32.mrb[0].mxu0
        %v10284 = vand.u32 %v8663, 4294901760
        %v10285 = vsub.f32 %v8663, %v10284
        %v10286 = vand.u32 %v10285, 4294901760
        %10287 = vmatprep.mubr.f32.mxu0 %v10286
        %v10288 = vand.u32 %v8615, 4294901760
        %v10289 = vsub.f32 %v8615, %v10288
        %v10290 = vand.u32 %v10289, 4294901760
        %10291 = vmatmul.mubr.f32.gmra.mrb[0].mxu0 %v10290
        %v10292 = vpop.f32.mrb[0].mxu0
        %v10293 = vadd.f32 %v9888, %v10292
        %v10294 = vpop.f32.mrb[0].mxu0
        %v10295 = vand.u32 %v8665, 4294901760
        %v10296 = vsub.f32 %v8665, %v10295
        %v10297 = vand.u32 %v10296, 4294901760
        %10298 = vmatprep.mubr.f32.mxu0 %v10297
        %v10299 = vand.u32 %v8616, 4294901760
        %v10300 = vsub.f32 %v8616, %v10299
        %v10301 = vand.u32 %v10300, 4294901760
        %10302 = vmatmul.mubr.f32.gmra.mrb[0].mxu0 %v10301
        %v10303 = vpop.f32.mrb[0].mxu0
        %v10304 = vadd.f32 %v9897, %v10303
        %v10305 = vpop.f32.mrb[0].mxu0
        %v10306 = vand.u32 %v8667, 4294901760
        %v10307 = vsub.f32 %v8667, %v10306
        %v10308 = vand.u32 %v10307, 4294901760
        %10309 = vmatprep.mubr.f32.mxu0 %v10308
        %v10310 = vand.u32 %v8617, 4294901760
        %v10311 = vsub.f32 %v8617, %v10310
        %v10312 = vand.u32 %v10311, 4294901760
        %10313 = vmatmul.mubr.f32.gmra.mrb[0].mxu0 %v10312
        %v10314 = vpop.f32.mrb[0].mxu0
        %v10315 = vadd.f32 %v9906, %v10314
        %v10316 = vpop.f32.mrb[0].mxu0
        %v10317 = vand.u32 %v8669, 4294901760
        %v10318 = vsub.f32 %v8669, %v10317
        %v10319 = vand.u32 %v10318, 4294901760
        %10320 = vmatprep.mubr.f32.mxu0 %v10319
        %v10321 = vand.u32 %v8618, 4294901760
        %v10322 = vsub.f32 %v8618, %v10321
        %v10323 = vand.u32 %v10322, 4294901760
        %10324 = vmatmul.mubr.f32.gmra.mrb[0].mxu0 %v10323
        %v10325 = vpop.f32.mrb[0].mxu0
        %v10326 = vadd.f32 %v9915, %v10325
        %v10327 = vpop.f32.mrb[0].mxu0
        %v10328 = vand.u32 %v8671, 4294901760
        %v10329 = vsub.f32 %v8671, %v10328
        %v10330 = vand.u32 %v10329, 4294901760
        %10331 = vmatprep.mubr.f32.mxu0 %v10330
        %v10332 = vand.u32 %v8619, 4294901760
        %v10333 = vsub.f32 %v8619, %v10332
        %v10334 = vand.u32 %v10333, 4294901760
        %10335 = vmatmul.mubr.f32.gmra.mrb[0].mxu0 %v10334
        %v10336 = vpop.f32.mrb[0].mxu0
        %v10337 = vadd.f32 %v9924, %v10336
        %v10338 = vpop.f32.mrb[0].mxu0
        %v10339 = vand.u32 %v8673, 4294901760
        %v10340 = vsub.f32 %v8673, %v10339
        %v10341 = vand.u32 %v10340, 4294901760
        %10342 = vmatprep.mubr.f32.mxu0 %v10341
        %v10343 = vand.u32 %v8620, 4294901760
        %v10344 = vsub.f32 %v8620, %v10343
        %v10345 = vand.u32 %v10344, 4294901760
        %10346 = vmatmul.mubr.f32.gmra.mrb[0].mxu0 %v10345
        %v10347 = vpop.f32.mrb[0].mxu0
        %v10348 = vadd.f32 %v9933, %v10347
        %v10349 = vpop.f32.mrb[0].mxu0
        %v10350 = vand.u32 %v8675, 4294901760
        %v10351 = vsub.f32 %v8675, %v10350
        %v10352 = vand.u32 %v10351, 4294901760
        %10353 = vmatprep.mubr.f32.mxu0 %v10352
        %v10354 = vand.u32 %v8621, 4294901760
        %v10355 = vsub.f32 %v8621, %v10354
        %v10356 = vand.u32 %v10355, 4294901760
        %10357 = vmatmul.mubr.f32.gmra.mrb[0].mxu0 %v10356
        %v10358 = vpop.f32.mrb[0].mxu0
        %v10359 = vadd.f32 %v9942, %v10358
        %v10360 = vpop.f32.mrb[0].mxu0
        %v10361 = vand.u32 %v8677, 4294901760
        %v10362 = vsub.f32 %v8677, %v10361
        %v10363 = vand.u32 %v10362, 4294901760
        %10364 = vmatprep.mubr.f32.mxu0 %v10363
        %v10365 = vand.u32 %v8622, 4294901760
        %v10366 = vsub.f32 %v8622, %v10365
        %v10367 = vand.u32 %v10366, 4294901760
        %10368 = vmatmul.mubr.f32.gmra.mrb[0].mxu0 %v10367
        %v10369 = vpop.f32.mrb[0].mxu0
        %v10370 = vadd.f32 %v9951, %v10369
        %v10371 = vpop.f32.mrb[0].mxu0
        %v10372 = vand.u32 %v8679, 4294901760
        %v10373 = vsub.f32 %v8679, %v10372
        %v10374 = vand.u32 %v10373, 4294901760
        %10375 = vmatprep.mubr.f32.mxu0 %v10374
        %v10376 = vand.u32 %v8623, 4294901760
        %v10377 = vsub.f32 %v8623, %v10376
        %v10378 = vand.u32 %v10377, 4294901760
        %10379 = vmatmul.mubr.f32.gmra.mrb[0].mxu0 %v10378
        %v10380 = vpop.f32.mrb[0].mxu0
        %v10381 = vadd.f32 %v9960, %v10380
        %v10382 = vpop.f32.mrb[0].mxu0
        %v10383 = vand.u32 %v8681, 4294901760
        %v10384 = vsub.f32 %v8681, %v10383
        %v10385 = vand.u32 %v10384, 4294901760
        %10386 = vmatprep.mubr.f32.mxu0 %v10385
        %v10387 = vand.u32 %v8624, 4294901760
        %v10388 = vsub.f32 %v8624, %v10387
        %v10389 = vand.u32 %v10388, 4294901760
        %10390 = vmatmul.mubr.f32.gmra.mrb[0].mxu0 %v10389
        %v10391 = vpop.f32.mrb[0].mxu0
        %v10392 = vadd.f32 %v9969, %v10391
        %v10393 = vpop.f32.mrb[0].mxu0
        %v10394 = vand.u32 %v8683, 4294901760
        %v10395 = vsub.f32 %v8683, %v10394
        %v10396 = vand.u32 %v10395, 4294901760
        %10397 = vmatprep.mubr.f32.mxu0 %v10396
        %v10398 = vand.u32 %v8625, 4294901760
        %v10399 = vsub.f32 %v8625, %v10398
        %v10400 = vand.u32 %v10399, 4294901760
        %10401 = vmatmul.mubr.f32.gmra.mrb[0].mxu0 %v10400
        %v10402 = vpop.f32.mrb[0].mxu0
        %v10403 = vadd.f32 %v9978, %v10402
        %v10404 = vpop.f32.mrb[0].mxu0
        %v10405 = vand.u32 %v8685, 4294901760
        %v10406 = vsub.f32 %v8685, %v10405
        %v10407 = vand.u32 %v10406, 4294901760
        %10408 = vmatprep.mubr.f32.mxu0 %v10407
        %v10409 = vand.u32 %v8626, 4294901760
        %v10410 = vsub.f32 %v8626, %v10409
        %v10411 = vand.u32 %v10410, 4294901760
        %10412 = vmatmul.mubr.f32.gmra.mrb[0].mxu0 %v10411
        %v10413 = vpop.f32.mrb[0].mxu0
        %v10414 = vadd.f32 %v9987, %v10413
        %v10415 = vpop.f32.mrb[0].mxu0
        %v10416 = vand.u32 %v8687, 4294901760
        %v10417 = vsub.f32 %v8687, %v10416
        %v10418 = vand.u32 %v10417, 4294901760
        %10419 = vmatprep.mubr.f32.mxu0 %v10418
        %v10420 = vand.u32 %v8627, 4294901760
        %v10421 = vsub.f32 %v8627, %v10420
        %v10422 = vand.u32 %v10421, 4294901760
        %10423 = vmatmul.mubr.f32.gmra.mrb[0].mxu0 %v10422
        %v10424 = vpop.f32.mrb[0].mxu0
        %v10425 = vadd.f32 %v9996, %v10424
        %v10426 = vpop.f32.mrb[0].mxu0
        %v10427 = vand.u32 %v8689, 4294901760
        %v10428 = vsub.f32 %v8689, %v10427
        %v10429 = vand.u32 %v10428, 4294901760
        %10430 = vmatprep.mubr.f32.mxu0 %v10429
        %v10431 = vand.u32 %v8628, 4294901760
        %v10432 = vsub.f32 %v8628, %v10431
        %v10433 = vand.u32 %v10432, 4294901760
        %10434 = vmatmul.mubr.f32.gmra.mrb[0].mxu0 %v10433
        %v10435 = vpop.f32.mrb[0].mxu0
        %v10436 = vadd.f32 %v10005, %v10435
        %v10437 = vpop.f32.mrb[0].mxu0
        %v10438 = vand.u32 %v8691, 4294901760
        %v10439 = vsub.f32 %v8691, %v10438
        %v10440 = vand.u32 %v10439, 4294901760
        %10441 = vmatprep.mubr.f32.mxu0 %v10440
        %v10442 = vand.u32 %v8629, 4294901760
        %v10443 = vsub.f32 %v8629, %v10442
        %v10444 = vand.u32 %v10443, 4294901760
        %10445 = vmatmul.mubr.f32.gmra.mrb[0].mxu0 %v10444
        %v10446 = vpop.f32.mrb[0].mxu0
        %v10447 = vadd.f32 %v10014, %v10446
        %v10448 = vpop.f32.mrb[0].mxu0
        %v10449 = vand.u32 %v8693, 4294901760
        %v10450 = vsub.f32 %v8693, %v10449
        %v10451 = vand.u32 %v10450, 4294901760
        %10452 = vmatprep.mubr.f32.mxu0 %v10451
        %v10453 = vand.u32 %v8630, 4294901760
        %v10454 = vsub.f32 %v8630, %v10453
        %v10455 = vand.u32 %v10454, 4294901760
        %10456 = vmatmul.mubr.f32.gmra.mrb[0].mxu0 %v10455
        %v10457 = vpop.f32.mrb[0].mxu0
        %v10458 = vadd.f32 %v10023, %v10457
        %v10459 = vpop.f32.mrb[0].mxu0
        %10460 = vdwg.mxu0
        %10461 = vmatprep.subr.mxu0 0.0
        %v10462 = vand.u32 %v7354, 4294901760
        %v10463 = vsub.f32 %v7354, %v10462
        %v10464 = vand.u32 %v10463, 4294901760
        %10465 = vmatpush1.msra.mxu0 %v10464
        %10466 = vmatprep.subr.mxu0 0.0
        %v10467 = vand.u32 %v7355, 4294901760
        %v10468 = vsub.f32 %v7355, %v10467
        %v10469 = vand.u32 %v10468, 4294901760
        %10470 = vmatpush1.msra.mxu0 %v10469
        %10471 = vmatprep.subr.mxu0 0.0
        %v10472 = vand.u32 %v7356, 4294901760
        %v10473 = vsub.f32 %v7356, %v10472
        %v10474 = vand.u32 %v10473, 4294901760
        %10475 = vmatpush1.msra.mxu0 %v10474
        %10476 = vmatprep.subr.mxu0 0.0
        %v10477 = vand.u32 %v7357, 4294901760
        %v10478 = vsub.f32 %v7357, %v10477
        %v10479 = vand.u32 %v10478, 4294901760
        %10480 = vmatpush1.msra.mxu0 %v10479
        %10481 = vmatprep.subr.mxu0 0.0
        %v10482 = vand.u32 %v7358, 4294901760
        %v10483 = vsub.f32 %v7358, %v10482
        %v10484 = vand.u32 %v10483, 4294901760
        %10485 = vmatpush1.msra.mxu0 %v10484
        %10486 = vmatprep.subr.mxu0 0.0
        %v10487 = vand.u32 %v7359, 4294901760
        %v10488 = vsub.f32 %v7359, %v10487
        %v10489 = vand.u32 %v10488, 4294901760
        %10490 = vmatpush1.msra.mxu0 %v10489
        %10491 = vmatprep.subr.mxu0 0.0
        %v10492 = vand.u32 %v7360, 4294901760
        %v10493 = vsub.f32 %v7360, %v10492
        %v10494 = vand.u32 %v10493, 4294901760
        %10495 = vmatpush1.msra.mxu0 %v10494
        %10496 = vmatprep.subr.mxu0 0.0
        %v10497 = vand.u32 %v7361, 4294901760
        %v10498 = vsub.f32 %v7361, %v10497
        %v10499 = vand.u32 %v10498, 4294901760
        %10500 = vmatpush1.msra.mxu0 %v10499
        %10501 = vmatprep.subr.mxu0 0.0
        %v10502 = vand.u32 %v7362, 4294901760
        %v10503 = vsub.f32 %v7362, %v10502
        %v10504 = vand.u32 %v10503, 4294901760
        %10505 = vmatpush1.msra.mxu0 %v10504
        %10506 = vmatprep.subr.mxu0 0.0
        %v10507 = vand.u32 %v7363, 4294901760
        %v10508 = vsub.f32 %v7363, %v10507
        %v10509 = vand.u32 %v10508, 4294901760
        %10510 = vmatpush1.msra.mxu0 %v10509
        %10511 = vmatprep.subr.mxu0 0.0
        %v10512 = vand.u32 %v7364, 4294901760
        %v10513 = vsub.f32 %v7364, %v10512
        %v10514 = vand.u32 %v10513, 4294901760
        %10515 = vmatpush1.msra.mxu0 %v10514
        %10516 = vmatprep.subr.mxu0 0.0
        %v10517 = vand.u32 %v7365, 4294901760
        %v10518 = vsub.f32 %v7365, %v10517
        %v10519 = vand.u32 %v10518, 4294901760
        %10520 = vmatpush1.msra.mxu0 %v10519
        %10521 = vmatprep.subr.mxu0 0.0
        %v10522 = vand.u32 %v7366, 4294901760
        %v10523 = vsub.f32 %v7366, %v10522
        %v10524 = vand.u32 %v10523, 4294901760
        %10525 = vmatpush1.msra.mxu0 %v10524
        %10526 = vmatprep.subr.mxu0 0.0
        %v10527 = vand.u32 %v7367, 4294901760
        %v10528 = vsub.f32 %v7367, %v10527
        %v10529 = vand.u32 %v10528, 4294901760
        %10530 = vmatpush1.msra.mxu0 %v10529
        %10531 = vmatprep.subr.mxu0 0.0
        %v10532 = vand.u32 %v7368, 4294901760
        %v10533 = vsub.f32 %v7368, %v10532
        %v10534 = vand.u32 %v10533, 4294901760
        %10535 = vmatpush1.msra.mxu0 %v10534
        %10536 = vmatprep.subr.mxu0 0.0
        %v10537 = vand.u32 %v7369, 4294901760
        %v10538 = vsub.f32 %v7369, %v10537
        %v10539 = vand.u32 %v10538, 4294901760
        %10540 = vmatpush1.msra.mxu0 %v10539
        %10541 = vmatprep.subr.mxu0 0.0
        %v10542 = vand.u32 %v7370, 4294901760
        %v10543 = vsub.f32 %v7370, %v10542
        %v10544 = vand.u32 %v10543, 4294901760
        %10545 = vmatpush1.msra.mxu0 %v10544
        %10546 = vmatprep.subr.mxu0 0.0
        %v10547 = vand.u32 %v7371, 4294901760
        %v10548 = vsub.f32 %v7371, %v10547
        %v10549 = vand.u32 %v10548, 4294901760
        %10550 = vmatpush1.msra.mxu0 %v10549
        %10551 = vmatprep.subr.mxu0 0.0
        %10552 = vmatpush1.msra.mxu0 0.0
        %10553 = vmatprep.subr.mxu0 0.0
        %10554 = vmatpush1.msra.mxu0 0.0
        %10555 = vmatprep.subr.mxu0 0.0
        %10556 = vmatpush1.msra.mxu0 0.0
        %10557 = vmatprep.subr.mxu0 0.0
        %10558 = vmatpush1.msra.mxu0 0.0
        %10559 = vmatprep.subr.mxu0 0.0
        %10560 = vmatpush1.msra.mxu0 0.0
        %10561 = vmatprep.subr.mxu0 0.0
        %10562 = vmatpush1.msra.mxu0 0.0
        %10563 = vmatprep.subr.mxu0 0.0
        %10564 = vmatpush1.msra.mxu0 0.0
        %10565 = vmatprep.subr.mxu0 0.0
        %10566 = vmatpush1.msra.mxu0 0.0
        %10567 = vmatprep.subr.mxu0 0.0
        %10568 = vmatpush1.msra.mxu0 0.0
        %10569 = vmatprep.subr.mxu0 0.0
        %10570 = vmatpush1.msra.mxu0 0.0
        %10571 = vmatprep.subr.mxu0 0.0
        %10572 = vmatpush1.msra.mxu0 0.0
        %10573 = vmatprep.subr.mxu0 0.0
        %10574 = vmatpush1.msra.mxu0 0.0
        %10575 = vmatprep.subr.mxu0 0.0
        %10576 = vmatpush1.msra.mxu0 0.0
        %10577 = vmatprep.subr.mxu0 0.0
        %10578 = vmatpush1.msra.mxu0 0.0
        %v10579 = vand.u32 %v8631, 4294901760
        %10580 = vmatprep.mubr.f32.mxu0 %v10579
        %v10581 = vand.u32 %v8599, 4294901760
        %10582 = vmatmul.mubr.f32.gmra.mrb[0].mxu0 %v10581
        %v10583 = vpop.f32.mrb[0].mxu0
        %v10584 = vadd.f32 %v10117, %v10583
        %v10585 = vpop.f32.mrb[0].mxu0
        %v10586 = vand.u32 %v8633, 4294901760
        %10587 = vmatprep.mubr.f32.mxu0 %v10586
        %v10588 = vand.u32 %v8600, 4294901760
        %10589 = vmatmul.mubr.f32.gmra.mrb[0].mxu0 %v10588
        %v10590 = vpop.f32.mrb[0].mxu0
        %v10591 = vadd.f32 %v10128, %v10590
        %v10592 = vpop.f32.mrb[0].mxu0
        %v10593 = vand.u32 %v8635, 4294901760
        %10594 = vmatprep.mubr.f32.mxu0 %v10593
        %v10595 = vand.u32 %v8601, 4294901760
        %10596 = vmatmul.mubr.f32.gmra.mrb[0].mxu0 %v10595
        %v10597 = vpop.f32.mrb[0].mxu0
        %v10598 = vadd.f32 %v10139, %v10597
        %v10599 = vpop.f32.mrb[0].mxu0
        %v10600 = vand.u32 %v8637, 4294901760
        %10601 = vmatprep.mubr.f32.mxu0 %v10600
        %v10602 = vand.u32 %v8602, 4294901760
        %10603 = vmatmul.mubr.f32.gmra.mrb[0].mxu0 %v10602
        %v10604 = vpop.f32.mrb[0].mxu0
        %v10605 = vadd.f32 %v10150, %v10604
        %v10606 = vpop.f32.mrb[0].mxu0
        %v10607 = vand.u32 %v8639, 4294901760
        %10608 = vmatprep.mubr.f32.mxu0 %v10607
        %v10609 = vand.u32 %v8603, 4294901760
        %10610 = vmatmul.mubr.f32.gmra.mrb[0].mxu0 %v10609
        %v10611 = vpop.f32.mrb[0].mxu0
        %v10612 = vadd.f32 %v10161, %v10611
        %v10613 = vpop.f32.mrb[0].mxu0
        %v10614 = vand.u32 %v8641, 4294901760
        %10615 = vmatprep.mubr.f32.mxu0 %v10614
        %v10616 = vand.u32 %v8604, 4294901760
        %10617 = vmatmul.mubr.f32.gmra.mrb[0].mxu0 %v10616
        %v10618 = vpop.f32.mrb[0].mxu0
        %v10619 = vadd.f32 %v10172, %v10618
        %v10620 = vpop.f32.mrb[0].mxu0
        %v10621 = vand.u32 %v8643, 4294901760
        %10622 = vmatprep.mubr.f32.mxu0 %v10621
        %v10623 = vand.u32 %v8605, 4294901760
        %10624 = vmatmul.mubr.f32.gmra.mrb[0].mxu0 %v10623
        %v10625 = vpop.f32.mrb[0].mxu0
        %v10626 = vadd.f32 %v10183, %v10625
        %v10627 = vpop.f32.mrb[0].mxu0
        %v10628 = vand.u32 %v8645, 4294901760
        %10629 = vmatprep.mubr.f32.mxu0 %v10628
        %v10630 = vand.u32 %v8606, 4294901760
        %10631 = vmatmul.mubr.f32.gmra.mrb[0].mxu0 %v10630
        %v10632 = vpop.f32.mrb[0].mxu0
        %v10633 = vadd.f32 %v10194, %v10632
        %v10634 = vpop.f32.mrb[0].mxu0
        %v10635 = vand.u32 %v8647, 4294901760
        %10636 = vmatprep.mubr.f32.mxu0 %v10635
        %v10637 = vand.u32 %v8607, 4294901760
        %10638 = vmatmul.mubr.f32.gmra.mrb[0].mxu0 %v10637
        %v10639 = vpop.f32.mrb[0].mxu0
        %v10640 = vadd.f32 %v10205, %v10639
        %v10641 = vpop.f32.mrb[0].mxu0
        %v10642 = vand.u32 %v8649, 4294901760
        %10643 = vmatprep.mubr.f32.mxu0 %v10642
        %v10644 = vand.u32 %v8608, 4294901760
        %10645 = vmatmul.mubr.f32.gmra.mrb[0].mxu0 %v10644
        %v10646 = vpop.f32.mrb[0].mxu0
        %v10647 = vadd.f32 %v10216, %v10646
        %v10648 = vpop.f32.mrb[0].mxu0
        %v10649 = vand.u32 %v8651, 4294901760
        %10650 = vmatprep.mubr.f32.mxu0 %v10649
        %v10651 = vand.u32 %v8609, 4294901760
        %10652 = vmatmul.mubr.f32.gmra.mrb[0].mxu0 %v10651
        %v10653 = vpop.f32.mrb[0].mxu0
        %v10654 = vadd.f32 %v10227, %v10653
        %v10655 = vpop.f32.mrb[0].mxu0
        %v10656 = vand.u32 %v8653, 4294901760
        %10657 = vmatprep.mubr.f32.mxu0 %v10656
        %v10658 = vand.u32 %v8610, 4294901760
        %10659 = vmatmul.mubr.f32.gmra.mrb[0].mxu0 %v10658
        %v10660 = vpop.f32.mrb[0].mxu0
        %v10661 = vadd.f32 %v10238, %v10660
        %v10662 = vpop.f32.mrb[0].mxu0
        %v10663 = vand.u32 %v8655, 4294901760
        %10664 = vmatprep.mubr.f32.mxu0 %v10663
        %v10665 = vand.u32 %v8611, 4294901760
        %10666 = vmatmul.mubr.f32.gmra.mrb[0].mxu0 %v10665
        %v10667 = vpop.f32.mrb[0].mxu0
        %v10668 = vadd.f32 %v10249, %v10667
        %v10669 = vpop.f32.mrb[0].mxu0
        %v10670 = vand.u32 %v8657, 4294901760
        %10671 = vmatprep.mubr.f32.mxu0 %v10670
        %v10672 = vand.u32 %v8612, 4294901760
        %10673 = vmatmul.mubr.f32.gmra.mrb[0].mxu0 %v10672
        %v10674 = vpop.f32.mrb[0].mxu0
        %v10675 = vadd.f32 %v10260, %v10674
        %v10676 = vpop.f32.mrb[0].mxu0
        %v10677 = vand.u32 %v8659, 4294901760
        %10678 = vmatprep.mubr.f32.mxu0 %v10677
        %v10679 = vand.u32 %v8613, 4294901760
        %10680 = vmatmul.mubr.f32.gmra.mrb[0].mxu0 %v10679
        %v10681 = vpop.f32.mrb[0].mxu0
        %v10682 = vadd.f32 %v10271, %v10681
        %v10683 = vpop.f32.mrb[0].mxu0
        %v10684 = vand.u32 %v8661, 4294901760
        %10685 = vmatprep.mubr.f32.mxu0 %v10684
        %v10686 = vand.u32 %v8614, 4294901760
        %10687 = vmatmul.mubr.f32.gmra.mrb[0].mxu0 %v10686
        %v10688 = vpop.f32.mrb[0].mxu0
        %v10689 = vadd.f32 %v10282, %v10688
        %v10690 = vpop.f32.mrb[0].mxu0
        %v10691 = vand.u32 %v8663, 4294901760
        %10692 = vmatprep.mubr.f32.mxu0 %v10691
        %v10693 = vand.u32 %v8615, 4294901760
        %10694 = vmatmul.mubr.f32.gmra.mrb[0].mxu0 %v10693
        %v10695 = vpop.f32.mrb[0].mxu0
        %v10696 = vadd.f32 %v10293, %v10695
        %v10697 = vpop.f32.mrb[0].mxu0
        %v10698 = vand.u32 %v8665, 4294901760
        %10699 = vmatprep.mubr.f32.mxu0 %v10698
        %v10700 = vand.u32 %v8616, 4294901760
        %10701 = vmatmul.mubr.f32.gmra.mrb[0].mxu0 %v10700
        %v10702 = vpop.f32.mrb[0].mxu0
        %v10703 = vadd.f32 %v10304, %v10702
        %v10704 = vpop.f32.mrb[0].mxu0
        %v10705 = vand.u32 %v8667, 4294901760
        %10706 = vmatprep.mubr.f32.mxu0 %v10705
        %v10707 = vand.u32 %v8617, 4294901760
        %10708 = vmatmul.mubr.f32.gmra.mrb[0].mxu0 %v10707
        %v10709 = vpop.f32.mrb[0].mxu0
        %v10710 = vadd.f32 %v10315, %v10709
        %v10711 = vpop.f32.mrb[0].mxu0
        %v10712 = vand.u32 %v8669, 4294901760
        %10713 = vmatprep.mubr.f32.mxu0 %v10712
        %v10714 = vand.u32 %v8618, 4294901760
        %10715 = vmatmul.mubr.f32.gmra.mrb[0].mxu0 %v10714
        %v10716 = vpop.f32.mrb[0].mxu0
        %v10717 = vadd.f32 %v10326, %v10716
        %v10718 = vpop.f32.mrb[0].mxu0
        %v10719 = vand.u32 %v8671, 4294901760
        %10720 = vmatprep.mubr.f32.mxu0 %v10719
        %v10721 = vand.u32 %v8619, 4294901760
        %10722 = vmatmul.mubr.f32.gmra.mrb[0].mxu0 %v10721
        %v10723 = vpop.f32.mrb[0].mxu0
        %v10724 = vadd.f32 %v10337, %v10723
        %v10725 = vpop.f32.mrb[0].mxu0
        %v10726 = vand.u32 %v8673, 4294901760
        %10727 = vmatprep.mubr.f32.mxu0 %v10726
        %v10728 = vand.u32 %v8620, 4294901760
        %10729 = vmatmul.mubr.f32.gmra.mrb[0].mxu0 %v10728
        %v10730 = vpop.f32.mrb[0].mxu0
        %v10731 = vadd.f32 %v10348, %v10730
        %v10732 = vpop.f32.mrb[0].mxu0
        %v10733 = vand.u32 %v8675, 4294901760
        %10734 = vmatprep.mubr.f32.mxu0 %v10733
        %v10735 = vand.u32 %v8621, 4294901760
        %10736 = vmatmul.mubr.f32.gmra.mrb[0].mxu0 %v10735
        %v10737 = vpop.f32.mrb[0].mxu0
        %v10738 = vadd.f32 %v10359, %v10737
        %v10739 = vpop.f32.mrb[0].mxu0
        %v10740 = vand.u32 %v8677, 4294901760
        %10741 = vmatprep.mubr.f32.mxu0 %v10740
        %v10742 = vand.u32 %v8622, 4294901760
        %10743 = vmatmul.mubr.f32.gmra.mrb[0].mxu0 %v10742
        %v10744 = vpop.f32.mrb[0].mxu0
        %v10745 = vadd.f32 %v10370, %v10744
        %v10746 = vpop.f32.mrb[0].mxu0
        %v10747 = vand.u32 %v8679, 4294901760
        %10748 = vmatprep.mubr.f32.mxu0 %v10747
        %v10749 = vand.u32 %v8623, 4294901760
        %10750 = vmatmul.mubr.f32.gmra.mrb[0].mxu0 %v10749
        %v10751 = vpop.f32.mrb[0].mxu0
        %v10752 = vadd.f32 %v10381, %v10751
        %v10753 = vpop.f32.mrb[0].mxu0
        %v10754 = vand.u32 %v8681, 4294901760
        %10755 = vmatprep.mubr.f32.mxu0 %v10754
        %v10756 = vand.u32 %v8624, 4294901760
        %10757 = vmatmul.mubr.f32.gmra.mrb[0].mxu0 %v10756
        %v10758 = vpop.f32.mrb[0].mxu0
        %v10759 = vadd.f32 %v10392, %v10758
        %v10760 = vpop.f32.mrb[0].mxu0
        %v10761 = vand.u32 %v8683, 4294901760
        %10762 = vmatprep.mubr.f32.mxu0 %v10761
        %v10763 = vand.u32 %v8625, 4294901760
        %10764 = vmatmul.mubr.f32.gmra.mrb[0].mxu0 %v10763
        %v10765 = vpop.f32.mrb[0].mxu0
        %v10766 = vadd.f32 %v10403, %v10765
        %v10767 = vpop.f32.mrb[0].mxu0
        %v10768 = vand.u32 %v8685, 4294901760
        %10769 = vmatprep.mubr.f32.mxu0 %v10768
        %v10770 = vand.u32 %v8626, 4294901760
        %10771 = vmatmul.mubr.f32.gmra.mrb[0].mxu0 %v10770
        %v10772 = vpop.f32.mrb[0].mxu0
        %v10773 = vadd.f32 %v10414, %v10772
        %v10774 = vpop.f32.mrb[0].mxu0
        %v10775 = vand.u32 %v8687, 4294901760
        %10776 = vmatprep.mubr.f32.mxu0 %v10775
        %v10777 = vand.u32 %v8627, 4294901760
        %10778 = vmatmul.mubr.f32.gmra.mrb[0].mxu0 %v10777
        %v10779 = vpop.f32.mrb[0].mxu0
        %v10780 = vadd.f32 %v10425, %v10779
        %v10781 = vpop.f32.mrb[0].mxu0
        %v10782 = vand.u32 %v8689, 4294901760
        %10783 = vmatprep.mubr.f32.mxu0 %v10782
        %v10784 = vand.u32 %v8628, 4294901760
        %10785 = vmatmul.mubr.f32.gmra.mrb[0].mxu0 %v10784
        %v10786 = vpop.f32.mrb[0].mxu0
        %v10787 = vadd.f32 %v10436, %v10786
        %v10788 = vpop.f32.mrb[0].mxu0
        %v10789 = vand.u32 %v8691, 4294901760
        %10790 = vmatprep.mubr.f32.mxu0 %v10789
        %v10791 = vand.u32 %v8629, 4294901760
        %10792 = vmatmul.mubr.f32.gmra.mrb[0].mxu0 %v10791
        %v10793 = vpop.f32.mrb[0].mxu0
        %v10794 = vadd.f32 %v10447, %v10793
        %v10795 = vpop.f32.mrb[0].mxu0
        %v10796 = vand.u32 %v8693, 4294901760
        %10797 = vmatprep.mubr.f32.mxu0 %v10796
        %v10798 = vand.u32 %v8630, 4294901760
        %10799 = vmatmul.mubr.f32.gmra.mrb[0].mxu0 %v10798
        %v10800 = vpop.f32.mrb[0].mxu0
        %v10801 = vadd.f32 %v10458, %v10800
        %v10802 = vpop.f32.mrb[0].mxu0
        %10803 = vdwg.mxu0
        %10804 = vmatprep.subr.mxu0 0.0
        %v10805 = vand.u32 %v7354, 4294901760
        %10806 = vmatpush1.msra.mxu0 %v10805
        %10807 = vmatprep.subr.mxu0 0.0
        %v10808 = vand.u32 %v7355, 4294901760
        %10809 = vmatpush1.msra.mxu0 %v10808
        %10810 = vmatprep.subr.mxu0 0.0
        %v10811 = vand.u32 %v7356, 4294901760
        %10812 = vmatpush1.msra.mxu0 %v10811
        %10813 = vmatprep.subr.mxu0 0.0
        %v10814 = vand.u32 %v7357, 4294901760
        %10815 = vmatpush1.msra.mxu0 %v10814
        %10816 = vmatprep.subr.mxu0 0.0
        %v10817 = vand.u32 %v7358, 4294901760
        %10818 = vmatpush1.msra.mxu0 %v10817
        %10819 = vmatprep.subr.mxu0 0.0
        %v10820 = vand.u32 %v7359, 4294901760
        %10821 = vmatpush1.msra.mxu0 %v10820
        %10822 = vmatprep.subr.mxu0 0.0
        %v10823 = vand.u32 %v7360, 4294901760
        %10824 = vmatpush1.msra.mxu0 %v10823
        %10825 = vmatprep.subr.mxu0 0.0
        %v10826 = vand.u32 %v7361, 4294901760
        %10827 = vmatpush1.msra.mxu0 %v10826
        %10828 = vmatprep.subr.mxu0 0.0
        %v10829 = vand.u32 %v7362, 4294901760
        %10830 = vmatpush1.msra.mxu0 %v10829
        %10831 = vmatprep.subr.mxu0 0.0
        %v10832 = vand.u32 %v7363, 4294901760
        %10833 = vmatpush1.msra.mxu0 %v10832
        %10834 = vmatprep.subr.mxu0 0.0
        %v10835 = vand.u32 %v7364, 4294901760
        %10836 = vmatpush1.msra.mxu0 %v10835
        %10837 = vmatprep.subr.mxu0 0.0
        %v10838 = vand.u32 %v7365, 4294901760
        %10839 = vmatpush1.msra.mxu0 %v10838
        %10840 = vmatprep.subr.mxu0 0.0
        %v10841 = vand.u32 %v7366, 4294901760
        %10842 = vmatpush1.msra.mxu0 %v10841
        %10843 = vmatprep.subr.mxu0 0.0
        %v10844 = vand.u32 %v7367, 4294901760
        %10845 = vmatpush1.msra.mxu0 %v10844
        %10846 = vmatprep.subr.mxu0 0.0
        %v10847 = vand.u32 %v7368, 4294901760
        %10848 = vmatpush1.msra.mxu0 %v10847
        %10849 = vmatprep.subr.mxu0 0.0
        %v10850 = vand.u32 %v7369, 4294901760
        %10851 = vmatpush1.msra.mxu0 %v10850
        %10852 = vmatprep.subr.mxu0 0.0
        %v10853 = vand.u32 %v7370, 4294901760
        %10854 = vmatpush1.msra.mxu0 %v10853
        %10855 = vmatprep.subr.mxu0 0.0
        %v10856 = vand.u32 %v7371, 4294901760
        %10857 = vmatpush1.msra.mxu0 %v10856
        %10858 = vmatprep.subr.mxu0 0.0
        %10859 = vmatpush1.msra.mxu0 0.0
        %10860 = vmatprep.subr.mxu0 0.0
        %10861 = vmatpush1.msra.mxu0 0.0
        %10862 = vmatprep.subr.mxu0 0.0
        %10863 = vmatpush1.msra.mxu0 0.0
        %10864 = vmatprep.subr.mxu0 0.0
        %10865 = vmatpush1.msra.mxu0 0.0
        %10866 = vmatprep.subr.mxu0 0.0
        %10867 = vmatpush1.msra.mxu0 0.0
        %10868 = vmatprep.subr.mxu0 0.0
        %10869 = vmatpush1.msra.mxu0 0.0
        %10870 = vmatprep.subr.mxu0 0.0
        %10871 = vmatpush1.msra.mxu0 0.0
        %10872 = vmatprep.subr.mxu0 0.0
        %10873 = vmatpush1.msra.mxu0 0.0
        %10874 = vmatprep.subr.mxu0 0.0
        %10875 = vmatpush1.msra.mxu0 0.0
        %10876 = vmatprep.subr.mxu0 0.0
        %10877 = vmatpush1.msra.mxu0 0.0
        %10878 = vmatprep.subr.mxu0 0.0
        %10879 = vmatpush1.msra.mxu0 0.0
        %10880 = vmatprep.subr.mxu0 0.0
        %10881 = vmatpush1.msra.mxu0 0.0
        %10882 = vmatprep.subr.mxu0 0.0
        %10883 = vmatpush1.msra.mxu0 0.0
        %10884 = vmatprep.subr.mxu0 0.0
        %10885 = vmatpush1.msra.mxu0 0.0
        %v10886 = vand.u32 %v8631, 4294901760
        %10887 = vmatprep.mubr.f32.mxu0 %v10886
        %v10888 = vand.u32 %v8599, 4294901760
        %10889 = vmatmul.mubr.f32.gmra.mrb[0].mxu0 %v10888
        %v10890 = vpop.f32.mrb[0].mxu0
        %v10891 = vadd.f32 %v10584, %v10890
        %v10892 = vpop.f32.mrb[0].mxu0
        %v10893 = vand.u32 %v8633, 4294901760
        %10894 = vmatprep.mubr.f32.mxu0 %v10893
        %v10895 = vand.u32 %v8600, 4294901760
        %10896 = vmatmul.mubr.f32.gmra.mrb[0].mxu0 %v10895
        %v10897 = vpop.f32.mrb[0].mxu0
        %v10898 = vadd.f32 %v10591, %v10897
        %v10899 = vpop.f32.mrb[0].mxu0
        %v10900 = vand.u32 %v8635, 4294901760
        %10901 = vmatprep.mubr.f32.mxu0 %v10900
        %v10902 = vand.u32 %v8601, 4294901760
        %10903 = vmatmul.mubr.f32.gmra.mrb[0].mxu0 %v10902
        %v10904 = vpop.f32.mrb[0].mxu0
        %v10905 = vadd.f32 %v10598, %v10904
        %v10906 = vpop.f32.mrb[0].mxu0
        %v10907 = vand.u32 %v8637, 4294901760
        %10908 = vmatprep.mubr.f32.mxu0 %v10907
        %v10909 = vand.u32 %v8602, 4294901760
        %10910 = vmatmul.mubr.f32.gmra.mrb[0].mxu0 %v10909
        %v10911 = vpop.f32.mrb[0].mxu0
        %v10912 = vadd.f32 %v10605, %v10911
        %v10913 = vpop.f32.mrb[0].mxu0
        %v10914 = vand.u32 %v8639, 4294901760
        %10915 = vmatprep.mubr.f32.mxu0 %v10914
        %v10916 = vand.u32 %v8603, 4294901760
        %10917 = vmatmul.mubr.f32.gmra.mrb[0].mxu0 %v10916
        %v10918 = vpop.f32.mrb[0].mxu0
        %v10919 = vadd.f32 %v10612, %v10918
        %v10920 = vpop.f32.mrb[0].mxu0
        %v10921 = vand.u32 %v8641, 4294901760
        %10922 = vmatprep.mubr.f32.mxu0 %v10921
        %v10923 = vand.u32 %v8604, 4294901760
        %10924 = vmatmul.mubr.f32.gmra.mrb[0].mxu0 %v10923
        %v10925 = vpop.f32.mrb[0].mxu0
        %v10926 = vadd.f32 %v10619, %v10925
        %v10927 = vpop.f32.mrb[0].mxu0
        %v10928 = vand.u32 %v8643, 4294901760
        %10929 = vmatprep.mubr.f32.mxu0 %v10928
        %v10930 = vand.u32 %v8605, 4294901760
        %10931 = vmatmul.mubr.f32.gmra.mrb[0].mxu0 %v10930
        %v10932 = vpop.f32.mrb[0].mxu0
        %v10933 = vadd.f32 %v10626, %v10932
        %v10934 = vpop.f32.mrb[0].mxu0
        %v10935 = vand.u32 %v8645, 4294901760
        %10936 = vmatprep.mubr.f32.mxu0 %v10935
        %v10937 = vand.u32 %v8606, 4294901760
        %10938 = vmatmul.mubr.f32.gmra.mrb[0].mxu0 %v10937
        %v10939 = vpop.f32.mrb[0].mxu0
        %v10940 = vadd.f32 %v10633, %v10939
        %v10941 = vpop.f32.mrb[0].mxu0
        %v10942 = vand.u32 %v8647, 4294901760
        %10943 = vmatprep.mubr.f32.mxu0 %v10942
        %v10944 = vand.u32 %v8607, 4294901760
        %10945 = vmatmul.mubr.f32.gmra.mrb[0].mxu0 %v10944
        %v10946 = vpop.f32.mrb[0].mxu0
        %v10947 = vadd.f32 %v10640, %v10946
        %v10948 = vpop.f32.mrb[0].mxu0
        %v10949 = vand.u32 %v8649, 4294901760
        %10950 = vmatprep.mubr.f32.mxu0 %v10949
        %v10951 = vand.u32 %v8608, 4294901760
        %10952 = vmatmul.mubr.f32.gmra.mrb[0].mxu0 %v10951
        %v10953 = vpop.f32.mrb[0].mxu0
        %v10954 = vadd.f32 %v10647, %v10953
        %v10955 = vpop.f32.mrb[0].mxu0
        %v10956 = vand.u32 %v8651, 4294901760
        %10957 = vmatprep.mubr.f32.mxu0 %v10956
        %v10958 = vand.u32 %v8609, 4294901760
        %10959 = vmatmul.mubr.f32.gmra.mrb[0].mxu0 %v10958
        %v10960 = vpop.f32.mrb[0].mxu0
        %v10961 = vadd.f32 %v10654, %v10960
        %v10962 = vpop.f32.mrb[0].mxu0
        %v10963 = vand.u32 %v8653, 4294901760
        %10964 = vmatprep.mubr.f32.mxu0 %v10963
        %v10965 = vand.u32 %v8610, 4294901760
        %10966 = vmatmul.mubr.f32.gmra.mrb[0].mxu0 %v10965
        %v10967 = vpop.f32.mrb[0].mxu0
        %v10968 = vadd.f32 %v10661, %v10967
        %v10969 = vpop.f32.mrb[0].mxu0
        %v10970 = vand.u32 %v8655, 4294901760
        %10971 = vmatprep.mubr.f32.mxu0 %v10970
        %v10972 = vand.u32 %v8611, 4294901760
        %10973 = vmatmul.mubr.f32.gmra.mrb[0].mxu0 %v10972
        %v10974 = vpop.f32.mrb[0].mxu0
        %v10975 = vadd.f32 %v10668, %v10974
        %v10976 = vpop.f32.mrb[0].mxu0
        %v10977 = vand.u32 %v8657, 4294901760
        %10978 = vmatprep.mubr.f32.mxu0 %v10977
        %v10979 = vand.u32 %v8612, 4294901760
        %10980 = vmatmul.mubr.f32.gmra.mrb[0].mxu0 %v10979
        %v10981 = vpop.f32.mrb[0].mxu0
        %v10982 = vadd.f32 %v10675, %v10981
        %v10983 = vpop.f32.mrb[0].mxu0
        %v10984 = vand.u32 %v8659, 4294901760
        %10985 = vmatprep.mubr.f32.mxu0 %v10984
        %v10986 = vand.u32 %v8613, 4294901760
        %10987 = vmatmul.mubr.f32.gmra.mrb[0].mxu0 %v10986
        %v10988 = vpop.f32.mrb[0].mxu0
        %v10989 = vadd.f32 %v10682, %v10988
        %v10990 = vpop.f32.mrb[0].mxu0
        %v10991 = vand.u32 %v8661, 4294901760
        %10992 = vmatprep.mubr.f32.mxu0 %v10991
        %v10993 = vand.u32 %v8614, 4294901760
        %10994 = vmatmul.mubr.f32.gmra.mrb[0].mxu0 %v10993
        %v10995 = vpop.f32.mrb[0].mxu0
        %v10996 = vadd.f32 %v10689, %v10995
        %v10997 = vpop.f32.mrb[0].mxu0
        %v10998 = vand.u32 %v8663, 4294901760
        %10999 = vmatprep.mubr.f32.mxu0 %v10998
        %v11000 = vand.u32 %v8615, 4294901760
        %11001 = vmatmul.mubr.f32.gmra.mrb[0].mxu0 %v11000
        %v11002 = vpop.f32.mrb[0].mxu0
        %v11003 = vadd.f32 %v10696, %v11002
        %v11004 = vpop.f32.mrb[0].mxu0
        %v11005 = vand.u32 %v8665, 4294901760
        %11006 = vmatprep.mubr.f32.mxu0 %v11005
        %v11007 = vand.u32 %v8616, 4294901760
        %11008 = vmatmul.mubr.f32.gmra.mrb[0].mxu0 %v11007
        %v11009 = vpop.f32.mrb[0].mxu0
        %v11010 = vadd.f32 %v10703, %v11009
        %v11011 = vpop.f32.mrb[0].mxu0
        %v11012 = vand.u32 %v8667, 4294901760
        %11013 = vmatprep.mubr.f32.mxu0 %v11012
        %v11014 = vand.u32 %v8617, 4294901760
        %11015 = vmatmul.mubr.f32.gmra.mrb[0].mxu0 %v11014
        %v11016 = vpop.f32.mrb[0].mxu0
        %v11017 = vadd.f32 %v10710, %v11016
        %v11018 = vpop.f32.mrb[0].mxu0
        %v11019 = vand.u32 %v8669, 4294901760
        %11020 = vmatprep.mubr.f32.mxu0 %v11019
        %v11021 = vand.u32 %v8618, 4294901760
        %11022 = vmatmul.mubr.f32.gmra.mrb[0].mxu0 %v11021
        %v11023 = vpop.f32.mrb[0].mxu0
        %v11024 = vadd.f32 %v10717, %v11023
        %v11025 = vpop.f32.mrb[0].mxu0
        %v11026 = vand.u32 %v8671, 4294901760
        %11027 = vmatprep.mubr.f32.mxu0 %v11026
        %v11028 = vand.u32 %v8619, 4294901760
        %11029 = vmatmul.mubr.f32.gmra.mrb[0].mxu0 %v11028
        %v11030 = vpop.f32.mrb[0].mxu0
        %v11031 = vadd.f32 %v10724, %v11030
        %v11032 = vpop.f32.mrb[0].mxu0
        %v11033 = vand.u32 %v8673, 4294901760
        %11034 = vmatprep.mubr.f32.mxu0 %v11033
        %v11035 = vand.u32 %v8620, 4294901760
        %11036 = vmatmul.mubr.f32.gmra.mrb[0].mxu0 %v11035
        %v11037 = vpop.f32.mrb[0].mxu0
        %v11038 = vadd.f32 %v10731, %v11037
        %v11039 = vpop.f32.mrb[0].mxu0
        %v11040 = vand.u32 %v8675, 4294901760
        %11041 = vmatprep.mubr.f32.mxu0 %v11040
        %v11042 = vand.u32 %v8621, 4294901760
        %11043 = vmatmul.mubr.f32.gmra.mrb[0].mxu0 %v11042
        %v11044 = vpop.f32.mrb[0].mxu0
        %v11045 = vadd.f32 %v10738, %v11044
        %v11046 = vpop.f32.mrb[0].mxu0
        %v11047 = vand.u32 %v8677, 4294901760
        %11048 = vmatprep.mubr.f32.mxu0 %v11047
        %v11049 = vand.u32 %v8622, 4294901760
        %11050 = vmatmul.mubr.f32.gmra.mrb[0].mxu0 %v11049
        %v11051 = vpop.f32.mrb[0].mxu0
        %v11052 = vadd.f32 %v10745, %v11051
        %v11053 = vpop.f32.mrb[0].mxu0
        %v11054 = vand.u32 %v8679, 4294901760
        %11055 = vmatprep.mubr.f32.mxu0 %v11054
        %v11056 = vand.u32 %v8623, 4294901760
        %11057 = vmatmul.mubr.f32.gmra.mrb[0].mxu0 %v11056
        %v11058 = vpop.f32.mrb[0].mxu0
        %v11059 = vadd.f32 %v10752, %v11058
        %v11060 = vpop.f32.mrb[0].mxu0
        %v11061 = vand.u32 %v8681, 4294901760
        %11062 = vmatprep.mubr.f32.mxu0 %v11061
        %v11063 = vand.u32 %v8624, 4294901760
        %11064 = vmatmul.mubr.f32.gmra.mrb[0].mxu0 %v11063
        %v11065 = vpop.f32.mrb[0].mxu0
        %v11066 = vadd.f32 %v10759, %v11065
        %v11067 = vpop.f32.mrb[0].mxu0
        %v11068 = vand.u32 %v8683, 4294901760
        %11069 = vmatprep.mubr.f32.mxu0 %v11068
        %v11070 = vand.u32 %v8625, 4294901760
        %11071 = vmatmul.mubr.f32.gmra.mrb[0].mxu0 %v11070
        %v11072 = vpop.f32.mrb[0].mxu0
        %v11073 = vadd.f32 %v10766, %v11072
        %v11074 = vpop.f32.mrb[0].mxu0
        %v11075 = vand.u32 %v8685, 4294901760
        %11076 = vmatprep.mubr.f32.mxu0 %v11075
        %v11077 = vand.u32 %v8626, 4294901760
        %11078 = vmatmul.mubr.f32.gmra.mrb[0].mxu0 %v11077
        %v11079 = vpop.f32.mrb[0].mxu0
        %v11080 = vadd.f32 %v10773, %v11079
        %v11081 = vpop.f32.mrb[0].mxu0
        %v11082 = vand.u32 %v8687, 4294901760
        %11083 = vmatprep.mubr.f32.mxu0 %v11082
        %v11084 = vand.u32 %v8627, 4294901760
        %11085 = vmatmul.mubr.f32.gmra.mrb[0].mxu0 %v11084
        %v11086 = vpop.f32.mrb[0].mxu0
        %v11087 = vadd.f32 %v10780, %v11086
        %v11088 = vpop.f32.mrb[0].mxu0
        %v11089 = vand.u32 %v8689, 4294901760
        %11090 = vmatprep.mubr.f32.mxu0 %v11089
        %v11091 = vand.u32 %v8628, 4294901760
        %11092 = vmatmul.mubr.f32.gmra.mrb[0].mxu0 %v11091
        %v11093 = vpop.f32.mrb[0].mxu0
        %v11094 = vadd.f32 %v10787, %v11093
        %v11095 = vpop.f32.mrb[0].mxu0
        %v11096 = vand.u32 %v8691, 4294901760
        %11097 = vmatprep.mubr.f32.mxu0 %v11096
        %v11098 = vand.u32 %v8629, 4294901760
        %11099 = vmatmul.mubr.f32.gmra.mrb[0].mxu0 %v11098
        %v11100 = vpop.f32.mrb[0].mxu0
        %v11101 = vadd.f32 %v10794, %v11100
        %v11102 = vpop.f32.mrb[0].mxu0
        %v11103 = vand.u32 %v8693, 4294901760
        %11104 = vmatprep.mubr.f32.mxu0 %v11103
        %v11105 = vand.u32 %v8630, 4294901760
        %11106 = vmatmul.mubr.f32.gmra.mrb[0].mxu0 %v11105
        %v11107 = vpop.f32.mrb[0].mxu0
        %v11108 = vadd.f32 %v10801, %v11107
        %v11109 = vpop.f32.mrb[0].mxu0
        %11110 = vdwg.mxu0
        %v11112 = vlaneseq
        %v11113 = vshrl.u32 %v11112, 7
        %v11114 = vsub.s32 0, %v11113
        %v11115 = vrot.slane %v7372, %v11114
        %v11117 = vadd.f32 %v10891, %v11115
        %v11118 = vadd.f32 %v10898, %v11115
        %v11119 = vadd.f32 %v10905, %v11115
        %v11120 = vadd.f32 %v10912, %v11115
        %v11121 = vadd.f32 %v10919, %v11115
        %v11122 = vadd.f32 %v10926, %v11115
        %v11123 = vadd.f32 %v10933, %v11115
        %v11124 = vadd.f32 %v10940, %v11115
        %v11125 = vadd.f32 %v10947, %v11115
        %v11126 = vadd.f32 %v10954, %v11115
        %v11127 = vadd.f32 %v10961, %v11115
        %v11128 = vadd.f32 %v10968, %v11115
        %v11129 = vadd.f32 %v10975, %v11115
        %v11130 = vadd.f32 %v10982, %v11115
        %v11131 = vadd.f32 %v10989, %v11115
        %v11132 = vadd.f32 %v10996, %v11115
        %v11133 = vadd.f32 %v11003, %v11115
        %v11134 = vadd.f32 %v11010, %v11115
        %v11135 = vadd.f32 %v11017, %v11115
        %v11136 = vadd.f32 %v11024, %v11115
        %v11137 = vadd.f32 %v11031, %v11115
        %v11138 = vadd.f32 %v11038, %v11115
        %v11139 = vadd.f32 %v11045, %v11115
        %v11140 = vadd.f32 %v11052, %v11115
        %v11141 = vadd.f32 %v11059, %v11115
        %v11142 = vadd.f32 %v11066, %v11115
        %v11143 = vadd.f32 %v11073, %v11115
        %v11144 = vadd.f32 %v11080, %v11115
        %v11145 = vadd.f32 %v11087, %v11115
        %v11146 = vadd.f32 %v11094, %v11115
        %v11147 = vadd.f32 %v11101, %v11115
        %v11148 = vadd.f32 %v11108, %v11115
        %vm11149 = vcmp.ge.f32.partialorder %v11117, 0.0
        %vm11150 = vcmp.ge.f32.partialorder %v11118, 0.0
        %vm11151 = vcmp.ge.f32.partialorder %v11119, 0.0
        %vm11152 = vcmp.ge.f32.partialorder %v11120, 0.0
        %vm11153 = vcmp.ge.f32.partialorder %v11121, 0.0
        %vm11154 = vcmp.ge.f32.partialorder %v11122, 0.0
        %vm11155 = vcmp.ge.f32.partialorder %v11123, 0.0
        %vm11156 = vcmp.ge.f32.partialorder %v11124, 0.0
        %vm11157 = vcmp.ge.f32.partialorder %v11125, 0.0
        %vm11158 = vcmp.ge.f32.partialorder %v11126, 0.0
        %vm11159 = vcmp.ge.f32.partialorder %v11127, 0.0
        %vm11160 = vcmp.ge.f32.partialorder %v11128, 0.0
        %vm11161 = vcmp.ge.f32.partialorder %v11129, 0.0
        %vm11162 = vcmp.ge.f32.partialorder %v11130, 0.0
        %vm11163 = vcmp.ge.f32.partialorder %v11131, 0.0
        %vm11164 = vcmp.ge.f32.partialorder %v11132, 0.0
        %vm11165 = vcmp.ge.f32.partialorder %v11133, 0.0
        %vm11166 = vcmp.ge.f32.partialorder %v11134, 0.0
        %vm11167 = vcmp.ge.f32.partialorder %v11135, 0.0
        %vm11168 = vcmp.ge.f32.partialorder %v11136, 0.0
        %vm11169 = vcmp.ge.f32.partialorder %v11137, 0.0
        %vm11170 = vcmp.ge.f32.partialorder %v11138, 0.0
        %vm11171 = vcmp.ge.f32.partialorder %v11139, 0.0
        %vm11172 = vcmp.ge.f32.partialorder %v11140, 0.0
        %vm11173 = vcmp.ge.f32.partialorder %v11141, 0.0
        %vm11174 = vcmp.ge.f32.partialorder %v11142, 0.0
        %vm11175 = vcmp.ge.f32.partialorder %v11143, 0.0
        %vm11176 = vcmp.ge.f32.partialorder %v11144, 0.0
        %vm11177 = vcmp.ge.f32.partialorder %v11145, 0.0
        %vm11178 = vcmp.ge.f32.partialorder %v11146, 0.0
        %vm11179 = vcmp.ge.f32.partialorder %v11147, 0.0
        %vm11180 = vcmp.ge.f32.partialorder %v11148, 0.0
        %v11181 = vmul.f32 %v11117, 0.01
        %v11182 = vmul.f32 %v11118, 0.01
        %v11183 = vmul.f32 %v11119, 0.01
        %v11184 = vmul.f32 %v11120, 0.01
        %v11185 = vmul.f32 %v11121, 0.01
        %v11186 = vmul.f32 %v11122, 0.01
        %v11187 = vmul.f32 %v11123, 0.01
        %v11188 = vmul.f32 %v11124, 0.01
        %v11189 = vmul.f32 %v11125, 0.01
        %v11190 = vmul.f32 %v11126, 0.01
        %v11191 = vmul.f32 %v11127, 0.01
        %v11192 = vmul.f32 %v11128, 0.01
        %v11193 = vmul.f32 %v11129, 0.01
        %v11194 = vmul.f32 %v11130, 0.01
        %v11195 = vmul.f32 %v11131, 0.01
        %v11196 = vmul.f32 %v11132, 0.01
        %v11197 = vmul.f32 %v11133, 0.01
        %v11198 = vmul.f32 %v11134, 0.01
        %v11199 = vmul.f32 %v11135, 0.01
        %v11200 = vmul.f32 %v11136, 0.01
        %v11201 = vmul.f32 %v11137, 0.01
        %v11202 = vmul.f32 %v11138, 0.01
        %v11203 = vmul.f32 %v11139, 0.01
        %v11204 = vmul.f32 %v11140, 0.01
        %v11205 = vmul.f32 %v11141, 0.01
        %v11206 = vmul.f32 %v11142, 0.01
        %v11207 = vmul.f32 %v11143, 0.01
        %v11208 = vmul.f32 %v11144, 0.01
        %v11209 = vmul.f32 %v11145, 0.01
        %v11210 = vmul.f32 %v11146, 0.01
        %v11211 = vmul.f32 %v11147, 0.01
        %v11212 = vmul.f32 %v11148, 0.01
        %v11213 = vsel %vm11149, %v11117, %v11181
        %v11214 = vsel %vm11150, %v11118, %v11182
        %v11215 = vsel %vm11151, %v11119, %v11183
        %v11216 = vsel %vm11152, %v11120, %v11184
        %v11217 = vsel %vm11153, %v11121, %v11185
        %v11218 = vsel %vm11154, %v11122, %v11186
        %v11219 = vsel %vm11155, %v11123, %v11187
        %v11220 = vsel %vm11156, %v11124, %v11188
        %v11221 = vsel %vm11157, %v11125, %v11189
        %v11222 = vsel %vm11158, %v11126, %v11190
        %v11223 = vsel %vm11159, %v11127, %v11191
        %v11224 = vsel %vm11160, %v11128, %v11192
        %v11225 = vsel %vm11161, %v11129, %v11193
        %v11226 = vsel %vm11162, %v11130, %v11194
        %v11227 = vsel %vm11163, %v11131, %v11195
        %v11228 = vsel %vm11164, %v11132, %v11196
        %v11229 = vsel %vm11165, %v11133, %v11197
        %v11230 = vsel %vm11166, %v11134, %v11198
        %v11231 = vsel %vm11167, %v11135, %v11199
        %v11232 = vsel %vm11168, %v11136, %v11200
        %v11233 = vsel %vm11169, %v11137, %v11201
        %v11234 = vsel %vm11170, %v11138, %v11202
        %v11235 = vsel %vm11171, %v11139, %v11203
        %v11236 = vsel %vm11172, %v11140, %v11204
        %v11237 = vsel %vm11173, %v11141, %v11205
        %v11238 = vsel %vm11174, %v11142, %v11206
        %v11239 = vsel %vm11175, %v11143, %v11207
        %v11240 = vsel %vm11176, %v11144, %v11208
        %v11241 = vsel %vm11177, %v11145, %v11209
        %v11242 = vsel %vm11178, %v11146, %v11210
        %v11243 = vsel %vm11179, %v11147, %v11211
        %v11244 = vsel %vm11180, %v11148, %v11212
        %v11245 = vcombine.low %v11213, %v11217
        %v11246 = vcombine.high %v11213, %v11217
        %v11248 = vunpack.c.l.s4 1983009808
        %v11249 = vunpack.c.0.s8 %v11248
        %v11250 = vlaneseq
        %v11251 = vshrl.u32 %v11250, 7
        %v11252 = vsub.s32 %v11249, %v11251
        %v11253 = vrot.slane %v11245, %v11252
        %v11255 = vunpack.c.l.s4 1983009808
        %v11256 = vunpack.c.0.s8 %v11255
        %v11257 = vlaneseq
        %v11258 = vshrl.u32 %v11257, 7
        %v11259 = vsub.s32 %v11256, %v11258
        %v11260 = vrot.slane %v11246, %v11259
        %v11261 = vcombine.low %v11215, %v11219
        %v11262 = vcombine.high %v11215, %v11219
        %v11264 = vunpack.c.l.s4 1983009808
        %v11265 = vunpack.c.0.s8 %v11264
        %v11266 = vlaneseq
        %v11267 = vshrl.u32 %v11266, 7
        %v11268 = vsub.s32 %v11265, %v11267
        %v11269 = vrot.slane %v11261, %v11268
        %v11271 = vunpack.c.l.s4 1983009808
        %v11272 = vunpack.c.0.s8 %v11271
        %v11273 = vlaneseq
        %v11274 = vshrl.u32 %v11273, 7
        %v11275 = vsub.s32 %v11272, %v11274
        %v11276 = vrot.slane %v11262, %v11275
        %v11277 = vcombine.low %v11221, %v11225
        %v11278 = vcombine.high %v11221, %v11225
        %v11280 = vunpack.c.l.s4 1983009808
        %v11281 = vunpack.c.0.s8 %v11280
        %v11282 = vlaneseq
        %v11283 = vshrl.u32 %v11282, 7
        %v11284 = vsub.s32 %v11281, %v11283
        %v11285 = vrot.slane %v11277, %v11284
        %v11287 = vunpack.c.l.s4 1983009808
        %v11288 = vunpack.c.0.s8 %v11287
        %v11289 = vlaneseq
        %v11290 = vshrl.u32 %v11289, 7
        %v11291 = vsub.s32 %v11288, %v11290
        %v11292 = vrot.slane %v11278, %v11291
        %v11293 = vcombine.low %v11223, %v11227
        %v11294 = vcombine.high %v11223, %v11227
        %v11296 = vunpack.c.l.s4 1983009808
        %v11297 = vunpack.c.0.s8 %v11296
        %v11298 = vlaneseq
        %v11299 = vshrl.u32 %v11298, 7
        %v11300 = vsub.s32 %v11297, %v11299
        %v11301 = vrot.slane %v11293, %v11300
        %v11303 = vunpack.c.l.s4 1983009808
        %v11304 = vunpack.c.0.s8 %v11303
        %v11305 = vlaneseq
        %v11306 = vshrl.u32 %v11305, 7
        %v11307 = vsub.s32 %v11304, %v11306
        %v11308 = vrot.slane %v11294, %v11307
        %v11309 = vcombine.low %v11253, %v11269
        %v11310 = vcombine.high %v11253, %v11269
        %v11312 = vunpack.c.l.s4 1934713408
        %v11313 = vunpack.c.0.s8 %v11312
        %v11314 = vlaneseq
        %v11315 = vshrl.u32 %v11314, 7
        %v11316 = vsub.s32 %v11313, %v11315
        %v11317 = vrot.slane %v11309, %v11316
        %v11319 = vunpack.c.l.s4 1934713408
        %v11320 = vunpack.c.0.s8 %v11319
        %v11321 = vlaneseq
        %v11322 = vshrl.u32 %v11321, 7
        %v11323 = vsub.s32 %v11320, %v11322
        %v11324 = vrot.slane %v11310, %v11323
        %v11325 = vcombine.low %v11260, %v11276
        %v11326 = vcombine.high %v11260, %v11276
        %v11328 = vunpack.c.l.s4 1934713408
        %v11329 = vunpack.c.0.s8 %v11328
        %v11330 = vlaneseq
        %v11331 = vshrl.u32 %v11330, 7
        %v11332 = vsub.s32 %v11329, %v11331
        %v11333 = vrot.slane %v11325, %v11332
        %v11335 = vunpack.c.l.s4 1934713408
        %v11336 = vunpack.c.0.s8 %v11335
        %v11337 = vlaneseq
        %v11338 = vshrl.u32 %v11337, 7
        %v11339 = vsub.s32 %v11336, %v11338
        %v11340 = vrot.slane %v11326, %v11339
        %v11341 = vcombine.low %v11285, %v11301
        %v11342 = vcombine.high %v11285, %v11301
        %v11344 = vunpack.c.l.s4 1934713408
        %v11345 = vunpack.c.0.s8 %v11344
        %v11346 = vlaneseq
        %v11347 = vshrl.u32 %v11346, 7
        %v11348 = vsub.s32 %v11345, %v11347
        %v11349 = vrot.slane %v11341, %v11348
        %v11351 = vunpack.c.l.s4 1934713408
        %v11352 = vunpack.c.0.s8 %v11351
        %v11353 = vlaneseq
        %v11354 = vshrl.u32 %v11353, 7
        %v11355 = vsub.s32 %v11352, %v11354
        %v11356 = vrot.slane %v11342, %v11355
        %v11357 = vcombine.low %v11292, %v11308
        %v11358 = vcombine.high %v11292, %v11308
        %v11360 = vunpack.c.l.s4 1934713408
        %v11361 = vunpack.c.0.s8 %v11360
        %v11362 = vlaneseq
        %v11363 = vshrl.u32 %v11362, 7
        %v11364 = vsub.s32 %v11361, %v11363
        %v11365 = vrot.slane %v11357, %v11364
        %v11367 = vunpack.c.l.s4 1934713408
        %v11368 = vunpack.c.0.s8 %v11367
        %v11369 = vlaneseq
        %v11370 = vshrl.u32 %v11369, 7
        %v11371 = vsub.s32 %v11368, %v11370
        %v11372 = vrot.slane %v11358, %v11371
        %v11373 = vcombine.low %v11317, %v11349
        %v11374 = vcombine.high %v11317, %v11349
        %v11375 = vcombine.low %v11324, %v11356
        %v11376 = vcombine.high %v11324, %v11356
        %v11377 = vcombine.low %v11333, %v11365
        %v11378 = vcombine.high %v11333, %v11365
        %v11379 = vcombine.low %v11340, %v11372
        %v11380 = vcombine.high %v11340, %v11372
        %v11381 = vcombine.low %v11229, %v11233
        %v11382 = vcombine.high %v11229, %v11233
        %v11384 = vunpack.c.l.s4 1983009808
        %v11385 = vunpack.c.0.s8 %v11384
        %v11386 = vlaneseq
        %v11387 = vshrl.u32 %v11386, 7
        %v11388 = vsub.s32 %v11385, %v11387
        %v11389 = vrot.slane %v11381, %v11388
        %v11391 = vunpack.c.l.s4 1983009808
        %v11392 = vunpack.c.0.s8 %v11391
        %v11393 = vlaneseq
        %v11394 = vshrl.u32 %v11393, 7
        %v11395 = vsub.s32 %v11392, %v11394
        %v11396 = vrot.slane %v11382, %v11395
        %v11397 = vcombine.low %v11231, %v11235
        %v11398 = vcombine.high %v11231, %v11235
        %v11400 = vunpack.c.l.s4 1983009808
        %v11401 = vunpack.c.0.s8 %v11400
        %v11402 = vlaneseq
        %v11403 = vshrl.u32 %v11402, 7
        %v11404 = vsub.s32 %v11401, %v11403
        %v11405 = vrot.slane %v11397, %v11404
        %v11407 = vunpack.c.l.s4 1983009808
        %v11408 = vunpack.c.0.s8 %v11407
        %v11409 = vlaneseq
        %v11410 = vshrl.u32 %v11409, 7
        %v11411 = vsub.s32 %v11408, %v11410
        %v11412 = vrot.slane %v11398, %v11411
        %v11413 = vcombine.low %v11237, %v11241
        %v11414 = vcombine.high %v11237, %v11241
        %v11416 = vunpack.c.l.s4 1983009808
        %v11417 = vunpack.c.0.s8 %v11416
        %v11418 = vlaneseq
        %v11419 = vshrl.u32 %v11418, 7
        %v11420 = vsub.s32 %v11417, %v11419
        %v11421 = vrot.slane %v11413, %v11420
        %v11423 = vunpack.c.l.s4 1983009808
        %v11424 = vunpack.c.0.s8 %v11423
        %v11425 = vlaneseq
        %v11426 = vshrl.u32 %v11425, 7
        %v11427 = vsub.s32 %v11424, %v11426
        %v11428 = vrot.slane %v11414, %v11427
        %v11429 = vcombine.low %v11239, %v11243
        %v11430 = vcombine.high %v11239, %v11243
        %v11432 = vunpack.c.l.s4 1983009808
        %v11433 = vunpack.c.0.s8 %v11432
        %v11434 = vlaneseq
        %v11435 = vshrl.u32 %v11434, 7
        %v11436 = vsub.s32 %v11433, %v11435
        %v11437 = vrot.slane %v11429, %v11436
        %v11439 = vunpack.c.l.s4 1983009808
        %v11440 = vunpack.c.0.s8 %v11439
        %v11441 = vlaneseq
        %v11442 = vshrl.u32 %v11441, 7
        %v11443 = vsub.s32 %v11440, %v11442
        %v11444 = vrot.slane %v11430, %v11443
        %v11445 = vcombine.low %v11389, %v11405
        %v11446 = vcombine.high %v11389, %v11405
        %v11448 = vunpack.c.l.s4 1934713408
        %v11449 = vunpack.c.0.s8 %v11448
        %v11450 = vlaneseq
        %v11451 = vshrl.u32 %v11450, 7
        %v11452 = vsub.s32 %v11449, %v11451
        %v11453 = vrot.slane %v11445, %v11452
        %v11455 = vunpack.c.l.s4 1934713408
        %v11456 = vunpack.c.0.s8 %v11455
        %v11457 = vlaneseq
        %v11458 = vshrl.u32 %v11457, 7
        %v11459 = vsub.s32 %v11456, %v11458
        %v11460 = vrot.slane %v11446, %v11459
        %v11461 = vcombine.low %v11396, %v11412
        %v11462 = vcombine.high %v11396, %v11412
        %v11464 = vunpack.c.l.s4 1934713408
        %v11465 = vunpack.c.0.s8 %v11464
        %v11466 = vlaneseq
        %v11467 = vshrl.u32 %v11466, 7
        %v11468 = vsub.s32 %v11465, %v11467
        %v11469 = vrot.slane %v11461, %v11468
        %v11471 = vunpack.c.l.s4 1934713408
        %v11472 = vunpack.c.0.s8 %v11471
        %v11473 = vlaneseq
        %v11474 = vshrl.u32 %v11473, 7
        %v11475 = vsub.s32 %v11472, %v11474
        %v11476 = vrot.slane %v11462, %v11475
        %v11477 = vcombine.low %v11421, %v11437
        %v11478 = vcombine.high %v11421, %v11437
        %v11480 = vunpack.c.l.s4 1934713408
        %v11481 = vunpack.c.0.s8 %v11480
        %v11482 = vlaneseq
        %v11483 = vshrl.u32 %v11482, 7
        %v11484 = vsub.s32 %v11481, %v11483
        %v11485 = vrot.slane %v11477, %v11484
        %v11487 = vunpack.c.l.s4 1934713408
        %v11488 = vunpack.c.0.s8 %v11487
        %v11489 = vlaneseq
        %v11490 = vshrl.u32 %v11489, 7
        %v11491 = vsub.s32 %v11488, %v11490
        %v11492 = vrot.slane %v11478, %v11491
        %v11493 = vcombine.low %v11428, %v11444
        %v11494 = vcombine.high %v11428, %v11444
        %v11496 = vunpack.c.l.s4 1934713408
        %v11497 = vunpack.c.0.s8 %v11496
        %v11498 = vlaneseq
        %v11499 = vshrl.u32 %v11498, 7
        %v11500 = vsub.s32 %v11497, %v11499
        %v11501 = vrot.slane %v11493, %v11500
        %v11503 = vunpack.c.l.s4 1934713408
        %v11504 = vunpack.c.0.s8 %v11503
        %v11505 = vlaneseq
        %v11506 = vshrl.u32 %v11505, 7
        %v11507 = vsub.s32 %v11504, %v11506
        %v11508 = vrot.slane %v11494, %v11507
        %v11509 = vcombine.low %v11453, %v11485
        %v11510 = vcombine.high %v11453, %v11485
        %v11511 = vcombine.low %v11460, %v11492
        %v11512 = vcombine.high %v11460, %v11492
        %v11513 = vcombine.low %v11469, %v11501
        %v11514 = vcombine.high %v11469, %v11501
        %v11515 = vcombine.low %v11476, %v11508
        %v11516 = vcombine.high %v11476, %v11508
        %v11517 = vcombine.low %v11214, %v11218
        %v11518 = vcombine.high %v11214, %v11218
        %v11520 = vunpack.c.l.s4 1983009808
        %v11521 = vunpack.c.0.s8 %v11520
        %v11522 = vlaneseq
        %v11523 = vshrl.u32 %v11522, 7
        %v11524 = vsub.s32 %v11521, %v11523
        %v11525 = vrot.slane %v11517, %v11524
        %v11527 = vunpack.c.l.s4 1983009808
        %v11528 = vunpack.c.0.s8 %v11527
        %v11529 = vlaneseq
        %v11530 = vshrl.u32 %v11529, 7
        %v11531 = vsub.s32 %v11528, %v11530
        %v11532 = vrot.slane %v11518, %v11531
        %v11533 = vcombine.low %v11216, %v11220
        %v11534 = vcombine.high %v11216, %v11220
        %v11536 = vunpack.c.l.s4 1983009808
        %v11537 = vunpack.c.0.s8 %v11536
        %v11538 = vlaneseq
        %v11539 = vshrl.u32 %v11538, 7
        %v11540 = vsub.s32 %v11537, %v11539
        %v11541 = vrot.slane %v11533, %v11540
        %v11543 = vunpack.c.l.s4 1983009808
        %v11544 = vunpack.c.0.s8 %v11543
        %v11545 = vlaneseq
        %v11546 = vshrl.u32 %v11545, 7
        %v11547 = vsub.s32 %v11544, %v11546
        %v11548 = vrot.slane %v11534, %v11547
        %v11549 = vcombine.low %v11222, %v11226
        %v11550 = vcombine.high %v11222, %v11226
        %v11552 = vunpack.c.l.s4 1983009808
        %v11553 = vunpack.c.0.s8 %v11552
        %v11554 = vlaneseq
        %v11555 = vshrl.u32 %v11554, 7
        %v11556 = vsub.s32 %v11553, %v11555
        %v11557 = vrot.slane %v11549, %v11556
        %v11559 = vunpack.c.l.s4 1983009808
        %v11560 = vunpack.c.0.s8 %v11559
        %v11561 = vlaneseq
        %v11562 = vshrl.u32 %v11561, 7
        %v11563 = vsub.s32 %v11560, %v11562
        %v11564 = vrot.slane %v11550, %v11563
        %v11565 = vcombine.low %v11224, %v11228
        %v11566 = vcombine.high %v11224, %v11228
        %v11568 = vunpack.c.l.s4 1983009808
        %v11569 = vunpack.c.0.s8 %v11568
        %v11570 = vlaneseq
        %v11571 = vshrl.u32 %v11570, 7
        %v11572 = vsub.s32 %v11569, %v11571
        %v11573 = vrot.slane %v11565, %v11572
        %v11575 = vunpack.c.l.s4 1983009808
        %v11576 = vunpack.c.0.s8 %v11575
        %v11577 = vlaneseq
        %v11578 = vshrl.u32 %v11577, 7
        %v11579 = vsub.s32 %v11576, %v11578
        %v11580 = vrot.slane %v11566, %v11579
        %v11581 = vcombine.low %v11525, %v11541
        %v11582 = vcombine.high %v11525, %v11541
        %v11584 = vunpack.c.l.s4 1934713408
        %v11585 = vunpack.c.0.s8 %v11584
        %v11586 = vlaneseq
        %v11587 = vshrl.u32 %v11586, 7
        %v11588 = vsub.s32 %v11585, %v11587
        %v11589 = vrot.slane %v11581, %v11588
        %v11591 = vunpack.c.l.s4 1934713408
        %v11592 = vunpack.c.0.s8 %v11591
        %v11593 = vlaneseq
        %v11594 = vshrl.u32 %v11593, 7
        %v11595 = vsub.s32 %v11592, %v11594
        %v11596 = vrot.slane %v11582, %v11595
        %v11597 = vcombine.low %v11532, %v11548
        %v11598 = vcombine.high %v11532, %v11548
        %v11600 = vunpack.c.l.s4 1934713408
        %v11601 = vunpack.c.0.s8 %v11600
        %v11602 = vlaneseq
        %v11603 = vshrl.u32 %v11602, 7
        %v11604 = vsub.s32 %v11601, %v11603
        %v11605 = vrot.slane %v11597, %v11604
        %v11607 = vunpack.c.l.s4 1934713408
        %v11608 = vunpack.c.0.s8 %v11607
        %v11609 = vlaneseq
        %v11610 = vshrl.u32 %v11609, 7
        %v11611 = vsub.s32 %v11608, %v11610
        %v11612 = vrot.slane %v11598, %v11611
        %v11613 = vcombine.low %v11557, %v11573
        %v11614 = vcombine.high %v11557, %v11573
        %v11616 = vunpack.c.l.s4 1934713408
        %v11617 = vunpack.c.0.s8 %v11616
        %v11618 = vlaneseq
        %v11619 = vshrl.u32 %v11618, 7
        %v11620 = vsub.s32 %v11617, %v11619
        %v11621 = vrot.slane %v11613, %v11620
        %v11623 = vunpack.c.l.s4 1934713408
        %v11624 = vunpack.c.0.s8 %v11623
        %v11625 = vlaneseq
        %v11626 = vshrl.u32 %v11625, 7
        %v11627 = vsub.s32 %v11624, %v11626
        %v11628 = vrot.slane %v11614, %v11627
        %v11629 = vcombine.low %v11564, %v11580
        %v11630 = vcombine.high %v11564, %v11580
        %v11632 = vunpack.c.l.s4 1934713408
        %v11633 = vunpack.c.0.s8 %v11632
        %v11634 = vlaneseq
        %v11635 = vshrl.u32 %v11634, 7
        %v11636 = vsub.s32 %v11633, %v11635
        %v11637 = vrot.slane %v11629, %v11636
        %v11639 = vunpack.c.l.s4 1934713408
        %v11640 = vunpack.c.0.s8 %v11639
        %v11641 = vlaneseq
        %v11642 = vshrl.u32 %v11641, 7
        %v11643 = vsub.s32 %v11640, %v11642
        %v11644 = vrot.slane %v11630, %v11643
        %v11645 = vcombine.low %v11589, %v11621
        %v11646 = vcombine.high %v11589, %v11621
        %v11647 = vcombine.low %v11596, %v11628
        %v11648 = vcombine.high %v11596, %v11628
        %v11649 = vcombine.low %v11605, %v11637
        %v11650 = vcombine.high %v11605, %v11637
        %v11651 = vcombine.low %v11612, %v11644
        %v11652 = vcombine.high %v11612, %v11644
        %v11653 = vcombine.low %v11230, %v11234
        %v11654 = vcombine.high %v11230, %v11234
        %v11656 = vunpack.c.l.s4 1983009808
        %v11657 = vunpack.c.0.s8 %v11656
        %v11658 = vlaneseq
        %v11659 = vshrl.u32 %v11658, 7
        %v11660 = vsub.s32 %v11657, %v11659
        %v11661 = vrot.slane %v11653, %v11660
        %v11663 = vunpack.c.l.s4 1983009808
        %v11664 = vunpack.c.0.s8 %v11663
        %v11665 = vlaneseq
        %v11666 = vshrl.u32 %v11665, 7
        %v11667 = vsub.s32 %v11664, %v11666
        %v11668 = vrot.slane %v11654, %v11667
        %v11669 = vcombine.low %v11232, %v11236
        %v11670 = vcombine.high %v11232, %v11236
        %v11672 = vunpack.c.l.s4 1983009808
        %v11673 = vunpack.c.0.s8 %v11672
        %v11674 = vlaneseq
        %v11675 = vshrl.u32 %v11674, 7
        %v11676 = vsub.s32 %v11673, %v11675
        %v11677 = vrot.slane %v11669, %v11676
        %v11679 = vunpack.c.l.s4 1983009808
        %v11680 = vunpack.c.0.s8 %v11679
        %v11681 = vlaneseq
        %v11682 = vshrl.u32 %v11681, 7
        %v11683 = vsub.s32 %v11680, %v11682
        %v11684 = vrot.slane %v11670, %v11683
        %v11685 = vcombine.low %v11238, %v11242
        %v11686 = vcombine.high %v11238, %v11242
        %v11688 = vunpack.c.l.s4 1983009808
        %v11689 = vunpack.c.0.s8 %v11688
        %v11690 = vlaneseq
        %v11691 = vshrl.u32 %v11690, 7
        %v11692 = vsub.s32 %v11689, %v11691
        %v11693 = vrot.slane %v11685, %v11692
        %v11695 = vunpack.c.l.s4 1983009808
        %v11696 = vunpack.c.0.s8 %v11695
        %v11697 = vlaneseq
        %v11698 = vshrl.u32 %v11697, 7
        %v11699 = vsub.s32 %v11696, %v11698
        %v11700 = vrot.slane %v11686, %v11699
        %v11701 = vcombine.low %v11240, %v11244
        %v11702 = vcombine.high %v11240, %v11244
        %v11704 = vunpack.c.l.s4 1983009808
        %v11705 = vunpack.c.0.s8 %v11704
        %v11706 = vlaneseq
        %v11707 = vshrl.u32 %v11706, 7
        %v11708 = vsub.s32 %v11705, %v11707
        %v11709 = vrot.slane %v11701, %v11708
        %v11711 = vunpack.c.l.s4 1983009808
        %v11712 = vunpack.c.0.s8 %v11711
        %v11713 = vlaneseq
        %v11714 = vshrl.u32 %v11713, 7
        %v11715 = vsub.s32 %v11712, %v11714
        %v11716 = vrot.slane %v11702, %v11715
        %v11717 = vcombine.low %v11661, %v11677
        %v11718 = vcombine.high %v11661, %v11677
        %v11720 = vunpack.c.l.s4 1934713408
        %v11721 = vunpack.c.0.s8 %v11720
        %v11722 = vlaneseq
        %v11723 = vshrl.u32 %v11722, 7
        %v11724 = vsub.s32 %v11721, %v11723
        %v11725 = vrot.slane %v11717, %v11724
        %v11727 = vunpack.c.l.s4 1934713408
        %v11728 = vunpack.c.0.s8 %v11727
        %v11729 = vlaneseq
        %v11730 = vshrl.u32 %v11729, 7
        %v11731 = vsub.s32 %v11728, %v11730
        %v11732 = vrot.slane %v11718, %v11731
        %v11733 = vcombine.low %v11668, %v11684
        %v11734 = vcombine.high %v11668, %v11684
        %v11736 = vunpack.c.l.s4 1934713408
        %v11737 = vunpack.c.0.s8 %v11736
        %v11738 = vlaneseq
        %v11739 = vshrl.u32 %v11738, 7
        %v11740 = vsub.s32 %v11737, %v11739
        %v11741 = vrot.slane %v11733, %v11740
        %v11743 = vunpack.c.l.s4 1934713408
        %v11744 = vunpack.c.0.s8 %v11743
        %v11745 = vlaneseq
        %v11746 = vshrl.u32 %v11745, 7
        %v11747 = vsub.s32 %v11744, %v11746
        %v11748 = vrot.slane %v11734, %v11747
        %v11749 = vcombine.low %v11693, %v11709
        %v11750 = vcombine.high %v11693, %v11709
        %v11752 = vunpack.c.l.s4 1934713408
        %v11753 = vunpack.c.0.s8 %v11752
        %v11754 = vlaneseq
        %v11755 = vshrl.u32 %v11754, 7
        %v11756 = vsub.s32 %v11753, %v11755
        %v11757 = vrot.slane %v11749, %v11756
        %v11759 = vunpack.c.l.s4 1934713408
        %v11760 = vunpack.c.0.s8 %v11759
        %v11761 = vlaneseq
        %v11762 = vshrl.u32 %v11761, 7
        %v11763 = vsub.s32 %v11760, %v11762
        %v11764 = vrot.slane %v11750, %v11763
        %v11765 = vcombine.low %v11700, %v11716
        %v11766 = vcombine.high %v11700, %v11716
        %v11768 = vunpack.c.l.s4 1934713408
        %v11769 = vunpack.c.0.s8 %v11768
        %v11770 = vlaneseq
        %v11771 = vshrl.u32 %v11770, 7
        %v11772 = vsub.s32 %v11769, %v11771
        %v11773 = vrot.slane %v11765, %v11772
        %v11775 = vunpack.c.l.s4 1934713408
        %v11776 = vunpack.c.0.s8 %v11775
        %v11777 = vlaneseq
        %v11778 = vshrl.u32 %v11777, 7
        %v11779 = vsub.s32 %v11776, %v11778
        %v11780 = vrot.slane %v11766, %v11779
        %v11781 = vcombine.low %v11725, %v11757
        %v11782 = vcombine.high %v11725, %v11757
        %v11783 = vcombine.low %v11732, %v11764
        %v11784 = vcombine.high %v11732, %v11764
        %v11785 = vcombine.low %v11741, %v11773
        %v11786 = vcombine.high %v11741, %v11773
        %v11787 = vcombine.low %v11748, %v11780
        %v11788 = vcombine.high %v11748, %v11780
        %11791 = vrot.lane.b32.xlu0 %v11374, 8
        %v11792 = vpop.permute.xlu0 %11791
        %11793 = vrot.lane.b32.xlu0 %v11510, 8
        %v11794 = vpop.permute.xlu0 %11793
        %11799 = vrot.lane.b32.xlu0 %v11375, 16
        %v11800 = vpop.permute.xlu0 %11799
        %11801 = vrot.lane.b32.xlu0 %v11511, 16
        %v11802 = vpop.permute.xlu0 %11801
        %11807 = vrot.lane.b32.xlu0 %v11376, 24
        %v11808 = vpop.permute.xlu0 %11807
        %11809 = vrot.lane.b32.xlu0 %v11512, 24
        %v11810 = vpop.permute.xlu0 %11809
        %11815 = vrot.lane.b32.xlu0 %v11377, 32
        %v11816 = vpop.permute.xlu0 %11815
        %11817 = vrot.lane.b32.xlu0 %v11513, 32
        %v11818 = vpop.permute.xlu0 %11817
        %11823 = vrot.lane.b32.xlu0 %v11378, 40
        %v11824 = vpop.permute.xlu0 %11823
        %11825 = vrot.lane.b32.xlu0 %v11514, 40
        %v11826 = vpop.permute.xlu0 %11825
        %11831 = vrot.lane.b32.xlu0 %v11379, 48
        %v11832 = vpop.permute.xlu0 %11831
        %11833 = vrot.lane.b32.xlu0 %v11515, 48
        %v11834 = vpop.permute.xlu0 %11833
        %11839 = vrot.lane.b32.xlu0 %v11380, 56
        %v11840 = vpop.permute.xlu0 %11839
        %11841 = vrot.lane.b32.xlu0 %v11516, 56
        %v11842 = vpop.permute.xlu0 %11841
        %11847 = vrot.lane.b32.xlu0 %v11645, 64
        %v11848 = vpop.permute.xlu0 %11847
        %11849 = vrot.lane.b32.xlu0 %v11781, 64
        %v11850 = vpop.permute.xlu0 %11849
        %11855 = vrot.lane.b32.xlu0 %v11646, 72
        %v11856 = vpop.permute.xlu0 %11855
        %11857 = vrot.lane.b32.xlu0 %v11782, 72
        %v11858 = vpop.permute.xlu0 %11857
        %11863 = vrot.lane.b32.xlu0 %v11647, 80
        %v11864 = vpop.permute.xlu0 %11863
        %11865 = vrot.lane.b32.xlu0 %v11783, 80
        %v11866 = vpop.permute.xlu0 %11865
        %11871 = vrot.lane.b32.xlu0 %v11648, 88
        %v11872 = vpop.permute.xlu0 %11871
        %11873 = vrot.lane.b32.xlu0 %v11784, 88
        %v11874 = vpop.permute.xlu0 %11873
        %11879 = vrot.lane.b32.xlu0 %v11649, 96
        %v11880 = vpop.permute.xlu0 %11879
        %11881 = vrot.lane.b32.xlu0 %v11785, 96
        %v11882 = vpop.permute.xlu0 %11881
        %11887 = vrot.lane.b32.xlu0 %v11650, 104
        %v11888 = vpop.permute.xlu0 %11887
        %11889 = vrot.lane.b32.xlu0 %v11786, 104
        %v11890 = vpop.permute.xlu0 %11889
        %11895 = vrot.lane.b32.xlu0 %v11651, 112
        %v11896 = vpop.permute.xlu0 %11895
        %11897 = vrot.lane.b32.xlu0 %v11787, 112
        %v11898 = vpop.permute.xlu0 %11897
        %11903 = vrot.lane.b32.xlu0 %v11652, 120
        %v11904 = vpop.permute.xlu0 %11903
        %11905 = vrot.lane.b32.xlu0 %v11788, 120
        %v11906 = vpop.permute.xlu0 %11905
        %v11909 = vsel %vm7321, %v11373, %v11792
        %v11910 = vsel %vm7321, %v11509, %v11794
        %v11911 = vsel %vm1275, %v11909, %v11800
        %v11912 = vsel %vm1275, %v11910, %v11802
        %vm11913 = vcmask 195584
        %v11914 = vsel %vm11913, %v11911, %v11808
        %v11915 = vsel %vm11913, %v11912, %v11810
        %v11916 = vsel %vm1592, %v11914, %v11816
        %v11917 = vsel %vm1592, %v11915, %v11818
        %vm11918 = vcmask 326656
        %v11919 = vsel %vm11918, %v11916, %v11824
        %v11920 = vsel %vm11918, %v11917, %v11826
        %v11921 = vsel %vm8468, %v11919, %v11832
        %v11922 = vsel %vm8468, %v11920, %v11834
        %vm11923 = vcmask 457728
        %v11924 = vsel %vm11923, %v11921, %v11840
        %v11925 = vsel %vm11923, %v11922, %v11842
        %v11926 = vsel %vm1601, %v11924, %v11848
        %v11927 = vsel %vm1601, %v11925, %v11850
        %vm11928 = vcmask 588800
        %v11929 = vsel %vm11928, %v11926, %v11856
        %v11930 = vsel %vm11928, %v11927, %v11858
        %v11931 = vsel %vm8533, %v11929, %v11864
        %v11932 = vsel %vm8533, %v11930, %v11866
        %vm11933 = vcmask 719872
        %v11934 = vsel %vm11933, %v11931, %v11872
        %v11935 = vsel %vm11933, %v11932, %v11874
        %v11936 = vsel %vm1610, %v11934, %v11880
        %v11937 = vsel %vm1610, %v11935, %v11882
        %vm11938 = vcmask 850944
        %v11939 = vsel %vm11938, %v11936, %v11888
        %v11940 = vsel %vm11938, %v11937, %v11890
        %v11941 = vsel %vm8598, %v11939, %v11896
        %v11942 = vsel %vm8598, %v11940, %v11898
        %vm11943 = vcmask 982016
        %v11944 = vsel %vm11943, %v11941, %v11904
        %v11945 = vsel %vm11943, %v11942, %v11906
        %11946 = vst [vmem:[%s301] sm:$0xff] %v11944
        %11947 = vst [vmem:[%s301 + $0x8] sm:$0xff] %v11945
        %s11948 = sand.u32 %s191, 1
        %s11949 = scalar_lea.sflag [#allocation3], %s11948
        %s11950 = sand.u32 %s191, 1
        %s11951 = smul.addr %s11950, 16
        %s11952 = scalar_lea.vmem [#allocation2], %s11951
        // Predicated region
        $region49: #{tpu_custom_call.1} parent=47 // pred_check
          %p11953 = pneg %p201
        $region50: #{tpu_custom_call.1} parent=47 // pred_check_branch
          %11955 = sbr.rel (%p11953) target = $region52
        $region51: #{tpu_custom_call.1} parent=47 // pred_region
          %s11957 = ssub.s32 256, 256
          %11958 = vsyncadd %s11949, %s11957
          %s11959 = smul.addr %s21, 2
          %s11960 = smul.addr %s11959, 128
          %s11961 = scalar_lea.hbm %s7, %s11960
          %s11962 = sshll.u32 %s11952, 4
          %s11963 = int_to_ptr.vmem [resolvable:$true] %s11962
          %11968 = dma.vmem_to_hbm [thread:$0]  %s11963, 256, %s11961, %s11949, 128, 128, 8
        $region52: #{tpu_custom_call.1} parent=47 // pred_fallthru
          _
      $region48: #{tpu_custom_call.1} parent=5 // pred_fallthru
        _
      %p11969 = scmp.le.s32.totalorder 2, %s16
      // Predicated region
      $region53: #{tpu_custom_call.1} parent=5 // pred_check
        %p11970 = pneg %p11969
      $region54: #{tpu_custom_call.1} parent=5 // pred_check_branch
        %11972 = sbr.rel (%p11970) target = $region56
      $region55: #{tpu_custom_call.1} parent=5 // pred_region
        %s11973 = ssub.s32 %s16, 2
        // Predicated region
        $region57: #{tpu_custom_call.1} parent=55 // pred_check
          %p11974 = pneg %p207
        $region58: #{tpu_custom_call.1} parent=55 // pred_check_branch
          %11976 = sbr.rel (%p11974) target = $region60
        $region59: #{tpu_custom_call.1} parent=55 // pred_region
          %s11977 = sand.u32 %s192, 1
          %s11978 = scalar_lea.sflag [#allocation3], %s11977
          %s11979 = sand.u32 %s192, 1
          %s11980 = smul.addr %s11979, 16
          %s11981 = scalar_lea.vmem [#allocation2], %s11980
          %11982 = dma.done %s11978, 256
        $region60: #{tpu_custom_call.1} parent=55 // pred_fallthru
          _
      $region56: #{tpu_custom_call.1} parent=5 // pred_fallthru
        _
    $region6: #{tpu_custom_call.1} parent=1 // loop_footer
      %s20 = sadd.s32 1, %s16
    $region7: #{tpu_custom_call.1} parent=1 // loop_footer_branch
      %15 = sbr.rel target = $region3
    $region8: #{tpu_custom_call.1} parent=1 // loop_exit
      _
    %11983 = vsyncpa [#allocation3], 1
    %s11984 = scalar_lea.sflag [#allocation3], 1
    %11985 = vsyncpa %s11984, 1

</llo_original>
